<compile_context>
chip_gen: v7x
topology: tpu7x:2x2x1
jax: 0.10.0
libtpu: 0.0.40
codegen_flags: <defaults>
</compile_context>

<pallas_src>
import jax
import jax.numpy as jnp
from jax.experimental import pallas as pl
from jax.experimental.pallas import tpu as pltpu

NEG_SLOPE = 0.01
BN_EPS = 1e-5
DIMS = [6, 256, 1024, 1024, 256, 1]
OUT_PAD = 128          # lane-dense output slab width (unmasked vst)
TB_MAX = 512           # max rows per grid step (~85% of roofline territory)
MIN_SPLIT_B = 16       # split into >=2 grid steps (v7x megacore) above this B


def _leaky_relu(y):
    # max(y, 0.01*y): 2 VPU ops (mul+max) instead of 3 (cmp+mul+select).
    return jnp.maximum(y, NEG_SLOPE * y)


def mlp_kernel(x_ref,
               w1, b1, w2, b2, w3, b3, w4, b4, w5, b5,
               out_ref):
    """Fused 5-layer MLP for one (TB, 6) batch tile.

    Weights/biases are VMEM-resident (constant-index blocks, DMA'd once).
    Activations are carried in bf16 between layers; every matmul accumulates
    in f32; LeakyReLU is computed in f32 then cast back to bf16.
    """

    def layer(h_bf16, w_ref, b_ref):
        y = jnp.dot(h_bf16, w_ref[...],
                    preferred_element_type=jnp.float32) + b_ref[...]
        return _leaky_relu(y).astype(jnp.bfloat16)

    h = x_ref[...].astype(jnp.bfloat16)          # cast input once at the top
    h = layer(h, w1, b1)
    h = layer(h, w2, b2)
    h = layer(h, w3, b3)
    h = layer(h, w4, b4)
    out_ref[...] = (jnp.dot(h, w5[...], preferred_element_type=jnp.float32)
                    + b5[...]).astype(out_ref.dtype)


# ----------------------------------------------------------------------------
# Parameter construction / one-time (model-load) preparation
# ----------------------------------------------------------------------------

def make_params(key):
    """Deterministic synthetic parameters matching the PyTorch module shapes."""
    params = {}
    for i in range(5):
        fan_in, fan_out = DIMS[i], DIMS[i + 1]
        key, kw, kb = jax.random.split(key, 3)
        bound = 1.0 / jnp.sqrt(fan_in)
        # stored (in, out) so the kernel computes h @ W
        params[f"w{i+1}"] = jax.random.uniform(
            kw, (fan_in, fan_out), jnp.float32, -bound, bound)
        params[f"b{i+1}"] = jax.random.uniform(
            kb, (1, fan_out), jnp.float32, -bound, bound)
    # BatchNorm parameters (eval-mode running stats) for layers 1..4
    for i in range(4):
        c = DIMS[i + 1]
        key, kg, kbeta, km, kv = jax.random.split(key, 5)
        params[f"gamma{i+1}"] = 1.0 + 0.1 * jax.random.normal(kg, (1, c), jnp.float32)
        params[f"beta{i+1}"] = 0.1 * jax.random.normal(kbeta, (1, c), jnp.float32)
        params[f"mean{i+1}"] = 0.1 * jax.random.normal(km, (1, c), jnp.float32)
        params[f"var{i+1}"] = jax.random.uniform(kv, (1, c), jnp.float32, 0.5, 1.5)
    return params


def fold_params(params):
    """Fold eval-mode BN into Linear W/b; cast weights to bf16 for the MXU."""
    folded = {}
    for i in range(1, 5):
        inv_std = 1.0 / jnp.sqrt(params[f"var{i}"] + BN_EPS)
        s = params[f"gamma{i}"] * inv_std                     # (1, C)
        t = params[f"beta{i}"] - params[f"mean{i}"] * s       # (1, C)
        folded[f"w{i}"] = (params[f"w{i}"] * s).astype(jnp.bfloat16)
        folded[f"b{i}"] = params[f"b{i}"] * s + t             # f32
    folded["w5"] = params["w5"].astype(jnp.bfloat16)
    folded["b5"] = params["b5"]
    return folded


def prepare_kernel_args(folded):
    """One-time prep: pad the 1-wide head to a lane-dense 128-wide slab and
    return the flat tuple of kernel weight/bias arguments (hoisted out of the
    per-call forward path)."""
    w5p = jnp.zeros((DIMS[4], OUT_PAD), jnp.bfloat16).at[:, :1].set(folded["w5"])
    b5p = jnp.zeros((1, OUT_PAD), jnp.float32).at[:, :1].set(folded["b5"])
    args = (folded["w1"], folded["b1"], folded["w2"], folded["b2"],
            folded["w3"], folded["b3"], folded["w4"], folded["b4"], w5p, b5p)
    return tuple(jax.block_until_ready(a) for a in args)


# ----------------------------------------------------------------------------
# Forward
# ----------------------------------------------------------------------------

def _choose_tiling(B):
    """Pick (TB, n_tiles) so that padding waste is <= 7 rows per tile and the
    grid has >=2 steps for mid/large batches (v7x megacore sharding)."""
    n_tiles = max(1, (B + TB_MAX - 1) // TB_MAX)
    if n_tiles == 1 and B >= MIN_SPLIT_B:
        n_tiles = 2
    rows = (B + n_tiles - 1) // n_tiles
    TB = ((rows + 7) // 8) * 8           # sublane-aligned
    return TB, n_tiles


def regression_forward(x, kernel_args):
    """Run the fused batch-tiled kernel on pre-folded parameters."""
    B, F_IN = x.shape
    TB, n_tiles = _choose_tiling(B)
    B_pad = TB * n_tiles
    if B_pad != B:
        x = jnp.pad(x, ((0, B_pad - B), (0, 0)))

    args = (x,) + tuple(kernel_args)

    flops = 2 * B_pad * (DIMS[0] * DIMS[1] + DIMS[1] * DIMS[2]
                         + DIMS[2] * DIMS[3] + DIMS[3] * DIMS[4]
                         + DIMS[4] * OUT_PAD)
    bytes_accessed = (sum(int(a.size) * a.dtype.itemsize for a in args)
                      + B_pad * OUT_PAD * 4)

    def build_and_run(single_buffer_weights):
        def pinned(shape):
            # Constant-index blocks are DMA'd once; single-buffer them to save
            # ~3.2 MB VMEM (matters most under v7x's 64 MiB VMEM).
            if single_buffer_weights:
                return pl.BlockSpec(shape, lambda i: (0, 0),
                                    pipeline_mode=pl.Buffered(1))
            return pl.BlockSpec(shape, lambda i: (0, 0))

        in_specs = [pl.BlockSpec((TB, F_IN), lambda i: (i, 0))]
        in_specs += [pinned(a.shape) for a in args[1:]]
        out_specs = pl.BlockSpec((TB, OUT_PAD), lambda i: (i, 0))

        return pl.pallas_call(
            mlp_kernel,
            out_shape=jax.ShapeDtypeStruct((B_pad, OUT_PAD), jnp.float32),
            grid=(n_tiles,),
            in_specs=in_specs,
            out_specs=out_specs,
            compiler_params=pltpu.CompilerParams(
                dimension_semantics=("parallel",),
                vmem_limit_bytes=32 << 20),
            cost_estimate=pl.CostEstimate(flops=flops, transcendentals=0,
                                          bytes_accessed=bytes_accessed),
        )(*args)

    try:
        out = build_and_run(True)
    except Exception:
        # pl.Buffered(1) single-buffering not supported on this jax build;
        # fall back to default (double) buffering of the pinned weights.
        out = build_and_run(False)

    return out[:B, :1]


# ----------------------------------------------------------------------------
# References
# ----------------------------------------------------------------------------

def regression_ref_mirror(x, folded):
    """Pure-JAX reference mirroring the kernel numerics (bf16 weights + acts)."""
    h = x.astype(jnp.bfloat16)
    for i in range(1, 5):
        y = jnp.dot(h, folded[f"w{i}"],
                    preferred_element_type=jnp.float32) + folded[f"b{i}"]
        h = _leaky_relu(y).astype(jnp.bfloat16)
    return jnp.dot(h, folded["w5"],
                   preferred_element_type=jnp.float32) + folded["b5"]


def regression_ref_f32(x, params):
    """Full-precision reference of the PyTorch eval-mode forward."""
    h = x
    for i in range(1, 5):
        h = h @ params[f"w{i}"] + params[f"b{i}"]
        inv_std = 1.0 / jnp.sqrt(params[f"var{i}"] + BN_EPS)
        h = (h - params[f"mean{i}"]) * inv_std * params[f"gamma{i}"] + params[f"beta{i}"]
        h = _leaky_relu(h)
    return h @ params["w5"] + params["b5"]


if __name__ == "__main__":
    key = jax.random.PRNGKey(0)
    key, kx, kp = jax.random.split(key, 3)

    B = 8
    x = jax.random.normal(kx, (B, DIMS[0]), jnp.float32)
    params = make_params(kp)

    # One-time (model-load) preparation, hoisted out of the per-call path.
    folded = fold_params(params)
    kernel_args = prepare_kernel_args(folded)

    out = regression_forward(x, kernel_args)
    out = jax.block_until_ready(out)
    assert out.shape == (B, 1), out.shape

    # Tight check vs. a reference that mirrors the kernel's bf16 numerics.
    mirror = regression_ref_mirror(x, folded)
    assert jnp.allclose(out, mirror, atol=1e-2, rtol=1e-2), (
        float(jnp.max(jnp.abs(out - mirror))))

    # Loose, scale-aware check vs. the full f32 PyTorch-equivalent reference
    # (bf16 weights/activations are an intentional perf choice).
    ref = regression_ref_f32(x, params)
    scale = jnp.maximum(jnp.max(jnp.abs(ref)), 1.0)
    assert float(jnp.max(jnp.abs(out - ref))) <= 0.05 * float(scale), (
        float(jnp.max(jnp.abs(out - ref))), float(scale))

    print("KERNEL_OK")
</pallas_src>

<mosaic_0001>
module attributes {stable_mosaic.version = 11 : i64} {
  func.func @mlp_kernel(%arg0: i32, %arg1: memref<8x6xf32, #tpu.memory_space<vmem>>, %arg2: memref<6x256xbf16, #tpu.memory_space<vmem>>, %arg3: memref<1x256xf32, #tpu.memory_space<vmem>>, %arg4: memref<256x1024xbf16, #tpu.memory_space<vmem>>, %arg5: memref<1x1024xf32, #tpu.memory_space<vmem>>, %arg6: memref<1024x1024xbf16, #tpu.memory_space<vmem>>, %arg7: memref<1x1024xf32, #tpu.memory_space<vmem>>, %arg8: memref<1024x256xbf16, #tpu.memory_space<vmem>>, %arg9: memref<1x256xf32, #tpu.memory_space<vmem>>, %arg10: memref<256x128xbf16, #tpu.memory_space<vmem>>, %arg11: memref<1x128xf32, #tpu.memory_space<vmem>>, %arg12: memref<8x128xf32, #tpu.memory_space<vmem>>) attributes {dimension_semantics = [#tpu.dimension_semantics<parallel>], iteration_bounds = array<i64: 1>, scalar_prefetch = 0 : i64, scratch_operands = 0 : i64, tpu.core_type = #tpu.core_type<tc>, window_params = [{transform_indices = @transform_0, window_bounds = array<i64: 8, 6>}, {pipeline_mode = #tpu.pipeline_mode<synchronous>, transform_indices = @transform_1, window_bounds = array<i64: 6, 256>}, {pipeline_mode = #tpu.pipeline_mode<synchronous>, transform_indices = @transform_2, window_bounds = array<i64: 1, 256>}, {pipeline_mode = #tpu.pipeline_mode<synchronous>, transform_indices = @transform_3, window_bounds = array<i64: 256, 1024>}, {pipeline_mode = #tpu.pipeline_mode<synchronous>, transform_indices = @transform_4, window_bounds = array<i64: 1, 1024>}, {pipeline_mode = #tpu.pipeline_mode<synchronous>, transform_indices = @transform_5, window_bounds = array<i64: 1024, 1024>}, {pipeline_mode = #tpu.pipeline_mode<synchronous>, transform_indices = @transform_6, window_bounds = array<i64: 1, 1024>}, {pipeline_mode = #tpu.pipeline_mode<synchronous>, transform_indices = @transform_7, window_bounds = array<i64: 1024, 256>}, {pipeline_mode = #tpu.pipeline_mode<synchronous>, transform_indices = @transform_8, window_bounds = array<i64: 1, 256>}, {pipeline_mode = #tpu.pipeline_mode<synchronous>, transform_indices = @transform_9, window_bounds = array<i64: 256, 128>}, {pipeline_mode = #tpu.pipeline_mode<synchronous>, transform_indices = @transform_10, window_bounds = array<i64: 1, 128>}, {transform_indices = @transform_11, window_bounds = array<i64: 8, 128>}]} {
    %c0 = arith.constant 0 : index
    %c0_0 = arith.constant 0 : index
    %0 = vector.load %arg1[%c0, %c0_0] : memref<8x6xf32, #tpu.memory_space<vmem>>, vector<8x6xf32>
    %1 = arith.truncf %0 : vector<8x6xf32> to vector<8x6xbf16>
    %c0_1 = arith.constant 0 : index
    %c0_2 = arith.constant 0 : index
    %2 = vector.load %arg2[%c0_1, %c0_2] : memref<6x256xbf16, #tpu.memory_space<vmem>>, vector<6x256xbf16>
    %cst = arith.constant dense<0.000000e+00> : vector<8x256xf32>
    %3 = tpu.matmul %1, %2, %cst {dimension_numbers = #tpu.dot_dimension_numbers<[1], [0], [0], [1], [0, 0, 1, 1], [], []>} : vector<8x6xbf16>, vector<6x256xbf16>, vector<8x256xf32> -> vector<8x256xf32>
    %c0_3 = arith.constant 0 : index
    %c0_4 = arith.constant 0 : index
    %4 = vector.load %arg3[%c0_3, %c0_4] : memref<1x256xf32, #tpu.memory_space<vmem>>, vector<1x256xf32>
    %5 = vector.broadcast %4 : vector<1x256xf32> to vector<8x256xf32>
    %6 = arith.addf %3, %5 : vector<8x256xf32>
    %cst_5 = arith.constant 0.00999999977 : f32
    %7 = vector.broadcast %cst_5 : f32 to vector<8x256xf32>
    %8 = arith.mulf %7, %6 : vector<8x256xf32>
    %9 = arith.maximumf %6, %8 : vector<8x256xf32>
    %10 = arith.truncf %9 : vector<8x256xf32> to vector<8x256xbf16>
    %c0_6 = arith.constant 0 : index
    %c0_7 = arith.constant 0 : index
    %11 = vector.load %arg4[%c0_6, %c0_7] : memref<256x1024xbf16, #tpu.memory_space<vmem>>, vector<256x1024xbf16>
    %cst_8 = arith.constant dense<0.000000e+00> : vector<8x1024xf32>
    %12 = tpu.matmul %10, %11, %cst_8 {dimension_numbers = #tpu.dot_dimension_numbers<[1], [0], [0], [1], [0, 0, 1, 1], [], []>} : vector<8x256xbf16>, vector<256x1024xbf16>, vector<8x1024xf32> -> vector<8x1024xf32>
    %c0_9 = arith.constant 0 : index
    %c0_10 = arith.constant 0 : index
    %13 = vector.load %arg5[%c0_9, %c0_10] : memref<1x1024xf32, #tpu.memory_space<vmem>>, vector<1x1024xf32>
    %14 = vector.broadcast %13 : vector<1x1024xf32> to vector<8x1024xf32>
    %15 = arith.addf %12, %14 : vector<8x1024xf32>
    %cst_11 = arith.constant 0.00999999977 : f32
    %16 = vector.broadcast %cst_11 : f32 to vector<8x1024xf32>
    %17 = arith.mulf %16, %15 : vector<8x1024xf32>
    %18 = arith.maximumf %15, %17 : vector<8x1024xf32>
    %19 = arith.truncf %18 : vector<8x1024xf32> to vector<8x1024xbf16>
    %c0_12 = arith.constant 0 : index
    %c0_13 = arith.constant 0 : index
    %20 = vector.load %arg6[%c0_12, %c0_13] : memref<1024x1024xbf16, #tpu.memory_space<vmem>>, vector<1024x1024xbf16>
    %cst_14 = arith.constant dense<0.000000e+00> : vector<8x1024xf32>
    %21 = tpu.matmul %19, %20, %cst_14 {dimension_numbers = #tpu.dot_dimension_numbers<[1], [0], [0], [1], [0, 0, 1, 1], [], []>} : vector<8x1024xbf16>, vector<1024x1024xbf16>, vector<8x1024xf32> -> vector<8x1024xf32>
    %c0_15 = arith.constant 0 : index
    %c0_16 = arith.constant 0 : index
    %22 = vector.load %arg7[%c0_15, %c0_16] : memref<1x1024xf32, #tpu.memory_space<vmem>>, vector<1x1024xf32>
    %23 = vector.broadcast %22 : vector<1x1024xf32> to vector<8x1024xf32>
    %24 = arith.addf %21, %23 : vector<8x1024xf32>
    %cst_17 = arith.constant 0.00999999977 : f32
    %25 = vector.broadcast %cst_17 : f32 to vector<8x1024xf32>
    %26 = arith.mulf %25, %24 : vector<8x1024xf32>
    %27 = arith.maximumf %24, %26 : vector<8x1024xf32>
    %28 = arith.truncf %27 : vector<8x1024xf32> to vector<8x1024xbf16>
    %c0_18 = arith.constant 0 : index
    %c0_19 = arith.constant 0 : index
    %29 = vector.load %arg8[%c0_18, %c0_19] : memref<1024x256xbf16, #tpu.memory_space<vmem>>, vector<1024x256xbf16>
    %cst_20 = arith.constant dense<0.000000e+00> : vector<8x256xf32>
    %30 = tpu.matmul %28, %29, %cst_20 {dimension_numbers = #tpu.dot_dimension_numbers<[1], [0], [0], [1], [0, 0, 1, 1], [], []>} : vector<8x1024xbf16>, vector<1024x256xbf16>, vector<8x256xf32> -> vector<8x256xf32>
    %c0_21 = arith.constant 0 : index
    %c0_22 = arith.constant 0 : index
    %31 = vector.load %arg9[%c0_21, %c0_22] : memref<1x256xf32, #tpu.memory_space<vmem>>, vector<1x256xf32>
    %32 = vector.broadcast %31 : vector<1x256xf32> to vector<8x256xf32>
    %33 = arith.addf %30, %32 : vector<8x256xf32>
    %cst_23 = arith.constant 0.00999999977 : f32
    %34 = vector.broadcast %cst_23 : f32 to vector<8x256xf32>
    %35 = arith.mulf %34, %33 : vector<8x256xf32>
    %36 = arith.maximumf %33, %35 : vector<8x256xf32>
    %37 = arith.truncf %36 : vector<8x256xf32> to vector<8x256xbf16>
    %c0_24 = arith.constant 0 : index
    %c0_25 = arith.constant 0 : index
    %38 = vector.load %arg10[%c0_24, %c0_25] : memref<256x128xbf16, #tpu.memory_space<vmem>>, vector<256x128xbf16>
    %cst_26 = arith.constant dense<0.000000e+00> : vector<8x128xf32>
    %39 = tpu.matmul %37, %38, %cst_26 {dimension_numbers = #tpu.dot_dimension_numbers<[1], [0], [0], [1], [0, 0, 1, 1], [], []>} : vector<8x256xbf16>, vector<256x128xbf16>, vector<8x128xf32> -> vector<8x128xf32>
    %c0_27 = arith.constant 0 : index
    %c0_28 = arith.constant 0 : index
    %40 = vector.load %arg11[%c0_27, %c0_28] : memref<1x128xf32, #tpu.memory_space<vmem>>, vector<1x128xf32>
    %41 = vector.broadcast %40 : vector<1x128xf32> to vector<8x128xf32>
    %42 = arith.addf %39, %41 : vector<8x128xf32>
    %c0_29 = arith.constant 0 : index
    %c0_30 = arith.constant 0 : index
    %43 = vector.load %arg12[%c0_29, %c0_30] : memref<8x128xf32, #tpu.memory_space<vmem>>, vector<8x128xf32>
    tpu.vector_store %arg12[%c0_29, %c0_30], %42 {strides = array<i32>} : memref<8x128xf32, #tpu.memory_space<vmem>>, vector<8x128xf32>,
    return
  }
  func.func @transform_0(%arg0: i32) -> (i32, i32) {
    %c0_i32 = arith.constant 0 : i32
    %c0_i32_0 = arith.constant 0 : i32
    return %arg0, %c0_i32 : i32, i32
  }
  func.func @transform_1(%arg0: i32) -> (i32, i32) {
    %c0_i32 = arith.constant 0 : i32
    %c0_i32_0 = arith.constant 0 : i32
    %c0_i32_1 = arith.constant 0 : i32
    return %c0_i32, %c0_i32_0 : i32, i32
  }
  func.func @transform_2(%arg0: i32) -> (i32, i32) {
    %c0_i32 = arith.constant 0 : i32
    %c0_i32_0 = arith.constant 0 : i32
    %c0_i32_1 = arith.constant 0 : i32
    return %c0_i32, %c0_i32_0 : i32, i32
  }
  func.func @transform_3(%arg0: i32) -> (i32, i32) {
    %c0_i32 = arith.constant 0 : i32
    %c0_i32_0 = arith.constant 0 : i32
    %c0_i32_1 = arith.constant 0 : i32
    return %c0_i32, %c0_i32_0 : i32, i32
  }
  func.func @transform_4(%arg0: i32) -> (i32, i32) {
    %c0_i32 = arith.constant 0 : i32
    %c0_i32_0 = arith.constant 0 : i32
    %c0_i32_1 = arith.constant 0 : i32
    return %c0_i32, %c0_i32_0 : i32, i32
  }
  func.func @transform_5(%arg0: i32) -> (i32, i32) {
    %c0_i32 = arith.constant 0 : i32
    %c0_i32_0 = arith.constant 0 : i32
    %c0_i32_1 = arith.constant 0 : i32
    return %c0_i32, %c0_i32_0 : i32, i32
  }
  func.func @transform_6(%arg0: i32) -> (i32, i32) {
    %c0_i32 = arith.constant 0 : i32
    %c0_i32_0 = arith.constant 0 : i32
    %c0_i32_1 = arith.constant 0 : i32
    return %c0_i32, %c0_i32_0 : i32, i32
  }
  func.func @transform_7(%arg0: i32) -> (i32, i32) {
    %c0_i32 = arith.constant 0 : i32
    %c0_i32_0 = arith.constant 0 : i32
    %c0_i32_1 = arith.constant 0 : i32
    return %c0_i32, %c0_i32_0 : i32, i32
  }
  func.func @transform_8(%arg0: i32) -> (i32, i32) {
    %c0_i32 = arith.constant 0 : i32
    %c0_i32_0 = arith.constant 0 : i32
    %c0_i32_1 = arith.constant 0 : i32
    return %c0_i32, %c0_i32_0 : i32, i32
  }
  func.func @transform_9(%arg0: i32) -> (i32, i32) {
    %c0_i32 = arith.constant 0 : i32
    %c0_i32_0 = arith.constant 0 : i32
    %c0_i32_1 = arith.constant 0 : i32
    return %c0_i32, %c0_i32_0 : i32, i32
  }
  func.func @transform_10(%arg0: i32) -> (i32, i32) {
    %c0_i32 = arith.constant 0 : i32
    %c0_i32_0 = arith.constant 0 : i32
    %c0_i32_1 = arith.constant 0 : i32
    return %c0_i32, %c0_i32_0 : i32, i32
  }
  func.func @transform_11(%arg0: i32) -> (i32, i32) {
    %c0_i32 = arith.constant 0 : i32
    %c0_i32_0 = arith.constant 0 : i32
    return %arg0, %c0_i32 : i32, i32
  }
}

module attributes {stable_mosaic.version = 11 : i64} {
  func.func @mlp_kernel(%arg0: i32, %arg1: memref<8x6xf32, #tpu.memory_space<vmem>>, %arg2: memref<6x256xbf16, #tpu.memory_space<vmem>>, %arg3: memref<1x256xf32, #tpu.memory_space<vmem>>, %arg4: memref<256x1024xbf16, #tpu.memory_space<vmem>>, %arg5: memref<1x1024xf32, #tpu.memory_space<vmem>>, %arg6: memref<1024x1024xbf16, #tpu.memory_space<vmem>>, %arg7: memref<1x1024xf32, #tpu.memory_space<vmem>>, %arg8: memref<1024x256xbf16, #tpu.memory_space<vmem>>, %arg9: memref<1x256xf32, #tpu.memory_space<vmem>>, %arg10: memref<256x128xbf16, #tpu.memory_space<vmem>>, %arg11: memref<1x128xf32, #tpu.memory_space<vmem>>, %arg12: memref<8x128xf32, #tpu.memory_space<vmem>>) attributes {dimension_semantics = [#tpu.dimension_semantics<parallel>], iteration_bounds = array<i64: 1>, scalar_prefetch = 0 : i64, scratch_operands = 0 : i64, tpu.core_type = #tpu.core_type<tc>, window_params = [{transform_indices = @transform_0, window_bounds = array<i64: 8, 6>}, {pipeline_mode = #tpu.pipeline_mode<synchronous>, transform_indices = @transform_1, window_bounds = array<i64: 6, 256>}, {pipeline_mode = #tpu.pipeline_mode<synchronous>, transform_indices = @transform_2, window_bounds = array<i64: 1, 256>}, {pipeline_mode = #tpu.pipeline_mode<synchronous>, transform_indices = @transform_3, window_bounds = array<i64: 256, 1024>}, {pipeline_mode = #tpu.pipeline_mode<synchronous>, transform_indices = @transform_4, window_bounds = array<i64: 1, 1024>}, {pipeline_mode = #tpu.pipeline_mode<synchronous>, transform_indices = @transform_5, window_bounds = array<i64: 1024, 1024>}, {pipeline_mode = #tpu.pipeline_mode<synchronous>, transform_indices = @transform_6, window_bounds = array<i64: 1, 1024>}, {pipeline_mode = #tpu.pipeline_mode<synchronous>, transform_indices = @transform_7, window_bounds = array<i64: 1024, 256>}, {pipeline_mode = #tpu.pipeline_mode<synchronous>, transform_indices = @transform_8, window_bounds = array<i64: 1, 256>}, {pipeline_mode = #tpu.pipeline_mode<synchronous>, transform_indices = @transform_9, window_bounds = array<i64: 256, 128>}, {pipeline_mode = #tpu.pipeline_mode<synchronous>, transform_indices = @transform_10, window_bounds = array<i64: 1, 128>}, {transform_indices = @transform_11, window_bounds = array<i64: 8, 128>}]} {
    %c0 = arith.constant 0 : index
    %c0_0 = arith.constant 0 : index
    %0 = vector.load %arg1[%c0, %c0_0] : memref<8x6xf32, #tpu.memory_space<vmem>>, vector<8x6xf32>
    %1 = arith.truncf %0 : vector<8x6xf32> to vector<8x6xbf16>
    %c0_1 = arith.constant 0 : index
    %c0_2 = arith.constant 0 : index
    %2 = vector.load %arg2[%c0_1, %c0_2] : memref<6x256xbf16, #tpu.memory_space<vmem>>, vector<6x256xbf16>
    %cst = arith.constant dense<0.000000e+00> : vector<8x256xf32>
    %3 = tpu.matmul %1, %2, %cst {dimension_numbers = #tpu.dot_dimension_numbers<[1], [0], [0], [1], [0, 0, 1, 1], [], []>} : vector<8x6xbf16>, vector<6x256xbf16>, vector<8x256xf32> -> vector<8x256xf32>
    %c0_3 = arith.constant 0 : index
    %c0_4 = arith.constant 0 : index
    %4 = vector.load %arg3[%c0_3, %c0_4] : memref<1x256xf32, #tpu.memory_space<vmem>>, vector<1x256xf32>
    %5 = vector.broadcast %4 : vector<1x256xf32> to vector<8x256xf32>
    %6 = arith.addf %3, %5 : vector<8x256xf32>
    %cst_5 = arith.constant 0.00999999977 : f32
    %7 = vector.broadcast %cst_5 : f32 to vector<8x256xf32>
    %8 = arith.mulf %7, %6 : vector<8x256xf32>
    %9 = arith.maximumf %6, %8 : vector<8x256xf32>
    %10 = arith.truncf %9 : vector<8x256xf32> to vector<8x256xbf16>
    %c0_6 = arith.constant 0 : index
    %c0_7 = arith.constant 0 : index
    %11 = vector.load %arg4[%c0_6, %c0_7] : memref<256x1024xbf16, #tpu.memory_space<vmem>>, vector<256x1024xbf16>
    %cst_8 = arith.constant dense<0.000000e+00> : vector<8x1024xf32>
    %12 = tpu.matmul %10, %11, %cst_8 {dimension_numbers = #tpu.dot_dimension_numbers<[1], [0], [0], [1], [0, 0, 1, 1], [], []>} : vector<8x256xbf16>, vector<256x1024xbf16>, vector<8x1024xf32> -> vector<8x1024xf32>
    %c0_9 = arith.constant 0 : index
    %c0_10 = arith.constant 0 : index
    %13 = vector.load %arg5[%c0_9, %c0_10] : memref<1x1024xf32, #tpu.memory_space<vmem>>, vector<1x1024xf32>
    %14 = vector.broadcast %13 : vector<1x1024xf32> to vector<8x1024xf32>
    %15 = arith.addf %12, %14 : vector<8x1024xf32>
    %cst_11 = arith.constant 0.00999999977 : f32
    %16 = vector.broadcast %cst_11 : f32 to vector<8x1024xf32>
    %17 = arith.mulf %16, %15 : vector<8x1024xf32>
    %18 = arith.maximumf %15, %17 : vector<8x1024xf32>
    %19 = arith.truncf %18 : vector<8x1024xf32> to vector<8x1024xbf16>
    %c0_12 = arith.constant 0 : index
    %c0_13 = arith.constant 0 : index
    %20 = vector.load %arg6[%c0_12, %c0_13] : memref<1024x1024xbf16, #tpu.memory_space<vmem>>, vector<1024x1024xbf16>
    %cst_14 = arith.constant dense<0.000000e+00> : vector<8x1024xf32>
    %21 = tpu.matmul %19, %20, %cst_14 {dimension_numbers = #tpu.dot_dimension_numbers<[1], [0], [0], [1], [0, 0, 1, 1], [], []>} : vector<8x1024xbf16>, vector<1024x1024xbf16>, vector<8x1024xf32> -> vector<8x1024xf32>
    %c0_15 = arith.constant 0 : index
    %c0_16 = arith.constant 0 : index
    %22 = vector.load %arg7[%c0_15, %c0_16] : memref<1x1024xf32, #tpu.memory_space<vmem>>, vector<1x1024xf32>
    %23 = vector.broadcast %22 : vector<1x1024xf32> to vector<8x1024xf32>
    %24 = arith.addf %21, %23 : vector<8x1024xf32>
    %cst_17 = arith.constant 0.00999999977 : f32
    %25 = vector.broadcast %cst_17 : f32 to vector<8x1024xf32>
    %26 = arith.mulf %25, %24 : vector<8x1024xf32>
    %27 = arith.maximumf %24, %26 : vector<8x1024xf32>
    %28 = arith.truncf %27 : vector<8x1024xf32> to vector<8x1024xbf16>
    %c0_18 = arith.constant 0 : index
    %c0_19 = arith.constant 0 : index
    %29 = vector.load %arg8[%c0_18, %c0_19] : memref<1024x256xbf16, #tpu.memory_space<vmem>>, vector<1024x256xbf16>
    %cst_20 = arith.constant dense<0.000000e+00> : vector<8x256xf32>
    %30 = tpu.matmul %28, %29, %cst_20 {dimension_numbers = #tpu.dot_dimension_numbers<[1], [0], [0], [1], [0, 0, 1, 1], [], []>} : vector<8x1024xbf16>, vector<1024x256xbf16>, vector<8x256xf32> -> vector<8x256xf32>
    %c0_21 = arith.constant 0 : index
    %c0_22 = arith.constant 0 : index
    %31 = vector.load %arg9[%c0_21, %c0_22] : memref<1x256xf32, #tpu.memory_space<vmem>>, vector<1x256xf32>
    %32 = vector.broadcast %31 : vector<1x256xf32> to vector<8x256xf32>
    %33 = arith.addf %30, %32 : vector<8x256xf32>
    %cst_23 = arith.constant 0.00999999977 : f32
    %34 = vector.broadcast %cst_23 : f32 to vector<8x256xf32>
    %35 = arith.mulf %34, %33 : vector<8x256xf32>
    %36 = arith.maximumf %33, %35 : vector<8x256xf32>
    %37 = arith.truncf %36 : vector<8x256xf32> to vector<8x256xbf16>
    %c0_24 = arith.constant 0 : index
    %c0_25 = arith.constant 0 : index
    %38 = vector.load %arg10[%c0_24, %c0_25] : memref<256x128xbf16, #tpu.memory_space<vmem>>, vector<256x128xbf16>
    %cst_26 = arith.constant dense<0.000000e+00> : vector<8x128xf32>
    %39 = tpu.matmul %37, %38, %cst_26 {dimension_numbers = #tpu.dot_dimension_numbers<[1], [0], [0], [1], [0, 0, 1, 1], [], []>} : vector<8x256xbf16>, vector<256x128xbf16>, vector<8x128xf32> -> vector<8x128xf32>
    %c0_27 = arith.constant 0 : index
    %c0_28 = arith.constant 0 : index
    %40 = vector.load %arg11[%c0_27, %c0_28] : memref<1x128xf32, #tpu.memory_space<vmem>>, vector<1x128xf32>
    %41 = vector.broadcast %40 : vector<1x128xf32> to vector<8x128xf32>
    %42 = arith.addf %39, %41 : vector<8x128xf32>
    %c0_29 = arith.constant 0 : index
    %c0_30 = arith.constant 0 : index
    %43 = vector.load %arg12[%c0_29, %c0_30] : memref<8x128xf32, #tpu.memory_space<vmem>>, vector<8x128xf32>
    tpu.vector_store %arg12[%c0_29, %c0_30], %42 {strides = array<i32>} : memref<8x128xf32, #tpu.memory_space<vmem>>, vector<8x128xf32>,
    return
  }
  func.func @transform_0(%arg0: i32) -> (i32, i32) {
    %c0_i32 = arith.constant 0 : i32
    %c0_i32_0 = arith.constant 0 : i32
    return %arg0, %c0_i32 : i32, i32
  }
  func.func @transform_1(%arg0: i32) -> (i32, i32) {
    %c0_i32 = arith.constant 0 : i32
    %c0_i32_0 = arith.constant 0 : i32
    %c0_i32_1 = arith.constant 0 : i32
    return %c0_i32, %c0_i32_0 : i32, i32
  }
  func.func @transform_2(%arg0: i32) -> (i32, i32) {
    %c0_i32 = arith.constant 0 : i32
    %c0_i32_0 = arith.constant 0 : i32
    %c0_i32_1 = arith.constant 0 : i32
    return %c0_i32, %c0_i32_0 : i32, i32
  }
  func.func @transform_3(%arg0: i32) -> (i32, i32) {
    %c0_i32 = arith.constant 0 : i32
    %c0_i32_0 = arith.constant 0 : i32
    %c0_i32_1 = arith.constant 0 : i32
    return %c0_i32, %c0_i32_0 : i32, i32
  }
  func.func @transform_4(%arg0: i32) -> (i32, i32) {
    %c0_i32 = arith.constant 0 : i32
    %c0_i32_0 = arith.constant 0 : i32
    %c0_i32_1 = arith.constant 0 : i32
    return %c0_i32, %c0_i32_0 : i32, i32
  }
  func.func @transform_5(%arg0: i32) -> (i32, i32) {
    %c0_i32 = arith.constant 0 : i32
    %c0_i32_0 = arith.constant 0 : i32
    %c0_i32_1 = arith.constant 0 : i32
    return %c0_i32, %c0_i32_0 : i32, i32
  }
  func.func @transform_6(%arg0: i32) -> (i32, i32) {
    %c0_i32 = arith.constant 0 : i32
    %c0_i32_0 = arith.constant 0 : i32
    %c0_i32_1 = arith.constant 0 : i32
    return %c0_i32, %c0_i32_0 : i32, i32
  }
  func.func @transform_7(%arg0: i32) -> (i32, i32) {
    %c0_i32 = arith.constant 0 : i32
    %c0_i32_0 = arith.constant 0 : i32
    %c0_i32_1 = arith.constant 0 : i32
    return %c0_i32, %c0_i32_0 : i32, i32
  }
  func.func @transform_8(%arg0: i32) -> (i32, i32) {
    %c0_i32 = arith.constant 0 : i32
    %c0_i32_0 = arith.constant 0 : i32
    %c0_i32_1 = arith.constant 0 : i32
    return %c0_i32, %c0_i32_0 : i32, i32
  }
  func.func @transform_9(%arg0: i32) -> (i32, i32) {
    %c0_i32 = arith.constant 0 : i32
    %c0_i32_0 = arith.constant 0 : i32
    %c0_i32_1 = arith.constant 0 : i32
    return %c0_i32, %c0_i32_0 : i32, i32
  }
  func.func @transform_10(%arg0: i32) -> (i32, i32) {
    %c0_i32 = arith.constant 0 : i32
    %c0_i32_0 = arith.constant 0 : i32
    %c0_i32_1 = arith.constant 0 : i32
    return %c0_i32, %c0_i32_0 : i32, i32
  }
  func.func @transform_11(%arg0: i32) -> (i32, i32) {
    %c0_i32 = arith.constant 0 : i32
    %c0_i32_0 = arith.constant 0 : i32
    return %arg0, %c0_i32 : i32, i32
  }
}

</mosaic_0001>

<llo_original>
// kernel: tpu_custom_call.1
$region0: #{tpu_custom_call.1}
  #allocation0 [shape = 'u32[]', space=smem, size = 0x4, offset = 0x4, fixed_abs, tag = 'smem constant byte address 0x4 - core index']
  #allocation1 [shape = 'u32[144,128]{1,0:T(1,128)}', space=vmem, size = 0x12000, scoped, tag = 'internal scratch']
  %s0 = inlined_call_operand.hbm [shape: f32[8,6], index: 0, kind: input, shape index: {}]
  %s1 = inlined_call_operand.hbm [shape: bf16[6,256], index: 1, kind: input, shape index: {}]
  %s2 = inlined_call_operand.hbm [shape: f32[1,256], index: 2, kind: input, shape index: {}]
  %s3 = inlined_call_operand.hbm [shape: bf16[256,1024], index: 3, kind: input, shape index: {}]
  %s4 = inlined_call_operand.hbm [shape: f32[1,1024], index: 4, kind: input, shape index: {}]
  %s5 = inlined_call_operand.hbm [shape: bf16[1024,1024], index: 5, kind: input, shape index: {}]
  %s6 = inlined_call_operand.hbm [shape: f32[1,1024], index: 6, kind: input, shape index: {}]
  %s7 = inlined_call_operand.hbm [shape: bf16[1024,256], index: 7, kind: input, shape index: {}]
  %s8 = inlined_call_operand.hbm [shape: f32[1,256], index: 8, kind: input, shape index: {}]
  %s9 = inlined_call_operand.hbm [shape: bf16[256,128], index: 9, kind: input, shape index: {}]
  %s10 = inlined_call_operand.hbm [shape: f32[1,128], index: 10, kind: input, shape index: {}]
  %s11 = inlined_call_operand.hbm [shape: f32[8,128], index: 11, kind: output, shape index: {}]
  %s12 = sld [smem:[#allocation0]]
  $region98: #{tpu_custom_call.1} parent=0
    _
  %s14 = ssub.s32 1, %s12
  %s15 = scalar_select 0, %s14, %s12
  $region1: #{tpu_custom_call.1} parent=0
    #allocation2 [shape = 'u8[4096]{0}', space=vmem, size = 0x1000, scoped, tag = 'input window, operand 0, single buffered']
    #allocation3 [shape = 's32[1]{0}', space=sflag, size = 0x4, scoped, tag = 'scoped memory for tpu_custom_call.1']
    #allocation4 [shape = 's32[1]{0}', space=sflag, size = 0x4, scoped, tag = 'scoped memory for tpu_custom_call.1']
    #allocation5 [shape = 'u8[4096]{0}', space=vmem, size = 0x1000, scoped, tag = 'input window, operand 1, single buffered']
    #allocation6 [shape = 's32[1]{0}', space=sflag, size = 0x4, scoped, tag = 'scoped memory for tpu_custom_call.1']
    #allocation7 [shape = 'u8[1024]{0}', space=vmem, size = 0x400, scoped, tag = 'input window, operand 2, single buffered']
    #allocation8 [shape = 'u8[524288]{0}', space=vmem, size = 0x80000, scoped, tag = 'input window, operand 3, single buffered']
    #allocation9 [shape = 's32[1]{0}', space=sflag, size = 0x4, scoped, tag = 'scoped memory for tpu_custom_call.1']
    #allocation10 [shape = 'u8[4096]{0}', space=vmem, size = 0x1000, scoped, tag = 'input window, operand 4, single buffered']
    #allocation11 [shape = 'u8[2097152]{0}', space=vmem, size = 0x200000, scoped, tag = 'input window, operand 5, single buffered']
    #allocation12 [shape = 's32[1]{0}', space=sflag, size = 0x4, scoped, tag = 'scoped memory for tpu_custom_call.1']
    #allocation13 [shape = 'u8[4096]{0}', space=vmem, size = 0x1000, scoped, tag = 'input window, operand 6, single buffered']
    #allocation14 [shape = 'u8[524288]{0}', space=vmem, size = 0x80000, scoped, tag = 'input window, operand 7, single buffered']
    #allocation15 [shape = 's32[1]{0}', space=sflag, size = 0x4, scoped, tag = 'scoped memory for tpu_custom_call.1']
    #allocation16 [shape = 'u8[1024]{0}', space=vmem, size = 0x400, scoped, tag = 'input window, operand 8, single buffered']
    #allocation17 [shape = 'u8[65536]{0}', space=vmem, size = 0x10000, scoped, tag = 'input window, operand 9, single buffered']
    #allocation18 [shape = 's32[1]{0}', space=sflag, size = 0x4, scoped, tag = 'scoped memory for tpu_custom_call.1']
    #allocation19 [shape = 'u8[512]{0}', space=vmem, size = 0x400, scoped, tag = 'input window, operand 10, single buffered']
    #allocation20 [shape = 'u8[4096]{0}', space=vmem, size = 0x1000, scoped, tag = 'output window, operand 0, single buffered']
    %16 = vsyncpa [#allocation3], 0
    %17 = vsyncpa [#allocation6], 0
    %18 = vsyncpa [#allocation9], 0
    %19 = vsyncpa [#allocation12], 0
    %20 = vsyncpa [#allocation15], 0
    %21 = vsyncpa [#allocation18], 0
    %22 = vsyncpa [#allocation4], 0
    // Predicated region
    $region2: #{tpu_custom_call.1} parent=1 // pred_check
      _
    $region3: #{tpu_custom_call.1} parent=1 // pred_check_branch
      %24 = sbr.rel (0) target = $region5
    $region4: #{tpu_custom_call.1} parent=1 // pred_region
      %s26 = ssub.s32 128, 128
      %27 = vsyncadd [#allocation3], %s26
      %s29 = sshll.u32 [#allocation2], 4
      %s30 = int_to_ptr.vmem [resolvable:$true] %s29
      %32 = dma.hbm_to_vmem [thread:$0]  %s0, 128, %s30, [#allocation3]
    $region5: #{tpu_custom_call.1} parent=1 // pred_fallthru
      _
    // Predicated region
    $region6: #{tpu_custom_call.1} parent=1 // pred_check
      _
    $region7: #{tpu_custom_call.1} parent=1 // pred_check_branch
      %34 = sbr.rel (0) target = $region9
    $region8: #{tpu_custom_call.1} parent=1 // pred_region
      %s36 = ssub.s32 128, 128
      %37 = vsyncadd [#allocation6], %s36
      %s39 = sshll.u32 [#allocation5], 4
      %s40 = int_to_ptr.vmem [resolvable:$true] %s39
      %42 = dma.hbm_to_vmem [thread:$0]  %s1, 128, %s40, [#allocation6]
    $region9: #{tpu_custom_call.1} parent=1 // pred_fallthru
      _
    // Predicated region
    $region10: #{tpu_custom_call.1} parent=1 // pred_check
      _
    $region11: #{tpu_custom_call.1} parent=1 // pred_check_branch
      %44 = sbr.rel (0) target = $region13
    $region12: #{tpu_custom_call.1} parent=1 // pred_region
      %s46 = ssub.s32 32, 32
      %47 = vsyncadd [#allocation6], %s46
      %s49 = sshll.u32 [#allocation7], 4
      %s50 = int_to_ptr.vmem [resolvable:$true] %s49
      %52 = dma.hbm_to_vmem [thread:$0]  %s2, 32, %s50, [#allocation6]
    $region13: #{tpu_custom_call.1} parent=1 // pred_fallthru
      _
    // Predicated region
    $region14: #{tpu_custom_call.1} parent=1 // pred_check
      _
    $region15: #{tpu_custom_call.1} parent=1 // pred_check_branch
      %54 = sbr.rel (0) target = $region17
    $region16: #{tpu_custom_call.1} parent=1 // pred_region
      %s56 = ssub.s32 16384, 16384
      %57 = vsyncadd [#allocation9], %s56
      %s58 = sshll.u32 [#allocation8], 4
      %s59 = int_to_ptr.vmem [resolvable:$true] %s58
      %64 = dma.hbm_to_vmem [thread:$0]  %s3, 16384, %s59, [#allocation9], 512, 512, 32
    $region17: #{tpu_custom_call.1} parent=1 // pred_fallthru
      _
    // Predicated region
    $region18: #{tpu_custom_call.1} parent=1 // pred_check
      _
    $region19: #{tpu_custom_call.1} parent=1 // pred_check_branch
      %66 = sbr.rel (0) target = $region21
    $region20: #{tpu_custom_call.1} parent=1 // pred_region
      %s68 = ssub.s32 128, 128
      %69 = vsyncadd [#allocation9], %s68
      %s71 = sshll.u32 [#allocation10], 4
      %s72 = int_to_ptr.vmem [resolvable:$true] %s71
      %74 = dma.hbm_to_vmem [thread:$0]  %s4, 128, %s72, [#allocation9]
    $region21: #{tpu_custom_call.1} parent=1 // pred_fallthru
      _
    // Predicated region
    $region22: #{tpu_custom_call.1} parent=1 // pred_check
      _
    $region23: #{tpu_custom_call.1} parent=1 // pred_check_branch
      %76 = sbr.rel (0) target = $region25
    $region24: #{tpu_custom_call.1} parent=1 // pred_region
      %s78 = ssub.s32 65536, 65536
      %79 = vsyncadd [#allocation12], %s78
      %s80 = sshll.u32 [#allocation11], 4
      %s81 = int_to_ptr.vmem [resolvable:$true] %s80
      %86 = dma.hbm_to_vmem [thread:$0]  %s5, 65536, %s81, [#allocation12], 512, 512, 32
    $region25: #{tpu_custom_call.1} parent=1 // pred_fallthru
      _
    // Predicated region
    $region26: #{tpu_custom_call.1} parent=1 // pred_check
      _
    $region27: #{tpu_custom_call.1} parent=1 // pred_check_branch
      %88 = sbr.rel (0) target = $region29
    $region28: #{tpu_custom_call.1} parent=1 // pred_region
      %s90 = ssub.s32 128, 128
      %91 = vsyncadd [#allocation12], %s90
      %s93 = sshll.u32 [#allocation13], 4
      %s94 = int_to_ptr.vmem [resolvable:$true] %s93
      %96 = dma.hbm_to_vmem [thread:$0]  %s6, 128, %s94, [#allocation12]
    $region29: #{tpu_custom_call.1} parent=1 // pred_fallthru
      _
    // Predicated region
    $region30: #{tpu_custom_call.1} parent=1 // pred_check
      _
    $region31: #{tpu_custom_call.1} parent=1 // pred_check_branch
      %98 = sbr.rel (0) target = $region33
    $region32: #{tpu_custom_call.1} parent=1 // pred_region
      %s100 = ssub.s32 16384, 16384
      %101 = vsyncadd [#allocation15], %s100
      %s102 = sshll.u32 [#allocation14], 4
      %s103 = int_to_ptr.vmem [resolvable:$true] %s102
      %108 = dma.hbm_to_vmem [thread:$0]  %s7, 16384, %s103, [#allocation15], 128, 128, 8
    $region33: #{tpu_custom_call.1} parent=1 // pred_fallthru
      _
    // Predicated region
    $region34: #{tpu_custom_call.1} parent=1 // pred_check
      _
    $region35: #{tpu_custom_call.1} parent=1 // pred_check_branch
      %110 = sbr.rel (0) target = $region37
    $region36: #{tpu_custom_call.1} parent=1 // pred_region
      %s112 = ssub.s32 32, 32
      %113 = vsyncadd [#allocation15], %s112
      %s115 = sshll.u32 [#allocation16], 4
      %s116 = int_to_ptr.vmem [resolvable:$true] %s115
      %118 = dma.hbm_to_vmem [thread:$0]  %s8, 32, %s116, [#allocation15]
    $region37: #{tpu_custom_call.1} parent=1 // pred_fallthru
      _
    // Predicated region
    $region38: #{tpu_custom_call.1} parent=1 // pred_check
      _
    $region39: #{tpu_custom_call.1} parent=1 // pred_check_branch
      %120 = sbr.rel (0) target = $region41
    $region40: #{tpu_custom_call.1} parent=1 // pred_region
      %s122 = ssub.s32 2048, 2048
      %123 = vsyncadd [#allocation18], %s122
      %s124 = sshll.u32 [#allocation17], 4
      %s125 = int_to_ptr.vmem [resolvable:$true] %s124
      %130 = dma.hbm_to_vmem [thread:$0]  %s9, 2048, %s125, [#allocation18], 64, 64, 4
    $region41: #{tpu_custom_call.1} parent=1 // pred_fallthru
      _
    // Predicated region
    $region42: #{tpu_custom_call.1} parent=1 // pred_check
      _
    $region43: #{tpu_custom_call.1} parent=1 // pred_check_branch
      %132 = sbr.rel (0) target = $region45
    $region44: #{tpu_custom_call.1} parent=1 // pred_region
      %s134 = ssub.s32 16, 16
      %135 = vsyncadd [#allocation18], %s134
      %s137 = sshll.u32 [#allocation19], 4
      %s138 = int_to_ptr.vmem [resolvable:$true] %s137
      %140 = dma.hbm_to_vmem [thread:$0]  %s10, 16, %s138, [#allocation18]
    $region45: #{tpu_custom_call.1} parent=1 // pred_fallthru
      _
    // Predicated region
    $region46: #{tpu_custom_call.1} parent=1 // pred_check
      _
    $region47: #{tpu_custom_call.1} parent=1 // pred_check_branch
      %142 = sbr.rel (0) target = $region49
    $region48: #{tpu_custom_call.1} parent=1 // pred_region
      %143 = dma.done [#allocation3], 128
    $region49: #{tpu_custom_call.1} parent=1 // pred_fallthru
      _
    // Predicated region
    $region50: #{tpu_custom_call.1} parent=1 // pred_check
      _
    $region51: #{tpu_custom_call.1} parent=1 // pred_check_branch
      %145 = sbr.rel (0) target = $region53
    $region52: #{tpu_custom_call.1} parent=1 // pred_region
      %146 = dma.done [#allocation6], 128
    $region53: #{tpu_custom_call.1} parent=1 // pred_fallthru
      _
    // Predicated region
    $region54: #{tpu_custom_call.1} parent=1 // pred_check
      _
    $region55: #{tpu_custom_call.1} parent=1 // pred_check_branch
      %148 = sbr.rel (0) target = $region57
    $region56: #{tpu_custom_call.1} parent=1 // pred_region
      %149 = dma.done [#allocation6], 32
    $region57: #{tpu_custom_call.1} parent=1 // pred_fallthru
      _
    // Predicated region
    $region58: #{tpu_custom_call.1} parent=1 // pred_check
      _
    $region59: #{tpu_custom_call.1} parent=1 // pred_check_branch
      %151 = sbr.rel (0) target = $region61
    $region60: #{tpu_custom_call.1} parent=1 // pred_region
      %152 = dma.done [#allocation9], 16384
    $region61: #{tpu_custom_call.1} parent=1 // pred_fallthru
      _
    // Predicated region
    $region62: #{tpu_custom_call.1} parent=1 // pred_check
      _
    $region63: #{tpu_custom_call.1} parent=1 // pred_check_branch
      %154 = sbr.rel (0) target = $region65
    $region64: #{tpu_custom_call.1} parent=1 // pred_region
      %155 = dma.done [#allocation9], 128
    $region65: #{tpu_custom_call.1} parent=1 // pred_fallthru
      _
    // Predicated region
    $region66: #{tpu_custom_call.1} parent=1 // pred_check
      _
    $region67: #{tpu_custom_call.1} parent=1 // pred_check_branch
      %157 = sbr.rel (0) target = $region69
    $region68: #{tpu_custom_call.1} parent=1 // pred_region
      %158 = dma.done [#allocation12], 65536
    $region69: #{tpu_custom_call.1} parent=1 // pred_fallthru
      _
    // Predicated region
    $region70: #{tpu_custom_call.1} parent=1 // pred_check
      _
    $region71: #{tpu_custom_call.1} parent=1 // pred_check_branch
      %160 = sbr.rel (0) target = $region73
    $region72: #{tpu_custom_call.1} parent=1 // pred_region
      %161 = dma.done [#allocation12], 128
    $region73: #{tpu_custom_call.1} parent=1 // pred_fallthru
      _
    // Predicated region
    $region74: #{tpu_custom_call.1} parent=1 // pred_check
      _
    $region75: #{tpu_custom_call.1} parent=1 // pred_check_branch
      %163 = sbr.rel (0) target = $region77
    $region76: #{tpu_custom_call.1} parent=1 // pred_region
      %164 = dma.done [#allocation15], 16384
    $region77: #{tpu_custom_call.1} parent=1 // pred_fallthru
      _
    // Predicated region
    $region78: #{tpu_custom_call.1} parent=1 // pred_check
      _
    $region79: #{tpu_custom_call.1} parent=1 // pred_check_branch
      %166 = sbr.rel (0) target = $region81
    $region80: #{tpu_custom_call.1} parent=1 // pred_region
      %167 = dma.done [#allocation15], 32
    $region81: #{tpu_custom_call.1} parent=1 // pred_fallthru
      _
    // Predicated region
    $region82: #{tpu_custom_call.1} parent=1 // pred_check
      _
    $region83: #{tpu_custom_call.1} parent=1 // pred_check_branch
      %169 = sbr.rel (0) target = $region85
    $region84: #{tpu_custom_call.1} parent=1 // pred_region
      %170 = dma.done [#allocation18], 2048
    $region85: #{tpu_custom_call.1} parent=1 // pred_fallthru
      _
    // Predicated region
    $region86: #{tpu_custom_call.1} parent=1 // pred_check
      _
    $region87: #{tpu_custom_call.1} parent=1 // pred_check_branch
      %172 = sbr.rel (0) target = $region89
    $region88: #{tpu_custom_call.1} parent=1 // pred_region
      %173 = dma.done [#allocation18], 16
    $region89: #{tpu_custom_call.1} parent=1 // pred_fallthru
      _
    %v175 = vld [vmem:[#allocation2] sm:$0xff]
    %v176 = vpack.c.bf16 %v175, %v175
    %v177 = vld [vmem:[#allocation5] sm:$0x77]
    %v178 = vld [vmem:[#allocation7] sm:$0x3]
    %v180 = vlaneseq
    %v181 = vshrl.u32 %v180, 7
    %v182 = vsub.s32 0, %v181
    %v183 = vrot.slane %v178, %v182
    %v184 = vlaneseq
    %v185 = vshrl.u32 %v184, 7
    %v186 = vsub.s32 1, %v185
    %v187 = vrot.slane %v178, %v186
    %v191 = vunpack.c.l.b16 %v177
    %v192 = vunpack.c.h.b16 %v177
    %v193 = vpack.c.b16 %v191, %v191
    %v194 = vpack.c.b16 %v192, %v192
    %vm195 = vcmask 48128
    %v197 = vsel %vm195, %v176, 0
    %vm199 = vcmask 1042432
    %v201 = vsel %vm199, %v193, 0
    %v204 = vsel %vm199, %v194, 0
    %206 = vmatprep.subr.bf16.mxu0 %v204
    %207 = vmatpush1.bf16.msra.mxu0 %v201
    %208 = vmatprep.subr.bf16.mxu0 0
    %209 = vmatpush1.bf16.msra.mxu0 0
    %210 = vmatprep.subr.bf16.mxu0 0
    %211 = vmatpush1.bf16.msra.mxu0 0
    %212 = vmatprep.subr.bf16.mxu0 0
    %213 = vmatpush1.bf16.msra.mxu0 0
    %214 = vmatprep.subr.bf16.mxu0 0
    %215 = vmatpush1.bf16.msra.mxu0 0
    %216 = vmatprep.subr.bf16.mxu0 0
    %217 = vmatpush1.bf16.msra.mxu0 0
    %218 = vmatprep.subr.bf16.mxu0 0
    %219 = vmatpush1.bf16.msra.mxu0 0
    %220 = vmatprep.subr.bf16.mxu0 0
    %221 = vmatpush1.bf16.msra.mxu0 0
    %222 = vmatprep.subr.bf16.mxu0 0
    %223 = vmatpush1.bf16.msra.mxu0 0
    %224 = vmatprep.subr.bf16.mxu0 0
    %225 = vmatpush1.bf16.msra.mxu0 0
    %226 = vmatprep.subr.bf16.mxu0 0
    %227 = vmatpush1.bf16.msra.mxu0 0
    %228 = vmatprep.subr.bf16.mxu0 0
    %229 = vmatpush1.bf16.msra.mxu0 0
    %230 = vmatprep.subr.bf16.mxu0 0
    %231 = vmatpush1.bf16.msra.mxu0 0
    %232 = vmatprep.subr.bf16.mxu0 0
    %233 = vmatpush1.bf16.msra.mxu0 0
    %234 = vmatprep.subr.bf16.mxu0 0
    %235 = vmatpush1.bf16.msra.mxu0 0
    %236 = vmatprep.subr.bf16.mxu0 0
    %237 = vmatpush1.bf16.msra.mxu0 0
    %238 = vmatprep.mubr.bf16.mxu0 0
    %239 = vmatmul.mubr.bf16.gmra.mrb[0].mxu0 %v197
    %v240 = vpop.f32.mrb[0].mxu0
    %v241 = vadd.f32 %v183, %v240
    %v242 = vpop.f32.mrb[0].mxu0
    %v243 = vadd.f32 %v187, %v242
    %v244 = vpop.f32.mrb[0].mxu0
    %v245 = vpop.f32.mrb[0].mxu0
    %246 = vdwg.mxu0
    %v247 = vmul.f32 %v241, 0.01
    %v248 = vmul.f32 %v243, 0.01
    %v249 = vmax.f32 %v241, %v247
    %v250 = vmax.f32 %v243, %v248
    %v251 = vpack.c.bf16 %v249, %v249
    %v252 = vpack.c.bf16 %v250, %v250
    %v253 = vld [vmem:[#allocation8] sm:$0xff]
    %v254 = vld [vmem:[#allocation8 + $0x8] sm:$0xff]
    %v255 = vld [vmem:[#allocation8 + $0x10] sm:$0xff]
    %v256 = vld [vmem:[#allocation8 + $0x18] sm:$0xff]
    %v257 = vld [vmem:[#allocation8 + $0x20] sm:$0xff]
    %v258 = vld [vmem:[#allocation8 + $0x28] sm:$0xff]
    %v259 = vld [vmem:[#allocation8 + $0x30] sm:$0xff]
    %v260 = vld [vmem:[#allocation8 + $0x38] sm:$0xff]
    %v261 = vld [vmem:[#allocation8 + $0x40] sm:$0xff]
    %v262 = vld [vmem:[#allocation8 + $0x48] sm:$0xff]
    %v263 = vld [vmem:[#allocation8 + $0x50] sm:$0xff]
    %v264 = vld [vmem:[#allocation8 + $0x58] sm:$0xff]
    %v265 = vld [vmem:[#allocation8 + $0x60] sm:$0xff]
    %v266 = vld [vmem:[#allocation8 + $0x68] sm:$0xff]
    %v267 = vld [vmem:[#allocation8 + $0x70] sm:$0xff]
    %v268 = vld [vmem:[#allocation8 + $0x78] sm:$0xff]
    %v269 = vld [vmem:[#allocation8 + $0x80] sm:$0xff]
    %v270 = vld [vmem:[#allocation8 + $0x88] sm:$0xff]
    %v271 = vld [vmem:[#allocation8 + $0x90] sm:$0xff]
    %v272 = vld [vmem:[#allocation8 + $0x98] sm:$0xff]
    %v273 = vld [vmem:[#allocation8 + $0xa0] sm:$0xff]
    %v274 = vld [vmem:[#allocation8 + $0xa8] sm:$0xff]
    %v275 = vld [vmem:[#allocation8 + $0xb0] sm:$0xff]
    %v276 = vld [vmem:[#allocation8 + $0xb8] sm:$0xff]
    %v277 = vld [vmem:[#allocation8 + $0xc0] sm:$0xff]
    %v278 = vld [vmem:[#allocation8 + $0xc8] sm:$0xff]
    %v279 = vld [vmem:[#allocation8 + $0xd0] sm:$0xff]
    %v280 = vld [vmem:[#allocation8 + $0xd8] sm:$0xff]
    %v281 = vld [vmem:[#allocation8 + $0xe0] sm:$0xff]
    %v282 = vld [vmem:[#allocation8 + $0xe8] sm:$0xff]
    %v283 = vld [vmem:[#allocation8 + $0xf0] sm:$0xff]
    %v284 = vld [vmem:[#allocation8 + $0xf8] sm:$0xff]
    %v285 = vld [vmem:[#allocation8 + $0x100] sm:$0xff]
    %v286 = vld [vmem:[#allocation8 + $0x108] sm:$0xff]
    %v287 = vld [vmem:[#allocation8 + $0x110] sm:$0xff]
    %v288 = vld [vmem:[#allocation8 + $0x118] sm:$0xff]
    %v289 = vld [vmem:[#allocation8 + $0x120] sm:$0xff]
    %v290 = vld [vmem:[#allocation8 + $0x128] sm:$0xff]
    %v291 = vld [vmem:[#allocation8 + $0x130] sm:$0xff]
    %v292 = vld [vmem:[#allocation8 + $0x138] sm:$0xff]
    %v293 = vld [vmem:[#allocation8 + $0x140] sm:$0xff]
    %v294 = vld [vmem:[#allocation8 + $0x148] sm:$0xff]
    %v295 = vld [vmem:[#allocation8 + $0x150] sm:$0xff]
    %v296 = vld [vmem:[#allocation8 + $0x158] sm:$0xff]
    %v297 = vld [vmem:[#allocation8 + $0x160] sm:$0xff]
    %v298 = vld [vmem:[#allocation8 + $0x168] sm:$0xff]
    %v299 = vld [vmem:[#allocation8 + $0x170] sm:$0xff]
    %v300 = vld [vmem:[#allocation8 + $0x178] sm:$0xff]
    %v301 = vld [vmem:[#allocation8 + $0x180] sm:$0xff]
    %v302 = vld [vmem:[#allocation8 + $0x188] sm:$0xff]
    %v303 = vld [vmem:[#allocation8 + $0x190] sm:$0xff]
    %v304 = vld [vmem:[#allocation8 + $0x198] sm:$0xff]
    %v305 = vld [vmem:[#allocation8 + $0x1a0] sm:$0xff]
    %v306 = vld [vmem:[#allocation8 + $0x1a8] sm:$0xff]
    %v307 = vld [vmem:[#allocation8 + $0x1b0] sm:$0xff]
    %v308 = vld [vmem:[#allocation8 + $0x1b8] sm:$0xff]
    %v309 = vld [vmem:[#allocation8 + $0x1c0] sm:$0xff]
    %v310 = vld [vmem:[#allocation8 + $0x1c8] sm:$0xff]
    %v311 = vld [vmem:[#allocation8 + $0x1d0] sm:$0xff]
    %v312 = vld [vmem:[#allocation8 + $0x1d8] sm:$0xff]
    %v313 = vld [vmem:[#allocation8 + $0x1e0] sm:$0xff]
    %v314 = vld [vmem:[#allocation8 + $0x1e8] sm:$0xff]
    %v315 = vld [vmem:[#allocation8 + $0x1f0] sm:$0xff]
    %v316 = vld [vmem:[#allocation8 + $0x1f8] sm:$0xff]
    %v317 = vld [vmem:[#allocation8 + $0x200] sm:$0xff]
    %v318 = vld [vmem:[#allocation8 + $0x208] sm:$0xff]
    %v319 = vld [vmem:[#allocation8 + $0x210] sm:$0xff]
    %v320 = vld [vmem:[#allocation8 + $0x218] sm:$0xff]
    %v321 = vld [vmem:[#allocation8 + $0x220] sm:$0xff]
    %v322 = vld [vmem:[#allocation8 + $0x228] sm:$0xff]
    %v323 = vld [vmem:[#allocation8 + $0x230] sm:$0xff]
    %v324 = vld [vmem:[#allocation8 + $0x238] sm:$0xff]
    %v325 = vld [vmem:[#allocation8 + $0x240] sm:$0xff]
    %v326 = vld [vmem:[#allocation8 + $0x248] sm:$0xff]
    %v327 = vld [vmem:[#allocation8 + $0x250] sm:$0xff]
    %v328 = vld [vmem:[#allocation8 + $0x258] sm:$0xff]
    %v329 = vld [vmem:[#allocation8 + $0x260] sm:$0xff]
    %v330 = vld [vmem:[#allocation8 + $0x268] sm:$0xff]
    %v331 = vld [vmem:[#allocation8 + $0x270] sm:$0xff]
    %v332 = vld [vmem:[#allocation8 + $0x278] sm:$0xff]
    %v333 = vld [vmem:[#allocation8 + $0x280] sm:$0xff]
    %v334 = vld [vmem:[#allocation8 + $0x288] sm:$0xff]
    %v335 = vld [vmem:[#allocation8 + $0x290] sm:$0xff]
    %v336 = vld [vmem:[#allocation8 + $0x298] sm:$0xff]
    %v337 = vld [vmem:[#allocation8 + $0x2a0] sm:$0xff]
    %v338 = vld [vmem:[#allocation8 + $0x2a8] sm:$0xff]
    %v339 = vld [vmem:[#allocation8 + $0x2b0] sm:$0xff]
    %v340 = vld [vmem:[#allocation8 + $0x2b8] sm:$0xff]
    %v341 = vld [vmem:[#allocation8 + $0x2c0] sm:$0xff]
    %v342 = vld [vmem:[#allocation8 + $0x2c8] sm:$0xff]
    %v343 = vld [vmem:[#allocation8 + $0x2d0] sm:$0xff]
    %v344 = vld [vmem:[#allocation8 + $0x2d8] sm:$0xff]
    %v345 = vld [vmem:[#allocation8 + $0x2e0] sm:$0xff]
    %v346 = vld [vmem:[#allocation8 + $0x2e8] sm:$0xff]
    %v347 = vld [vmem:[#allocation8 + $0x2f0] sm:$0xff]
    %v348 = vld [vmem:[#allocation8 + $0x2f8] sm:$0xff]
    %v349 = vld [vmem:[#allocation8 + $0x300] sm:$0xff]
    %v350 = vld [vmem:[#allocation8 + $0x308] sm:$0xff]
    %v351 = vld [vmem:[#allocation8 + $0x310] sm:$0xff]
    %v352 = vld [vmem:[#allocation8 + $0x318] sm:$0xff]
    %v353 = vld [vmem:[#allocation8 + $0x320] sm:$0xff]
    %v354 = vld [vmem:[#allocation8 + $0x328] sm:$0xff]
    %v355 = vld [vmem:[#allocation8 + $0x330] sm:$0xff]
    %v356 = vld [vmem:[#allocation8 + $0x338] sm:$0xff]
    %v357 = vld [vmem:[#allocation8 + $0x340] sm:$0xff]
    %v358 = vld [vmem:[#allocation8 + $0x348] sm:$0xff]
    %v359 = vld [vmem:[#allocation8 + $0x350] sm:$0xff]
    %v360 = vld [vmem:[#allocation8 + $0x358] sm:$0xff]
    %v361 = vld [vmem:[#allocation8 + $0x360] sm:$0xff]
    %v362 = vld [vmem:[#allocation8 + $0x368] sm:$0xff]
    %v363 = vld [vmem:[#allocation8 + $0x370] sm:$0xff]
    %v364 = vld [vmem:[#allocation8 + $0x378] sm:$0xff]
    %v365 = vld [vmem:[#allocation8 + $0x380] sm:$0xff]
    %v366 = vld [vmem:[#allocation8 + $0x388] sm:$0xff]
    %v367 = vld [vmem:[#allocation8 + $0x390] sm:$0xff]
    %v368 = vld [vmem:[#allocation8 + $0x398] sm:$0xff]
    %v369 = vld [vmem:[#allocation8 + $0x3a0] sm:$0xff]
    %v370 = vld [vmem:[#allocation8 + $0x3a8] sm:$0xff]
    %v371 = vld [vmem:[#allocation8 + $0x3b0] sm:$0xff]
    %v372 = vld [vmem:[#allocation8 + $0x3b8] sm:$0xff]
    %v373 = vld [vmem:[#allocation8 + $0x3c0] sm:$0xff]
    %v374 = vld [vmem:[#allocation8 + $0x3c8] sm:$0xff]
    %v375 = vld [vmem:[#allocation8 + $0x3d0] sm:$0xff]
    %v376 = vld [vmem:[#allocation8 + $0x3d8] sm:$0xff]
    %v377 = vld [vmem:[#allocation8 + $0x3e0] sm:$0xff]
    %v378 = vld [vmem:[#allocation8 + $0x3e8] sm:$0xff]
    %v379 = vld [vmem:[#allocation8 + $0x3f0] sm:$0xff]
    %v380 = vld [vmem:[#allocation8 + $0x3f8] sm:$0xff]
    %v381 = vld [vmem:[#allocation10] sm:$0xff]
    %v383 = vlaneseq
    %v384 = vshrl.u32 %v383, 7
    %v385 = vsub.s32 0, %v384
    %v386 = vrot.slane %v381, %v385
    %v387 = vlaneseq
    %v388 = vshrl.u32 %v387, 7
    %v389 = vsub.s32 1, %v388
    %v390 = vrot.slane %v381, %v389
    %v391 = vlaneseq
    %v392 = vshrl.u32 %v391, 7
    %v393 = vsub.s32 2, %v392
    %v394 = vrot.slane %v381, %v393
    %v395 = vlaneseq
    %v396 = vshrl.u32 %v395, 7
    %v397 = vsub.s32 3, %v396
    %v398 = vrot.slane %v381, %v397
    %v399 = vlaneseq
    %v400 = vshrl.u32 %v399, 7
    %v401 = vsub.s32 4, %v400
    %v402 = vrot.slane %v381, %v401
    %v403 = vlaneseq
    %v404 = vshrl.u32 %v403, 7
    %v405 = vsub.s32 5, %v404
    %v406 = vrot.slane %v381, %v405
    %v407 = vlaneseq
    %v408 = vshrl.u32 %v407, 7
    %v409 = vsub.s32 6, %v408
    %v410 = vrot.slane %v381, %v409
    %v411 = vlaneseq
    %v412 = vshrl.u32 %v411, 7
    %v413 = vsub.s32 7, %v412
    %v414 = vrot.slane %v381, %v413
    %v551 = vunpack.c.l.b16 %v253
    %v552 = vunpack.c.h.b16 %v253
    %v553 = vunpack.c.l.b16 %v254
    %v554 = vunpack.c.h.b16 %v254
    %v555 = vunpack.c.l.b16 %v255
    %v556 = vunpack.c.h.b16 %v255
    %v557 = vunpack.c.l.b16 %v256
    %v558 = vunpack.c.h.b16 %v256
    %v559 = vunpack.c.l.b16 %v257
    %v560 = vunpack.c.h.b16 %v257
    %v561 = vunpack.c.l.b16 %v258
    %v562 = vunpack.c.h.b16 %v258
    %v563 = vunpack.c.l.b16 %v259
    %v564 = vunpack.c.h.b16 %v259
    %v565 = vunpack.c.l.b16 %v260
    %v566 = vunpack.c.h.b16 %v260
    %v567 = vunpack.c.l.b16 %v261
    %v568 = vunpack.c.h.b16 %v261
    %v569 = vunpack.c.l.b16 %v262
    %v570 = vunpack.c.h.b16 %v262
    %v571 = vunpack.c.l.b16 %v263
    %v572 = vunpack.c.h.b16 %v263
    %v573 = vunpack.c.l.b16 %v264
    %v574 = vunpack.c.h.b16 %v264
    %v575 = vunpack.c.l.b16 %v265
    %v576 = vunpack.c.h.b16 %v265
    %v577 = vunpack.c.l.b16 %v266
    %v578 = vunpack.c.h.b16 %v266
    %v579 = vunpack.c.l.b16 %v267
    %v580 = vunpack.c.h.b16 %v267
    %v581 = vunpack.c.l.b16 %v268
    %v582 = vunpack.c.h.b16 %v268
    %v583 = vunpack.c.l.b16 %v269
    %v584 = vunpack.c.h.b16 %v269
    %v585 = vunpack.c.l.b16 %v270
    %v586 = vunpack.c.h.b16 %v270
    %v587 = vunpack.c.l.b16 %v271
    %v588 = vunpack.c.h.b16 %v271
    %v589 = vunpack.c.l.b16 %v272
    %v590 = vunpack.c.h.b16 %v272
    %v591 = vunpack.c.l.b16 %v273
    %v592 = vunpack.c.h.b16 %v273
    %v593 = vunpack.c.l.b16 %v274
    %v594 = vunpack.c.h.b16 %v274
    %v595 = vunpack.c.l.b16 %v275
    %v596 = vunpack.c.h.b16 %v275
    %v597 = vunpack.c.l.b16 %v276
    %v598 = vunpack.c.h.b16 %v276
    %v599 = vunpack.c.l.b16 %v277
    %v600 = vunpack.c.h.b16 %v277
    %v601 = vunpack.c.l.b16 %v278
    %v602 = vunpack.c.h.b16 %v278
    %v603 = vunpack.c.l.b16 %v279
    %v604 = vunpack.c.h.b16 %v279
    %v605 = vunpack.c.l.b16 %v280
    %v606 = vunpack.c.h.b16 %v280
    %v607 = vunpack.c.l.b16 %v281
    %v608 = vunpack.c.h.b16 %v281
    %v609 = vunpack.c.l.b16 %v282
    %v610 = vunpack.c.h.b16 %v282
    %v611 = vunpack.c.l.b16 %v283
    %v612 = vunpack.c.h.b16 %v283
    %v613 = vunpack.c.l.b16 %v284
    %v614 = vunpack.c.h.b16 %v284
    %v615 = vunpack.c.l.b16 %v285
    %v616 = vunpack.c.h.b16 %v285
    %v617 = vunpack.c.l.b16 %v286
    %v618 = vunpack.c.h.b16 %v286
    %v619 = vunpack.c.l.b16 %v287
    %v620 = vunpack.c.h.b16 %v287
    %v621 = vunpack.c.l.b16 %v288
    %v622 = vunpack.c.h.b16 %v288
    %v623 = vunpack.c.l.b16 %v289
    %v624 = vunpack.c.h.b16 %v289
    %v625 = vunpack.c.l.b16 %v290
    %v626 = vunpack.c.h.b16 %v290
    %v627 = vunpack.c.l.b16 %v291
    %v628 = vunpack.c.h.b16 %v291
    %v629 = vunpack.c.l.b16 %v292
    %v630 = vunpack.c.h.b16 %v292
    %v631 = vunpack.c.l.b16 %v293
    %v632 = vunpack.c.h.b16 %v293
    %v633 = vunpack.c.l.b16 %v294
    %v634 = vunpack.c.h.b16 %v294
    %v635 = vunpack.c.l.b16 %v295
    %v636 = vunpack.c.h.b16 %v295
    %v637 = vunpack.c.l.b16 %v296
    %v638 = vunpack.c.h.b16 %v296
    %v639 = vunpack.c.l.b16 %v297
    %v640 = vunpack.c.h.b16 %v297
    %v641 = vunpack.c.l.b16 %v298
    %v642 = vunpack.c.h.b16 %v298
    %v643 = vunpack.c.l.b16 %v299
    %v644 = vunpack.c.h.b16 %v299
    %v645 = vunpack.c.l.b16 %v300
    %v646 = vunpack.c.h.b16 %v300
    %v647 = vunpack.c.l.b16 %v301
    %v648 = vunpack.c.h.b16 %v301
    %v649 = vunpack.c.l.b16 %v302
    %v650 = vunpack.c.h.b16 %v302
    %v651 = vunpack.c.l.b16 %v303
    %v652 = vunpack.c.h.b16 %v303
    %v653 = vunpack.c.l.b16 %v304
    %v654 = vunpack.c.h.b16 %v304
    %v655 = vunpack.c.l.b16 %v305
    %v656 = vunpack.c.h.b16 %v305
    %v657 = vunpack.c.l.b16 %v306
    %v658 = vunpack.c.h.b16 %v306
    %v659 = vunpack.c.l.b16 %v307
    %v660 = vunpack.c.h.b16 %v307
    %v661 = vunpack.c.l.b16 %v308
    %v662 = vunpack.c.h.b16 %v308
    %v663 = vunpack.c.l.b16 %v309
    %v664 = vunpack.c.h.b16 %v309
    %v665 = vunpack.c.l.b16 %v310
    %v666 = vunpack.c.h.b16 %v310
    %v667 = vunpack.c.l.b16 %v311
    %v668 = vunpack.c.h.b16 %v311
    %v669 = vunpack.c.l.b16 %v312
    %v670 = vunpack.c.h.b16 %v312
    %v671 = vunpack.c.l.b16 %v313
    %v672 = vunpack.c.h.b16 %v313
    %v673 = vunpack.c.l.b16 %v314
    %v674 = vunpack.c.h.b16 %v314
    %v675 = vunpack.c.l.b16 %v315
    %v676 = vunpack.c.h.b16 %v315
    %v677 = vunpack.c.l.b16 %v316
    %v678 = vunpack.c.h.b16 %v316
    %v679 = vunpack.c.l.b16 %v317
    %v680 = vunpack.c.h.b16 %v317
    %v681 = vunpack.c.l.b16 %v318
    %v682 = vunpack.c.h.b16 %v318
    %v683 = vunpack.c.l.b16 %v319
    %v684 = vunpack.c.h.b16 %v319
    %v685 = vunpack.c.l.b16 %v320
    %v686 = vunpack.c.h.b16 %v320
    %v687 = vunpack.c.l.b16 %v321
    %v688 = vunpack.c.h.b16 %v321
    %v689 = vunpack.c.l.b16 %v322
    %v690 = vunpack.c.h.b16 %v322
    %v691 = vunpack.c.l.b16 %v323
    %v692 = vunpack.c.h.b16 %v323
    %v693 = vunpack.c.l.b16 %v324
    %v694 = vunpack.c.h.b16 %v324
    %v695 = vunpack.c.l.b16 %v325
    %v696 = vunpack.c.h.b16 %v325
    %v697 = vunpack.c.l.b16 %v326
    %v698 = vunpack.c.h.b16 %v326
    %v699 = vunpack.c.l.b16 %v327
    %v700 = vunpack.c.h.b16 %v327
    %v701 = vunpack.c.l.b16 %v328
    %v702 = vunpack.c.h.b16 %v328
    %v703 = vunpack.c.l.b16 %v329
    %v704 = vunpack.c.h.b16 %v329
    %v705 = vunpack.c.l.b16 %v330
    %v706 = vunpack.c.h.b16 %v330
    %v707 = vunpack.c.l.b16 %v331
    %v708 = vunpack.c.h.b16 %v331
    %v709 = vunpack.c.l.b16 %v332
    %v710 = vunpack.c.h.b16 %v332
    %v711 = vunpack.c.l.b16 %v333
    %v712 = vunpack.c.h.b16 %v333
    %v713 = vunpack.c.l.b16 %v334
    %v714 = vunpack.c.h.b16 %v334
    %v715 = vunpack.c.l.b16 %v335
    %v716 = vunpack.c.h.b16 %v335
    %v717 = vunpack.c.l.b16 %v336
    %v718 = vunpack.c.h.b16 %v336
    %v719 = vunpack.c.l.b16 %v337
    %v720 = vunpack.c.h.b16 %v337
    %v721 = vunpack.c.l.b16 %v338
    %v722 = vunpack.c.h.b16 %v338
    %v723 = vunpack.c.l.b16 %v339
    %v724 = vunpack.c.h.b16 %v339
    %v725 = vunpack.c.l.b16 %v340
    %v726 = vunpack.c.h.b16 %v340
    %v727 = vunpack.c.l.b16 %v341
    %v728 = vunpack.c.h.b16 %v341
    %v729 = vunpack.c.l.b16 %v342
    %v730 = vunpack.c.h.b16 %v342
    %v731 = vunpack.c.l.b16 %v343
    %v732 = vunpack.c.h.b16 %v343
    %v733 = vunpack.c.l.b16 %v344
    %v734 = vunpack.c.h.b16 %v344
    %v735 = vunpack.c.l.b16 %v345
    %v736 = vunpack.c.h.b16 %v345
    %v737 = vunpack.c.l.b16 %v346
    %v738 = vunpack.c.h.b16 %v346
    %v739 = vunpack.c.l.b16 %v347
    %v740 = vunpack.c.h.b16 %v347
    %v741 = vunpack.c.l.b16 %v348
    %v742 = vunpack.c.h.b16 %v348
    %v743 = vunpack.c.l.b16 %v349
    %v744 = vunpack.c.h.b16 %v349
    %v745 = vunpack.c.l.b16 %v350
    %v746 = vunpack.c.h.b16 %v350
    %v747 = vunpack.c.l.b16 %v351
    %v748 = vunpack.c.h.b16 %v351
    %v749 = vunpack.c.l.b16 %v352
    %v750 = vunpack.c.h.b16 %v352
    %v751 = vunpack.c.l.b16 %v353
    %v752 = vunpack.c.h.b16 %v353
    %v753 = vunpack.c.l.b16 %v354
    %v754 = vunpack.c.h.b16 %v354
    %v755 = vunpack.c.l.b16 %v355
    %v756 = vunpack.c.h.b16 %v355
    %v757 = vunpack.c.l.b16 %v356
    %v758 = vunpack.c.h.b16 %v356
    %v759 = vunpack.c.l.b16 %v357
    %v760 = vunpack.c.h.b16 %v357
    %v761 = vunpack.c.l.b16 %v358
    %v762 = vunpack.c.h.b16 %v358
    %v763 = vunpack.c.l.b16 %v359
    %v764 = vunpack.c.h.b16 %v359
    %v765 = vunpack.c.l.b16 %v360
    %v766 = vunpack.c.h.b16 %v360
    %v767 = vunpack.c.l.b16 %v361
    %v768 = vunpack.c.h.b16 %v361
    %v769 = vunpack.c.l.b16 %v362
    %v770 = vunpack.c.h.b16 %v362
    %v771 = vunpack.c.l.b16 %v363
    %v772 = vunpack.c.h.b16 %v363
    %v773 = vunpack.c.l.b16 %v364
    %v774 = vunpack.c.h.b16 %v364
    %v775 = vunpack.c.l.b16 %v365
    %v776 = vunpack.c.h.b16 %v365
    %v777 = vunpack.c.l.b16 %v366
    %v778 = vunpack.c.h.b16 %v366
    %v779 = vunpack.c.l.b16 %v367
    %v780 = vunpack.c.h.b16 %v367
    %v781 = vunpack.c.l.b16 %v368
    %v782 = vunpack.c.h.b16 %v368
    %v783 = vunpack.c.l.b16 %v369
    %v784 = vunpack.c.h.b16 %v369
    %v785 = vunpack.c.l.b16 %v370
    %v786 = vunpack.c.h.b16 %v370
    %v787 = vunpack.c.l.b16 %v371
    %v788 = vunpack.c.h.b16 %v371
    %v789 = vunpack.c.l.b16 %v372
    %v790 = vunpack.c.h.b16 %v372
    %v791 = vunpack.c.l.b16 %v373
    %v792 = vunpack.c.h.b16 %v373
    %v793 = vunpack.c.l.b16 %v374
    %v794 = vunpack.c.h.b16 %v374
    %v795 = vunpack.c.l.b16 %v375
    %v796 = vunpack.c.h.b16 %v375
    %v797 = vunpack.c.l.b16 %v376
    %v798 = vunpack.c.h.b16 %v376
    %v799 = vunpack.c.l.b16 %v377
    %v800 = vunpack.c.h.b16 %v377
    %v801 = vunpack.c.l.b16 %v378
    %v802 = vunpack.c.h.b16 %v378
    %v803 = vunpack.c.l.b16 %v379
    %v804 = vunpack.c.h.b16 %v379
    %v805 = vunpack.c.l.b16 %v380
    %v806 = vunpack.c.h.b16 %v380
    %v807 = vpack.c.b16 %v559, %v551
    %v808 = vpack.c.b16 %v560, %v552
    %v809 = vpack.c.b16 %v561, %v553
    %v810 = vpack.c.b16 %v562, %v554
    %v811 = vpack.c.b16 %v563, %v555
    %v812 = vpack.c.b16 %v564, %v556
    %v813 = vpack.c.b16 %v565, %v557
    %v814 = vpack.c.b16 %v566, %v558
    %v815 = vpack.c.b16 %v575, %v567
    %v816 = vpack.c.b16 %v576, %v568
    %v817 = vpack.c.b16 %v577, %v569
    %v818 = vpack.c.b16 %v578, %v570
    %v819 = vpack.c.b16 %v579, %v571
    %v820 = vpack.c.b16 %v580, %v572
    %v821 = vpack.c.b16 %v581, %v573
    %v822 = vpack.c.b16 %v582, %v574
    %v823 = vpack.c.b16 %v591, %v583
    %v824 = vpack.c.b16 %v592, %v584
    %v825 = vpack.c.b16 %v593, %v585
    %v826 = vpack.c.b16 %v594, %v586
    %v827 = vpack.c.b16 %v595, %v587
    %v828 = vpack.c.b16 %v596, %v588
    %v829 = vpack.c.b16 %v597, %v589
    %v830 = vpack.c.b16 %v598, %v590
    %v831 = vpack.c.b16 %v607, %v599
    %v832 = vpack.c.b16 %v608, %v600
    %v833 = vpack.c.b16 %v609, %v601
    %v834 = vpack.c.b16 %v610, %v602
    %v835 = vpack.c.b16 %v611, %v603
    %v836 = vpack.c.b16 %v612, %v604
    %v837 = vpack.c.b16 %v613, %v605
    %v838 = vpack.c.b16 %v614, %v606
    %v839 = vpack.c.b16 %v623, %v615
    %v840 = vpack.c.b16 %v624, %v616
    %v841 = vpack.c.b16 %v625, %v617
    %v842 = vpack.c.b16 %v626, %v618
    %v843 = vpack.c.b16 %v627, %v619
    %v844 = vpack.c.b16 %v628, %v620
    %v845 = vpack.c.b16 %v629, %v621
    %v846 = vpack.c.b16 %v630, %v622
    %v847 = vpack.c.b16 %v639, %v631
    %v848 = vpack.c.b16 %v640, %v632
    %v849 = vpack.c.b16 %v641, %v633
    %v850 = vpack.c.b16 %v642, %v634
    %v851 = vpack.c.b16 %v643, %v635
    %v852 = vpack.c.b16 %v644, %v636
    %v853 = vpack.c.b16 %v645, %v637
    %v854 = vpack.c.b16 %v646, %v638
    %v855 = vpack.c.b16 %v655, %v647
    %v856 = vpack.c.b16 %v656, %v648
    %v857 = vpack.c.b16 %v657, %v649
    %v858 = vpack.c.b16 %v658, %v650
    %v859 = vpack.c.b16 %v659, %v651
    %v860 = vpack.c.b16 %v660, %v652
    %v861 = vpack.c.b16 %v661, %v653
    %v862 = vpack.c.b16 %v662, %v654
    %v863 = vpack.c.b16 %v671, %v663
    %v864 = vpack.c.b16 %v672, %v664
    %v865 = vpack.c.b16 %v673, %v665
    %v866 = vpack.c.b16 %v674, %v666
    %v867 = vpack.c.b16 %v675, %v667
    %v868 = vpack.c.b16 %v676, %v668
    %v869 = vpack.c.b16 %v677, %v669
    %v870 = vpack.c.b16 %v678, %v670
    %v871 = vpack.c.b16 %v687, %v679
    %v872 = vpack.c.b16 %v688, %v680
    %v873 = vpack.c.b16 %v689, %v681
    %v874 = vpack.c.b16 %v690, %v682
    %v875 = vpack.c.b16 %v691, %v683
    %v876 = vpack.c.b16 %v692, %v684
    %v877 = vpack.c.b16 %v693, %v685
    %v878 = vpack.c.b16 %v694, %v686
    %v879 = vpack.c.b16 %v703, %v695
    %v880 = vpack.c.b16 %v704, %v696
    %v881 = vpack.c.b16 %v705, %v697
    %v882 = vpack.c.b16 %v706, %v698
    %v883 = vpack.c.b16 %v707, %v699
    %v884 = vpack.c.b16 %v708, %v700
    %v885 = vpack.c.b16 %v709, %v701
    %v886 = vpack.c.b16 %v710, %v702
    %v887 = vpack.c.b16 %v719, %v711
    %v888 = vpack.c.b16 %v720, %v712
    %v889 = vpack.c.b16 %v721, %v713
    %v890 = vpack.c.b16 %v722, %v714
    %v891 = vpack.c.b16 %v723, %v715
    %v892 = vpack.c.b16 %v724, %v716
    %v893 = vpack.c.b16 %v725, %v717
    %v894 = vpack.c.b16 %v726, %v718
    %v895 = vpack.c.b16 %v735, %v727
    %v896 = vpack.c.b16 %v736, %v728
    %v897 = vpack.c.b16 %v737, %v729
    %v898 = vpack.c.b16 %v738, %v730
    %v899 = vpack.c.b16 %v739, %v731
    %v900 = vpack.c.b16 %v740, %v732
    %v901 = vpack.c.b16 %v741, %v733
    %v902 = vpack.c.b16 %v742, %v734
    %v903 = vpack.c.b16 %v751, %v743
    %v904 = vpack.c.b16 %v752, %v744
    %v905 = vpack.c.b16 %v753, %v745
    %v906 = vpack.c.b16 %v754, %v746
    %v907 = vpack.c.b16 %v755, %v747
    %v908 = vpack.c.b16 %v756, %v748
    %v909 = vpack.c.b16 %v757, %v749
    %v910 = vpack.c.b16 %v758, %v750
    %v911 = vpack.c.b16 %v767, %v759
    %v912 = vpack.c.b16 %v768, %v760
    %v913 = vpack.c.b16 %v769, %v761
    %v914 = vpack.c.b16 %v770, %v762
    %v915 = vpack.c.b16 %v771, %v763
    %v916 = vpack.c.b16 %v772, %v764
    %v917 = vpack.c.b16 %v773, %v765
    %v918 = vpack.c.b16 %v774, %v766
    %v919 = vpack.c.b16 %v783, %v775
    %v920 = vpack.c.b16 %v784, %v776
    %v921 = vpack.c.b16 %v785, %v777
    %v922 = vpack.c.b16 %v786, %v778
    %v923 = vpack.c.b16 %v787, %v779
    %v924 = vpack.c.b16 %v788, %v780
    %v925 = vpack.c.b16 %v789, %v781
    %v926 = vpack.c.b16 %v790, %v782
    %v927 = vpack.c.b16 %v799, %v791
    %v928 = vpack.c.b16 %v800, %v792
    %v929 = vpack.c.b16 %v801, %v793
    %v930 = vpack.c.b16 %v802, %v794
    %v931 = vpack.c.b16 %v803, %v795
    %v932 = vpack.c.b16 %v804, %v796
    %v933 = vpack.c.b16 %v805, %v797
    %v934 = vpack.c.b16 %v806, %v798
    %1063 = vmatprep.subr.bf16.mxu0 %v808
    %1064 = vmatpush1.bf16.msra.mxu0 %v807
    %1065 = vmatprep.subr.bf16.mxu0 %v816
    %1066 = vmatpush1.bf16.msra.mxu0 %v815
    %1067 = vmatprep.subr.bf16.mxu0 %v824
    %1068 = vmatpush1.bf16.msra.mxu0 %v823
    %1069 = vmatprep.subr.bf16.mxu0 %v832
    %1070 = vmatpush1.bf16.msra.mxu0 %v831
    %1071 = vmatprep.subr.bf16.mxu0 %v840
    %1072 = vmatpush1.bf16.msra.mxu0 %v839
    %1073 = vmatprep.subr.bf16.mxu0 %v848
    %1074 = vmatpush1.bf16.msra.mxu0 %v847
    %1075 = vmatprep.subr.bf16.mxu0 %v856
    %1076 = vmatpush1.bf16.msra.mxu0 %v855
    %1077 = vmatprep.subr.bf16.mxu0 %v864
    %1078 = vmatpush1.bf16.msra.mxu0 %v863
    %1079 = vmatprep.subr.bf16.mxu0 %v872
    %1080 = vmatpush1.bf16.msra.mxu0 %v871
    %1081 = vmatprep.subr.bf16.mxu0 %v880
    %1082 = vmatpush1.bf16.msra.mxu0 %v879
    %1083 = vmatprep.subr.bf16.mxu0 %v888
    %1084 = vmatpush1.bf16.msra.mxu0 %v887
    %1085 = vmatprep.subr.bf16.mxu0 %v896
    %1086 = vmatpush1.bf16.msra.mxu0 %v895
    %1087 = vmatprep.subr.bf16.mxu0 %v904
    %1088 = vmatpush1.bf16.msra.mxu0 %v903
    %1089 = vmatprep.subr.bf16.mxu0 %v912
    %1090 = vmatpush1.bf16.msra.mxu0 %v911
    %1091 = vmatprep.subr.bf16.mxu0 %v920
    %1092 = vmatpush1.bf16.msra.mxu0 %v919
    %1093 = vmatprep.subr.bf16.mxu0 %v928
    %1094 = vmatpush1.bf16.msra.mxu0 %v927
    %1095 = vmatprep.mubr.bf16.mxu0 %v252
    %1096 = vmatmul.mubr.bf16.gmra.mrb[0].mxu0 %v251
    %v1097 = vpop.f32.mrb[0].mxu0
    %v1098 = vadd.f32 %v386, %v1097
    %v1099 = vpop.f32.mrb[0].mxu0
    %v1100 = vadd.f32 %v390, %v1099
    %v1101 = vpop.f32.mrb[0].mxu0
    %v1102 = vpop.f32.mrb[0].mxu0
    %1103 = vdwg.mxu0
    %1104 = vmatprep.subr.bf16.mxu0 %v810
    %1105 = vmatpush1.bf16.msra.mxu0 %v809
    %1106 = vmatprep.subr.bf16.mxu0 %v818
    %1107 = vmatpush1.bf16.msra.mxu0 %v817
    %1108 = vmatprep.subr.bf16.mxu0 %v826
    %1109 = vmatpush1.bf16.msra.mxu0 %v825
    %1110 = vmatprep.subr.bf16.mxu0 %v834
    %1111 = vmatpush1.bf16.msra.mxu0 %v833
    %1112 = vmatprep.subr.bf16.mxu0 %v842
    %1113 = vmatpush1.bf16.msra.mxu0 %v841
    %1114 = vmatprep.subr.bf16.mxu0 %v850
    %1115 = vmatpush1.bf16.msra.mxu0 %v849
    %1116 = vmatprep.subr.bf16.mxu0 %v858
    %1117 = vmatpush1.bf16.msra.mxu0 %v857
    %1118 = vmatprep.subr.bf16.mxu0 %v866
    %1119 = vmatpush1.bf16.msra.mxu0 %v865
    %1120 = vmatprep.subr.bf16.mxu0 %v874
    %1121 = vmatpush1.bf16.msra.mxu0 %v873
    %1122 = vmatprep.subr.bf16.mxu0 %v882
    %1123 = vmatpush1.bf16.msra.mxu0 %v881
    %1124 = vmatprep.subr.bf16.mxu0 %v890
    %1125 = vmatpush1.bf16.msra.mxu0 %v889
    %1126 = vmatprep.subr.bf16.mxu0 %v898
    %1127 = vmatpush1.bf16.msra.mxu0 %v897
    %1128 = vmatprep.subr.bf16.mxu0 %v906
    %1129 = vmatpush1.bf16.msra.mxu0 %v905
    %1130 = vmatprep.subr.bf16.mxu0 %v914
    %1131 = vmatpush1.bf16.msra.mxu0 %v913
    %1132 = vmatprep.subr.bf16.mxu0 %v922
    %1133 = vmatpush1.bf16.msra.mxu0 %v921
    %1134 = vmatprep.subr.bf16.mxu0 %v930
    %1135 = vmatpush1.bf16.msra.mxu0 %v929
    %1136 = vmatprep.mubr.bf16.mxu0 %v252
    %1137 = vmatmul.mubr.bf16.gmra.mrb[0].mxu0 %v251
    %v1138 = vpop.f32.mrb[0].mxu0
    %v1139 = vadd.f32 %v394, %v1138
    %v1140 = vpop.f32.mrb[0].mxu0
    %v1141 = vadd.f32 %v398, %v1140
    %v1142 = vpop.f32.mrb[0].mxu0
    %v1143 = vpop.f32.mrb[0].mxu0
    %1144 = vdwg.mxu0
    %1145 = vmatprep.subr.bf16.mxu0 %v812
    %1146 = vmatpush1.bf16.msra.mxu0 %v811
    %1147 = vmatprep.subr.bf16.mxu0 %v820
    %1148 = vmatpush1.bf16.msra.mxu0 %v819
    %1149 = vmatprep.subr.bf16.mxu0 %v828
    %1150 = vmatpush1.bf16.msra.mxu0 %v827
    %1151 = vmatprep.subr.bf16.mxu0 %v836
    %1152 = vmatpush1.bf16.msra.mxu0 %v835
    %1153 = vmatprep.subr.bf16.mxu0 %v844
    %1154 = vmatpush1.bf16.msra.mxu0 %v843
    %1155 = vmatprep.subr.bf16.mxu0 %v852
    %1156 = vmatpush1.bf16.msra.mxu0 %v851
    %1157 = vmatprep.subr.bf16.mxu0 %v860
    %1158 = vmatpush1.bf16.msra.mxu0 %v859
    %1159 = vmatprep.subr.bf16.mxu0 %v868
    %1160 = vmatpush1.bf16.msra.mxu0 %v867
    %1161 = vmatprep.subr.bf16.mxu0 %v876
    %1162 = vmatpush1.bf16.msra.mxu0 %v875
    %1163 = vmatprep.subr.bf16.mxu0 %v884
    %1164 = vmatpush1.bf16.msra.mxu0 %v883
    %1165 = vmatprep.subr.bf16.mxu0 %v892
    %1166 = vmatpush1.bf16.msra.mxu0 %v891
    %1167 = vmatprep.subr.bf16.mxu0 %v900
    %1168 = vmatpush1.bf16.msra.mxu0 %v899
    %1169 = vmatprep.subr.bf16.mxu0 %v908
    %1170 = vmatpush1.bf16.msra.mxu0 %v907
    %1171 = vmatprep.subr.bf16.mxu0 %v916
    %1172 = vmatpush1.bf16.msra.mxu0 %v915
    %1173 = vmatprep.subr.bf16.mxu0 %v924
    %1174 = vmatpush1.bf16.msra.mxu0 %v923
    %1175 = vmatprep.subr.bf16.mxu0 %v932
    %1176 = vmatpush1.bf16.msra.mxu0 %v931
    %1177 = vmatprep.mubr.bf16.mxu0 %v252
    %1178 = vmatmul.mubr.bf16.gmra.mrb[0].mxu0 %v251
    %v1179 = vpop.f32.mrb[0].mxu0
    %v1180 = vadd.f32 %v402, %v1179
    %v1181 = vpop.f32.mrb[0].mxu0
    %v1182 = vadd.f32 %v406, %v1181
    %v1183 = vpop.f32.mrb[0].mxu0
    %v1184 = vpop.f32.mrb[0].mxu0
    %1185 = vdwg.mxu0
    %1186 = vmatprep.subr.bf16.mxu0 %v814
    %1187 = vmatpush1.bf16.msra.mxu0 %v813
    %1188 = vmatprep.subr.bf16.mxu0 %v822
    %1189 = vmatpush1.bf16.msra.mxu0 %v821
    %1190 = vmatprep.subr.bf16.mxu0 %v830
    %1191 = vmatpush1.bf16.msra.mxu0 %v829
    %1192 = vmatprep.subr.bf16.mxu0 %v838
    %1193 = vmatpush1.bf16.msra.mxu0 %v837
    %1194 = vmatprep.subr.bf16.mxu0 %v846
    %1195 = vmatpush1.bf16.msra.mxu0 %v845
    %1196 = vmatprep.subr.bf16.mxu0 %v854
    %1197 = vmatpush1.bf16.msra.mxu0 %v853
    %1198 = vmatprep.subr.bf16.mxu0 %v862
    %1199 = vmatpush1.bf16.msra.mxu0 %v861
    %1200 = vmatprep.subr.bf16.mxu0 %v870
    %1201 = vmatpush1.bf16.msra.mxu0 %v869
    %1202 = vmatprep.subr.bf16.mxu0 %v878
    %1203 = vmatpush1.bf16.msra.mxu0 %v877
    %1204 = vmatprep.subr.bf16.mxu0 %v886
    %1205 = vmatpush1.bf16.msra.mxu0 %v885
    %1206 = vmatprep.subr.bf16.mxu0 %v894
    %1207 = vmatpush1.bf16.msra.mxu0 %v893
    %1208 = vmatprep.subr.bf16.mxu0 %v902
    %1209 = vmatpush1.bf16.msra.mxu0 %v901
    %1210 = vmatprep.subr.bf16.mxu0 %v910
    %1211 = vmatpush1.bf16.msra.mxu0 %v909
    %1212 = vmatprep.subr.bf16.mxu0 %v918
    %1213 = vmatpush1.bf16.msra.mxu0 %v917
    %1214 = vmatprep.subr.bf16.mxu0 %v926
    %1215 = vmatpush1.bf16.msra.mxu0 %v925
    %1216 = vmatprep.subr.bf16.mxu0 %v934
    %1217 = vmatpush1.bf16.msra.mxu0 %v933
    %1218 = vmatprep.mubr.bf16.mxu0 %v252
    %1219 = vmatmul.mubr.bf16.gmra.mrb[0].mxu0 %v251
    %v1220 = vpop.f32.mrb[0].mxu0
    %v1221 = vadd.f32 %v410, %v1220
    %v1222 = vpop.f32.mrb[0].mxu0
    %v1223 = vadd.f32 %v414, %v1222
    %v1224 = vpop.f32.mrb[0].mxu0
    %v1225 = vpop.f32.mrb[0].mxu0
    %1226 = vdwg.mxu0
    %v1227 = vmul.f32 %v1098, 0.01
    %v1228 = vmul.f32 %v1100, 0.01
    %v1229 = vmul.f32 %v1139, 0.01
    %v1230 = vmul.f32 %v1141, 0.01
    %v1231 = vmul.f32 %v1180, 0.01
    %v1232 = vmul.f32 %v1182, 0.01
    %v1233 = vmul.f32 %v1221, 0.01
    %v1234 = vmul.f32 %v1223, 0.01
    %v1235 = vmax.f32 %v1098, %v1227
    %v1236 = vmax.f32 %v1100, %v1228
    %v1237 = vmax.f32 %v1139, %v1229
    %v1238 = vmax.f32 %v1141, %v1230
    %v1239 = vmax.f32 %v1180, %v1231
    %v1240 = vmax.f32 %v1182, %v1232
    %v1241 = vmax.f32 %v1221, %v1233
    %v1242 = vmax.f32 %v1223, %v1234
    %v1243 = vpack.c.bf16 %v1235, %v1235
    %v1244 = vpack.c.bf16 %v1236, %v1236
    %v1245 = vpack.c.bf16 %v1237, %v1237
    %v1246 = vpack.c.bf16 %v1238, %v1238
    %v1247 = vpack.c.bf16 %v1239, %v1239
    %v1248 = vpack.c.bf16 %v1240, %v1240
    %v1249 = vpack.c.bf16 %v1241, %v1241
    %v1250 = vpack.c.bf16 %v1242, %v1242
    %v1251 = vld [vmem:[#allocation11] sm:$0xff]
    %v1252 = vld [vmem:[#allocation11 + $0x8] sm:$0xff]
    %v1253 = vld [vmem:[#allocation11 + $0x10] sm:$0xff]
    %v1254 = vld [vmem:[#allocation11 + $0x18] sm:$0xff]
    %v1255 = vld [vmem:[#allocation11 + $0x20] sm:$0xff]
    %v1256 = vld [vmem:[#allocation11 + $0x28] sm:$0xff]
    %v1257 = vld [vmem:[#allocation11 + $0x30] sm:$0xff]
    %v1258 = vld [vmem:[#allocation11 + $0x38] sm:$0xff]
    %v1259 = vld [vmem:[#allocation11 + $0x40] sm:$0xff]
    %v1260 = vld [vmem:[#allocation11 + $0x48] sm:$0xff]
    %v1261 = vld [vmem:[#allocation11 + $0x50] sm:$0xff]
    %v1262 = vld [vmem:[#allocation11 + $0x58] sm:$0xff]
    %v1263 = vld [vmem:[#allocation11 + $0x60] sm:$0xff]
    %v1264 = vld [vmem:[#allocation11 + $0x68] sm:$0xff]
    %v1265 = vld [vmem:[#allocation11 + $0x70] sm:$0xff]
    %v1266 = vld [vmem:[#allocation11 + $0x78] sm:$0xff]
    %v1267 = vld [vmem:[#allocation11 + $0x80] sm:$0xff]
    %v1268 = vld [vmem:[#allocation11 + $0x88] sm:$0xff]
    %v1269 = vld [vmem:[#allocation11 + $0x90] sm:$0xff]
    %v1270 = vld [vmem:[#allocation11 + $0x98] sm:$0xff]
    %v1271 = vld [vmem:[#allocation11 + $0xa0] sm:$0xff]
    %v1272 = vld [vmem:[#allocation11 + $0xa8] sm:$0xff]
    %v1273 = vld [vmem:[#allocation11 + $0xb0] sm:$0xff]
    %v1274 = vld [vmem:[#allocation11 + $0xb8] sm:$0xff]
    %v1275 = vld [vmem:[#allocation11 + $0xc0] sm:$0xff]
    %v1276 = vld [vmem:[#allocation11 + $0xc8] sm:$0xff]
    %v1277 = vld [vmem:[#allocation11 + $0xd0] sm:$0xff]
    %v1278 = vld [vmem:[#allocation11 + $0xd8] sm:$0xff]
    %v1279 = vld [vmem:[#allocation11 + $0xe0] sm:$0xff]
    %v1280 = vld [vmem:[#allocation11 + $0xe8] sm:$0xff]
    %v1281 = vld [vmem:[#allocation11 + $0xf0] sm:$0xff]
    %v1282 = vld [vmem:[#allocation11 + $0xf8] sm:$0xff]
    %v1283 = vld [vmem:[#allocation11 + $0x100] sm:$0xff]
    %v1284 = vld [vmem:[#allocation11 + $0x108] sm:$0xff]
    %v1285 = vld [vmem:[#allocation11 + $0x110] sm:$0xff]
    %v1286 = vld [vmem:[#allocation11 + $0x118] sm:$0xff]
    %v1287 = vld [vmem:[#allocation11 + $0x120] sm:$0xff]
    %v1288 = vld [vmem:[#allocation11 + $0x128] sm:$0xff]
    %v1289 = vld [vmem:[#allocation11 + $0x130] sm:$0xff]
    %v1290 = vld [vmem:[#allocation11 + $0x138] sm:$0xff]
    %v1291 = vld [vmem:[#allocation11 + $0x140] sm:$0xff]
    %v1292 = vld [vmem:[#allocation11 + $0x148] sm:$0xff]
    %v1293 = vld [vmem:[#allocation11 + $0x150] sm:$0xff]
    %v1294 = vld [vmem:[#allocation11 + $0x158] sm:$0xff]
    %v1295 = vld [vmem:[#allocation11 + $0x160] sm:$0xff]
    %v1296 = vld [vmem:[#allocation11 + $0x168] sm:$0xff]
    %v1297 = vld [vmem:[#allocation11 + $0x170] sm:$0xff]
    %v1298 = vld [vmem:[#allocation11 + $0x178] sm:$0xff]
    %v1299 = vld [vmem:[#allocation11 + $0x180] sm:$0xff]
    %v1300 = vld [vmem:[#allocation11 + $0x188] sm:$0xff]
    %v1301 = vld [vmem:[#allocation11 + $0x190] sm:$0xff]
    %v1302 = vld [vmem:[#allocation11 + $0x198] sm:$0xff]
    %v1303 = vld [vmem:[#allocation11 + $0x1a0] sm:$0xff]
    %v1304 = vld [vmem:[#allocation11 + $0x1a8] sm:$0xff]
    %v1305 = vld [vmem:[#allocation11 + $0x1b0] sm:$0xff]
    %v1306 = vld [vmem:[#allocation11 + $0x1b8] sm:$0xff]
    %v1307 = vld [vmem:[#allocation11 + $0x1c0] sm:$0xff]
    %v1308 = vld [vmem:[#allocation11 + $0x1c8] sm:$0xff]
    %v1309 = vld [vmem:[#allocation11 + $0x1d0] sm:$0xff]
    %v1310 = vld [vmem:[#allocation11 + $0x1d8] sm:$0xff]
    %v1311 = vld [vmem:[#allocation11 + $0x1e0] sm:$0xff]
    %v1312 = vld [vmem:[#allocation11 + $0x1e8] sm:$0xff]
    %v1313 = vld [vmem:[#allocation11 + $0x1f0] sm:$0xff]
    %v1314 = vld [vmem:[#allocation11 + $0x1f8] sm:$0xff]
    %v1315 = vld [vmem:[#allocation11 + $0x200] sm:$0xff]
    %v1316 = vld [vmem:[#allocation11 + $0x208] sm:$0xff]
    %v1317 = vld [vmem:[#allocation11 + $0x210] sm:$0xff]
    %v1318 = vld [vmem:[#allocation11 + $0x218] sm:$0xff]
    %v1319 = vld [vmem:[#allocation11 + $0x220] sm:$0xff]
    %v1320 = vld [vmem:[#allocation11 + $0x228] sm:$0xff]
    %v1321 = vld [vmem:[#allocation11 + $0x230] sm:$0xff]
    %v1322 = vld [vmem:[#allocation11 + $0x238] sm:$0xff]
    %v1323 = vld [vmem:[#allocation11 + $0x240] sm:$0xff]
    %v1324 = vld [vmem:[#allocation11 + $0x248] sm:$0xff]
    %v1325 = vld [vmem:[#allocation11 + $0x250] sm:$0xff]
    %v1326 = vld [vmem:[#allocation11 + $0x258] sm:$0xff]
    %v1327 = vld [vmem:[#allocation11 + $0x260] sm:$0xff]
    %v1328 = vld [vmem:[#allocation11 + $0x268] sm:$0xff]
    %v1329 = vld [vmem:[#allocation11 + $0x270] sm:$0xff]
    %v1330 = vld [vmem:[#allocation11 + $0x278] sm:$0xff]
    %v1331 = vld [vmem:[#allocation11 + $0x280] sm:$0xff]
    %v1332 = vld [vmem:[#allocation11 + $0x288] sm:$0xff]
    %v1333 = vld [vmem:[#allocation11 + $0x290] sm:$0xff]
    %v1334 = vld [vmem:[#allocation11 + $0x298] sm:$0xff]
    %v1335 = vld [vmem:[#allocation11 + $0x2a0] sm:$0xff]
    %v1336 = vld [vmem:[#allocation11 + $0x2a8] sm:$0xff]
    %v1337 = vld [vmem:[#allocation11 + $0x2b0] sm:$0xff]
    %v1338 = vld [vmem:[#allocation11 + $0x2b8] sm:$0xff]
    %v1339 = vld [vmem:[#allocation11 + $0x2c0] sm:$0xff]
    %v1340 = vld [vmem:[#allocation11 + $0x2c8] sm:$0xff]
    %v1341 = vld [vmem:[#allocation11 + $0x2d0] sm:$0xff]
    %v1342 = vld [vmem:[#allocation11 + $0x2d8] sm:$0xff]
    %v1343 = vld [vmem:[#allocation11 + $0x2e0] sm:$0xff]
    %v1344 = vld [vmem:[#allocation11 + $0x2e8] sm:$0xff]
    %v1345 = vld [vmem:[#allocation11 + $0x2f0] sm:$0xff]
    %v1346 = vld [vmem:[#allocation11 + $0x2f8] sm:$0xff]
    %v1347 = vld [vmem:[#allocation11 + $0x300] sm:$0xff]
    %v1348 = vld [vmem:[#allocation11 + $0x308] sm:$0xff]
    %v1349 = vld [vmem:[#allocation11 + $0x310] sm:$0xff]
    %v1350 = vld [vmem:[#allocation11 + $0x318] sm:$0xff]
    %v1351 = vld [vmem:[#allocation11 + $0x320] sm:$0xff]
    %v1352 = vld [vmem:[#allocation11 + $0x328] sm:$0xff]
    %v1353 = vld [vmem:[#allocation11 + $0x330] sm:$0xff]
    %v1354 = vld [vmem:[#allocation11 + $0x338] sm:$0xff]
    %v1355 = vld [vmem:[#allocation11 + $0x340] sm:$0xff]
    %v1356 = vld [vmem:[#allocation11 + $0x348] sm:$0xff]
    %v1357 = vld [vmem:[#allocation11 + $0x350] sm:$0xff]
    %v1358 = vld [vmem:[#allocation11 + $0x358] sm:$0xff]
    %v1359 = vld [vmem:[#allocation11 + $0x360] sm:$0xff]
    %v1360 = vld [vmem:[#allocation11 + $0x368] sm:$0xff]
    %v1361 = vld [vmem:[#allocation11 + $0x370] sm:$0xff]
    %v1362 = vld [vmem:[#allocation11 + $0x378] sm:$0xff]
    %v1363 = vld [vmem:[#allocation11 + $0x380] sm:$0xff]
    %v1364 = vld [vmem:[#allocation11 + $0x388] sm:$0xff]
    %v1365 = vld [vmem:[#allocation11 + $0x390] sm:$0xff]
    %v1366 = vld [vmem:[#allocation11 + $0x398] sm:$0xff]
    %v1367 = vld [vmem:[#allocation11 + $0x3a0] sm:$0xff]
    %v1368 = vld [vmem:[#allocation11 + $0x3a8] sm:$0xff]
    %v1369 = vld [vmem:[#allocation11 + $0x3b0] sm:$0xff]
    %v1370 = vld [vmem:[#allocation11 + $0x3b8] sm:$0xff]
    %v1371 = vld [vmem:[#allocation11 + $0x3c0] sm:$0xff]
    %v1372 = vld [vmem:[#allocation11 + $0x3c8] sm:$0xff]
    %v1373 = vld [vmem:[#allocation11 + $0x3d0] sm:$0xff]
    %v1374 = vld [vmem:[#allocation11 + $0x3d8] sm:$0xff]
    %v1375 = vld [vmem:[#allocation11 + $0x3e0] sm:$0xff]
    %v1376 = vld [vmem:[#allocation11 + $0x3e8] sm:$0xff]
    %v1377 = vld [vmem:[#allocation11 + $0x3f0] sm:$0xff]
    %v1378 = vld [vmem:[#allocation11 + $0x3f8] sm:$0xff]
    %v1379 = vld [vmem:[#allocation11 + $0x400] sm:$0xff]
    %v1380 = vld [vmem:[#allocation11 + $0x408] sm:$0xff]
    %v1381 = vld [vmem:[#allocation11 + $0x410] sm:$0xff]
    %v1382 = vld [vmem:[#allocation11 + $0x418] sm:$0xff]
    %v1383 = vld [vmem:[#allocation11 + $0x420] sm:$0xff]
    %v1384 = vld [vmem:[#allocation11 + $0x428] sm:$0xff]
    %v1385 = vld [vmem:[#allocation11 + $0x430] sm:$0xff]
    %v1386 = vld [vmem:[#allocation11 + $0x438] sm:$0xff]
    %v1387 = vld [vmem:[#allocation11 + $0x440] sm:$0xff]
    %v1388 = vld [vmem:[#allocation11 + $0x448] sm:$0xff]
    %v1389 = vld [vmem:[#allocation11 + $0x450] sm:$0xff]
    %v1390 = vld [vmem:[#allocation11 + $0x458] sm:$0xff]
    %v1391 = vld [vmem:[#allocation11 + $0x460] sm:$0xff]
    %v1392 = vld [vmem:[#allocation11 + $0x468] sm:$0xff]
    %v1393 = vld [vmem:[#allocation11 + $0x470] sm:$0xff]
    %v1394 = vld [vmem:[#allocation11 + $0x478] sm:$0xff]
    %v1395 = vld [vmem:[#allocation11 + $0x480] sm:$0xff]
    %v1396 = vld [vmem:[#allocation11 + $0x488] sm:$0xff]
    %v1397 = vld [vmem:[#allocation11 + $0x490] sm:$0xff]
    %v1398 = vld [vmem:[#allocation11 + $0x498] sm:$0xff]
    %v1399 = vld [vmem:[#allocation11 + $0x4a0] sm:$0xff]
    %v1400 = vld [vmem:[#allocation11 + $0x4a8] sm:$0xff]
    %v1401 = vld [vmem:[#allocation11 + $0x4b0] sm:$0xff]
    %v1402 = vld [vmem:[#allocation11 + $0x4b8] sm:$0xff]
    %v1403 = vld [vmem:[#allocation11 + $0x4c0] sm:$0xff]
    %v1404 = vld [vmem:[#allocation11 + $0x4c8] sm:$0xff]
    %v1405 = vld [vmem:[#allocation11 + $0x4d0] sm:$0xff]
    %v1406 = vld [vmem:[#allocation11 + $0x4d8] sm:$0xff]
    %v1407 = vld [vmem:[#allocation11 + $0x4e0] sm:$0xff]
    %v1408 = vld [vmem:[#allocation11 + $0x4e8] sm:$0xff]
    %v1409 = vld [vmem:[#allocation11 + $0x4f0] sm:$0xff]
    %v1410 = vld [vmem:[#allocation11 + $0x4f8] sm:$0xff]
    %v1411 = vld [vmem:[#allocation11 + $0x500] sm:$0xff]
    %v1412 = vld [vmem:[#allocation11 + $0x508] sm:$0xff]
    %v1413 = vld [vmem:[#allocation11 + $0x510] sm:$0xff]
    %v1414 = vld [vmem:[#allocation11 + $0x518] sm:$0xff]
    %v1415 = vld [vmem:[#allocation11 + $0x520] sm:$0xff]
    %v1416 = vld [vmem:[#allocation11 + $0x528] sm:$0xff]
    %v1417 = vld [vmem:[#allocation11 + $0x530] sm:$0xff]
    %v1418 = vld [vmem:[#allocation11 + $0x538] sm:$0xff]
    %v1419 = vld [vmem:[#allocation11 + $0x540] sm:$0xff]
    %v1420 = vld [vmem:[#allocation11 + $0x548] sm:$0xff]
    %v1421 = vld [vmem:[#allocation11 + $0x550] sm:$0xff]
    %v1422 = vld [vmem:[#allocation11 + $0x558] sm:$0xff]
    %v1423 = vld [vmem:[#allocation11 + $0x560] sm:$0xff]
    %v1424 = vld [vmem:[#allocation11 + $0x568] sm:$0xff]
    %v1425 = vld [vmem:[#allocation11 + $0x570] sm:$0xff]
    %v1426 = vld [vmem:[#allocation11 + $0x578] sm:$0xff]
    %v1427 = vld [vmem:[#allocation11 + $0x580] sm:$0xff]
    %v1428 = vld [vmem:[#allocation11 + $0x588] sm:$0xff]
    %v1429 = vld [vmem:[#allocation11 + $0x590] sm:$0xff]
    %v1430 = vld [vmem:[#allocation11 + $0x598] sm:$0xff]
    %v1431 = vld [vmem:[#allocation11 + $0x5a0] sm:$0xff]
    %v1432 = vld [vmem:[#allocation11 + $0x5a8] sm:$0xff]
    %v1433 = vld [vmem:[#allocation11 + $0x5b0] sm:$0xff]
    %v1434 = vld [vmem:[#allocation11 + $0x5b8] sm:$0xff]
    %v1435 = vld [vmem:[#allocation11 + $0x5c0] sm:$0xff]
    %v1436 = vld [vmem:[#allocation11 + $0x5c8] sm:$0xff]
    %v1437 = vld [vmem:[#allocation11 + $0x5d0] sm:$0xff]
    %v1438 = vld [vmem:[#allocation11 + $0x5d8] sm:$0xff]
    %v1439 = vld [vmem:[#allocation11 + $0x5e0] sm:$0xff]
    %v1440 = vld [vmem:[#allocation11 + $0x5e8] sm:$0xff]
    %v1441 = vld [vmem:[#allocation11 + $0x5f0] sm:$0xff]
    %v1442 = vld [vmem:[#allocation11 + $0x5f8] sm:$0xff]
    %v1443 = vld [vmem:[#allocation11 + $0x600] sm:$0xff]
    %v1444 = vld [vmem:[#allocation11 + $0x608] sm:$0xff]
    %v1445 = vld [vmem:[#allocation11 + $0x610] sm:$0xff]
    %v1446 = vld [vmem:[#allocation11 + $0x618] sm:$0xff]
    %v1447 = vld [vmem:[#allocation11 + $0x620] sm:$0xff]
    %v1448 = vld [vmem:[#allocation11 + $0x628] sm:$0xff]
    %v1449 = vld [vmem:[#allocation11 + $0x630] sm:$0xff]
    %v1450 = vld [vmem:[#allocation11 + $0x638] sm:$0xff]
    %v1451 = vld [vmem:[#allocation11 + $0x640] sm:$0xff]
    %v1452 = vld [vmem:[#allocation11 + $0x648] sm:$0xff]
    %v1453 = vld [vmem:[#allocation11 + $0x650] sm:$0xff]
    %v1454 = vld [vmem:[#allocation11 + $0x658] sm:$0xff]
    %v1455 = vld [vmem:[#allocation11 + $0x660] sm:$0xff]
    %v1456 = vld [vmem:[#allocation11 + $0x668] sm:$0xff]
    %v1457 = vld [vmem:[#allocation11 + $0x670] sm:$0xff]
    %v1458 = vld [vmem:[#allocation11 + $0x678] sm:$0xff]
    %v1459 = vld [vmem:[#allocation11 + $0x680] sm:$0xff]
    %v1460 = vld [vmem:[#allocation11 + $0x688] sm:$0xff]
    %v1461 = vld [vmem:[#allocation11 + $0x690] sm:$0xff]
    %v1462 = vld [vmem:[#allocation11 + $0x698] sm:$0xff]
    %v1463 = vld [vmem:[#allocation11 + $0x6a0] sm:$0xff]
    %v1464 = vld [vmem:[#allocation11 + $0x6a8] sm:$0xff]
    %v1465 = vld [vmem:[#allocation11 + $0x6b0] sm:$0xff]
    %v1466 = vld [vmem:[#allocation11 + $0x6b8] sm:$0xff]
    %v1467 = vld [vmem:[#allocation11 + $0x6c0] sm:$0xff]
    %v1468 = vld [vmem:[#allocation11 + $0x6c8] sm:$0xff]
    %v1469 = vld [vmem:[#allocation11 + $0x6d0] sm:$0xff]
    %v1470 = vld [vmem:[#allocation11 + $0x6d8] sm:$0xff]
    %v1471 = vld [vmem:[#allocation11 + $0x6e0] sm:$0xff]
    %v1472 = vld [vmem:[#allocation11 + $0x6e8] sm:$0xff]
    %v1473 = vld [vmem:[#allocation11 + $0x6f0] sm:$0xff]
    %v1474 = vld [vmem:[#allocation11 + $0x6f8] sm:$0xff]
    %v1475 = vld [vmem:[#allocation11 + $0x700] sm:$0xff]
    %v1476 = vld [vmem:[#allocation11 + $0x708] sm:$0xff]
    %v1477 = vld [vmem:[#allocation11 + $0x710] sm:$0xff]
    %v1478 = vld [vmem:[#allocation11 + $0x718] sm:$0xff]
    %v1479 = vld [vmem:[#allocation11 + $0x720] sm:$0xff]
    %v1480 = vld [vmem:[#allocation11 + $0x728] sm:$0xff]
    %v1481 = vld [vmem:[#allocation11 + $0x730] sm:$0xff]
    %v1482 = vld [vmem:[#allocation11 + $0x738] sm:$0xff]
    %v1483 = vld [vmem:[#allocation11 + $0x740] sm:$0xff]
    %v1484 = vld [vmem:[#allocation11 + $0x748] sm:$0xff]
    %v1485 = vld [vmem:[#allocation11 + $0x750] sm:$0xff]
    %v1486 = vld [vmem:[#allocation11 + $0x758] sm:$0xff]
    %v1487 = vld [vmem:[#allocation11 + $0x760] sm:$0xff]
    %v1488 = vld [vmem:[#allocation11 + $0x768] sm:$0xff]
    %v1489 = vld [vmem:[#allocation11 + $0x770] sm:$0xff]
    %v1490 = vld [vmem:[#allocation11 + $0x778] sm:$0xff]
    %v1491 = vld [vmem:[#allocation11 + $0x780] sm:$0xff]
    %v1492 = vld [vmem:[#allocation11 + $0x788] sm:$0xff]
    %v1493 = vld [vmem:[#allocation11 + $0x790] sm:$0xff]
    %v1494 = vld [vmem:[#allocation11 + $0x798] sm:$0xff]
    %v1495 = vld [vmem:[#allocation11 + $0x7a0] sm:$0xff]
    %v1496 = vld [vmem:[#allocation11 + $0x7a8] sm:$0xff]
    %v1497 = vld [vmem:[#allocation11 + $0x7b0] sm:$0xff]
    %v1498 = vld [vmem:[#allocation11 + $0x7b8] sm:$0xff]
    %v1499 = vld [vmem:[#allocation11 + $0x7c0] sm:$0xff]
    %v1500 = vld [vmem:[#allocation11 + $0x7c8] sm:$0xff]
    %v1501 = vld [vmem:[#allocation11 + $0x7d0] sm:$0xff]
    %v1502 = vld [vmem:[#allocation11 + $0x7d8] sm:$0xff]
    %v1503 = vld [vmem:[#allocation11 + $0x7e0] sm:$0xff]
    %v1504 = vld [vmem:[#allocation11 + $0x7e8] sm:$0xff]
    %v1505 = vld [vmem:[#allocation11 + $0x7f0] sm:$0xff]
    %v1506 = vld [vmem:[#allocation11 + $0x7f8] sm:$0xff]
    %v1507 = vld [vmem:[#allocation11 + $0x800] sm:$0xff]
    %v1508 = vld [vmem:[#allocation11 + $0x808] sm:$0xff]
    %v1509 = vld [vmem:[#allocation11 + $0x810] sm:$0xff]
    %v1510 = vld [vmem:[#allocation11 + $0x818] sm:$0xff]
    %v1511 = vld [vmem:[#allocation11 + $0x820] sm:$0xff]
    %v1512 = vld [vmem:[#allocation11 + $0x828] sm:$0xff]
    %v1513 = vld [vmem:[#allocation11 + $0x830] sm:$0xff]
    %v1514 = vld [vmem:[#allocation11 + $0x838] sm:$0xff]
    %v1515 = vld [vmem:[#allocation11 + $0x840] sm:$0xff]
    %v1516 = vld [vmem:[#allocation11 + $0x848] sm:$0xff]
    %v1517 = vld [vmem:[#allocation11 + $0x850] sm:$0xff]
    %v1518 = vld [vmem:[#allocation11 + $0x858] sm:$0xff]
    %v1519 = vld [vmem:[#allocation11 + $0x860] sm:$0xff]
    %v1520 = vld [vmem:[#allocation11 + $0x868] sm:$0xff]
    %v1521 = vld [vmem:[#allocation11 + $0x870] sm:$0xff]
    %v1522 = vld [vmem:[#allocation11 + $0x878] sm:$0xff]
    %v1523 = vld [vmem:[#allocation11 + $0x880] sm:$0xff]
    %v1524 = vld [vmem:[#allocation11 + $0x888] sm:$0xff]
    %v1525 = vld [vmem:[#allocation11 + $0x890] sm:$0xff]
    %v1526 = vld [vmem:[#allocation11 + $0x898] sm:$0xff]
    %v1527 = vld [vmem:[#allocation11 + $0x8a0] sm:$0xff]
    %v1528 = vld [vmem:[#allocation11 + $0x8a8] sm:$0xff]
    %v1529 = vld [vmem:[#allocation11 + $0x8b0] sm:$0xff]
    %v1530 = vld [vmem:[#allocation11 + $0x8b8] sm:$0xff]
    %v1531 = vld [vmem:[#allocation11 + $0x8c0] sm:$0xff]
    %v1532 = vld [vmem:[#allocation11 + $0x8c8] sm:$0xff]
    %v1533 = vld [vmem:[#allocation11 + $0x8d0] sm:$0xff]
    %v1534 = vld [vmem:[#allocation11 + $0x8d8] sm:$0xff]
    %v1535 = vld [vmem:[#allocation11 + $0x8e0] sm:$0xff]
    %v1536 = vld [vmem:[#allocation11 + $0x8e8] sm:$0xff]
    %v1537 = vld [vmem:[#allocation11 + $0x8f0] sm:$0xff]
    %v1538 = vld [vmem:[#allocation11 + $0x8f8] sm:$0xff]
    %v1539 = vld [vmem:[#allocation11 + $0x900] sm:$0xff]
    %v1540 = vld [vmem:[#allocation11 + $0x908] sm:$0xff]
    %v1541 = vld [vmem:[#allocation11 + $0x910] sm:$0xff]
    %v1542 = vld [vmem:[#allocation11 + $0x918] sm:$0xff]
    %v1543 = vld [vmem:[#allocation11 + $0x920] sm:$0xff]
    %v1544 = vld [vmem:[#allocation11 + $0x928] sm:$0xff]
    %v1545 = vld [vmem:[#allocation11 + $0x930] sm:$0xff]
    %v1546 = vld [vmem:[#allocation11 + $0x938] sm:$0xff]
    %v1547 = vld [vmem:[#allocation11 + $0x940] sm:$0xff]
    %v1548 = vld [vmem:[#allocation11 + $0x948] sm:$0xff]
    %v1549 = vld [vmem:[#allocation11 + $0x950] sm:$0xff]
    %v1550 = vld [vmem:[#allocation11 + $0x958] sm:$0xff]
    %v1551 = vld [vmem:[#allocation11 + $0x960] sm:$0xff]
    %v1552 = vld [vmem:[#allocation11 + $0x968] sm:$0xff]
    %v1553 = vld [vmem:[#allocation11 + $0x970] sm:$0xff]
    %v1554 = vld [vmem:[#allocation11 + $0x978] sm:$0xff]
    %v1555 = vld [vmem:[#allocation11 + $0x980] sm:$0xff]
    %v1556 = vld [vmem:[#allocation11 + $0x988] sm:$0xff]
    %v1557 = vld [vmem:[#allocation11 + $0x990] sm:$0xff]
    %v1558 = vld [vmem:[#allocation11 + $0x998] sm:$0xff]
    %v1559 = vld [vmem:[#allocation11 + $0x9a0] sm:$0xff]
    %v1560 = vld [vmem:[#allocation11 + $0x9a8] sm:$0xff]
    %v1561 = vld [vmem:[#allocation11 + $0x9b0] sm:$0xff]
    %v1562 = vld [vmem:[#allocation11 + $0x9b8] sm:$0xff]
    %v1563 = vld [vmem:[#allocation11 + $0x9c0] sm:$0xff]
    %v1564 = vld [vmem:[#allocation11 + $0x9c8] sm:$0xff]
    %v1565 = vld [vmem:[#allocation11 + $0x9d0] sm:$0xff]
    %v1566 = vld [vmem:[#allocation11 + $0x9d8] sm:$0xff]
    %v1567 = vld [vmem:[#allocation11 + $0x9e0] sm:$0xff]
    %v1568 = vld [vmem:[#allocation11 + $0x9e8] sm:$0xff]
    %v1569 = vld [vmem:[#allocation11 + $0x9f0] sm:$0xff]
    %v1570 = vld [vmem:[#allocation11 + $0x9f8] sm:$0xff]
    %v1571 = vld [vmem:[#allocation11 + $0xa00] sm:$0xff]
    %v1572 = vld [vmem:[#allocation11 + $0xa08] sm:$0xff]
    %v1573 = vld [vmem:[#allocation11 + $0xa10] sm:$0xff]
    %v1574 = vld [vmem:[#allocation11 + $0xa18] sm:$0xff]
    %v1575 = vld [vmem:[#allocation11 + $0xa20] sm:$0xff]
    %v1576 = vld [vmem:[#allocation11 + $0xa28] sm:$0xff]
    %v1577 = vld [vmem:[#allocation11 + $0xa30] sm:$0xff]
    %v1578 = vld [vmem:[#allocation11 + $0xa38] sm:$0xff]
    %v1579 = vld [vmem:[#allocation11 + $0xa40] sm:$0xff]
    %v1580 = vld [vmem:[#allocation11 + $0xa48] sm:$0xff]
    %v1581 = vld [vmem:[#allocation11 + $0xa50] sm:$0xff]
    %v1582 = vld [vmem:[#allocation11 + $0xa58] sm:$0xff]
    %v1583 = vld [vmem:[#allocation11 + $0xa60] sm:$0xff]
    %v1584 = vld [vmem:[#allocation11 + $0xa68] sm:$0xff]
    %v1585 = vld [vmem:[#allocation11 + $0xa70] sm:$0xff]
    %v1586 = vld [vmem:[#allocation11 + $0xa78] sm:$0xff]
    %v1587 = vld [vmem:[#allocation11 + $0xa80] sm:$0xff]
    %v1588 = vld [vmem:[#allocation11 + $0xa88] sm:$0xff]
    %v1589 = vld [vmem:[#allocation11 + $0xa90] sm:$0xff]
    %v1590 = vld [vmem:[#allocation11 + $0xa98] sm:$0xff]
    %v1591 = vld [vmem:[#allocation11 + $0xaa0] sm:$0xff]
    %v1592 = vld [vmem:[#allocation11 + $0xaa8] sm:$0xff]
    %v1593 = vld [vmem:[#allocation11 + $0xab0] sm:$0xff]
    %v1594 = vld [vmem:[#allocation11 + $0xab8] sm:$0xff]
    %v1595 = vld [vmem:[#allocation11 + $0xac0] sm:$0xff]
    %v1596 = vld [vmem:[#allocation11 + $0xac8] sm:$0xff]
    %v1597 = vld [vmem:[#allocation11 + $0xad0] sm:$0xff]
    %v1598 = vld [vmem:[#allocation11 + $0xad8] sm:$0xff]
    %v1599 = vld [vmem:[#allocation11 + $0xae0] sm:$0xff]
    %v1600 = vld [vmem:[#allocation11 + $0xae8] sm:$0xff]
    %v1601 = vld [vmem:[#allocation11 + $0xaf0] sm:$0xff]
    %v1602 = vld [vmem:[#allocation11 + $0xaf8] sm:$0xff]
    %v1603 = vld [vmem:[#allocation11 + $0xb00] sm:$0xff]
    %v1604 = vld [vmem:[#allocation11 + $0xb08] sm:$0xff]
    %v1605 = vld [vmem:[#allocation11 + $0xb10] sm:$0xff]
    %v1606 = vld [vmem:[#allocation11 + $0xb18] sm:$0xff]
    %v1607 = vld [vmem:[#allocation11 + $0xb20] sm:$0xff]
    %v1608 = vld [vmem:[#allocation11 + $0xb28] sm:$0xff]
    %v1609 = vld [vmem:[#allocation11 + $0xb30] sm:$0xff]
    %v1610 = vld [vmem:[#allocation11 + $0xb38] sm:$0xff]
    %v1611 = vld [vmem:[#allocation11 + $0xb40] sm:$0xff]
    %v1612 = vld [vmem:[#allocation11 + $0xb48] sm:$0xff]
    %v1613 = vld [vmem:[#allocation11 + $0xb50] sm:$0xff]
    %v1614 = vld [vmem:[#allocation11 + $0xb58] sm:$0xff]
    %v1615 = vld [vmem:[#allocation11 + $0xb60] sm:$0xff]
    %v1616 = vld [vmem:[#allocation11 + $0xb68] sm:$0xff]
    %v1617 = vld [vmem:[#allocation11 + $0xb70] sm:$0xff]
    %v1618 = vld [vmem:[#allocation11 + $0xb78] sm:$0xff]
    %v1619 = vld [vmem:[#allocation11 + $0xb80] sm:$0xff]
    %v1620 = vld [vmem:[#allocation11 + $0xb88] sm:$0xff]
    %v1621 = vld [vmem:[#allocation11 + $0xb90] sm:$0xff]
    %v1622 = vld [vmem:[#allocation11 + $0xb98] sm:$0xff]
    %v1623 = vld [vmem:[#allocation11 + $0xba0] sm:$0xff]
    %v1624 = vld [vmem:[#allocation11 + $0xba8] sm:$0xff]
    %v1625 = vld [vmem:[#allocation11 + $0xbb0] sm:$0xff]
    %v1626 = vld [vmem:[#allocation11 + $0xbb8] sm:$0xff]
    %v1627 = vld [vmem:[#allocation11 + $0xbc0] sm:$0xff]
    %v1628 = vld [vmem:[#allocation11 + $0xbc8] sm:$0xff]
    %v1629 = vld [vmem:[#allocation11 + $0xbd0] sm:$0xff]
    %v1630 = vld [vmem:[#allocation11 + $0xbd8] sm:$0xff]
    %v1631 = vld [vmem:[#allocation11 + $0xbe0] sm:$0xff]
    %v1632 = vld [vmem:[#allocation11 + $0xbe8] sm:$0xff]
    %v1633 = vld [vmem:[#allocation11 + $0xbf0] sm:$0xff]
    %v1634 = vld [vmem:[#allocation11 + $0xbf8] sm:$0xff]
    %v1635 = vld [vmem:[#allocation11 + $0xc00] sm:$0xff]
    %v1636 = vld [vmem:[#allocation11 + $0xc08] sm:$0xff]
    %v1637 = vld [vmem:[#allocation11 + $0xc10] sm:$0xff]
    %v1638 = vld [vmem:[#allocation11 + $0xc18] sm:$0xff]
    %v1639 = vld [vmem:[#allocation11 + $0xc20] sm:$0xff]
    %v1640 = vld [vmem:[#allocation11 + $0xc28] sm:$0xff]
    %v1641 = vld [vmem:[#allocation11 + $0xc30] sm:$0xff]
    %v1642 = vld [vmem:[#allocation11 + $0xc38] sm:$0xff]
    %v1643 = vld [vmem:[#allocation11 + $0xc40] sm:$0xff]
    %v1644 = vld [vmem:[#allocation11 + $0xc48] sm:$0xff]
    %v1645 = vld [vmem:[#allocation11 + $0xc50] sm:$0xff]
    %v1646 = vld [vmem:[#allocation11 + $0xc58] sm:$0xff]
    %v1647 = vld [vmem:[#allocation11 + $0xc60] sm:$0xff]
    %v1648 = vld [vmem:[#allocation11 + $0xc68] sm:$0xff]
    %v1649 = vld [vmem:[#allocation11 + $0xc70] sm:$0xff]
    %v1650 = vld [vmem:[#allocation11 + $0xc78] sm:$0xff]
    %v1651 = vld [vmem:[#allocation11 + $0xc80] sm:$0xff]
    %v1652 = vld [vmem:[#allocation11 + $0xc88] sm:$0xff]
    %v1653 = vld [vmem:[#allocation11 + $0xc90] sm:$0xff]
    %v1654 = vld [vmem:[#allocation11 + $0xc98] sm:$0xff]
    %v1655 = vld [vmem:[#allocation11 + $0xca0] sm:$0xff]
    %v1656 = vld [vmem:[#allocation11 + $0xca8] sm:$0xff]
    %v1657 = vld [vmem:[#allocation11 + $0xcb0] sm:$0xff]
    %v1658 = vld [vmem:[#allocation11 + $0xcb8] sm:$0xff]
    %v1659 = vld [vmem:[#allocation11 + $0xcc0] sm:$0xff]
    %v1660 = vld [vmem:[#allocation11 + $0xcc8] sm:$0xff]
    %v1661 = vld [vmem:[#allocation11 + $0xcd0] sm:$0xff]
    %v1662 = vld [vmem:[#allocation11 + $0xcd8] sm:$0xff]
    %v1663 = vld [vmem:[#allocation11 + $0xce0] sm:$0xff]
    %v1664 = vld [vmem:[#allocation11 + $0xce8] sm:$0xff]
    %v1665 = vld [vmem:[#allocation11 + $0xcf0] sm:$0xff]
    %v1666 = vld [vmem:[#allocation11 + $0xcf8] sm:$0xff]
    %v1667 = vld [vmem:[#allocation11 + $0xd00] sm:$0xff]
    %v1668 = vld [vmem:[#allocation11 + $0xd08] sm:$0xff]
    %v1669 = vld [vmem:[#allocation11 + $0xd10] sm:$0xff]
    %v1670 = vld [vmem:[#allocation11 + $0xd18] sm:$0xff]
    %v1671 = vld [vmem:[#allocation11 + $0xd20] sm:$0xff]
    %v1672 = vld [vmem:[#allocation11 + $0xd28] sm:$0xff]
    %v1673 = vld [vmem:[#allocation11 + $0xd30] sm:$0xff]
    %v1674 = vld [vmem:[#allocation11 + $0xd38] sm:$0xff]
    %v1675 = vld [vmem:[#allocation11 + $0xd40] sm:$0xff]
    %v1676 = vld [vmem:[#allocation11 + $0xd48] sm:$0xff]
    %v1677 = vld [vmem:[#allocation11 + $0xd50] sm:$0xff]
    %v1678 = vld [vmem:[#allocation11 + $0xd58] sm:$0xff]
    %v1679 = vld [vmem:[#allocation11 + $0xd60] sm:$0xff]
    %v1680 = vld [vmem:[#allocation11 + $0xd68] sm:$0xff]
    %v1681 = vld [vmem:[#allocation11 + $0xd70] sm:$0xff]
    %v1682 = vld [vmem:[#allocation11 + $0xd78] sm:$0xff]
    %v1683 = vld [vmem:[#allocation11 + $0xd80] sm:$0xff]
    %v1684 = vld [vmem:[#allocation11 + $0xd88] sm:$0xff]
    %v1685 = vld [vmem:[#allocation11 + $0xd90] sm:$0xff]
    %v1686 = vld [vmem:[#allocation11 + $0xd98] sm:$0xff]
    %v1687 = vld [vmem:[#allocation11 + $0xda0] sm:$0xff]
    %v1688 = vld [vmem:[#allocation11 + $0xda8] sm:$0xff]
    %v1689 = vld [vmem:[#allocation11 + $0xdb0] sm:$0xff]
    %v1690 = vld [vmem:[#allocation11 + $0xdb8] sm:$0xff]
    %v1691 = vld [vmem:[#allocation11 + $0xdc0] sm:$0xff]
    %v1692 = vld [vmem:[#allocation11 + $0xdc8] sm:$0xff]
    %v1693 = vld [vmem:[#allocation11 + $0xdd0] sm:$0xff]
    %v1694 = vld [vmem:[#allocation11 + $0xdd8] sm:$0xff]
    %v1695 = vld [vmem:[#allocation11 + $0xde0] sm:$0xff]
    %v1696 = vld [vmem:[#allocation11 + $0xde8] sm:$0xff]
    %v1697 = vld [vmem:[#allocation11 + $0xdf0] sm:$0xff]
    %v1698 = vld [vmem:[#allocation11 + $0xdf8] sm:$0xff]
    %v1699 = vld [vmem:[#allocation11 + $0xe00] sm:$0xff]
    %v1700 = vld [vmem:[#allocation11 + $0xe08] sm:$0xff]
    %v1701 = vld [vmem:[#allocation11 + $0xe10] sm:$0xff]
    %v1702 = vld [vmem:[#allocation11 + $0xe18] sm:$0xff]
    %v1703 = vld [vmem:[#allocation11 + $0xe20] sm:$0xff]
    %v1704 = vld [vmem:[#allocation11 + $0xe28] sm:$0xff]
    %v1705 = vld [vmem:[#allocation11 + $0xe30] sm:$0xff]
    %v1706 = vld [vmem:[#allocation11 + $0xe38] sm:$0xff]
    %v1707 = vld [vmem:[#allocation11 + $0xe40] sm:$0xff]
    %v1708 = vld [vmem:[#allocation11 + $0xe48] sm:$0xff]
    %v1709 = vld [vmem:[#allocation11 + $0xe50] sm:$0xff]
    %v1710 = vld [vmem:[#allocation11 + $0xe58] sm:$0xff]
    %v1711 = vld [vmem:[#allocation11 + $0xe60] sm:$0xff]
    %v1712 = vld [vmem:[#allocation11 + $0xe68] sm:$0xff]
    %v1713 = vld [vmem:[#allocation11 + $0xe70] sm:$0xff]
    %v1714 = vld [vmem:[#allocation11 + $0xe78] sm:$0xff]
    %v1715 = vld [vmem:[#allocation11 + $0xe80] sm:$0xff]
    %v1716 = vld [vmem:[#allocation11 + $0xe88] sm:$0xff]
    %v1717 = vld [vmem:[#allocation11 + $0xe90] sm:$0xff]
    %v1718 = vld [vmem:[#allocation11 + $0xe98] sm:$0xff]
    %v1719 = vld [vmem:[#allocation11 + $0xea0] sm:$0xff]
    %v1720 = vld [vmem:[#allocation11 + $0xea8] sm:$0xff]
    %v1721 = vld [vmem:[#allocation11 + $0xeb0] sm:$0xff]
    %v1722 = vld [vmem:[#allocation11 + $0xeb8] sm:$0xff]
    %v1723 = vld [vmem:[#allocation11 + $0xec0] sm:$0xff]
    %v1724 = vld [vmem:[#allocation11 + $0xec8] sm:$0xff]
    %v1725 = vld [vmem:[#allocation11 + $0xed0] sm:$0xff]
    %v1726 = vld [vmem:[#allocation11 + $0xed8] sm:$0xff]
    %v1727 = vld [vmem:[#allocation11 + $0xee0] sm:$0xff]
    %v1728 = vld [vmem:[#allocation11 + $0xee8] sm:$0xff]
    %v1729 = vld [vmem:[#allocation11 + $0xef0] sm:$0xff]
    %v1730 = vld [vmem:[#allocation11 + $0xef8] sm:$0xff]
    %v1731 = vld [vmem:[#allocation11 + $0xf00] sm:$0xff]
    %v1732 = vld [vmem:[#allocation11 + $0xf08] sm:$0xff]
    %v1733 = vld [vmem:[#allocation11 + $0xf10] sm:$0xff]
    %v1734 = vld [vmem:[#allocation11 + $0xf18] sm:$0xff]
    %v1735 = vld [vmem:[#allocation11 + $0xf20] sm:$0xff]
    %v1736 = vld [vmem:[#allocation11 + $0xf28] sm:$0xff]
    %v1737 = vld [vmem:[#allocation11 + $0xf30] sm:$0xff]
    %v1738 = vld [vmem:[#allocation11 + $0xf38] sm:$0xff]
    %v1739 = vld [vmem:[#allocation11 + $0xf40] sm:$0xff]
    %v1740 = vld [vmem:[#allocation11 + $0xf48] sm:$0xff]
    %v1741 = vld [vmem:[#allocation11 + $0xf50] sm:$0xff]
    %v1742 = vld [vmem:[#allocation11 + $0xf58] sm:$0xff]
    %v1743 = vld [vmem:[#allocation11 + $0xf60] sm:$0xff]
    %v1744 = vld [vmem:[#allocation11 + $0xf68] sm:$0xff]
    %v1745 = vld [vmem:[#allocation11 + $0xf70] sm:$0xff]
    %v1746 = vld [vmem:[#allocation11 + $0xf78] sm:$0xff]
    %v1747 = vld [vmem:[#allocation11 + $0xf80] sm:$0xff]
    %v1748 = vld [vmem:[#allocation11 + $0xf88] sm:$0xff]
    %v1749 = vld [vmem:[#allocation11 + $0xf90] sm:$0xff]
    %v1750 = vld [vmem:[#allocation11 + $0xf98] sm:$0xff]
    %v1751 = vld [vmem:[#allocation11 + $0xfa0] sm:$0xff]
    %v1752 = vld [vmem:[#allocation11 + $0xfa8] sm:$0xff]
    %v1753 = vld [vmem:[#allocation11 + $0xfb0] sm:$0xff]
    %v1754 = vld [vmem:[#allocation11 + $0xfb8] sm:$0xff]
    %v1755 = vld [vmem:[#allocation11 + $0xfc0] sm:$0xff]
    %v1756 = vld [vmem:[#allocation11 + $0xfc8] sm:$0xff]
    %v1757 = vld [vmem:[#allocation11 + $0xfd0] sm:$0xff]
    %v1758 = vld [vmem:[#allocation11 + $0xfd8] sm:$0xff]
    %v1759 = vld [vmem:[#allocation11 + $0xfe0] sm:$0xff]
    %v1760 = vld [vmem:[#allocation11 + $0xfe8] sm:$0xff]
    %v1761 = vld [vmem:[#allocation11 + $0xff0] sm:$0xff]
    %v1762 = vld [vmem:[#allocation11 + $0xff8] sm:$0xff]
    %v1763 = vld [vmem:[#allocation13] sm:$0xff]
    %v1765 = vlaneseq
    %v1766 = vshrl.u32 %v1765, 7
    %v1767 = vsub.s32 0, %v1766
    %v1768 = vrot.slane %v1763, %v1767
    %v1769 = vlaneseq
    %v1770 = vshrl.u32 %v1769, 7
    %v1771 = vsub.s32 1, %v1770
    %v1772 = vrot.slane %v1763, %v1771
    %v1773 = vlaneseq
    %v1774 = vshrl.u32 %v1773, 7
    %v1775 = vsub.s32 2, %v1774
    %v1776 = vrot.slane %v1763, %v1775
    %v1777 = vlaneseq
    %v1778 = vshrl.u32 %v1777, 7
    %v1779 = vsub.s32 3, %v1778
    %v1780 = vrot.slane %v1763, %v1779
    %v1781 = vlaneseq
    %v1782 = vshrl.u32 %v1781, 7
    %v1783 = vsub.s32 4, %v1782
    %v1784 = vrot.slane %v1763, %v1783
    %v1785 = vlaneseq
    %v1786 = vshrl.u32 %v1785, 7
    %v1787 = vsub.s32 5, %v1786
    %v1788 = vrot.slane %v1763, %v1787
    %v1789 = vlaneseq
    %v1790 = vshrl.u32 %v1789, 7
    %v1791 = vsub.s32 6, %v1790
    %v1792 = vrot.slane %v1763, %v1791
    %v1793 = vlaneseq
    %v1794 = vshrl.u32 %v1793, 7
    %v1795 = vsub.s32 7, %v1794
    %v1796 = vrot.slane %v1763, %v1795
    %v2317 = vunpack.c.l.b16 %v1251
    %v2318 = vunpack.c.h.b16 %v1251
    %v2319 = vunpack.c.l.b16 %v1252
    %v2320 = vunpack.c.h.b16 %v1252
    %v2321 = vunpack.c.l.b16 %v1253
    %v2322 = vunpack.c.h.b16 %v1253
    %v2323 = vunpack.c.l.b16 %v1254
    %v2324 = vunpack.c.h.b16 %v1254
    %v2325 = vunpack.c.l.b16 %v1255
    %v2326 = vunpack.c.h.b16 %v1255
    %v2327 = vunpack.c.l.b16 %v1256
    %v2328 = vunpack.c.h.b16 %v1256
    %v2329 = vunpack.c.l.b16 %v1257
    %v2330 = vunpack.c.h.b16 %v1257
    %v2331 = vunpack.c.l.b16 %v1258
    %v2332 = vunpack.c.h.b16 %v1258
    %v2333 = vunpack.c.l.b16 %v1259
    %v2334 = vunpack.c.h.b16 %v1259
    %v2335 = vunpack.c.l.b16 %v1260
    %v2336 = vunpack.c.h.b16 %v1260
    %v2337 = vunpack.c.l.b16 %v1261
    %v2338 = vunpack.c.h.b16 %v1261
    %v2339 = vunpack.c.l.b16 %v1262
    %v2340 = vunpack.c.h.b16 %v1262
    %v2341 = vunpack.c.l.b16 %v1263
    %v2342 = vunpack.c.h.b16 %v1263
    %v2343 = vunpack.c.l.b16 %v1264
    %v2344 = vunpack.c.h.b16 %v1264
    %v2345 = vunpack.c.l.b16 %v1265
    %v2346 = vunpack.c.h.b16 %v1265
    %v2347 = vunpack.c.l.b16 %v1266
    %v2348 = vunpack.c.h.b16 %v1266
    %v2349 = vunpack.c.l.b16 %v1267
    %v2350 = vunpack.c.h.b16 %v1267
    %v2351 = vunpack.c.l.b16 %v1268
    %v2352 = vunpack.c.h.b16 %v1268
    %v2353 = vunpack.c.l.b16 %v1269
    %v2354 = vunpack.c.h.b16 %v1269
    %v2355 = vunpack.c.l.b16 %v1270
    %v2356 = vunpack.c.h.b16 %v1270
    %v2357 = vunpack.c.l.b16 %v1271
    %v2358 = vunpack.c.h.b16 %v1271
    %v2359 = vunpack.c.l.b16 %v1272
    %v2360 = vunpack.c.h.b16 %v1272
    %v2361 = vunpack.c.l.b16 %v1273
    %v2362 = vunpack.c.h.b16 %v1273
    %v2363 = vunpack.c.l.b16 %v1274
    %v2364 = vunpack.c.h.b16 %v1274
    %v2365 = vunpack.c.l.b16 %v1275
    %v2366 = vunpack.c.h.b16 %v1275
    %v2367 = vunpack.c.l.b16 %v1276
    %v2368 = vunpack.c.h.b16 %v1276
    %v2369 = vunpack.c.l.b16 %v1277
    %v2370 = vunpack.c.h.b16 %v1277
    %v2371 = vunpack.c.l.b16 %v1278
    %v2372 = vunpack.c.h.b16 %v1278
    %v2373 = vunpack.c.l.b16 %v1279
    %v2374 = vunpack.c.h.b16 %v1279
    %v2375 = vunpack.c.l.b16 %v1280
    %v2376 = vunpack.c.h.b16 %v1280
    %v2377 = vunpack.c.l.b16 %v1281
    %v2378 = vunpack.c.h.b16 %v1281
    %v2379 = vunpack.c.l.b16 %v1282
    %v2380 = vunpack.c.h.b16 %v1282
    %v2381 = vunpack.c.l.b16 %v1283
    %v2382 = vunpack.c.h.b16 %v1283
    %v2383 = vunpack.c.l.b16 %v1284
    %v2384 = vunpack.c.h.b16 %v1284
    %v2385 = vunpack.c.l.b16 %v1285
    %v2386 = vunpack.c.h.b16 %v1285
    %v2387 = vunpack.c.l.b16 %v1286
    %v2388 = vunpack.c.h.b16 %v1286
    %v2389 = vunpack.c.l.b16 %v1287
    %v2390 = vunpack.c.h.b16 %v1287
    %v2391 = vunpack.c.l.b16 %v1288
    %v2392 = vunpack.c.h.b16 %v1288
    %v2393 = vunpack.c.l.b16 %v1289
    %v2394 = vunpack.c.h.b16 %v1289
    %v2395 = vunpack.c.l.b16 %v1290
    %v2396 = vunpack.c.h.b16 %v1290
    %v2397 = vunpack.c.l.b16 %v1291
    %v2398 = vunpack.c.h.b16 %v1291
    %v2399 = vunpack.c.l.b16 %v1292
    %v2400 = vunpack.c.h.b16 %v1292
    %v2401 = vunpack.c.l.b16 %v1293
    %v2402 = vunpack.c.h.b16 %v1293
    %v2403 = vunpack.c.l.b16 %v1294
    %v2404 = vunpack.c.h.b16 %v1294
    %v2405 = vunpack.c.l.b16 %v1295
    %v2406 = vunpack.c.h.b16 %v1295
    %v2407 = vunpack.c.l.b16 %v1296
    %v2408 = vunpack.c.h.b16 %v1296
    %v2409 = vunpack.c.l.b16 %v1297
    %v2410 = vunpack.c.h.b16 %v1297
    %v2411 = vunpack.c.l.b16 %v1298
    %v2412 = vunpack.c.h.b16 %v1298
    %v2413 = vunpack.c.l.b16 %v1299
    %v2414 = vunpack.c.h.b16 %v1299
    %v2415 = vunpack.c.l.b16 %v1300
    %v2416 = vunpack.c.h.b16 %v1300
    %v2417 = vunpack.c.l.b16 %v1301
    %v2418 = vunpack.c.h.b16 %v1301
    %v2419 = vunpack.c.l.b16 %v1302
    %v2420 = vunpack.c.h.b16 %v1302
    %v2421 = vunpack.c.l.b16 %v1303
    %v2422 = vunpack.c.h.b16 %v1303
    %v2423 = vunpack.c.l.b16 %v1304
    %v2424 = vunpack.c.h.b16 %v1304
    %v2425 = vunpack.c.l.b16 %v1305
    %v2426 = vunpack.c.h.b16 %v1305
    %v2427 = vunpack.c.l.b16 %v1306
    %v2428 = vunpack.c.h.b16 %v1306
    %v2429 = vunpack.c.l.b16 %v1307
    %v2430 = vunpack.c.h.b16 %v1307
    %v2431 = vunpack.c.l.b16 %v1308
    %v2432 = vunpack.c.h.b16 %v1308
    %v2433 = vunpack.c.l.b16 %v1309
    %v2434 = vunpack.c.h.b16 %v1309
    %v2435 = vunpack.c.l.b16 %v1310
    %v2436 = vunpack.c.h.b16 %v1310
    %v2437 = vunpack.c.l.b16 %v1311
    %v2438 = vunpack.c.h.b16 %v1311
    %v2439 = vunpack.c.l.b16 %v1312
    %v2440 = vunpack.c.h.b16 %v1312
    %v2441 = vunpack.c.l.b16 %v1313
    %v2442 = vunpack.c.h.b16 %v1313
    %v2443 = vunpack.c.l.b16 %v1314
    %v2444 = vunpack.c.h.b16 %v1314
    %v2445 = vunpack.c.l.b16 %v1315
    %v2446 = vunpack.c.h.b16 %v1315
    %v2447 = vunpack.c.l.b16 %v1316
    %v2448 = vunpack.c.h.b16 %v1316
    %v2449 = vunpack.c.l.b16 %v1317
    %v2450 = vunpack.c.h.b16 %v1317
    %v2451 = vunpack.c.l.b16 %v1318
    %v2452 = vunpack.c.h.b16 %v1318
    %v2453 = vunpack.c.l.b16 %v1319
    %v2454 = vunpack.c.h.b16 %v1319
    %v2455 = vunpack.c.l.b16 %v1320
    %v2456 = vunpack.c.h.b16 %v1320
    %v2457 = vunpack.c.l.b16 %v1321
    %v2458 = vunpack.c.h.b16 %v1321
    %v2459 = vunpack.c.l.b16 %v1322
    %v2460 = vunpack.c.h.b16 %v1322
    %v2461 = vunpack.c.l.b16 %v1323
    %v2462 = vunpack.c.h.b16 %v1323
    %v2463 = vunpack.c.l.b16 %v1324
    %v2464 = vunpack.c.h.b16 %v1324
    %v2465 = vunpack.c.l.b16 %v1325
    %v2466 = vunpack.c.h.b16 %v1325
    %v2467 = vunpack.c.l.b16 %v1326
    %v2468 = vunpack.c.h.b16 %v1326
    %v2469 = vunpack.c.l.b16 %v1327
    %v2470 = vunpack.c.h.b16 %v1327
    %v2471 = vunpack.c.l.b16 %v1328
    %v2472 = vunpack.c.h.b16 %v1328
    %v2473 = vunpack.c.l.b16 %v1329
    %v2474 = vunpack.c.h.b16 %v1329
    %v2475 = vunpack.c.l.b16 %v1330
    %v2476 = vunpack.c.h.b16 %v1330
    %v2477 = vunpack.c.l.b16 %v1331
    %v2478 = vunpack.c.h.b16 %v1331
    %v2479 = vunpack.c.l.b16 %v1332
    %v2480 = vunpack.c.h.b16 %v1332
    %v2481 = vunpack.c.l.b16 %v1333
    %v2482 = vunpack.c.h.b16 %v1333
    %v2483 = vunpack.c.l.b16 %v1334
    %v2484 = vunpack.c.h.b16 %v1334
    %v2485 = vunpack.c.l.b16 %v1335
    %v2486 = vunpack.c.h.b16 %v1335
    %v2487 = vunpack.c.l.b16 %v1336
    %v2488 = vunpack.c.h.b16 %v1336
    %v2489 = vunpack.c.l.b16 %v1337
    %v2490 = vunpack.c.h.b16 %v1337
    %v2491 = vunpack.c.l.b16 %v1338
    %v2492 = vunpack.c.h.b16 %v1338
    %v2493 = vunpack.c.l.b16 %v1339
    %v2494 = vunpack.c.h.b16 %v1339
    %v2495 = vunpack.c.l.b16 %v1340
    %v2496 = vunpack.c.h.b16 %v1340
    %v2497 = vunpack.c.l.b16 %v1341
    %v2498 = vunpack.c.h.b16 %v1341
    %v2499 = vunpack.c.l.b16 %v1342
    %v2500 = vunpack.c.h.b16 %v1342
    %v2501 = vunpack.c.l.b16 %v1343
    %v2502 = vunpack.c.h.b16 %v1343
    %v2503 = vunpack.c.l.b16 %v1344
    %v2504 = vunpack.c.h.b16 %v1344
    %v2505 = vunpack.c.l.b16 %v1345
    %v2506 = vunpack.c.h.b16 %v1345
    %v2507 = vunpack.c.l.b16 %v1346
    %v2508 = vunpack.c.h.b16 %v1346
    %v2509 = vunpack.c.l.b16 %v1347
    %v2510 = vunpack.c.h.b16 %v1347
    %v2511 = vunpack.c.l.b16 %v1348
    %v2512 = vunpack.c.h.b16 %v1348
    %v2513 = vunpack.c.l.b16 %v1349
    %v2514 = vunpack.c.h.b16 %v1349
    %v2515 = vunpack.c.l.b16 %v1350
    %v2516 = vunpack.c.h.b16 %v1350
    %v2517 = vunpack.c.l.b16 %v1351
    %v2518 = vunpack.c.h.b16 %v1351
    %v2519 = vunpack.c.l.b16 %v1352
    %v2520 = vunpack.c.h.b16 %v1352
    %v2521 = vunpack.c.l.b16 %v1353
    %v2522 = vunpack.c.h.b16 %v1353
    %v2523 = vunpack.c.l.b16 %v1354
    %v2524 = vunpack.c.h.b16 %v1354
    %v2525 = vunpack.c.l.b16 %v1355
    %v2526 = vunpack.c.h.b16 %v1355
    %v2527 = vunpack.c.l.b16 %v1356
    %v2528 = vunpack.c.h.b16 %v1356
    %v2529 = vunpack.c.l.b16 %v1357
    %v2530 = vunpack.c.h.b16 %v1357
    %v2531 = vunpack.c.l.b16 %v1358
    %v2532 = vunpack.c.h.b16 %v1358
    %v2533 = vunpack.c.l.b16 %v1359
    %v2534 = vunpack.c.h.b16 %v1359
    %v2535 = vunpack.c.l.b16 %v1360
    %v2536 = vunpack.c.h.b16 %v1360
    %v2537 = vunpack.c.l.b16 %v1361
    %v2538 = vunpack.c.h.b16 %v1361
    %v2539 = vunpack.c.l.b16 %v1362
    %v2540 = vunpack.c.h.b16 %v1362
    %v2541 = vunpack.c.l.b16 %v1363
    %v2542 = vunpack.c.h.b16 %v1363
    %v2543 = vunpack.c.l.b16 %v1364
    %v2544 = vunpack.c.h.b16 %v1364
    %v2545 = vunpack.c.l.b16 %v1365
    %v2546 = vunpack.c.h.b16 %v1365
    %v2547 = vunpack.c.l.b16 %v1366
    %v2548 = vunpack.c.h.b16 %v1366
    %v2549 = vunpack.c.l.b16 %v1367
    %v2550 = vunpack.c.h.b16 %v1367
    %v2551 = vunpack.c.l.b16 %v1368
    %v2552 = vunpack.c.h.b16 %v1368
    %v2553 = vunpack.c.l.b16 %v1369
    %v2554 = vunpack.c.h.b16 %v1369
    %v2555 = vunpack.c.l.b16 %v1370
    %v2556 = vunpack.c.h.b16 %v1370
    %v2557 = vunpack.c.l.b16 %v1371
    %v2558 = vunpack.c.h.b16 %v1371
    %v2559 = vunpack.c.l.b16 %v1372
    %v2560 = vunpack.c.h.b16 %v1372
    %v2561 = vunpack.c.l.b16 %v1373
    %v2562 = vunpack.c.h.b16 %v1373
    %v2563 = vunpack.c.l.b16 %v1374
    %v2564 = vunpack.c.h.b16 %v1374
    %v2565 = vunpack.c.l.b16 %v1375
    %v2566 = vunpack.c.h.b16 %v1375
    %v2567 = vunpack.c.l.b16 %v1376
    %v2568 = vunpack.c.h.b16 %v1376
    %v2569 = vunpack.c.l.b16 %v1377
    %v2570 = vunpack.c.h.b16 %v1377
    %v2571 = vunpack.c.l.b16 %v1378
    %v2572 = vunpack.c.h.b16 %v1378
    %v2573 = vunpack.c.l.b16 %v1379
    %v2574 = vunpack.c.h.b16 %v1379
    %v2575 = vunpack.c.l.b16 %v1380
    %v2576 = vunpack.c.h.b16 %v1380
    %v2577 = vunpack.c.l.b16 %v1381
    %v2578 = vunpack.c.h.b16 %v1381
    %v2579 = vunpack.c.l.b16 %v1382
    %v2580 = vunpack.c.h.b16 %v1382
    %v2581 = vunpack.c.l.b16 %v1383
    %v2582 = vunpack.c.h.b16 %v1383
    %v2583 = vunpack.c.l.b16 %v1384
    %v2584 = vunpack.c.h.b16 %v1384
    %v2585 = vunpack.c.l.b16 %v1385
    %v2586 = vunpack.c.h.b16 %v1385
    %v2587 = vunpack.c.l.b16 %v1386
    %v2588 = vunpack.c.h.b16 %v1386
    %v2589 = vunpack.c.l.b16 %v1387
    %v2590 = vunpack.c.h.b16 %v1387
    %v2591 = vunpack.c.l.b16 %v1388
    %v2592 = vunpack.c.h.b16 %v1388
    %v2593 = vunpack.c.l.b16 %v1389
    %v2594 = vunpack.c.h.b16 %v1389
    %v2595 = vunpack.c.l.b16 %v1390
    %v2596 = vunpack.c.h.b16 %v1390
    %v2597 = vunpack.c.l.b16 %v1391
    %v2598 = vunpack.c.h.b16 %v1391
    %v2599 = vunpack.c.l.b16 %v1392
    %v2600 = vunpack.c.h.b16 %v1392
    %v2601 = vunpack.c.l.b16 %v1393
    %v2602 = vunpack.c.h.b16 %v1393
    %v2603 = vunpack.c.l.b16 %v1394
    %v2604 = vunpack.c.h.b16 %v1394
    %v2605 = vunpack.c.l.b16 %v1395
    %v2606 = vunpack.c.h.b16 %v1395
    %v2607 = vunpack.c.l.b16 %v1396
    %v2608 = vunpack.c.h.b16 %v1396
    %v2609 = vunpack.c.l.b16 %v1397
    %v2610 = vunpack.c.h.b16 %v1397
    %v2611 = vunpack.c.l.b16 %v1398
    %v2612 = vunpack.c.h.b16 %v1398
    %v2613 = vunpack.c.l.b16 %v1399
    %v2614 = vunpack.c.h.b16 %v1399
    %v2615 = vunpack.c.l.b16 %v1400
    %v2616 = vunpack.c.h.b16 %v1400
    %v2617 = vunpack.c.l.b16 %v1401
    %v2618 = vunpack.c.h.b16 %v1401
    %v2619 = vunpack.c.l.b16 %v1402
    %v2620 = vunpack.c.h.b16 %v1402
    %v2621 = vunpack.c.l.b16 %v1403
    %v2622 = vunpack.c.h.b16 %v1403
    %v2623 = vunpack.c.l.b16 %v1404
    %v2624 = vunpack.c.h.b16 %v1404
    %v2625 = vunpack.c.l.b16 %v1405
    %v2626 = vunpack.c.h.b16 %v1405
    %v2627 = vunpack.c.l.b16 %v1406
    %v2628 = vunpack.c.h.b16 %v1406
    %v2629 = vunpack.c.l.b16 %v1407
    %v2630 = vunpack.c.h.b16 %v1407
    %v2631 = vunpack.c.l.b16 %v1408
    %v2632 = vunpack.c.h.b16 %v1408
    %v2633 = vunpack.c.l.b16 %v1409
    %v2634 = vunpack.c.h.b16 %v1409
    %v2635 = vunpack.c.l.b16 %v1410
    %v2636 = vunpack.c.h.b16 %v1410
    %v2637 = vunpack.c.l.b16 %v1411
    %v2638 = vunpack.c.h.b16 %v1411
    %v2639 = vunpack.c.l.b16 %v1412
    %v2640 = vunpack.c.h.b16 %v1412
    %v2641 = vunpack.c.l.b16 %v1413
    %v2642 = vunpack.c.h.b16 %v1413
    %v2643 = vunpack.c.l.b16 %v1414
    %v2644 = vunpack.c.h.b16 %v1414
    %v2645 = vunpack.c.l.b16 %v1415
    %v2646 = vunpack.c.h.b16 %v1415
    %v2647 = vunpack.c.l.b16 %v1416
    %v2648 = vunpack.c.h.b16 %v1416
    %v2649 = vunpack.c.l.b16 %v1417
    %v2650 = vunpack.c.h.b16 %v1417
    %v2651 = vunpack.c.l.b16 %v1418
    %v2652 = vunpack.c.h.b16 %v1418
    %v2653 = vunpack.c.l.b16 %v1419
    %v2654 = vunpack.c.h.b16 %v1419
    %v2655 = vunpack.c.l.b16 %v1420
    %v2656 = vunpack.c.h.b16 %v1420
    %v2657 = vunpack.c.l.b16 %v1421
    %v2658 = vunpack.c.h.b16 %v1421
    %v2659 = vunpack.c.l.b16 %v1422
    %v2660 = vunpack.c.h.b16 %v1422
    %v2661 = vunpack.c.l.b16 %v1423
    %v2662 = vunpack.c.h.b16 %v1423
    %v2663 = vunpack.c.l.b16 %v1424
    %v2664 = vunpack.c.h.b16 %v1424
    %v2665 = vunpack.c.l.b16 %v1425
    %v2666 = vunpack.c.h.b16 %v1425
    %v2667 = vunpack.c.l.b16 %v1426
    %v2668 = vunpack.c.h.b16 %v1426
    %v2669 = vunpack.c.l.b16 %v1427
    %v2670 = vunpack.c.h.b16 %v1427
    %v2671 = vunpack.c.l.b16 %v1428
    %v2672 = vunpack.c.h.b16 %v1428
    %v2673 = vunpack.c.l.b16 %v1429
    %v2674 = vunpack.c.h.b16 %v1429
    %v2675 = vunpack.c.l.b16 %v1430
    %v2676 = vunpack.c.h.b16 %v1430
    %v2677 = vunpack.c.l.b16 %v1431
    %v2678 = vunpack.c.h.b16 %v1431
    %v2679 = vunpack.c.l.b16 %v1432
    %v2680 = vunpack.c.h.b16 %v1432
    %v2681 = vunpack.c.l.b16 %v1433
    %v2682 = vunpack.c.h.b16 %v1433
    %v2683 = vunpack.c.l.b16 %v1434
    %v2684 = vunpack.c.h.b16 %v1434
    %v2685 = vunpack.c.l.b16 %v1435
    %v2686 = vunpack.c.h.b16 %v1435
    %v2687 = vunpack.c.l.b16 %v1436
    %v2688 = vunpack.c.h.b16 %v1436
    %v2689 = vunpack.c.l.b16 %v1437
    %v2690 = vunpack.c.h.b16 %v1437
    %v2691 = vunpack.c.l.b16 %v1438
    %v2692 = vunpack.c.h.b16 %v1438
    %v2693 = vunpack.c.l.b16 %v1439
    %v2694 = vunpack.c.h.b16 %v1439
    %v2695 = vunpack.c.l.b16 %v1440
    %v2696 = vunpack.c.h.b16 %v1440
    %v2697 = vunpack.c.l.b16 %v1441
    %v2698 = vunpack.c.h.b16 %v1441
    %v2699 = vunpack.c.l.b16 %v1442
    %v2700 = vunpack.c.h.b16 %v1442
    %v2701 = vunpack.c.l.b16 %v1443
    %v2702 = vunpack.c.h.b16 %v1443
    %v2703 = vunpack.c.l.b16 %v1444
    %v2704 = vunpack.c.h.b16 %v1444
    %v2705 = vunpack.c.l.b16 %v1445
    %v2706 = vunpack.c.h.b16 %v1445
    %v2707 = vunpack.c.l.b16 %v1446
    %v2708 = vunpack.c.h.b16 %v1446
    %v2709 = vunpack.c.l.b16 %v1447
    %v2710 = vunpack.c.h.b16 %v1447
    %v2711 = vunpack.c.l.b16 %v1448
    %v2712 = vunpack.c.h.b16 %v1448
    %v2713 = vunpack.c.l.b16 %v1449
    %v2714 = vunpack.c.h.b16 %v1449
    %v2715 = vunpack.c.l.b16 %v1450
    %v2716 = vunpack.c.h.b16 %v1450
    %v2717 = vunpack.c.l.b16 %v1451
    %v2718 = vunpack.c.h.b16 %v1451
    %v2719 = vunpack.c.l.b16 %v1452
    %v2720 = vunpack.c.h.b16 %v1452
    %v2721 = vunpack.c.l.b16 %v1453
    %v2722 = vunpack.c.h.b16 %v1453
    %v2723 = vunpack.c.l.b16 %v1454
    %v2724 = vunpack.c.h.b16 %v1454
    %v2725 = vunpack.c.l.b16 %v1455
    %v2726 = vunpack.c.h.b16 %v1455
    %v2727 = vunpack.c.l.b16 %v1456
    %v2728 = vunpack.c.h.b16 %v1456
    %v2729 = vunpack.c.l.b16 %v1457
    %v2730 = vunpack.c.h.b16 %v1457
    %v2731 = vunpack.c.l.b16 %v1458
    %v2732 = vunpack.c.h.b16 %v1458
    %v2733 = vunpack.c.l.b16 %v1459
    %v2734 = vunpack.c.h.b16 %v1459
    %v2735 = vunpack.c.l.b16 %v1460
    %v2736 = vunpack.c.h.b16 %v1460
    %v2737 = vunpack.c.l.b16 %v1461
    %v2738 = vunpack.c.h.b16 %v1461
    %v2739 = vunpack.c.l.b16 %v1462
    %v2740 = vunpack.c.h.b16 %v1462
    %v2741 = vunpack.c.l.b16 %v1463
    %v2742 = vunpack.c.h.b16 %v1463
    %v2743 = vunpack.c.l.b16 %v1464
    %v2744 = vunpack.c.h.b16 %v1464
    %v2745 = vunpack.c.l.b16 %v1465
    %v2746 = vunpack.c.h.b16 %v1465
    %v2747 = vunpack.c.l.b16 %v1466
    %v2748 = vunpack.c.h.b16 %v1466
    %v2749 = vunpack.c.l.b16 %v1467
    %v2750 = vunpack.c.h.b16 %v1467
    %v2751 = vunpack.c.l.b16 %v1468
    %v2752 = vunpack.c.h.b16 %v1468
    %v2753 = vunpack.c.l.b16 %v1469
    %v2754 = vunpack.c.h.b16 %v1469
    %v2755 = vunpack.c.l.b16 %v1470
    %v2756 = vunpack.c.h.b16 %v1470
    %v2757 = vunpack.c.l.b16 %v1471
    %v2758 = vunpack.c.h.b16 %v1471
    %v2759 = vunpack.c.l.b16 %v1472
    %v2760 = vunpack.c.h.b16 %v1472
    %v2761 = vunpack.c.l.b16 %v1473
    %v2762 = vunpack.c.h.b16 %v1473
    %v2763 = vunpack.c.l.b16 %v1474
    %v2764 = vunpack.c.h.b16 %v1474
    %v2765 = vunpack.c.l.b16 %v1475
    %v2766 = vunpack.c.h.b16 %v1475
    %v2767 = vunpack.c.l.b16 %v1476
    %v2768 = vunpack.c.h.b16 %v1476
    %v2769 = vunpack.c.l.b16 %v1477
    %v2770 = vunpack.c.h.b16 %v1477
    %v2771 = vunpack.c.l.b16 %v1478
    %v2772 = vunpack.c.h.b16 %v1478
    %v2773 = vunpack.c.l.b16 %v1479
    %v2774 = vunpack.c.h.b16 %v1479
    %v2775 = vunpack.c.l.b16 %v1480
    %v2776 = vunpack.c.h.b16 %v1480
    %v2777 = vunpack.c.l.b16 %v1481
    %v2778 = vunpack.c.h.b16 %v1481
    %v2779 = vunpack.c.l.b16 %v1482
    %v2780 = vunpack.c.h.b16 %v1482
    %v2781 = vunpack.c.l.b16 %v1483
    %v2782 = vunpack.c.h.b16 %v1483
    %v2783 = vunpack.c.l.b16 %v1484
    %v2784 = vunpack.c.h.b16 %v1484
    %v2785 = vunpack.c.l.b16 %v1485
    %v2786 = vunpack.c.h.b16 %v1485
    %v2787 = vunpack.c.l.b16 %v1486
    %v2788 = vunpack.c.h.b16 %v1486
    %v2789 = vunpack.c.l.b16 %v1487
    %v2790 = vunpack.c.h.b16 %v1487
    %v2791 = vunpack.c.l.b16 %v1488
    %v2792 = vunpack.c.h.b16 %v1488
    %v2793 = vunpack.c.l.b16 %v1489
    %v2794 = vunpack.c.h.b16 %v1489
    %v2795 = vunpack.c.l.b16 %v1490
    %v2796 = vunpack.c.h.b16 %v1490
    %v2797 = vunpack.c.l.b16 %v1491
    %v2798 = vunpack.c.h.b16 %v1491
    %v2799 = vunpack.c.l.b16 %v1492
    %v2800 = vunpack.c.h.b16 %v1492
    %v2801 = vunpack.c.l.b16 %v1493
    %v2802 = vunpack.c.h.b16 %v1493
    %v2803 = vunpack.c.l.b16 %v1494
    %v2804 = vunpack.c.h.b16 %v1494
    %v2805 = vunpack.c.l.b16 %v1495
    %v2806 = vunpack.c.h.b16 %v1495
    %v2807 = vunpack.c.l.b16 %v1496
    %v2808 = vunpack.c.h.b16 %v1496
    %v2809 = vunpack.c.l.b16 %v1497
    %v2810 = vunpack.c.h.b16 %v1497
    %v2811 = vunpack.c.l.b16 %v1498
    %v2812 = vunpack.c.h.b16 %v1498
    %v2813 = vunpack.c.l.b16 %v1499
    %v2814 = vunpack.c.h.b16 %v1499
    %v2815 = vunpack.c.l.b16 %v1500
    %v2816 = vunpack.c.h.b16 %v1500
    %v2817 = vunpack.c.l.b16 %v1501
    %v2818 = vunpack.c.h.b16 %v1501
    %v2819 = vunpack.c.l.b16 %v1502
    %v2820 = vunpack.c.h.b16 %v1502
    %v2821 = vunpack.c.l.b16 %v1503
    %v2822 = vunpack.c.h.b16 %v1503
    %v2823 = vunpack.c.l.b16 %v1504
    %v2824 = vunpack.c.h.b16 %v1504
    %v2825 = vunpack.c.l.b16 %v1505
    %v2826 = vunpack.c.h.b16 %v1505
    %v2827 = vunpack.c.l.b16 %v1506
    %v2828 = vunpack.c.h.b16 %v1506
    %v2829 = vunpack.c.l.b16 %v1507
    %v2830 = vunpack.c.h.b16 %v1507
    %v2831 = vunpack.c.l.b16 %v1508
    %v2832 = vunpack.c.h.b16 %v1508
    %v2833 = vunpack.c.l.b16 %v1509
    %v2834 = vunpack.c.h.b16 %v1509
    %v2835 = vunpack.c.l.b16 %v1510
    %v2836 = vunpack.c.h.b16 %v1510
    %v2837 = vunpack.c.l.b16 %v1511
    %v2838 = vunpack.c.h.b16 %v1511
    %v2839 = vunpack.c.l.b16 %v1512
    %v2840 = vunpack.c.h.b16 %v1512
    %v2841 = vunpack.c.l.b16 %v1513
    %v2842 = vunpack.c.h.b16 %v1513
    %v2843 = vunpack.c.l.b16 %v1514
    %v2844 = vunpack.c.h.b16 %v1514
    %v2845 = vunpack.c.l.b16 %v1515
    %v2846 = vunpack.c.h.b16 %v1515
    %v2847 = vunpack.c.l.b16 %v1516
    %v2848 = vunpack.c.h.b16 %v1516
    %v2849 = vunpack.c.l.b16 %v1517
    %v2850 = vunpack.c.h.b16 %v1517
    %v2851 = vunpack.c.l.b16 %v1518
    %v2852 = vunpack.c.h.b16 %v1518
    %v2853 = vunpack.c.l.b16 %v1519
    %v2854 = vunpack.c.h.b16 %v1519
    %v2855 = vunpack.c.l.b16 %v1520
    %v2856 = vunpack.c.h.b16 %v1520
    %v2857 = vunpack.c.l.b16 %v1521
    %v2858 = vunpack.c.h.b16 %v1521
    %v2859 = vunpack.c.l.b16 %v1522
    %v2860 = vunpack.c.h.b16 %v1522
    %v2861 = vunpack.c.l.b16 %v1523
    %v2862 = vunpack.c.h.b16 %v1523
    %v2863 = vunpack.c.l.b16 %v1524
    %v2864 = vunpack.c.h.b16 %v1524
    %v2865 = vunpack.c.l.b16 %v1525
    %v2866 = vunpack.c.h.b16 %v1525
    %v2867 = vunpack.c.l.b16 %v1526
    %v2868 = vunpack.c.h.b16 %v1526
    %v2869 = vunpack.c.l.b16 %v1527
    %v2870 = vunpack.c.h.b16 %v1527
    %v2871 = vunpack.c.l.b16 %v1528
    %v2872 = vunpack.c.h.b16 %v1528
    %v2873 = vunpack.c.l.b16 %v1529
    %v2874 = vunpack.c.h.b16 %v1529
    %v2875 = vunpack.c.l.b16 %v1530
    %v2876 = vunpack.c.h.b16 %v1530
    %v2877 = vunpack.c.l.b16 %v1531
    %v2878 = vunpack.c.h.b16 %v1531
    %v2879 = vunpack.c.l.b16 %v1532
    %v2880 = vunpack.c.h.b16 %v1532
    %v2881 = vunpack.c.l.b16 %v1533
    %v2882 = vunpack.c.h.b16 %v1533
    %v2883 = vunpack.c.l.b16 %v1534
    %v2884 = vunpack.c.h.b16 %v1534
    %v2885 = vunpack.c.l.b16 %v1535
    %v2886 = vunpack.c.h.b16 %v1535
    %v2887 = vunpack.c.l.b16 %v1536
    %v2888 = vunpack.c.h.b16 %v1536
    %v2889 = vunpack.c.l.b16 %v1537
    %v2890 = vunpack.c.h.b16 %v1537
    %v2891 = vunpack.c.l.b16 %v1538
    %v2892 = vunpack.c.h.b16 %v1538
    %v2893 = vunpack.c.l.b16 %v1539
    %v2894 = vunpack.c.h.b16 %v1539
    %v2895 = vunpack.c.l.b16 %v1540
    %v2896 = vunpack.c.h.b16 %v1540
    %v2897 = vunpack.c.l.b16 %v1541
    %v2898 = vunpack.c.h.b16 %v1541
    %v2899 = vunpack.c.l.b16 %v1542
    %v2900 = vunpack.c.h.b16 %v1542
    %v2901 = vunpack.c.l.b16 %v1543
    %v2902 = vunpack.c.h.b16 %v1543
    %v2903 = vunpack.c.l.b16 %v1544
    %v2904 = vunpack.c.h.b16 %v1544
    %v2905 = vunpack.c.l.b16 %v1545
    %v2906 = vunpack.c.h.b16 %v1545
    %v2907 = vunpack.c.l.b16 %v1546
    %v2908 = vunpack.c.h.b16 %v1546
    %v2909 = vunpack.c.l.b16 %v1547
    %v2910 = vunpack.c.h.b16 %v1547
    %v2911 = vunpack.c.l.b16 %v1548
    %v2912 = vunpack.c.h.b16 %v1548
    %v2913 = vunpack.c.l.b16 %v1549
    %v2914 = vunpack.c.h.b16 %v1549
    %v2915 = vunpack.c.l.b16 %v1550
    %v2916 = vunpack.c.h.b16 %v1550
    %v2917 = vunpack.c.l.b16 %v1551
    %v2918 = vunpack.c.h.b16 %v1551
    %v2919 = vunpack.c.l.b16 %v1552
    %v2920 = vunpack.c.h.b16 %v1552
    %v2921 = vunpack.c.l.b16 %v1553
    %v2922 = vunpack.c.h.b16 %v1553
    %v2923 = vunpack.c.l.b16 %v1554
    %v2924 = vunpack.c.h.b16 %v1554
    %v2925 = vunpack.c.l.b16 %v1555
    %v2926 = vunpack.c.h.b16 %v1555
    %v2927 = vunpack.c.l.b16 %v1556
    %v2928 = vunpack.c.h.b16 %v1556
    %v2929 = vunpack.c.l.b16 %v1557
    %v2930 = vunpack.c.h.b16 %v1557
    %v2931 = vunpack.c.l.b16 %v1558
    %v2932 = vunpack.c.h.b16 %v1558
    %v2933 = vunpack.c.l.b16 %v1559
    %v2934 = vunpack.c.h.b16 %v1559
    %v2935 = vunpack.c.l.b16 %v1560
    %v2936 = vunpack.c.h.b16 %v1560
    %v2937 = vunpack.c.l.b16 %v1561
    %v2938 = vunpack.c.h.b16 %v1561
    %v2939 = vunpack.c.l.b16 %v1562
    %v2940 = vunpack.c.h.b16 %v1562
    %v2941 = vunpack.c.l.b16 %v1563
    %v2942 = vunpack.c.h.b16 %v1563
    %v2943 = vunpack.c.l.b16 %v1564
    %v2944 = vunpack.c.h.b16 %v1564
    %v2945 = vunpack.c.l.b16 %v1565
    %v2946 = vunpack.c.h.b16 %v1565
    %v2947 = vunpack.c.l.b16 %v1566
    %v2948 = vunpack.c.h.b16 %v1566
    %v2949 = vunpack.c.l.b16 %v1567
    %v2950 = vunpack.c.h.b16 %v1567
    %v2951 = vunpack.c.l.b16 %v1568
    %v2952 = vunpack.c.h.b16 %v1568
    %v2953 = vunpack.c.l.b16 %v1569
    %v2954 = vunpack.c.h.b16 %v1569
    %v2955 = vunpack.c.l.b16 %v1570
    %v2956 = vunpack.c.h.b16 %v1570
    %v2957 = vunpack.c.l.b16 %v1571
    %v2958 = vunpack.c.h.b16 %v1571
    %v2959 = vunpack.c.l.b16 %v1572
    %v2960 = vunpack.c.h.b16 %v1572
    %v2961 = vunpack.c.l.b16 %v1573
    %v2962 = vunpack.c.h.b16 %v1573
    %v2963 = vunpack.c.l.b16 %v1574
    %v2964 = vunpack.c.h.b16 %v1574
    %v2965 = vunpack.c.l.b16 %v1575
    %v2966 = vunpack.c.h.b16 %v1575
    %v2967 = vunpack.c.l.b16 %v1576
    %v2968 = vunpack.c.h.b16 %v1576
    %v2969 = vunpack.c.l.b16 %v1577
    %v2970 = vunpack.c.h.b16 %v1577
    %v2971 = vunpack.c.l.b16 %v1578
    %v2972 = vunpack.c.h.b16 %v1578
    %v2973 = vunpack.c.l.b16 %v1579
    %v2974 = vunpack.c.h.b16 %v1579
    %v2975 = vunpack.c.l.b16 %v1580
    %v2976 = vunpack.c.h.b16 %v1580
    %v2977 = vunpack.c.l.b16 %v1581
    %v2978 = vunpack.c.h.b16 %v1581
    %v2979 = vunpack.c.l.b16 %v1582
    %v2980 = vunpack.c.h.b16 %v1582
    %v2981 = vunpack.c.l.b16 %v1583
    %v2982 = vunpack.c.h.b16 %v1583
    %v2983 = vunpack.c.l.b16 %v1584
    %v2984 = vunpack.c.h.b16 %v1584
    %v2985 = vunpack.c.l.b16 %v1585
    %v2986 = vunpack.c.h.b16 %v1585
    %v2987 = vunpack.c.l.b16 %v1586
    %v2988 = vunpack.c.h.b16 %v1586
    %v2989 = vunpack.c.l.b16 %v1587
    %v2990 = vunpack.c.h.b16 %v1587
    %v2991 = vunpack.c.l.b16 %v1588
    %v2992 = vunpack.c.h.b16 %v1588
    %v2993 = vunpack.c.l.b16 %v1589
    %v2994 = vunpack.c.h.b16 %v1589
    %v2995 = vunpack.c.l.b16 %v1590
    %v2996 = vunpack.c.h.b16 %v1590
    %v2997 = vunpack.c.l.b16 %v1591
    %v2998 = vunpack.c.h.b16 %v1591
    %v2999 = vunpack.c.l.b16 %v1592
    %v3000 = vunpack.c.h.b16 %v1592
    %v3001 = vunpack.c.l.b16 %v1593
    %v3002 = vunpack.c.h.b16 %v1593
    %v3003 = vunpack.c.l.b16 %v1594
    %v3004 = vunpack.c.h.b16 %v1594
    %v3005 = vunpack.c.l.b16 %v1595
    %v3006 = vunpack.c.h.b16 %v1595
    %v3007 = vunpack.c.l.b16 %v1596
    %v3008 = vunpack.c.h.b16 %v1596
    %v3009 = vunpack.c.l.b16 %v1597
    %v3010 = vunpack.c.h.b16 %v1597
    %v3011 = vunpack.c.l.b16 %v1598
    %v3012 = vunpack.c.h.b16 %v1598
    %v3013 = vunpack.c.l.b16 %v1599
    %v3014 = vunpack.c.h.b16 %v1599
    %v3015 = vunpack.c.l.b16 %v1600
    %v3016 = vunpack.c.h.b16 %v1600
    %v3017 = vunpack.c.l.b16 %v1601
    %v3018 = vunpack.c.h.b16 %v1601
    %v3019 = vunpack.c.l.b16 %v1602
    %v3020 = vunpack.c.h.b16 %v1602
    %v3021 = vunpack.c.l.b16 %v1603
    %v3022 = vunpack.c.h.b16 %v1603
    %v3023 = vunpack.c.l.b16 %v1604
    %v3024 = vunpack.c.h.b16 %v1604
    %v3025 = vunpack.c.l.b16 %v1605
    %v3026 = vunpack.c.h.b16 %v1605
    %v3027 = vunpack.c.l.b16 %v1606
    %v3028 = vunpack.c.h.b16 %v1606
    %v3029 = vunpack.c.l.b16 %v1607
    %v3030 = vunpack.c.h.b16 %v1607
    %v3031 = vunpack.c.l.b16 %v1608
    %v3032 = vunpack.c.h.b16 %v1608
    %v3033 = vunpack.c.l.b16 %v1609
    %v3034 = vunpack.c.h.b16 %v1609
    %v3035 = vunpack.c.l.b16 %v1610
    %v3036 = vunpack.c.h.b16 %v1610
    %v3037 = vunpack.c.l.b16 %v1611
    %v3038 = vunpack.c.h.b16 %v1611
    %v3039 = vunpack.c.l.b16 %v1612
    %v3040 = vunpack.c.h.b16 %v1612
    %v3041 = vunpack.c.l.b16 %v1613
    %v3042 = vunpack.c.h.b16 %v1613
    %v3043 = vunpack.c.l.b16 %v1614
    %v3044 = vunpack.c.h.b16 %v1614
    %v3045 = vunpack.c.l.b16 %v1615
    %v3046 = vunpack.c.h.b16 %v1615
    %v3047 = vunpack.c.l.b16 %v1616
    %v3048 = vunpack.c.h.b16 %v1616
    %v3049 = vunpack.c.l.b16 %v1617
    %v3050 = vunpack.c.h.b16 %v1617
    %v3051 = vunpack.c.l.b16 %v1618
    %v3052 = vunpack.c.h.b16 %v1618
    %v3053 = vunpack.c.l.b16 %v1619
    %v3054 = vunpack.c.h.b16 %v1619
    %v3055 = vunpack.c.l.b16 %v1620
    %v3056 = vunpack.c.h.b16 %v1620
    %v3057 = vunpack.c.l.b16 %v1621
    %v3058 = vunpack.c.h.b16 %v1621
    %v3059 = vunpack.c.l.b16 %v1622
    %v3060 = vunpack.c.h.b16 %v1622
    %v3061 = vunpack.c.l.b16 %v1623
    %v3062 = vunpack.c.h.b16 %v1623
    %v3063 = vunpack.c.l.b16 %v1624
    %v3064 = vunpack.c.h.b16 %v1624
    %v3065 = vunpack.c.l.b16 %v1625
    %v3066 = vunpack.c.h.b16 %v1625
    %v3067 = vunpack.c.l.b16 %v1626
    %v3068 = vunpack.c.h.b16 %v1626
    %v3069 = vunpack.c.l.b16 %v1627
    %v3070 = vunpack.c.h.b16 %v1627
    %v3071 = vunpack.c.l.b16 %v1628
    %v3072 = vunpack.c.h.b16 %v1628
    %v3073 = vunpack.c.l.b16 %v1629
    %v3074 = vunpack.c.h.b16 %v1629
    %v3075 = vunpack.c.l.b16 %v1630
    %v3076 = vunpack.c.h.b16 %v1630
    %v3077 = vunpack.c.l.b16 %v1631
    %v3078 = vunpack.c.h.b16 %v1631
    %v3079 = vunpack.c.l.b16 %v1632
    %v3080 = vunpack.c.h.b16 %v1632
    %v3081 = vunpack.c.l.b16 %v1633
    %v3082 = vunpack.c.h.b16 %v1633
    %v3083 = vunpack.c.l.b16 %v1634
    %v3084 = vunpack.c.h.b16 %v1634
    %v3085 = vunpack.c.l.b16 %v1635
    %v3086 = vunpack.c.h.b16 %v1635
    %v3087 = vunpack.c.l.b16 %v1636
    %v3088 = vunpack.c.h.b16 %v1636
    %v3089 = vunpack.c.l.b16 %v1637
    %v3090 = vunpack.c.h.b16 %v1637
    %v3091 = vunpack.c.l.b16 %v1638
    %v3092 = vunpack.c.h.b16 %v1638
    %v3093 = vunpack.c.l.b16 %v1639
    %v3094 = vunpack.c.h.b16 %v1639
    %v3095 = vunpack.c.l.b16 %v1640
    %v3096 = vunpack.c.h.b16 %v1640
    %v3097 = vunpack.c.l.b16 %v1641
    %v3098 = vunpack.c.h.b16 %v1641
    %v3099 = vunpack.c.l.b16 %v1642
    %v3100 = vunpack.c.h.b16 %v1642
    %v3101 = vunpack.c.l.b16 %v1643
    %v3102 = vunpack.c.h.b16 %v1643
    %v3103 = vunpack.c.l.b16 %v1644
    %v3104 = vunpack.c.h.b16 %v1644
    %v3105 = vunpack.c.l.b16 %v1645
    %v3106 = vunpack.c.h.b16 %v1645
    %v3107 = vunpack.c.l.b16 %v1646
    %v3108 = vunpack.c.h.b16 %v1646
    %v3109 = vunpack.c.l.b16 %v1647
    %v3110 = vunpack.c.h.b16 %v1647
    %v3111 = vunpack.c.l.b16 %v1648
    %v3112 = vunpack.c.h.b16 %v1648
    %v3113 = vunpack.c.l.b16 %v1649
    %v3114 = vunpack.c.h.b16 %v1649
    %v3115 = vunpack.c.l.b16 %v1650
    %v3116 = vunpack.c.h.b16 %v1650
    %v3117 = vunpack.c.l.b16 %v1651
    %v3118 = vunpack.c.h.b16 %v1651
    %v3119 = vunpack.c.l.b16 %v1652
    %v3120 = vunpack.c.h.b16 %v1652
    %v3121 = vunpack.c.l.b16 %v1653
    %v3122 = vunpack.c.h.b16 %v1653
    %v3123 = vunpack.c.l.b16 %v1654
    %v3124 = vunpack.c.h.b16 %v1654
    %v3125 = vunpack.c.l.b16 %v1655
    %v3126 = vunpack.c.h.b16 %v1655
    %v3127 = vunpack.c.l.b16 %v1656
    %v3128 = vunpack.c.h.b16 %v1656
    %v3129 = vunpack.c.l.b16 %v1657
    %v3130 = vunpack.c.h.b16 %v1657
    %v3131 = vunpack.c.l.b16 %v1658
    %v3132 = vunpack.c.h.b16 %v1658
    %v3133 = vunpack.c.l.b16 %v1659
    %v3134 = vunpack.c.h.b16 %v1659
    %v3135 = vunpack.c.l.b16 %v1660
    %v3136 = vunpack.c.h.b16 %v1660
    %v3137 = vunpack.c.l.b16 %v1661
    %v3138 = vunpack.c.h.b16 %v1661
    %v3139 = vunpack.c.l.b16 %v1662
    %v3140 = vunpack.c.h.b16 %v1662
    %v3141 = vunpack.c.l.b16 %v1663
    %v3142 = vunpack.c.h.b16 %v1663
    %v3143 = vunpack.c.l.b16 %v1664
    %v3144 = vunpack.c.h.b16 %v1664
    %v3145 = vunpack.c.l.b16 %v1665
    %v3146 = vunpack.c.h.b16 %v1665
    %v3147 = vunpack.c.l.b16 %v1666
    %v3148 = vunpack.c.h.b16 %v1666
    %v3149 = vunpack.c.l.b16 %v1667
    %v3150 = vunpack.c.h.b16 %v1667
    %v3151 = vunpack.c.l.b16 %v1668
    %v3152 = vunpack.c.h.b16 %v1668
    %v3153 = vunpack.c.l.b16 %v1669
    %v3154 = vunpack.c.h.b16 %v1669
    %v3155 = vunpack.c.l.b16 %v1670
    %v3156 = vunpack.c.h.b16 %v1670
    %v3157 = vunpack.c.l.b16 %v1671
    %v3158 = vunpack.c.h.b16 %v1671
    %v3159 = vunpack.c.l.b16 %v1672
    %v3160 = vunpack.c.h.b16 %v1672
    %v3161 = vunpack.c.l.b16 %v1673
    %v3162 = vunpack.c.h.b16 %v1673
    %v3163 = vunpack.c.l.b16 %v1674
    %v3164 = vunpack.c.h.b16 %v1674
    %v3165 = vunpack.c.l.b16 %v1675
    %v3166 = vunpack.c.h.b16 %v1675
    %v3167 = vunpack.c.l.b16 %v1676
    %v3168 = vunpack.c.h.b16 %v1676
    %v3169 = vunpack.c.l.b16 %v1677
    %v3170 = vunpack.c.h.b16 %v1677
    %v3171 = vunpack.c.l.b16 %v1678
    %v3172 = vunpack.c.h.b16 %v1678
    %v3173 = vunpack.c.l.b16 %v1679
    %v3174 = vunpack.c.h.b16 %v1679
    %v3175 = vunpack.c.l.b16 %v1680
    %v3176 = vunpack.c.h.b16 %v1680
    %v3177 = vunpack.c.l.b16 %v1681
    %v3178 = vunpack.c.h.b16 %v1681
    %v3179 = vunpack.c.l.b16 %v1682
    %v3180 = vunpack.c.h.b16 %v1682
    %v3181 = vunpack.c.l.b16 %v1683
    %v3182 = vunpack.c.h.b16 %v1683
    %v3183 = vunpack.c.l.b16 %v1684
    %v3184 = vunpack.c.h.b16 %v1684
    %v3185 = vunpack.c.l.b16 %v1685
    %v3186 = vunpack.c.h.b16 %v1685
    %v3187 = vunpack.c.l.b16 %v1686
    %v3188 = vunpack.c.h.b16 %v1686
    %v3189 = vunpack.c.l.b16 %v1687
    %v3190 = vunpack.c.h.b16 %v1687
    %v3191 = vunpack.c.l.b16 %v1688
    %v3192 = vunpack.c.h.b16 %v1688
    %v3193 = vunpack.c.l.b16 %v1689
    %v3194 = vunpack.c.h.b16 %v1689
    %v3195 = vunpack.c.l.b16 %v1690
    %v3196 = vunpack.c.h.b16 %v1690
    %v3197 = vunpack.c.l.b16 %v1691
    %v3198 = vunpack.c.h.b16 %v1691
    %v3199 = vunpack.c.l.b16 %v1692
    %v3200 = vunpack.c.h.b16 %v1692
    %v3201 = vunpack.c.l.b16 %v1693
    %v3202 = vunpack.c.h.b16 %v1693
    %v3203 = vunpack.c.l.b16 %v1694
    %v3204 = vunpack.c.h.b16 %v1694
    %v3205 = vunpack.c.l.b16 %v1695
    %v3206 = vunpack.c.h.b16 %v1695
    %v3207 = vunpack.c.l.b16 %v1696
    %v3208 = vunpack.c.h.b16 %v1696
    %v3209 = vunpack.c.l.b16 %v1697
    %v3210 = vunpack.c.h.b16 %v1697
    %v3211 = vunpack.c.l.b16 %v1698
    %v3212 = vunpack.c.h.b16 %v1698
    %v3213 = vunpack.c.l.b16 %v1699
    %v3214 = vunpack.c.h.b16 %v1699
    %v3215 = vunpack.c.l.b16 %v1700
    %v3216 = vunpack.c.h.b16 %v1700
    %v3217 = vunpack.c.l.b16 %v1701
    %v3218 = vunpack.c.h.b16 %v1701
    %v3219 = vunpack.c.l.b16 %v1702
    %v3220 = vunpack.c.h.b16 %v1702
    %v3221 = vunpack.c.l.b16 %v1703
    %v3222 = vunpack.c.h.b16 %v1703
    %v3223 = vunpack.c.l.b16 %v1704
    %v3224 = vunpack.c.h.b16 %v1704
    %v3225 = vunpack.c.l.b16 %v1705
    %v3226 = vunpack.c.h.b16 %v1705
    %v3227 = vunpack.c.l.b16 %v1706
    %v3228 = vunpack.c.h.b16 %v1706
    %v3229 = vunpack.c.l.b16 %v1707
    %v3230 = vunpack.c.h.b16 %v1707
    %v3231 = vunpack.c.l.b16 %v1708
    %v3232 = vunpack.c.h.b16 %v1708
    %v3233 = vunpack.c.l.b16 %v1709
    %v3234 = vunpack.c.h.b16 %v1709
    %v3235 = vunpack.c.l.b16 %v1710
    %v3236 = vunpack.c.h.b16 %v1710
    %v3237 = vunpack.c.l.b16 %v1711
    %v3238 = vunpack.c.h.b16 %v1711
    %v3239 = vunpack.c.l.b16 %v1712
    %v3240 = vunpack.c.h.b16 %v1712
    %v3241 = vunpack.c.l.b16 %v1713
    %v3242 = vunpack.c.h.b16 %v1713
    %v3243 = vunpack.c.l.b16 %v1714
    %v3244 = vunpack.c.h.b16 %v1714
    %v3245 = vunpack.c.l.b16 %v1715
    %v3246 = vunpack.c.h.b16 %v1715
    %v3247 = vunpack.c.l.b16 %v1716
    %v3248 = vunpack.c.h.b16 %v1716
    %v3249 = vunpack.c.l.b16 %v1717
    %v3250 = vunpack.c.h.b16 %v1717
    %v3251 = vunpack.c.l.b16 %v1718
    %v3252 = vunpack.c.h.b16 %v1718
    %v3253 = vunpack.c.l.b16 %v1719
    %v3254 = vunpack.c.h.b16 %v1719
    %v3255 = vunpack.c.l.b16 %v1720
    %v3256 = vunpack.c.h.b16 %v1720
    %v3257 = vunpack.c.l.b16 %v1721
    %v3258 = vunpack.c.h.b16 %v1721
    %v3259 = vunpack.c.l.b16 %v1722
    %v3260 = vunpack.c.h.b16 %v1722
    %v3261 = vunpack.c.l.b16 %v1723
    %v3262 = vunpack.c.h.b16 %v1723
    %v3263 = vunpack.c.l.b16 %v1724
    %v3264 = vunpack.c.h.b16 %v1724
    %v3265 = vunpack.c.l.b16 %v1725
    %v3266 = vunpack.c.h.b16 %v1725
    %v3267 = vunpack.c.l.b16 %v1726
    %v3268 = vunpack.c.h.b16 %v1726
    %v3269 = vunpack.c.l.b16 %v1727
    %v3270 = vunpack.c.h.b16 %v1727
    %v3271 = vunpack.c.l.b16 %v1728
    %v3272 = vunpack.c.h.b16 %v1728
    %v3273 = vunpack.c.l.b16 %v1729
    %v3274 = vunpack.c.h.b16 %v1729
    %v3275 = vunpack.c.l.b16 %v1730
    %v3276 = vunpack.c.h.b16 %v1730
    %v3277 = vunpack.c.l.b16 %v1731
    %v3278 = vunpack.c.h.b16 %v1731
    %v3279 = vunpack.c.l.b16 %v1732
    %v3280 = vunpack.c.h.b16 %v1732
    %v3281 = vunpack.c.l.b16 %v1733
    %v3282 = vunpack.c.h.b16 %v1733
    %v3283 = vunpack.c.l.b16 %v1734
    %v3284 = vunpack.c.h.b16 %v1734
    %v3285 = vunpack.c.l.b16 %v1735
    %v3286 = vunpack.c.h.b16 %v1735
    %v3287 = vunpack.c.l.b16 %v1736
    %v3288 = vunpack.c.h.b16 %v1736
    %v3289 = vunpack.c.l.b16 %v1737
    %v3290 = vunpack.c.h.b16 %v1737
    %v3291 = vunpack.c.l.b16 %v1738
    %v3292 = vunpack.c.h.b16 %v1738
    %v3293 = vunpack.c.l.b16 %v1739
    %v3294 = vunpack.c.h.b16 %v1739
    %v3295 = vunpack.c.l.b16 %v1740
    %v3296 = vunpack.c.h.b16 %v1740
    %v3297 = vunpack.c.l.b16 %v1741
    %v3298 = vunpack.c.h.b16 %v1741
    %v3299 = vunpack.c.l.b16 %v1742
    %v3300 = vunpack.c.h.b16 %v1742
    %v3301 = vunpack.c.l.b16 %v1743
    %v3302 = vunpack.c.h.b16 %v1743
    %v3303 = vunpack.c.l.b16 %v1744
    %v3304 = vunpack.c.h.b16 %v1744
    %v3305 = vunpack.c.l.b16 %v1745
    %v3306 = vunpack.c.h.b16 %v1745
    %v3307 = vunpack.c.l.b16 %v1746
    %v3308 = vunpack.c.h.b16 %v1746
    %v3309 = vunpack.c.l.b16 %v1747
    %v3310 = vunpack.c.h.b16 %v1747
    %v3311 = vunpack.c.l.b16 %v1748
    %v3312 = vunpack.c.h.b16 %v1748
    %v3313 = vunpack.c.l.b16 %v1749
    %v3314 = vunpack.c.h.b16 %v1749
    %v3315 = vunpack.c.l.b16 %v1750
    %v3316 = vunpack.c.h.b16 %v1750
    %v3317 = vunpack.c.l.b16 %v1751
    %v3318 = vunpack.c.h.b16 %v1751
    %v3319 = vunpack.c.l.b16 %v1752
    %v3320 = vunpack.c.h.b16 %v1752
    %v3321 = vunpack.c.l.b16 %v1753
    %v3322 = vunpack.c.h.b16 %v1753
    %v3323 = vunpack.c.l.b16 %v1754
    %v3324 = vunpack.c.h.b16 %v1754
    %v3325 = vunpack.c.l.b16 %v1755
    %v3326 = vunpack.c.h.b16 %v1755
    %v3327 = vunpack.c.l.b16 %v1756
    %v3328 = vunpack.c.h.b16 %v1756
    %v3329 = vunpack.c.l.b16 %v1757
    %v3330 = vunpack.c.h.b16 %v1757
    %v3331 = vunpack.c.l.b16 %v1758
    %v3332 = vunpack.c.h.b16 %v1758
    %v3333 = vunpack.c.l.b16 %v1759
    %v3334 = vunpack.c.h.b16 %v1759
    %v3335 = vunpack.c.l.b16 %v1760
    %v3336 = vunpack.c.h.b16 %v1760
    %v3337 = vunpack.c.l.b16 %v1761
    %v3338 = vunpack.c.h.b16 %v1761
    %v3339 = vunpack.c.l.b16 %v1762
    %v3340 = vunpack.c.h.b16 %v1762
    %v3341 = vpack.c.b16 %v2325, %v2317
    %v3342 = vpack.c.b16 %v2326, %v2318
    %v3343 = vpack.c.b16 %v2327, %v2319
    %v3344 = vpack.c.b16 %v2328, %v2320
    %v3345 = vpack.c.b16 %v2329, %v2321
    %v3346 = vpack.c.b16 %v2330, %v2322
    %v3347 = vpack.c.b16 %v2331, %v2323
    %v3348 = vpack.c.b16 %v2332, %v2324
    %v3349 = vpack.c.b16 %v2341, %v2333
    %v3350 = vpack.c.b16 %v2342, %v2334
    %v3351 = vpack.c.b16 %v2343, %v2335
    %v3352 = vpack.c.b16 %v2344, %v2336
    %v3353 = vpack.c.b16 %v2345, %v2337
    %v3354 = vpack.c.b16 %v2346, %v2338
    %v3355 = vpack.c.b16 %v2347, %v2339
    %v3356 = vpack.c.b16 %v2348, %v2340
    %v3357 = vpack.c.b16 %v2357, %v2349
    %v3358 = vpack.c.b16 %v2358, %v2350
    %v3359 = vpack.c.b16 %v2359, %v2351
    %v3360 = vpack.c.b16 %v2360, %v2352
    %v3361 = vpack.c.b16 %v2361, %v2353
    %v3362 = vpack.c.b16 %v2362, %v2354
    %v3363 = vpack.c.b16 %v2363, %v2355
    %v3364 = vpack.c.b16 %v2364, %v2356
    %v3365 = vpack.c.b16 %v2373, %v2365
    %v3366 = vpack.c.b16 %v2374, %v2366
    %v3367 = vpack.c.b16 %v2375, %v2367
    %v3368 = vpack.c.b16 %v2376, %v2368
    %v3369 = vpack.c.b16 %v2377, %v2369
    %v3370 = vpack.c.b16 %v2378, %v2370
    %v3371 = vpack.c.b16 %v2379, %v2371
    %v3372 = vpack.c.b16 %v2380, %v2372
    %v3373 = vpack.c.b16 %v2389, %v2381
    %v3374 = vpack.c.b16 %v2390, %v2382
    %v3375 = vpack.c.b16 %v2391, %v2383
    %v3376 = vpack.c.b16 %v2392, %v2384
    %v3377 = vpack.c.b16 %v2393, %v2385
    %v3378 = vpack.c.b16 %v2394, %v2386
    %v3379 = vpack.c.b16 %v2395, %v2387
    %v3380 = vpack.c.b16 %v2396, %v2388
    %v3381 = vpack.c.b16 %v2405, %v2397
    %v3382 = vpack.c.b16 %v2406, %v2398
    %v3383 = vpack.c.b16 %v2407, %v2399
    %v3384 = vpack.c.b16 %v2408, %v2400
    %v3385 = vpack.c.b16 %v2409, %v2401
    %v3386 = vpack.c.b16 %v2410, %v2402
    %v3387 = vpack.c.b16 %v2411, %v2403
    %v3388 = vpack.c.b16 %v2412, %v2404
    %v3389 = vpack.c.b16 %v2421, %v2413
    %v3390 = vpack.c.b16 %v2422, %v2414
    %v3391 = vpack.c.b16 %v2423, %v2415
    %v3392 = vpack.c.b16 %v2424, %v2416
    %v3393 = vpack.c.b16 %v2425, %v2417
    %v3394 = vpack.c.b16 %v2426, %v2418
    %v3395 = vpack.c.b16 %v2427, %v2419
    %v3396 = vpack.c.b16 %v2428, %v2420
    %v3397 = vpack.c.b16 %v2437, %v2429
    %v3398 = vpack.c.b16 %v2438, %v2430
    %v3399 = vpack.c.b16 %v2439, %v2431
    %v3400 = vpack.c.b16 %v2440, %v2432
    %v3401 = vpack.c.b16 %v2441, %v2433
    %v3402 = vpack.c.b16 %v2442, %v2434
    %v3403 = vpack.c.b16 %v2443, %v2435
    %v3404 = vpack.c.b16 %v2444, %v2436
    %v3405 = vpack.c.b16 %v2453, %v2445
    %v3406 = vpack.c.b16 %v2454, %v2446
    %v3407 = vpack.c.b16 %v2455, %v2447
    %v3408 = vpack.c.b16 %v2456, %v2448
    %v3409 = vpack.c.b16 %v2457, %v2449
    %v3410 = vpack.c.b16 %v2458, %v2450
    %v3411 = vpack.c.b16 %v2459, %v2451
    %v3412 = vpack.c.b16 %v2460, %v2452
    %v3413 = vpack.c.b16 %v2469, %v2461
    %v3414 = vpack.c.b16 %v2470, %v2462
    %v3415 = vpack.c.b16 %v2471, %v2463
    %v3416 = vpack.c.b16 %v2472, %v2464
    %v3417 = vpack.c.b16 %v2473, %v2465
    %v3418 = vpack.c.b16 %v2474, %v2466
    %v3419 = vpack.c.b16 %v2475, %v2467
    %v3420 = vpack.c.b16 %v2476, %v2468
    %v3421 = vpack.c.b16 %v2485, %v2477
    %v3422 = vpack.c.b16 %v2486, %v2478
    %v3423 = vpack.c.b16 %v2487, %v2479
    %v3424 = vpack.c.b16 %v2488, %v2480
    %v3425 = vpack.c.b16 %v2489, %v2481
    %v3426 = vpack.c.b16 %v2490, %v2482
    %v3427 = vpack.c.b16 %v2491, %v2483
    %v3428 = vpack.c.b16 %v2492, %v2484
    %v3429 = vpack.c.b16 %v2501, %v2493
    %v3430 = vpack.c.b16 %v2502, %v2494
    %v3431 = vpack.c.b16 %v2503, %v2495
    %v3432 = vpack.c.b16 %v2504, %v2496
    %v3433 = vpack.c.b16 %v2505, %v2497
    %v3434 = vpack.c.b16 %v2506, %v2498
    %v3435 = vpack.c.b16 %v2507, %v2499
    %v3436 = vpack.c.b16 %v2508, %v2500
    %v3437 = vpack.c.b16 %v2517, %v2509
    %v3438 = vpack.c.b16 %v2518, %v2510
    %v3439 = vpack.c.b16 %v2519, %v2511
    %v3440 = vpack.c.b16 %v2520, %v2512
    %v3441 = vpack.c.b16 %v2521, %v2513
    %v3442 = vpack.c.b16 %v2522, %v2514
    %v3443 = vpack.c.b16 %v2523, %v2515
    %v3444 = vpack.c.b16 %v2524, %v2516
    %v3445 = vpack.c.b16 %v2533, %v2525
    %v3446 = vpack.c.b16 %v2534, %v2526
    %v3447 = vpack.c.b16 %v2535, %v2527
    %v3448 = vpack.c.b16 %v2536, %v2528
    %v3449 = vpack.c.b16 %v2537, %v2529
    %v3450 = vpack.c.b16 %v2538, %v2530
    %v3451 = vpack.c.b16 %v2539, %v2531
    %v3452 = vpack.c.b16 %v2540, %v2532
    %v3453 = vpack.c.b16 %v2549, %v2541
    %v3454 = vpack.c.b16 %v2550, %v2542
    %v3455 = vpack.c.b16 %v2551, %v2543
    %v3456 = vpack.c.b16 %v2552, %v2544
    %v3457 = vpack.c.b16 %v2553, %v2545
    %v3458 = vpack.c.b16 %v2554, %v2546
    %v3459 = vpack.c.b16 %v2555, %v2547
    %v3460 = vpack.c.b16 %v2556, %v2548
    %v3461 = vpack.c.b16 %v2565, %v2557
    %v3462 = vpack.c.b16 %v2566, %v2558
    %v3463 = vpack.c.b16 %v2567, %v2559
    %v3464 = vpack.c.b16 %v2568, %v2560
    %v3465 = vpack.c.b16 %v2569, %v2561
    %v3466 = vpack.c.b16 %v2570, %v2562
    %v3467 = vpack.c.b16 %v2571, %v2563
    %v3468 = vpack.c.b16 %v2572, %v2564
    %v3469 = vpack.c.b16 %v2581, %v2573
    %v3470 = vpack.c.b16 %v2582, %v2574
    %v3471 = vpack.c.b16 %v2583, %v2575
    %v3472 = vpack.c.b16 %v2584, %v2576
    %v3473 = vpack.c.b16 %v2585, %v2577
    %v3474 = vpack.c.b16 %v2586, %v2578
    %v3475 = vpack.c.b16 %v2587, %v2579
    %v3476 = vpack.c.b16 %v2588, %v2580
    %v3477 = vpack.c.b16 %v2597, %v2589
    %v3478 = vpack.c.b16 %v2598, %v2590
    %v3479 = vpack.c.b16 %v2599, %v2591
    %v3480 = vpack.c.b16 %v2600, %v2592
    %v3481 = vpack.c.b16 %v2601, %v2593
    %v3482 = vpack.c.b16 %v2602, %v2594
    %v3483 = vpack.c.b16 %v2603, %v2595
    %v3484 = vpack.c.b16 %v2604, %v2596
    %v3485 = vpack.c.b16 %v2613, %v2605
    %v3486 = vpack.c.b16 %v2614, %v2606
    %v3487 = vpack.c.b16 %v2615, %v2607
    %v3488 = vpack.c.b16 %v2616, %v2608
    %v3489 = vpack.c.b16 %v2617, %v2609
    %v3490 = vpack.c.b16 %v2618, %v2610
    %v3491 = vpack.c.b16 %v2619, %v2611
    %v3492 = vpack.c.b16 %v2620, %v2612
    %v3493 = vpack.c.b16 %v2629, %v2621
    %v3494 = vpack.c.b16 %v2630, %v2622
    %v3495 = vpack.c.b16 %v2631, %v2623
    %v3496 = vpack.c.b16 %v2632, %v2624
    %v3497 = vpack.c.b16 %v2633, %v2625
    %v3498 = vpack.c.b16 %v2634, %v2626
    %v3499 = vpack.c.b16 %v2635, %v2627
    %v3500 = vpack.c.b16 %v2636, %v2628
    %v3501 = vpack.c.b16 %v2645, %v2637
    %v3502 = vpack.c.b16 %v2646, %v2638
    %v3503 = vpack.c.b16 %v2647, %v2639
    %v3504 = vpack.c.b16 %v2648, %v2640
    %v3505 = vpack.c.b16 %v2649, %v2641
    %v3506 = vpack.c.b16 %v2650, %v2642
    %v3507 = vpack.c.b16 %v2651, %v2643
    %v3508 = vpack.c.b16 %v2652, %v2644
    %v3509 = vpack.c.b16 %v2661, %v2653
    %v3510 = vpack.c.b16 %v2662, %v2654
    %v3511 = vpack.c.b16 %v2663, %v2655
    %v3512 = vpack.c.b16 %v2664, %v2656
    %v3513 = vpack.c.b16 %v2665, %v2657
    %v3514 = vpack.c.b16 %v2666, %v2658
    %v3515 = vpack.c.b16 %v2667, %v2659
    %v3516 = vpack.c.b16 %v2668, %v2660
    %v3517 = vpack.c.b16 %v2677, %v2669
    %v3518 = vpack.c.b16 %v2678, %v2670
    %v3519 = vpack.c.b16 %v2679, %v2671
    %v3520 = vpack.c.b16 %v2680, %v2672
    %v3521 = vpack.c.b16 %v2681, %v2673
    %v3522 = vpack.c.b16 %v2682, %v2674
    %v3523 = vpack.c.b16 %v2683, %v2675
    %v3524 = vpack.c.b16 %v2684, %v2676
    %v3525 = vpack.c.b16 %v2693, %v2685
    %v3526 = vpack.c.b16 %v2694, %v2686
    %v3527 = vpack.c.b16 %v2695, %v2687
    %v3528 = vpack.c.b16 %v2696, %v2688
    %v3529 = vpack.c.b16 %v2697, %v2689
    %v3530 = vpack.c.b16 %v2698, %v2690
    %v3531 = vpack.c.b16 %v2699, %v2691
    %v3532 = vpack.c.b16 %v2700, %v2692
    %v3533 = vpack.c.b16 %v2709, %v2701
    %v3534 = vpack.c.b16 %v2710, %v2702
    %v3535 = vpack.c.b16 %v2711, %v2703
    %v3536 = vpack.c.b16 %v2712, %v2704
    %v3537 = vpack.c.b16 %v2713, %v2705
    %v3538 = vpack.c.b16 %v2714, %v2706
    %v3539 = vpack.c.b16 %v2715, %v2707
    %v3540 = vpack.c.b16 %v2716, %v2708
    %v3541 = vpack.c.b16 %v2725, %v2717
    %v3542 = vpack.c.b16 %v2726, %v2718
    %v3543 = vpack.c.b16 %v2727, %v2719
    %v3544 = vpack.c.b16 %v2728, %v2720
    %v3545 = vpack.c.b16 %v2729, %v2721
    %v3546 = vpack.c.b16 %v2730, %v2722
    %v3547 = vpack.c.b16 %v2731, %v2723
    %v3548 = vpack.c.b16 %v2732, %v2724
    %v3549 = vpack.c.b16 %v2741, %v2733
    %v3550 = vpack.c.b16 %v2742, %v2734
    %v3551 = vpack.c.b16 %v2743, %v2735
    %v3552 = vpack.c.b16 %v2744, %v2736
    %v3553 = vpack.c.b16 %v2745, %v2737
    %v3554 = vpack.c.b16 %v2746, %v2738
    %v3555 = vpack.c.b16 %v2747, %v2739
    %v3556 = vpack.c.b16 %v2748, %v2740
    %v3557 = vpack.c.b16 %v2757, %v2749
    %v3558 = vpack.c.b16 %v2758, %v2750
    %v3559 = vpack.c.b16 %v2759, %v2751
    %v3560 = vpack.c.b16 %v2760, %v2752
    %v3561 = vpack.c.b16 %v2761, %v2753
    %v3562 = vpack.c.b16 %v2762, %v2754
    %v3563 = vpack.c.b16 %v2763, %v2755
    %v3564 = vpack.c.b16 %v2764, %v2756
    %v3565 = vpack.c.b16 %v2773, %v2765
    %v3566 = vpack.c.b16 %v2774, %v2766
    %v3567 = vpack.c.b16 %v2775, %v2767
    %v3568 = vpack.c.b16 %v2776, %v2768
    %v3569 = vpack.c.b16 %v2777, %v2769
    %v3570 = vpack.c.b16 %v2778, %v2770
    %v3571 = vpack.c.b16 %v2779, %v2771
    %v3572 = vpack.c.b16 %v2780, %v2772
    %v3573 = vpack.c.b16 %v2789, %v2781
    %v3574 = vpack.c.b16 %v2790, %v2782
    %v3575 = vpack.c.b16 %v2791, %v2783
    %v3576 = vpack.c.b16 %v2792, %v2784
    %v3577 = vpack.c.b16 %v2793, %v2785
    %v3578 = vpack.c.b16 %v2794, %v2786
    %v3579 = vpack.c.b16 %v2795, %v2787
    %v3580 = vpack.c.b16 %v2796, %v2788
    %v3581 = vpack.c.b16 %v2805, %v2797
    %v3582 = vpack.c.b16 %v2806, %v2798
    %v3583 = vpack.c.b16 %v2807, %v2799
    %v3584 = vpack.c.b16 %v2808, %v2800
    %v3585 = vpack.c.b16 %v2809, %v2801
    %v3586 = vpack.c.b16 %v2810, %v2802
    %v3587 = vpack.c.b16 %v2811, %v2803
    %v3588 = vpack.c.b16 %v2812, %v2804
    %v3589 = vpack.c.b16 %v2821, %v2813
    %v3590 = vpack.c.b16 %v2822, %v2814
    %v3591 = vpack.c.b16 %v2823, %v2815
    %v3592 = vpack.c.b16 %v2824, %v2816
    %v3593 = vpack.c.b16 %v2825, %v2817
    %v3594 = vpack.c.b16 %v2826, %v2818
    %v3595 = vpack.c.b16 %v2827, %v2819
    %v3596 = vpack.c.b16 %v2828, %v2820
    %v3597 = vpack.c.b16 %v2837, %v2829
    %v3598 = vpack.c.b16 %v2838, %v2830
    %v3599 = vpack.c.b16 %v2839, %v2831
    %v3600 = vpack.c.b16 %v2840, %v2832
    %v3601 = vpack.c.b16 %v2841, %v2833
    %v3602 = vpack.c.b16 %v2842, %v2834
    %v3603 = vpack.c.b16 %v2843, %v2835
    %v3604 = vpack.c.b16 %v2844, %v2836
    %v3605 = vpack.c.b16 %v2853, %v2845
    %v3606 = vpack.c.b16 %v2854, %v2846
    %v3607 = vpack.c.b16 %v2855, %v2847
    %v3608 = vpack.c.b16 %v2856, %v2848
    %v3609 = vpack.c.b16 %v2857, %v2849
    %v3610 = vpack.c.b16 %v2858, %v2850
    %v3611 = vpack.c.b16 %v2859, %v2851
    %v3612 = vpack.c.b16 %v2860, %v2852
    %v3613 = vpack.c.b16 %v2869, %v2861
    %v3614 = vpack.c.b16 %v2870, %v2862
    %v3615 = vpack.c.b16 %v2871, %v2863
    %v3616 = vpack.c.b16 %v2872, %v2864
    %v3617 = vpack.c.b16 %v2873, %v2865
    %v3618 = vpack.c.b16 %v2874, %v2866
    %v3619 = vpack.c.b16 %v2875, %v2867
    %v3620 = vpack.c.b16 %v2876, %v2868
    %v3621 = vpack.c.b16 %v2885, %v2877
    %v3622 = vpack.c.b16 %v2886, %v2878
    %v3623 = vpack.c.b16 %v2887, %v2879
    %v3624 = vpack.c.b16 %v2888, %v2880
    %v3625 = vpack.c.b16 %v2889, %v2881
    %v3626 = vpack.c.b16 %v2890, %v2882
    %v3627 = vpack.c.b16 %v2891, %v2883
    %v3628 = vpack.c.b16 %v2892, %v2884
    %v3629 = vpack.c.b16 %v2901, %v2893
    %v3630 = vpack.c.b16 %v2902, %v2894
    %v3631 = vpack.c.b16 %v2903, %v2895
    %v3632 = vpack.c.b16 %v2904, %v2896
    %v3633 = vpack.c.b16 %v2905, %v2897
    %v3634 = vpack.c.b16 %v2906, %v2898
    %v3635 = vpack.c.b16 %v2907, %v2899
    %v3636 = vpack.c.b16 %v2908, %v2900
    %v3637 = vpack.c.b16 %v2917, %v2909
    %v3638 = vpack.c.b16 %v2918, %v2910
    %v3639 = vpack.c.b16 %v2919, %v2911
    %v3640 = vpack.c.b16 %v2920, %v2912
    %v3641 = vpack.c.b16 %v2921, %v2913
    %v3642 = vpack.c.b16 %v2922, %v2914
    %v3643 = vpack.c.b16 %v2923, %v2915
    %v3644 = vpack.c.b16 %v2924, %v2916
    %v3645 = vpack.c.b16 %v2933, %v2925
    %v3646 = vpack.c.b16 %v2934, %v2926
    %v3647 = vpack.c.b16 %v2935, %v2927
    %v3648 = vpack.c.b16 %v2936, %v2928
    %v3649 = vpack.c.b16 %v2937, %v2929
    %v3650 = vpack.c.b16 %v2938, %v2930
    %v3651 = vpack.c.b16 %v2939, %v2931
    %v3652 = vpack.c.b16 %v2940, %v2932
    %v3653 = vpack.c.b16 %v2949, %v2941
    %v3654 = vpack.c.b16 %v2950, %v2942
    %v3655 = vpack.c.b16 %v2951, %v2943
    %v3656 = vpack.c.b16 %v2952, %v2944
    %v3657 = vpack.c.b16 %v2953, %v2945
    %v3658 = vpack.c.b16 %v2954, %v2946
    %v3659 = vpack.c.b16 %v2955, %v2947
    %v3660 = vpack.c.b16 %v2956, %v2948
    %v3661 = vpack.c.b16 %v2965, %v2957
    %v3662 = vpack.c.b16 %v2966, %v2958
    %v3663 = vpack.c.b16 %v2967, %v2959
    %v3664 = vpack.c.b16 %v2968, %v2960
    %v3665 = vpack.c.b16 %v2969, %v2961
    %v3666 = vpack.c.b16 %v2970, %v2962
    %v3667 = vpack.c.b16 %v2971, %v2963
    %v3668 = vpack.c.b16 %v2972, %v2964
    %v3669 = vpack.c.b16 %v2981, %v2973
    %v3670 = vpack.c.b16 %v2982, %v2974
    %v3671 = vpack.c.b16 %v2983, %v2975
    %v3672 = vpack.c.b16 %v2984, %v2976
    %v3673 = vpack.c.b16 %v2985, %v2977
    %v3674 = vpack.c.b16 %v2986, %v2978
    %v3675 = vpack.c.b16 %v2987, %v2979
    %v3676 = vpack.c.b16 %v2988, %v2980
    %v3677 = vpack.c.b16 %v2997, %v2989
    %v3678 = vpack.c.b16 %v2998, %v2990
    %v3679 = vpack.c.b16 %v2999, %v2991
    %v3680 = vpack.c.b16 %v3000, %v2992
    %v3681 = vpack.c.b16 %v3001, %v2993
    %v3682 = vpack.c.b16 %v3002, %v2994
    %v3683 = vpack.c.b16 %v3003, %v2995
    %v3684 = vpack.c.b16 %v3004, %v2996
    %v3685 = vpack.c.b16 %v3013, %v3005
    %v3686 = vpack.c.b16 %v3014, %v3006
    %v3687 = vpack.c.b16 %v3015, %v3007
    %v3688 = vpack.c.b16 %v3016, %v3008
    %v3689 = vpack.c.b16 %v3017, %v3009
    %v3690 = vpack.c.b16 %v3018, %v3010
    %v3691 = vpack.c.b16 %v3019, %v3011
    %v3692 = vpack.c.b16 %v3020, %v3012
    %v3693 = vpack.c.b16 %v3029, %v3021
    %v3694 = vpack.c.b16 %v3030, %v3022
    %v3695 = vpack.c.b16 %v3031, %v3023
    %v3696 = vpack.c.b16 %v3032, %v3024
    %v3697 = vpack.c.b16 %v3033, %v3025
    %v3698 = vpack.c.b16 %v3034, %v3026
    %v3699 = vpack.c.b16 %v3035, %v3027
    %v3700 = vpack.c.b16 %v3036, %v3028
    %v3701 = vpack.c.b16 %v3045, %v3037
    %v3702 = vpack.c.b16 %v3046, %v3038
    %v3703 = vpack.c.b16 %v3047, %v3039
    %v3704 = vpack.c.b16 %v3048, %v3040
    %v3705 = vpack.c.b16 %v3049, %v3041
    %v3706 = vpack.c.b16 %v3050, %v3042
    %v3707 = vpack.c.b16 %v3051, %v3043
    %v3708 = vpack.c.b16 %v3052, %v3044
    %v3709 = vpack.c.b16 %v3061, %v3053
    %v3710 = vpack.c.b16 %v3062, %v3054
    %v3711 = vpack.c.b16 %v3063, %v3055
    %v3712 = vpack.c.b16 %v3064, %v3056
    %v3713 = vpack.c.b16 %v3065, %v3057
    %v3714 = vpack.c.b16 %v3066, %v3058
    %v3715 = vpack.c.b16 %v3067, %v3059
    %v3716 = vpack.c.b16 %v3068, %v3060
    %v3717 = vpack.c.b16 %v3077, %v3069
    %v3718 = vpack.c.b16 %v3078, %v3070
    %v3719 = vpack.c.b16 %v3079, %v3071
    %v3720 = vpack.c.b16 %v3080, %v3072
    %v3721 = vpack.c.b16 %v3081, %v3073
    %v3722 = vpack.c.b16 %v3082, %v3074
    %v3723 = vpack.c.b16 %v3083, %v3075
    %v3724 = vpack.c.b16 %v3084, %v3076
    %v3725 = vpack.c.b16 %v3093, %v3085
    %v3726 = vpack.c.b16 %v3094, %v3086
    %v3727 = vpack.c.b16 %v3095, %v3087
    %v3728 = vpack.c.b16 %v3096, %v3088
    %v3729 = vpack.c.b16 %v3097, %v3089
    %v3730 = vpack.c.b16 %v3098, %v3090
    %v3731 = vpack.c.b16 %v3099, %v3091
    %v3732 = vpack.c.b16 %v3100, %v3092
    %v3733 = vpack.c.b16 %v3109, %v3101
    %v3734 = vpack.c.b16 %v3110, %v3102
    %v3735 = vpack.c.b16 %v3111, %v3103
    %v3736 = vpack.c.b16 %v3112, %v3104
    %v3737 = vpack.c.b16 %v3113, %v3105
    %v3738 = vpack.c.b16 %v3114, %v3106
    %v3739 = vpack.c.b16 %v3115, %v3107
    %v3740 = vpack.c.b16 %v3116, %v3108
    %v3741 = vpack.c.b16 %v3125, %v3117
    %v3742 = vpack.c.b16 %v3126, %v3118
    %v3743 = vpack.c.b16 %v3127, %v3119
    %v3744 = vpack.c.b16 %v3128, %v3120
    %v3745 = vpack.c.b16 %v3129, %v3121
    %v3746 = vpack.c.b16 %v3130, %v3122
    %v3747 = vpack.c.b16 %v3131, %v3123
    %v3748 = vpack.c.b16 %v3132, %v3124
    %v3749 = vpack.c.b16 %v3141, %v3133
    %v3750 = vpack.c.b16 %v3142, %v3134
    %v3751 = vpack.c.b16 %v3143, %v3135
    %v3752 = vpack.c.b16 %v3144, %v3136
    %v3753 = vpack.c.b16 %v3145, %v3137
    %v3754 = vpack.c.b16 %v3146, %v3138
    %v3755 = vpack.c.b16 %v3147, %v3139
    %v3756 = vpack.c.b16 %v3148, %v3140
    %v3757 = vpack.c.b16 %v3157, %v3149
    %v3758 = vpack.c.b16 %v3158, %v3150
    %v3759 = vpack.c.b16 %v3159, %v3151
    %v3760 = vpack.c.b16 %v3160, %v3152
    %v3761 = vpack.c.b16 %v3161, %v3153
    %v3762 = vpack.c.b16 %v3162, %v3154
    %v3763 = vpack.c.b16 %v3163, %v3155
    %v3764 = vpack.c.b16 %v3164, %v3156
    %v3765 = vpack.c.b16 %v3173, %v3165
    %v3766 = vpack.c.b16 %v3174, %v3166
    %v3767 = vpack.c.b16 %v3175, %v3167
    %v3768 = vpack.c.b16 %v3176, %v3168
    %v3769 = vpack.c.b16 %v3177, %v3169
    %v3770 = vpack.c.b16 %v3178, %v3170
    %v3771 = vpack.c.b16 %v3179, %v3171
    %v3772 = vpack.c.b16 %v3180, %v3172
    %v3773 = vpack.c.b16 %v3189, %v3181
    %v3774 = vpack.c.b16 %v3190, %v3182
    %v3775 = vpack.c.b16 %v3191, %v3183
    %v3776 = vpack.c.b16 %v3192, %v3184
    %v3777 = vpack.c.b16 %v3193, %v3185
    %v3778 = vpack.c.b16 %v3194, %v3186
    %v3779 = vpack.c.b16 %v3195, %v3187
    %v3780 = vpack.c.b16 %v3196, %v3188
    %v3781 = vpack.c.b16 %v3205, %v3197
    %v3782 = vpack.c.b16 %v3206, %v3198
    %v3783 = vpack.c.b16 %v3207, %v3199
    %v3784 = vpack.c.b16 %v3208, %v3200
    %v3785 = vpack.c.b16 %v3209, %v3201
    %v3786 = vpack.c.b16 %v3210, %v3202
    %v3787 = vpack.c.b16 %v3211, %v3203
    %v3788 = vpack.c.b16 %v3212, %v3204
    %v3789 = vpack.c.b16 %v3221, %v3213
    %v3790 = vpack.c.b16 %v3222, %v3214
    %v3791 = vpack.c.b16 %v3223, %v3215
    %v3792 = vpack.c.b16 %v3224, %v3216
    %v3793 = vpack.c.b16 %v3225, %v3217
    %v3794 = vpack.c.b16 %v3226, %v3218
    %v3795 = vpack.c.b16 %v3227, %v3219
    %v3796 = vpack.c.b16 %v3228, %v3220
    %v3797 = vpack.c.b16 %v3237, %v3229
    %v3798 = vpack.c.b16 %v3238, %v3230
    %v3799 = vpack.c.b16 %v3239, %v3231
    %v3800 = vpack.c.b16 %v3240, %v3232
    %v3801 = vpack.c.b16 %v3241, %v3233
    %v3802 = vpack.c.b16 %v3242, %v3234
    %v3803 = vpack.c.b16 %v3243, %v3235
    %v3804 = vpack.c.b16 %v3244, %v3236
    %v3805 = vpack.c.b16 %v3253, %v3245
    %v3806 = vpack.c.b16 %v3254, %v3246
    %v3807 = vpack.c.b16 %v3255, %v3247
    %v3808 = vpack.c.b16 %v3256, %v3248
    %v3809 = vpack.c.b16 %v3257, %v3249
    %v3810 = vpack.c.b16 %v3258, %v3250
    %v3811 = vpack.c.b16 %v3259, %v3251
    %v3812 = vpack.c.b16 %v3260, %v3252
    %v3813 = vpack.c.b16 %v3269, %v3261
    %v3814 = vpack.c.b16 %v3270, %v3262
    %v3815 = vpack.c.b16 %v3271, %v3263
    %v3816 = vpack.c.b16 %v3272, %v3264
    %v3817 = vpack.c.b16 %v3273, %v3265
    %v3818 = vpack.c.b16 %v3274, %v3266
    %v3819 = vpack.c.b16 %v3275, %v3267
    %v3820 = vpack.c.b16 %v3276, %v3268
    %v3821 = vpack.c.b16 %v3285, %v3277
    %v3822 = vpack.c.b16 %v3286, %v3278
    %v3823 = vpack.c.b16 %v3287, %v3279
    %v3824 = vpack.c.b16 %v3288, %v3280
    %v3825 = vpack.c.b16 %v3289, %v3281
    %v3826 = vpack.c.b16 %v3290, %v3282
    %v3827 = vpack.c.b16 %v3291, %v3283
    %v3828 = vpack.c.b16 %v3292, %v3284
    %v3829 = vpack.c.b16 %v3301, %v3293
    %v3830 = vpack.c.b16 %v3302, %v3294
    %v3831 = vpack.c.b16 %v3303, %v3295
    %v3832 = vpack.c.b16 %v3304, %v3296
    %v3833 = vpack.c.b16 %v3305, %v3297
    %v3834 = vpack.c.b16 %v3306, %v3298
    %v3835 = vpack.c.b16 %v3307, %v3299
    %v3836 = vpack.c.b16 %v3308, %v3300
    %v3837 = vpack.c.b16 %v3317, %v3309
    %v3838 = vpack.c.b16 %v3318, %v3310
    %v3839 = vpack.c.b16 %v3319, %v3311
    %v3840 = vpack.c.b16 %v3320, %v3312
    %v3841 = vpack.c.b16 %v3321, %v3313
    %v3842 = vpack.c.b16 %v3322, %v3314
    %v3843 = vpack.c.b16 %v3323, %v3315
    %v3844 = vpack.c.b16 %v3324, %v3316
    %v3845 = vpack.c.b16 %v3333, %v3325
    %v3846 = vpack.c.b16 %v3334, %v3326
    %v3847 = vpack.c.b16 %v3335, %v3327
    %v3848 = vpack.c.b16 %v3336, %v3328
    %v3849 = vpack.c.b16 %v3337, %v3329
    %v3850 = vpack.c.b16 %v3338, %v3330
    %v3851 = vpack.c.b16 %v3339, %v3331
    %v3852 = vpack.c.b16 %v3340, %v3332
    %4365 = vmatprep.subr.bf16.mxu0 %v3342
    %4366 = vmatpush1.bf16.msra.mxu0 %v3341
    %4367 = vmatprep.subr.bf16.mxu0 %v3350
    %4368 = vmatpush1.bf16.msra.mxu0 %v3349
    %4369 = vmatprep.subr.bf16.mxu0 %v3358
    %4370 = vmatpush1.bf16.msra.mxu0 %v3357
    %4371 = vmatprep.subr.bf16.mxu0 %v3366
    %4372 = vmatpush1.bf16.msra.mxu0 %v3365
    %4373 = vmatprep.subr.bf16.mxu0 %v3374
    %4374 = vmatpush1.bf16.msra.mxu0 %v3373
    %4375 = vmatprep.subr.bf16.mxu0 %v3382
    %4376 = vmatpush1.bf16.msra.mxu0 %v3381
    %4377 = vmatprep.subr.bf16.mxu0 %v3390
    %4378 = vmatpush1.bf16.msra.mxu0 %v3389
    %4379 = vmatprep.subr.bf16.mxu0 %v3398
    %4380 = vmatpush1.bf16.msra.mxu0 %v3397
    %4381 = vmatprep.subr.bf16.mxu0 %v3406
    %4382 = vmatpush1.bf16.msra.mxu0 %v3405
    %4383 = vmatprep.subr.bf16.mxu0 %v3414
    %4384 = vmatpush1.bf16.msra.mxu0 %v3413
    %4385 = vmatprep.subr.bf16.mxu0 %v3422
    %4386 = vmatpush1.bf16.msra.mxu0 %v3421
    %4387 = vmatprep.subr.bf16.mxu0 %v3430
    %4388 = vmatpush1.bf16.msra.mxu0 %v3429
    %4389 = vmatprep.subr.bf16.mxu0 %v3438
    %4390 = vmatpush1.bf16.msra.mxu0 %v3437
    %4391 = vmatprep.subr.bf16.mxu0 %v3446
    %4392 = vmatpush1.bf16.msra.mxu0 %v3445
    %4393 = vmatprep.subr.bf16.mxu0 %v3454
    %4394 = vmatpush1.bf16.msra.mxu0 %v3453
    %4395 = vmatprep.subr.bf16.mxu0 %v3462
    %4396 = vmatpush1.bf16.msra.mxu0 %v3461
    %4397 = vmatprep.mubr.bf16.mxu0 %v1244
    %4398 = vmatmul.mubr.bf16.gmra.mrb[0].mxu0 %v1243
    %v4399 = vpop.f32.mrb[0].mxu0
    %v4400 = vadd.f32 %v1768, %v4399
    %v4401 = vpop.f32.mrb[0].mxu0
    %v4402 = vadd.f32 %v1772, %v4401
    %v4403 = vpop.f32.mrb[0].mxu0
    %v4404 = vpop.f32.mrb[0].mxu0
    %4405 = vdwg.mxu0
    %4406 = vmatprep.subr.bf16.mxu0 %v3470
    %4407 = vmatpush1.bf16.msra.mxu0 %v3469
    %4408 = vmatprep.subr.bf16.mxu0 %v3478
    %4409 = vmatpush1.bf16.msra.mxu0 %v3477
    %4410 = vmatprep.subr.bf16.mxu0 %v3486
    %4411 = vmatpush1.bf16.msra.mxu0 %v3485
    %4412 = vmatprep.subr.bf16.mxu0 %v3494
    %4413 = vmatpush1.bf16.msra.mxu0 %v3493
    %4414 = vmatprep.subr.bf16.mxu0 %v3502
    %4415 = vmatpush1.bf16.msra.mxu0 %v3501
    %4416 = vmatprep.subr.bf16.mxu0 %v3510
    %4417 = vmatpush1.bf16.msra.mxu0 %v3509
    %4418 = vmatprep.subr.bf16.mxu0 %v3518
    %4419 = vmatpush1.bf16.msra.mxu0 %v3517
    %4420 = vmatprep.subr.bf16.mxu0 %v3526
    %4421 = vmatpush1.bf16.msra.mxu0 %v3525
    %4422 = vmatprep.subr.bf16.mxu0 %v3534
    %4423 = vmatpush1.bf16.msra.mxu0 %v3533
    %4424 = vmatprep.subr.bf16.mxu0 %v3542
    %4425 = vmatpush1.bf16.msra.mxu0 %v3541
    %4426 = vmatprep.subr.bf16.mxu0 %v3550
    %4427 = vmatpush1.bf16.msra.mxu0 %v3549
    %4428 = vmatprep.subr.bf16.mxu0 %v3558
    %4429 = vmatpush1.bf16.msra.mxu0 %v3557
    %4430 = vmatprep.subr.bf16.mxu0 %v3566
    %4431 = vmatpush1.bf16.msra.mxu0 %v3565
    %4432 = vmatprep.subr.bf16.mxu0 %v3574
    %4433 = vmatpush1.bf16.msra.mxu0 %v3573
    %4434 = vmatprep.subr.bf16.mxu0 %v3582
    %4435 = vmatpush1.bf16.msra.mxu0 %v3581
    %4436 = vmatprep.subr.bf16.mxu0 %v3590
    %4437 = vmatpush1.bf16.msra.mxu0 %v3589
    %4438 = vmatprep.mubr.bf16.mxu0 %v1246
    %4439 = vmatmul.mubr.bf16.gmra.mrb[0].mxu0 %v1245
    %v4440 = vpop.f32.mrb[0].mxu0
    %v4441 = vadd.f32 %v4400, %v4440
    %v4442 = vpop.f32.mrb[0].mxu0
    %v4443 = vadd.f32 %v4402, %v4442
    %v4444 = vpop.f32.mrb[0].mxu0
    %v4445 = vpop.f32.mrb[0].mxu0
    %4446 = vdwg.mxu0
    %4447 = vmatprep.subr.bf16.mxu0 %v3598
    %4448 = vmatpush1.bf16.msra.mxu0 %v3597
    %4449 = vmatprep.subr.bf16.mxu0 %v3606
    %4450 = vmatpush1.bf16.msra.mxu0 %v3605
    %4451 = vmatprep.subr.bf16.mxu0 %v3614
    %4452 = vmatpush1.bf16.msra.mxu0 %v3613
    %4453 = vmatprep.subr.bf16.mxu0 %v3622
    %4454 = vmatpush1.bf16.msra.mxu0 %v3621
    %4455 = vmatprep.subr.bf16.mxu0 %v3630
    %4456 = vmatpush1.bf16.msra.mxu0 %v3629
    %4457 = vmatprep.subr.bf16.mxu0 %v3638
    %4458 = vmatpush1.bf16.msra.mxu0 %v3637
    %4459 = vmatprep.subr.bf16.mxu0 %v3646
    %4460 = vmatpush1.bf16.msra.mxu0 %v3645
    %4461 = vmatprep.subr.bf16.mxu0 %v3654
    %4462 = vmatpush1.bf16.msra.mxu0 %v3653
    %4463 = vmatprep.subr.bf16.mxu0 %v3662
    %4464 = vmatpush1.bf16.msra.mxu0 %v3661
    %4465 = vmatprep.subr.bf16.mxu0 %v3670
    %4466 = vmatpush1.bf16.msra.mxu0 %v3669
    %4467 = vmatprep.subr.bf16.mxu0 %v3678
    %4468 = vmatpush1.bf16.msra.mxu0 %v3677
    %4469 = vmatprep.subr.bf16.mxu0 %v3686
    %4470 = vmatpush1.bf16.msra.mxu0 %v3685
    %4471 = vmatprep.subr.bf16.mxu0 %v3694
    %4472 = vmatpush1.bf16.msra.mxu0 %v3693
    %4473 = vmatprep.subr.bf16.mxu0 %v3702
    %4474 = vmatpush1.bf16.msra.mxu0 %v3701
    %4475 = vmatprep.subr.bf16.mxu0 %v3710
    %4476 = vmatpush1.bf16.msra.mxu0 %v3709
    %4477 = vmatprep.subr.bf16.mxu0 %v3718
    %4478 = vmatpush1.bf16.msra.mxu0 %v3717
    %4479 = vmatprep.mubr.bf16.mxu0 %v1248
    %4480 = vmatmul.mubr.bf16.gmra.mrb[0].mxu0 %v1247
    %v4481 = vpop.f32.mrb[0].mxu0
    %v4482 = vadd.f32 %v4441, %v4481
    %v4483 = vpop.f32.mrb[0].mxu0
    %v4484 = vadd.f32 %v4443, %v4483
    %v4485 = vpop.f32.mrb[0].mxu0
    %v4486 = vpop.f32.mrb[0].mxu0
    %4487 = vdwg.mxu0
    %4488 = vmatprep.subr.bf16.mxu0 %v3726
    %4489 = vmatpush1.bf16.msra.mxu0 %v3725
    %4490 = vmatprep.subr.bf16.mxu0 %v3734
    %4491 = vmatpush1.bf16.msra.mxu0 %v3733
    %4492 = vmatprep.subr.bf16.mxu0 %v3742
    %4493 = vmatpush1.bf16.msra.mxu0 %v3741
    %4494 = vmatprep.subr.bf16.mxu0 %v3750
    %4495 = vmatpush1.bf16.msra.mxu0 %v3749
    %4496 = vmatprep.subr.bf16.mxu0 %v3758
    %4497 = vmatpush1.bf16.msra.mxu0 %v3757
    %4498 = vmatprep.subr.bf16.mxu0 %v3766
    %4499 = vmatpush1.bf16.msra.mxu0 %v3765
    %4500 = vmatprep.subr.bf16.mxu0 %v3774
    %4501 = vmatpush1.bf16.msra.mxu0 %v3773
    %4502 = vmatprep.subr.bf16.mxu0 %v3782
    %4503 = vmatpush1.bf16.msra.mxu0 %v3781
    %4504 = vmatprep.subr.bf16.mxu0 %v3790
    %4505 = vmatpush1.bf16.msra.mxu0 %v3789
    %4506 = vmatprep.subr.bf16.mxu0 %v3798
    %4507 = vmatpush1.bf16.msra.mxu0 %v3797
    %4508 = vmatprep.subr.bf16.mxu0 %v3806
    %4509 = vmatpush1.bf16.msra.mxu0 %v3805
    %4510 = vmatprep.subr.bf16.mxu0 %v3814
    %4511 = vmatpush1.bf16.msra.mxu0 %v3813
    %4512 = vmatprep.subr.bf16.mxu0 %v3822
    %4513 = vmatpush1.bf16.msra.mxu0 %v3821
    %4514 = vmatprep.subr.bf16.mxu0 %v3830
    %4515 = vmatpush1.bf16.msra.mxu0 %v3829
    %4516 = vmatprep.subr.bf16.mxu0 %v3838
    %4517 = vmatpush1.bf16.msra.mxu0 %v3837
    %4518 = vmatprep.subr.bf16.mxu0 %v3846
    %4519 = vmatpush1.bf16.msra.mxu0 %v3845
    %4520 = vmatprep.mubr.bf16.mxu0 %v1250
    %4521 = vmatmul.mubr.bf16.gmra.mrb[0].mxu0 %v1249
    %v4522 = vpop.f32.mrb[0].mxu0
    %v4523 = vadd.f32 %v4482, %v4522
    %v4524 = vpop.f32.mrb[0].mxu0
    %v4525 = vadd.f32 %v4484, %v4524
    %v4526 = vpop.f32.mrb[0].mxu0
    %v4527 = vpop.f32.mrb[0].mxu0
    %4528 = vdwg.mxu0
    %4529 = vmatprep.subr.bf16.mxu0 %v3344
    %4530 = vmatpush1.bf16.msra.mxu0 %v3343
    %4531 = vmatprep.subr.bf16.mxu0 %v3352
    %4532 = vmatpush1.bf16.msra.mxu0 %v3351
    %4533 = vmatprep.subr.bf16.mxu0 %v3360
    %4534 = vmatpush1.bf16.msra.mxu0 %v3359
    %4535 = vmatprep.subr.bf16.mxu0 %v3368
    %4536 = vmatpush1.bf16.msra.mxu0 %v3367
    %4537 = vmatprep.subr.bf16.mxu0 %v3376
    %4538 = vmatpush1.bf16.msra.mxu0 %v3375
    %4539 = vmatprep.subr.bf16.mxu0 %v3384
    %4540 = vmatpush1.bf16.msra.mxu0 %v3383
    %4541 = vmatprep.subr.bf16.mxu0 %v3392
    %4542 = vmatpush1.bf16.msra.mxu0 %v3391
    %4543 = vmatprep.subr.bf16.mxu0 %v3400
    %4544 = vmatpush1.bf16.msra.mxu0 %v3399
    %4545 = vmatprep.subr.bf16.mxu0 %v3408
    %4546 = vmatpush1.bf16.msra.mxu0 %v3407
    %4547 = vmatprep.subr.bf16.mxu0 %v3416
    %4548 = vmatpush1.bf16.msra.mxu0 %v3415
    %4549 = vmatprep.subr.bf16.mxu0 %v3424
    %4550 = vmatpush1.bf16.msra.mxu0 %v3423
    %4551 = vmatprep.subr.bf16.mxu0 %v3432
    %4552 = vmatpush1.bf16.msra.mxu0 %v3431
    %4553 = vmatprep.subr.bf16.mxu0 %v3440
    %4554 = vmatpush1.bf16.msra.mxu0 %v3439
    %4555 = vmatprep.subr.bf16.mxu0 %v3448
    %4556 = vmatpush1.bf16.msra.mxu0 %v3447
    %4557 = vmatprep.subr.bf16.mxu0 %v3456
    %4558 = vmatpush1.bf16.msra.mxu0 %v3455
    %4559 = vmatprep.subr.bf16.mxu0 %v3464
    %4560 = vmatpush1.bf16.msra.mxu0 %v3463
    %4561 = vmatprep.mubr.bf16.mxu0 %v1244
    %4562 = vmatmul.mubr.bf16.gmra.mrb[0].mxu0 %v1243
    %v4563 = vpop.f32.mrb[0].mxu0
    %v4564 = vadd.f32 %v1776, %v4563
    %v4565 = vpop.f32.mrb[0].mxu0
    %v4566 = vadd.f32 %v1780, %v4565
    %v4567 = vpop.f32.mrb[0].mxu0
    %v4568 = vpop.f32.mrb[0].mxu0
    %4569 = vdwg.mxu0
    %4570 = vmatprep.subr.bf16.mxu0 %v3472
    %4571 = vmatpush1.bf16.msra.mxu0 %v3471
    %4572 = vmatprep.subr.bf16.mxu0 %v3480
    %4573 = vmatpush1.bf16.msra.mxu0 %v3479
    %4574 = vmatprep.subr.bf16.mxu0 %v3488
    %4575 = vmatpush1.bf16.msra.mxu0 %v3487
    %4576 = vmatprep.subr.bf16.mxu0 %v3496
    %4577 = vmatpush1.bf16.msra.mxu0 %v3495
    %4578 = vmatprep.subr.bf16.mxu0 %v3504
    %4579 = vmatpush1.bf16.msra.mxu0 %v3503
    %4580 = vmatprep.subr.bf16.mxu0 %v3512
    %4581 = vmatpush1.bf16.msra.mxu0 %v3511
    %4582 = vmatprep.subr.bf16.mxu0 %v3520
    %4583 = vmatpush1.bf16.msra.mxu0 %v3519
    %4584 = vmatprep.subr.bf16.mxu0 %v3528
    %4585 = vmatpush1.bf16.msra.mxu0 %v3527
    %4586 = vmatprep.subr.bf16.mxu0 %v3536
    %4587 = vmatpush1.bf16.msra.mxu0 %v3535
    %4588 = vmatprep.subr.bf16.mxu0 %v3544
    %4589 = vmatpush1.bf16.msra.mxu0 %v3543
    %4590 = vmatprep.subr.bf16.mxu0 %v3552
    %4591 = vmatpush1.bf16.msra.mxu0 %v3551
    %4592 = vmatprep.subr.bf16.mxu0 %v3560
    %4593 = vmatpush1.bf16.msra.mxu0 %v3559
    %4594 = vmatprep.subr.bf16.mxu0 %v3568
    %4595 = vmatpush1.bf16.msra.mxu0 %v3567
    %4596 = vmatprep.subr.bf16.mxu0 %v3576
    %4597 = vmatpush1.bf16.msra.mxu0 %v3575
    %4598 = vmatprep.subr.bf16.mxu0 %v3584
    %4599 = vmatpush1.bf16.msra.mxu0 %v3583
    %4600 = vmatprep.subr.bf16.mxu0 %v3592
    %4601 = vmatpush1.bf16.msra.mxu0 %v3591
    %4602 = vmatprep.mubr.bf16.mxu0 %v1246
    %4603 = vmatmul.mubr.bf16.gmra.mrb[0].mxu0 %v1245
    %v4604 = vpop.f32.mrb[0].mxu0
    %v4605 = vadd.f32 %v4564, %v4604
    %v4606 = vpop.f32.mrb[0].mxu0
    %v4607 = vadd.f32 %v4566, %v4606
    %v4608 = vpop.f32.mrb[0].mxu0
    %v4609 = vpop.f32.mrb[0].mxu0
    %4610 = vdwg.mxu0
    %4611 = vmatprep.subr.bf16.mxu0 %v3600
    %4612 = vmatpush1.bf16.msra.mxu0 %v3599
    %4613 = vmatprep.subr.bf16.mxu0 %v3608
    %4614 = vmatpush1.bf16.msra.mxu0 %v3607
    %4615 = vmatprep.subr.bf16.mxu0 %v3616
    %4616 = vmatpush1.bf16.msra.mxu0 %v3615
    %4617 = vmatprep.subr.bf16.mxu0 %v3624
    %4618 = vmatpush1.bf16.msra.mxu0 %v3623
    %4619 = vmatprep.subr.bf16.mxu0 %v3632
    %4620 = vmatpush1.bf16.msra.mxu0 %v3631
    %4621 = vmatprep.subr.bf16.mxu0 %v3640
    %4622 = vmatpush1.bf16.msra.mxu0 %v3639
    %4623 = vmatprep.subr.bf16.mxu0 %v3648
    %4624 = vmatpush1.bf16.msra.mxu0 %v3647
    %4625 = vmatprep.subr.bf16.mxu0 %v3656
    %4626 = vmatpush1.bf16.msra.mxu0 %v3655
    %4627 = vmatprep.subr.bf16.mxu0 %v3664
    %4628 = vmatpush1.bf16.msra.mxu0 %v3663
    %4629 = vmatprep.subr.bf16.mxu0 %v3672
    %4630 = vmatpush1.bf16.msra.mxu0 %v3671
    %4631 = vmatprep.subr.bf16.mxu0 %v3680
    %4632 = vmatpush1.bf16.msra.mxu0 %v3679
    %4633 = vmatprep.subr.bf16.mxu0 %v3688
    %4634 = vmatpush1.bf16.msra.mxu0 %v3687
    %4635 = vmatprep.subr.bf16.mxu0 %v3696
    %4636 = vmatpush1.bf16.msra.mxu0 %v3695
    %4637 = vmatprep.subr.bf16.mxu0 %v3704
    %4638 = vmatpush1.bf16.msra.mxu0 %v3703
    %4639 = vmatprep.subr.bf16.mxu0 %v3712
    %4640 = vmatpush1.bf16.msra.mxu0 %v3711
    %4641 = vmatprep.subr.bf16.mxu0 %v3720
    %4642 = vmatpush1.bf16.msra.mxu0 %v3719
    %4643 = vmatprep.mubr.bf16.mxu0 %v1248
    %4644 = vmatmul.mubr.bf16.gmra.mrb[0].mxu0 %v1247
    %v4645 = vpop.f32.mrb[0].mxu0
    %v4646 = vadd.f32 %v4605, %v4645
    %v4647 = vpop.f32.mrb[0].mxu0
    %v4648 = vadd.f32 %v4607, %v4647
    %v4649 = vpop.f32.mrb[0].mxu0
    %v4650 = vpop.f32.mrb[0].mxu0
    %4651 = vdwg.mxu0
    %4652 = vmatprep.subr.bf16.mxu0 %v3728
    %4653 = vmatpush1.bf16.msra.mxu0 %v3727
    %4654 = vmatprep.subr.bf16.mxu0 %v3736
    %4655 = vmatpush1.bf16.msra.mxu0 %v3735
    %4656 = vmatprep.subr.bf16.mxu0 %v3744
    %4657 = vmatpush1.bf16.msra.mxu0 %v3743
    %4658 = vmatprep.subr.bf16.mxu0 %v3752
    %4659 = vmatpush1.bf16.msra.mxu0 %v3751
    %4660 = vmatprep.subr.bf16.mxu0 %v3760
    %4661 = vmatpush1.bf16.msra.mxu0 %v3759
    %4662 = vmatprep.subr.bf16.mxu0 %v3768
    %4663 = vmatpush1.bf16.msra.mxu0 %v3767
    %4664 = vmatprep.subr.bf16.mxu0 %v3776
    %4665 = vmatpush1.bf16.msra.mxu0 %v3775
    %4666 = vmatprep.subr.bf16.mxu0 %v3784
    %4667 = vmatpush1.bf16.msra.mxu0 %v3783
    %4668 = vmatprep.subr.bf16.mxu0 %v3792
    %4669 = vmatpush1.bf16.msra.mxu0 %v3791
    %4670 = vmatprep.subr.bf16.mxu0 %v3800
    %4671 = vmatpush1.bf16.msra.mxu0 %v3799
    %4672 = vmatprep.subr.bf16.mxu0 %v3808
    %4673 = vmatpush1.bf16.msra.mxu0 %v3807
    %4674 = vmatprep.subr.bf16.mxu0 %v3816
    %4675 = vmatpush1.bf16.msra.mxu0 %v3815
    %4676 = vmatprep.subr.bf16.mxu0 %v3824
    %4677 = vmatpush1.bf16.msra.mxu0 %v3823
    %4678 = vmatprep.subr.bf16.mxu0 %v3832
    %4679 = vmatpush1.bf16.msra.mxu0 %v3831
    %4680 = vmatprep.subr.bf16.mxu0 %v3840
    %4681 = vmatpush1.bf16.msra.mxu0 %v3839
    %4682 = vmatprep.subr.bf16.mxu0 %v3848
    %4683 = vmatpush1.bf16.msra.mxu0 %v3847
    %4684 = vmatprep.mubr.bf16.mxu0 %v1250
    %4685 = vmatmul.mubr.bf16.gmra.mrb[0].mxu0 %v1249
    %v4686 = vpop.f32.mrb[0].mxu0
    %v4687 = vadd.f32 %v4646, %v4686
    %v4688 = vpop.f32.mrb[0].mxu0
    %v4689 = vadd.f32 %v4648, %v4688
    %v4690 = vpop.f32.mrb[0].mxu0
    %v4691 = vpop.f32.mrb[0].mxu0
    %4692 = vdwg.mxu0
    %4693 = vmatprep.subr.bf16.mxu0 %v3346
    %4694 = vmatpush1.bf16.msra.mxu0 %v3345
    %4695 = vmatprep.subr.bf16.mxu0 %v3354
    %4696 = vmatpush1.bf16.msra.mxu0 %v3353
    %4697 = vmatprep.subr.bf16.mxu0 %v3362
    %4698 = vmatpush1.bf16.msra.mxu0 %v3361
    %4699 = vmatprep.subr.bf16.mxu0 %v3370
    %4700 = vmatpush1.bf16.msra.mxu0 %v3369
    %4701 = vmatprep.subr.bf16.mxu0 %v3378
    %4702 = vmatpush1.bf16.msra.mxu0 %v3377
    %4703 = vmatprep.subr.bf16.mxu0 %v3386
    %4704 = vmatpush1.bf16.msra.mxu0 %v3385
    %4705 = vmatprep.subr.bf16.mxu0 %v3394
    %4706 = vmatpush1.bf16.msra.mxu0 %v3393
    %4707 = vmatprep.subr.bf16.mxu0 %v3402
    %4708 = vmatpush1.bf16.msra.mxu0 %v3401
    %4709 = vmatprep.subr.bf16.mxu0 %v3410
    %4710 = vmatpush1.bf16.msra.mxu0 %v3409
    %4711 = vmatprep.subr.bf16.mxu0 %v3418
    %4712 = vmatpush1.bf16.msra.mxu0 %v3417
    %4713 = vmatprep.subr.bf16.mxu0 %v3426
    %4714 = vmatpush1.bf16.msra.mxu0 %v3425
    %4715 = vmatprep.subr.bf16.mxu0 %v3434
    %4716 = vmatpush1.bf16.msra.mxu0 %v3433
    %4717 = vmatprep.subr.bf16.mxu0 %v3442
    %4718 = vmatpush1.bf16.msra.mxu0 %v3441
    %4719 = vmatprep.subr.bf16.mxu0 %v3450
    %4720 = vmatpush1.bf16.msra.mxu0 %v3449
    %4721 = vmatprep.subr.bf16.mxu0 %v3458
    %4722 = vmatpush1.bf16.msra.mxu0 %v3457
    %4723 = vmatprep.subr.bf16.mxu0 %v3466
    %4724 = vmatpush1.bf16.msra.mxu0 %v3465
    %4725 = vmatprep.mubr.bf16.mxu0 %v1244
    %4726 = vmatmul.mubr.bf16.gmra.mrb[0].mxu0 %v1243
    %v4727 = vpop.f32.mrb[0].mxu0
    %v4728 = vadd.f32 %v1784, %v4727
    %v4729 = vpop.f32.mrb[0].mxu0
    %v4730 = vadd.f32 %v1788, %v4729
    %v4731 = vpop.f32.mrb[0].mxu0
    %v4732 = vpop.f32.mrb[0].mxu0
    %4733 = vdwg.mxu0
    %4734 = vmatprep.subr.bf16.mxu0 %v3474
    %4735 = vmatpush1.bf16.msra.mxu0 %v3473
    %4736 = vmatprep.subr.bf16.mxu0 %v3482
    %4737 = vmatpush1.bf16.msra.mxu0 %v3481
    %4738 = vmatprep.subr.bf16.mxu0 %v3490
    %4739 = vmatpush1.bf16.msra.mxu0 %v3489
    %4740 = vmatprep.subr.bf16.mxu0 %v3498
    %4741 = vmatpush1.bf16.msra.mxu0 %v3497
    %4742 = vmatprep.subr.bf16.mxu0 %v3506
    %4743 = vmatpush1.bf16.msra.mxu0 %v3505
    %4744 = vmatprep.subr.bf16.mxu0 %v3514
    %4745 = vmatpush1.bf16.msra.mxu0 %v3513
    %4746 = vmatprep.subr.bf16.mxu0 %v3522
    %4747 = vmatpush1.bf16.msra.mxu0 %v3521
    %4748 = vmatprep.subr.bf16.mxu0 %v3530
    %4749 = vmatpush1.bf16.msra.mxu0 %v3529
    %4750 = vmatprep.subr.bf16.mxu0 %v3538
    %4751 = vmatpush1.bf16.msra.mxu0 %v3537
    %4752 = vmatprep.subr.bf16.mxu0 %v3546
    %4753 = vmatpush1.bf16.msra.mxu0 %v3545
    %4754 = vmatprep.subr.bf16.mxu0 %v3554
    %4755 = vmatpush1.bf16.msra.mxu0 %v3553
    %4756 = vmatprep.subr.bf16.mxu0 %v3562
    %4757 = vmatpush1.bf16.msra.mxu0 %v3561
    %4758 = vmatprep.subr.bf16.mxu0 %v3570
    %4759 = vmatpush1.bf16.msra.mxu0 %v3569
    %4760 = vmatprep.subr.bf16.mxu0 %v3578
    %4761 = vmatpush1.bf16.msra.mxu0 %v3577
    %4762 = vmatprep.subr.bf16.mxu0 %v3586
    %4763 = vmatpush1.bf16.msra.mxu0 %v3585
    %4764 = vmatprep.subr.bf16.mxu0 %v3594
    %4765 = vmatpush1.bf16.msra.mxu0 %v3593
    %4766 = vmatprep.mubr.bf16.mxu0 %v1246
    %4767 = vmatmul.mubr.bf16.gmra.mrb[0].mxu0 %v1245
    %v4768 = vpop.f32.mrb[0].mxu0
    %v4769 = vadd.f32 %v4728, %v4768
    %v4770 = vpop.f32.mrb[0].mxu0
    %v4771 = vadd.f32 %v4730, %v4770
    %v4772 = vpop.f32.mrb[0].mxu0
    %v4773 = vpop.f32.mrb[0].mxu0
    %4774 = vdwg.mxu0
    %4775 = vmatprep.subr.bf16.mxu0 %v3602
    %4776 = vmatpush1.bf16.msra.mxu0 %v3601
    %4777 = vmatprep.subr.bf16.mxu0 %v3610
    %4778 = vmatpush1.bf16.msra.mxu0 %v3609
    %4779 = vmatprep.subr.bf16.mxu0 %v3618
    %4780 = vmatpush1.bf16.msra.mxu0 %v3617
    %4781 = vmatprep.subr.bf16.mxu0 %v3626
    %4782 = vmatpush1.bf16.msra.mxu0 %v3625
    %4783 = vmatprep.subr.bf16.mxu0 %v3634
    %4784 = vmatpush1.bf16.msra.mxu0 %v3633
    %4785 = vmatprep.subr.bf16.mxu0 %v3642
    %4786 = vmatpush1.bf16.msra.mxu0 %v3641
    %4787 = vmatprep.subr.bf16.mxu0 %v3650
    %4788 = vmatpush1.bf16.msra.mxu0 %v3649
    %4789 = vmatprep.subr.bf16.mxu0 %v3658
    %4790 = vmatpush1.bf16.msra.mxu0 %v3657
    %4791 = vmatprep.subr.bf16.mxu0 %v3666
    %4792 = vmatpush1.bf16.msra.mxu0 %v3665
    %4793 = vmatprep.subr.bf16.mxu0 %v3674
    %4794 = vmatpush1.bf16.msra.mxu0 %v3673
    %4795 = vmatprep.subr.bf16.mxu0 %v3682
    %4796 = vmatpush1.bf16.msra.mxu0 %v3681
    %4797 = vmatprep.subr.bf16.mxu0 %v3690
    %4798 = vmatpush1.bf16.msra.mxu0 %v3689
    %4799 = vmatprep.subr.bf16.mxu0 %v3698
    %4800 = vmatpush1.bf16.msra.mxu0 %v3697
    %4801 = vmatprep.subr.bf16.mxu0 %v3706
    %4802 = vmatpush1.bf16.msra.mxu0 %v3705
    %4803 = vmatprep.subr.bf16.mxu0 %v3714
    %4804 = vmatpush1.bf16.msra.mxu0 %v3713
    %4805 = vmatprep.subr.bf16.mxu0 %v3722
    %4806 = vmatpush1.bf16.msra.mxu0 %v3721
    %4807 = vmatprep.mubr.bf16.mxu0 %v1248
    %4808 = vmatmul.mubr.bf16.gmra.mrb[0].mxu0 %v1247
    %v4809 = vpop.f32.mrb[0].mxu0
    %v4810 = vadd.f32 %v4769, %v4809
    %v4811 = vpop.f32.mrb[0].mxu0
    %v4812 = vadd.f32 %v4771, %v4811
    %v4813 = vpop.f32.mrb[0].mxu0
    %v4814 = vpop.f32.mrb[0].mxu0
    %4815 = vdwg.mxu0
    %4816 = vmatprep.subr.bf16.mxu0 %v3730
    %4817 = vmatpush1.bf16.msra.mxu0 %v3729
    %4818 = vmatprep.subr.bf16.mxu0 %v3738
    %4819 = vmatpush1.bf16.msra.mxu0 %v3737
    %4820 = vmatprep.subr.bf16.mxu0 %v3746
    %4821 = vmatpush1.bf16.msra.mxu0 %v3745
    %4822 = vmatprep.subr.bf16.mxu0 %v3754
    %4823 = vmatpush1.bf16.msra.mxu0 %v3753
    %4824 = vmatprep.subr.bf16.mxu0 %v3762
    %4825 = vmatpush1.bf16.msra.mxu0 %v3761
    %4826 = vmatprep.subr.bf16.mxu0 %v3770
    %4827 = vmatpush1.bf16.msra.mxu0 %v3769
    %4828 = vmatprep.subr.bf16.mxu0 %v3778
    %4829 = vmatpush1.bf16.msra.mxu0 %v3777
    %4830 = vmatprep.subr.bf16.mxu0 %v3786
    %4831 = vmatpush1.bf16.msra.mxu0 %v3785
    %4832 = vmatprep.subr.bf16.mxu0 %v3794
    %4833 = vmatpush1.bf16.msra.mxu0 %v3793
    %4834 = vmatprep.subr.bf16.mxu0 %v3802
    %4835 = vmatpush1.bf16.msra.mxu0 %v3801
    %4836 = vmatprep.subr.bf16.mxu0 %v3810
    %4837 = vmatpush1.bf16.msra.mxu0 %v3809
    %4838 = vmatprep.subr.bf16.mxu0 %v3818
    %4839 = vmatpush1.bf16.msra.mxu0 %v3817
    %4840 = vmatprep.subr.bf16.mxu0 %v3826
    %4841 = vmatpush1.bf16.msra.mxu0 %v3825
    %4842 = vmatprep.subr.bf16.mxu0 %v3834
    %4843 = vmatpush1.bf16.msra.mxu0 %v3833
    %4844 = vmatprep.subr.bf16.mxu0 %v3842
    %4845 = vmatpush1.bf16.msra.mxu0 %v3841
    %4846 = vmatprep.subr.bf16.mxu0 %v3850
    %4847 = vmatpush1.bf16.msra.mxu0 %v3849
    %4848 = vmatprep.mubr.bf16.mxu0 %v1250
    %4849 = vmatmul.mubr.bf16.gmra.mrb[0].mxu0 %v1249
    %v4850 = vpop.f32.mrb[0].mxu0
    %v4851 = vadd.f32 %v4810, %v4850
    %v4852 = vpop.f32.mrb[0].mxu0
    %v4853 = vadd.f32 %v4812, %v4852
    %v4854 = vpop.f32.mrb[0].mxu0
    %v4855 = vpop.f32.mrb[0].mxu0
    %4856 = vdwg.mxu0
    %4857 = vmatprep.subr.bf16.mxu0 %v3348
    %4858 = vmatpush1.bf16.msra.mxu0 %v3347
    %4859 = vmatprep.subr.bf16.mxu0 %v3356
    %4860 = vmatpush1.bf16.msra.mxu0 %v3355
    %4861 = vmatprep.subr.bf16.mxu0 %v3364
    %4862 = vmatpush1.bf16.msra.mxu0 %v3363
    %4863 = vmatprep.subr.bf16.mxu0 %v3372
    %4864 = vmatpush1.bf16.msra.mxu0 %v3371
    %4865 = vmatprep.subr.bf16.mxu0 %v3380
    %4866 = vmatpush1.bf16.msra.mxu0 %v3379
    %4867 = vmatprep.subr.bf16.mxu0 %v3388
    %4868 = vmatpush1.bf16.msra.mxu0 %v3387
    %4869 = vmatprep.subr.bf16.mxu0 %v3396
    %4870 = vmatpush1.bf16.msra.mxu0 %v3395
    %4871 = vmatprep.subr.bf16.mxu0 %v3404
    %4872 = vmatpush1.bf16.msra.mxu0 %v3403
    %4873 = vmatprep.subr.bf16.mxu0 %v3412
    %4874 = vmatpush1.bf16.msra.mxu0 %v3411
    %4875 = vmatprep.subr.bf16.mxu0 %v3420
    %4876 = vmatpush1.bf16.msra.mxu0 %v3419
    %4877 = vmatprep.subr.bf16.mxu0 %v3428
    %4878 = vmatpush1.bf16.msra.mxu0 %v3427
    %4879 = vmatprep.subr.bf16.mxu0 %v3436
    %4880 = vmatpush1.bf16.msra.mxu0 %v3435
    %4881 = vmatprep.subr.bf16.mxu0 %v3444
    %4882 = vmatpush1.bf16.msra.mxu0 %v3443
    %4883 = vmatprep.subr.bf16.mxu0 %v3452
    %4884 = vmatpush1.bf16.msra.mxu0 %v3451
    %4885 = vmatprep.subr.bf16.mxu0 %v3460
    %4886 = vmatpush1.bf16.msra.mxu0 %v3459
    %4887 = vmatprep.subr.bf16.mxu0 %v3468
    %4888 = vmatpush1.bf16.msra.mxu0 %v3467
    %4889 = vmatprep.mubr.bf16.mxu0 %v1244
    %4890 = vmatmul.mubr.bf16.gmra.mrb[0].mxu0 %v1243
    %v4891 = vpop.f32.mrb[0].mxu0
    %v4892 = vadd.f32 %v1792, %v4891
    %v4893 = vpop.f32.mrb[0].mxu0
    %v4894 = vadd.f32 %v1796, %v4893
    %v4895 = vpop.f32.mrb[0].mxu0
    %v4896 = vpop.f32.mrb[0].mxu0
    %4897 = vdwg.mxu0
    %4898 = vmatprep.subr.bf16.mxu0 %v3476
    %4899 = vmatpush1.bf16.msra.mxu0 %v3475
    %4900 = vmatprep.subr.bf16.mxu0 %v3484
    %4901 = vmatpush1.bf16.msra.mxu0 %v3483
    %4902 = vmatprep.subr.bf16.mxu0 %v3492
    %4903 = vmatpush1.bf16.msra.mxu0 %v3491
    %4904 = vmatprep.subr.bf16.mxu0 %v3500
    %4905 = vmatpush1.bf16.msra.mxu0 %v3499
    %4906 = vmatprep.subr.bf16.mxu0 %v3508
    %4907 = vmatpush1.bf16.msra.mxu0 %v3507
    %4908 = vmatprep.subr.bf16.mxu0 %v3516
    %4909 = vmatpush1.bf16.msra.mxu0 %v3515
    %4910 = vmatprep.subr.bf16.mxu0 %v3524
    %4911 = vmatpush1.bf16.msra.mxu0 %v3523
    %4912 = vmatprep.subr.bf16.mxu0 %v3532
    %4913 = vmatpush1.bf16.msra.mxu0 %v3531
    %4914 = vmatprep.subr.bf16.mxu0 %v3540
    %4915 = vmatpush1.bf16.msra.mxu0 %v3539
    %4916 = vmatprep.subr.bf16.mxu0 %v3548
    %4917 = vmatpush1.bf16.msra.mxu0 %v3547
    %4918 = vmatprep.subr.bf16.mxu0 %v3556
    %4919 = vmatpush1.bf16.msra.mxu0 %v3555
    %4920 = vmatprep.subr.bf16.mxu0 %v3564
    %4921 = vmatpush1.bf16.msra.mxu0 %v3563
    %4922 = vmatprep.subr.bf16.mxu0 %v3572
    %4923 = vmatpush1.bf16.msra.mxu0 %v3571
    %4924 = vmatprep.subr.bf16.mxu0 %v3580
    %4925 = vmatpush1.bf16.msra.mxu0 %v3579
    %4926 = vmatprep.subr.bf16.mxu0 %v3588
    %4927 = vmatpush1.bf16.msra.mxu0 %v3587
    %4928 = vmatprep.subr.bf16.mxu0 %v3596
    %4929 = vmatpush1.bf16.msra.mxu0 %v3595
    %4930 = vmatprep.mubr.bf16.mxu0 %v1246
    %4931 = vmatmul.mubr.bf16.gmra.mrb[0].mxu0 %v1245
    %v4932 = vpop.f32.mrb[0].mxu0
    %v4933 = vadd.f32 %v4892, %v4932
    %v4934 = vpop.f32.mrb[0].mxu0
    %v4935 = vadd.f32 %v4894, %v4934
    %v4936 = vpop.f32.mrb[0].mxu0
    %v4937 = vpop.f32.mrb[0].mxu0
    %4938 = vdwg.mxu0
    %4939 = vmatprep.subr.bf16.mxu0 %v3604
    %4940 = vmatpush1.bf16.msra.mxu0 %v3603
    %4941 = vmatprep.subr.bf16.mxu0 %v3612
    %4942 = vmatpush1.bf16.msra.mxu0 %v3611
    %4943 = vmatprep.subr.bf16.mxu0 %v3620
    %4944 = vmatpush1.bf16.msra.mxu0 %v3619
    %4945 = vmatprep.subr.bf16.mxu0 %v3628
    %4946 = vmatpush1.bf16.msra.mxu0 %v3627
    %4947 = vmatprep.subr.bf16.mxu0 %v3636
    %4948 = vmatpush1.bf16.msra.mxu0 %v3635
    %4949 = vmatprep.subr.bf16.mxu0 %v3644
    %4950 = vmatpush1.bf16.msra.mxu0 %v3643
    %4951 = vmatprep.subr.bf16.mxu0 %v3652
    %4952 = vmatpush1.bf16.msra.mxu0 %v3651
    %4953 = vmatprep.subr.bf16.mxu0 %v3660
    %4954 = vmatpush1.bf16.msra.mxu0 %v3659
    %4955 = vmatprep.subr.bf16.mxu0 %v3668
    %4956 = vmatpush1.bf16.msra.mxu0 %v3667
    %4957 = vmatprep.subr.bf16.mxu0 %v3676
    %4958 = vmatpush1.bf16.msra.mxu0 %v3675
    %4959 = vmatprep.subr.bf16.mxu0 %v3684
    %4960 = vmatpush1.bf16.msra.mxu0 %v3683
    %4961 = vmatprep.subr.bf16.mxu0 %v3692
    %4962 = vmatpush1.bf16.msra.mxu0 %v3691
    %4963 = vmatprep.subr.bf16.mxu0 %v3700
    %4964 = vmatpush1.bf16.msra.mxu0 %v3699
    %4965 = vmatprep.subr.bf16.mxu0 %v3708
    %4966 = vmatpush1.bf16.msra.mxu0 %v3707
    %4967 = vmatprep.subr.bf16.mxu0 %v3716
    %4968 = vmatpush1.bf16.msra.mxu0 %v3715
    %4969 = vmatprep.subr.bf16.mxu0 %v3724
    %4970 = vmatpush1.bf16.msra.mxu0 %v3723
    %4971 = vmatprep.mubr.bf16.mxu0 %v1248
    %4972 = vmatmul.mubr.bf16.gmra.mrb[0].mxu0 %v1247
    %v4973 = vpop.f32.mrb[0].mxu0
    %v4974 = vadd.f32 %v4933, %v4973
    %v4975 = vpop.f32.mrb[0].mxu0
    %v4976 = vadd.f32 %v4935, %v4975
    %v4977 = vpop.f32.mrb[0].mxu0
    %v4978 = vpop.f32.mrb[0].mxu0
    %4979 = vdwg.mxu0
    %4980 = vmatprep.subr.bf16.mxu0 %v3732
    %4981 = vmatpush1.bf16.msra.mxu0 %v3731
    %4982 = vmatprep.subr.bf16.mxu0 %v3740
    %4983 = vmatpush1.bf16.msra.mxu0 %v3739
    %4984 = vmatprep.subr.bf16.mxu0 %v3748
    %4985 = vmatpush1.bf16.msra.mxu0 %v3747
    %4986 = vmatprep.subr.bf16.mxu0 %v3756
    %4987 = vmatpush1.bf16.msra.mxu0 %v3755
    %4988 = vmatprep.subr.bf16.mxu0 %v3764
    %4989 = vmatpush1.bf16.msra.mxu0 %v3763
    %4990 = vmatprep.subr.bf16.mxu0 %v3772
    %4991 = vmatpush1.bf16.msra.mxu0 %v3771
    %4992 = vmatprep.subr.bf16.mxu0 %v3780
    %4993 = vmatpush1.bf16.msra.mxu0 %v3779
    %4994 = vmatprep.subr.bf16.mxu0 %v3788
    %4995 = vmatpush1.bf16.msra.mxu0 %v3787
    %4996 = vmatprep.subr.bf16.mxu0 %v3796
    %4997 = vmatpush1.bf16.msra.mxu0 %v3795
    %4998 = vmatprep.subr.bf16.mxu0 %v3804
    %4999 = vmatpush1.bf16.msra.mxu0 %v3803
    %5000 = vmatprep.subr.bf16.mxu0 %v3812
    %5001 = vmatpush1.bf16.msra.mxu0 %v3811
    %5002 = vmatprep.subr.bf16.mxu0 %v3820
    %5003 = vmatpush1.bf16.msra.mxu0 %v3819
    %5004 = vmatprep.subr.bf16.mxu0 %v3828
    %5005 = vmatpush1.bf16.msra.mxu0 %v3827
    %5006 = vmatprep.subr.bf16.mxu0 %v3836
    %5007 = vmatpush1.bf16.msra.mxu0 %v3835
    %5008 = vmatprep.subr.bf16.mxu0 %v3844
    %5009 = vmatpush1.bf16.msra.mxu0 %v3843
    %5010 = vmatprep.subr.bf16.mxu0 %v3852
    %5011 = vmatpush1.bf16.msra.mxu0 %v3851
    %5012 = vmatprep.mubr.bf16.mxu0 %v1250
    %5013 = vmatmul.mubr.bf16.gmra.mrb[0].mxu0 %v1249
    %v5014 = vpop.f32.mrb[0].mxu0
    %v5015 = vadd.f32 %v4974, %v5014
    %v5016 = vpop.f32.mrb[0].mxu0
    %v5017 = vadd.f32 %v4976, %v5016
    %v5018 = vpop.f32.mrb[0].mxu0
    %v5019 = vpop.f32.mrb[0].mxu0
    %5020 = vdwg.mxu0
    %v5021 = vmul.f32 %v4523, 0.01
    %v5022 = vmul.f32 %v4525, 0.01
    %v5023 = vmul.f32 %v4687, 0.01
    %v5024 = vmul.f32 %v4689, 0.01
    %v5025 = vmul.f32 %v4851, 0.01
    %v5026 = vmul.f32 %v4853, 0.01
    %v5027 = vmul.f32 %v5015, 0.01
    %v5028 = vmul.f32 %v5017, 0.01
    %v5029 = vmax.f32 %v4523, %v5021
    %v5030 = vmax.f32 %v4525, %v5022
    %v5031 = vmax.f32 %v4687, %v5023
    %v5032 = vmax.f32 %v4689, %v5024
    %v5033 = vmax.f32 %v4851, %v5025
    %v5034 = vmax.f32 %v4853, %v5026
    %v5035 = vmax.f32 %v5015, %v5027
    %v5036 = vmax.f32 %v5017, %v5028
    %v5037 = vpack.c.bf16 %v5029, %v5029
    %v5038 = vpack.c.bf16 %v5030, %v5030
    %v5039 = vpack.c.bf16 %v5031, %v5031
    %v5040 = vpack.c.bf16 %v5032, %v5032
    %v5041 = vpack.c.bf16 %v5033, %v5033
    %v5042 = vpack.c.bf16 %v5034, %v5034
    %v5043 = vpack.c.bf16 %v5035, %v5035
    %v5044 = vpack.c.bf16 %v5036, %v5036
    %v5045 = vld [vmem:[#allocation14] sm:$0xff]
    %v5046 = vld [vmem:[#allocation14 + $0x8] sm:$0xff]
    %v5047 = vld [vmem:[#allocation14 + $0x10] sm:$0xff]
    %v5048 = vld [vmem:[#allocation14 + $0x18] sm:$0xff]
    %v5049 = vld [vmem:[#allocation14 + $0x20] sm:$0xff]
    %v5050 = vld [vmem:[#allocation14 + $0x28] sm:$0xff]
    %v5051 = vld [vmem:[#allocation14 + $0x30] sm:$0xff]
    %v5052 = vld [vmem:[#allocation14 + $0x38] sm:$0xff]
    %v5053 = vld [vmem:[#allocation14 + $0x40] sm:$0xff]
    %v5054 = vld [vmem:[#allocation14 + $0x48] sm:$0xff]
    %v5055 = vld [vmem:[#allocation14 + $0x50] sm:$0xff]
    %v5056 = vld [vmem:[#allocation14 + $0x58] sm:$0xff]
    %v5057 = vld [vmem:[#allocation14 + $0x60] sm:$0xff]
    %v5058 = vld [vmem:[#allocation14 + $0x68] sm:$0xff]
    %v5059 = vld [vmem:[#allocation14 + $0x70] sm:$0xff]
    %v5060 = vld [vmem:[#allocation14 + $0x78] sm:$0xff]
    %v5061 = vld [vmem:[#allocation14 + $0x80] sm:$0xff]
    %v5062 = vld [vmem:[#allocation14 + $0x88] sm:$0xff]
    %v5063 = vld [vmem:[#allocation14 + $0x90] sm:$0xff]
    %v5064 = vld [vmem:[#allocation14 + $0x98] sm:$0xff]
    %v5065 = vld [vmem:[#allocation14 + $0xa0] sm:$0xff]
    %v5066 = vld [vmem:[#allocation14 + $0xa8] sm:$0xff]
    %v5067 = vld [vmem:[#allocation14 + $0xb0] sm:$0xff]
    %v5068 = vld [vmem:[#allocation14 + $0xb8] sm:$0xff]
    %v5069 = vld [vmem:[#allocation14 + $0xc0] sm:$0xff]
    %v5070 = vld [vmem:[#allocation14 + $0xc8] sm:$0xff]
    %v5071 = vld [vmem:[#allocation14 + $0xd0] sm:$0xff]
    %v5072 = vld [vmem:[#allocation14 + $0xd8] sm:$0xff]
    %v5073 = vld [vmem:[#allocation14 + $0xe0] sm:$0xff]
    %v5074 = vld [vmem:[#allocation14 + $0xe8] sm:$0xff]
    %v5075 = vld [vmem:[#allocation14 + $0xf0] sm:$0xff]
    %v5076 = vld [vmem:[#allocation14 + $0xf8] sm:$0xff]
    %v5077 = vld [vmem:[#allocation14 + $0x100] sm:$0xff]
    %v5078 = vld [vmem:[#allocation14 + $0x108] sm:$0xff]
    %v5079 = vld [vmem:[#allocation14 + $0x110] sm:$0xff]
    %v5080 = vld [vmem:[#allocation14 + $0x118] sm:$0xff]
    %v5081 = vld [vmem:[#allocation14 + $0x120] sm:$0xff]
    %v5082 = vld [vmem:[#allocation14 + $0x128] sm:$0xff]
    %v5083 = vld [vmem:[#allocation14 + $0x130] sm:$0xff]
    %v5084 = vld [vmem:[#allocation14 + $0x138] sm:$0xff]
    %v5085 = vld [vmem:[#allocation14 + $0x140] sm:$0xff]
    %v5086 = vld [vmem:[#allocation14 + $0x148] sm:$0xff]
    %v5087 = vld [vmem:[#allocation14 + $0x150] sm:$0xff]
    %v5088 = vld [vmem:[#allocation14 + $0x158] sm:$0xff]
    %v5089 = vld [vmem:[#allocation14 + $0x160] sm:$0xff]
    %v5090 = vld [vmem:[#allocation14 + $0x168] sm:$0xff]
    %v5091 = vld [vmem:[#allocation14 + $0x170] sm:$0xff]
    %v5092 = vld [vmem:[#allocation14 + $0x178] sm:$0xff]
    %v5093 = vld [vmem:[#allocation14 + $0x180] sm:$0xff]
    %v5094 = vld [vmem:[#allocation14 + $0x188] sm:$0xff]
    %v5095 = vld [vmem:[#allocation14 + $0x190] sm:$0xff]
    %v5096 = vld [vmem:[#allocation14 + $0x198] sm:$0xff]
    %v5097 = vld [vmem:[#allocation14 + $0x1a0] sm:$0xff]
    %v5098 = vld [vmem:[#allocation14 + $0x1a8] sm:$0xff]
    %v5099 = vld [vmem:[#allocation14 + $0x1b0] sm:$0xff]
    %v5100 = vld [vmem:[#allocation14 + $0x1b8] sm:$0xff]
    %v5101 = vld [vmem:[#allocation14 + $0x1c0] sm:$0xff]
    %v5102 = vld [vmem:[#allocation14 + $0x1c8] sm:$0xff]
    %v5103 = vld [vmem:[#allocation14 + $0x1d0] sm:$0xff]
    %v5104 = vld [vmem:[#allocation14 + $0x1d8] sm:$0xff]
    %v5105 = vld [vmem:[#allocation14 + $0x1e0] sm:$0xff]
    %v5106 = vld [vmem:[#allocation14 + $0x1e8] sm:$0xff]
    %v5107 = vld [vmem:[#allocation14 + $0x1f0] sm:$0xff]
    %v5108 = vld [vmem:[#allocation14 + $0x1f8] sm:$0xff]
    %v5109 = vld [vmem:[#allocation14 + $0x200] sm:$0xff]
    %v5110 = vld [vmem:[#allocation14 + $0x208] sm:$0xff]
    %v5111 = vld [vmem:[#allocation14 + $0x210] sm:$0xff]
    %v5112 = vld [vmem:[#allocation14 + $0x218] sm:$0xff]
    %v5113 = vld [vmem:[#allocation14 + $0x220] sm:$0xff]
    %v5114 = vld [vmem:[#allocation14 + $0x228] sm:$0xff]
    %v5115 = vld [vmem:[#allocation14 + $0x230] sm:$0xff]
    %v5116 = vld [vmem:[#allocation14 + $0x238] sm:$0xff]
    %v5117 = vld [vmem:[#allocation14 + $0x240] sm:$0xff]
    %v5118 = vld [vmem:[#allocation14 + $0x248] sm:$0xff]
    %v5119 = vld [vmem:[#allocation14 + $0x250] sm:$0xff]
    %v5120 = vld [vmem:[#allocation14 + $0x258] sm:$0xff]
    %v5121 = vld [vmem:[#allocation14 + $0x260] sm:$0xff]
    %v5122 = vld [vmem:[#allocation14 + $0x268] sm:$0xff]
    %v5123 = vld [vmem:[#allocation14 + $0x270] sm:$0xff]
    %v5124 = vld [vmem:[#allocation14 + $0x278] sm:$0xff]
    %v5125 = vld [vmem:[#allocation14 + $0x280] sm:$0xff]
    %v5126 = vld [vmem:[#allocation14 + $0x288] sm:$0xff]
    %v5127 = vld [vmem:[#allocation14 + $0x290] sm:$0xff]
    %v5128 = vld [vmem:[#allocation14 + $0x298] sm:$0xff]
    %v5129 = vld [vmem:[#allocation14 + $0x2a0] sm:$0xff]
    %v5130 = vld [vmem:[#allocation14 + $0x2a8] sm:$0xff]
    %v5131 = vld [vmem:[#allocation14 + $0x2b0] sm:$0xff]
    %v5132 = vld [vmem:[#allocation14 + $0x2b8] sm:$0xff]
    %v5133 = vld [vmem:[#allocation14 + $0x2c0] sm:$0xff]
    %v5134 = vld [vmem:[#allocation14 + $0x2c8] sm:$0xff]
    %v5135 = vld [vmem:[#allocation14 + $0x2d0] sm:$0xff]
    %v5136 = vld [vmem:[#allocation14 + $0x2d8] sm:$0xff]
    %v5137 = vld [vmem:[#allocation14 + $0x2e0] sm:$0xff]
    %v5138 = vld [vmem:[#allocation14 + $0x2e8] sm:$0xff]
    %v5139 = vld [vmem:[#allocation14 + $0x2f0] sm:$0xff]
    %v5140 = vld [vmem:[#allocation14 + $0x2f8] sm:$0xff]
    %v5141 = vld [vmem:[#allocation14 + $0x300] sm:$0xff]
    %v5142 = vld [vmem:[#allocation14 + $0x308] sm:$0xff]
    %v5143 = vld [vmem:[#allocation14 + $0x310] sm:$0xff]
    %v5144 = vld [vmem:[#allocation14 + $0x318] sm:$0xff]
    %v5145 = vld [vmem:[#allocation14 + $0x320] sm:$0xff]
    %v5146 = vld [vmem:[#allocation14 + $0x328] sm:$0xff]
    %v5147 = vld [vmem:[#allocation14 + $0x330] sm:$0xff]
    %v5148 = vld [vmem:[#allocation14 + $0x338] sm:$0xff]
    %v5149 = vld [vmem:[#allocation14 + $0x340] sm:$0xff]
    %v5150 = vld [vmem:[#allocation14 + $0x348] sm:$0xff]
    %v5151 = vld [vmem:[#allocation14 + $0x350] sm:$0xff]
    %v5152 = vld [vmem:[#allocation14 + $0x358] sm:$0xff]
    %v5153 = vld [vmem:[#allocation14 + $0x360] sm:$0xff]
    %v5154 = vld [vmem:[#allocation14 + $0x368] sm:$0xff]
    %v5155 = vld [vmem:[#allocation14 + $0x370] sm:$0xff]
    %v5156 = vld [vmem:[#allocation14 + $0x378] sm:$0xff]
    %v5157 = vld [vmem:[#allocation14 + $0x380] sm:$0xff]
    %v5158 = vld [vmem:[#allocation14 + $0x388] sm:$0xff]
    %v5159 = vld [vmem:[#allocation14 + $0x390] sm:$0xff]
    %v5160 = vld [vmem:[#allocation14 + $0x398] sm:$0xff]
    %v5161 = vld [vmem:[#allocation14 + $0x3a0] sm:$0xff]
    %v5162 = vld [vmem:[#allocation14 + $0x3a8] sm:$0xff]
    %v5163 = vld [vmem:[#allocation14 + $0x3b0] sm:$0xff]
    %v5164 = vld [vmem:[#allocation14 + $0x3b8] sm:$0xff]
    %v5165 = vld [vmem:[#allocation14 + $0x3c0] sm:$0xff]
    %v5166 = vld [vmem:[#allocation14 + $0x3c8] sm:$0xff]
    %v5167 = vld [vmem:[#allocation14 + $0x3d0] sm:$0xff]
    %v5168 = vld [vmem:[#allocation14 + $0x3d8] sm:$0xff]
    %v5169 = vld [vmem:[#allocation14 + $0x3e0] sm:$0xff]
    %v5170 = vld [vmem:[#allocation14 + $0x3e8] sm:$0xff]
    %v5171 = vld [vmem:[#allocation14 + $0x3f0] sm:$0xff]
    %v5172 = vld [vmem:[#allocation14 + $0x3f8] sm:$0xff]
    %v5173 = vld [vmem:[#allocation16] sm:$0x3]
    %v5175 = vlaneseq
    %v5176 = vshrl.u32 %v5175, 7
    %v5177 = vsub.s32 0, %v5176
    %v5178 = vrot.slane %v5173, %v5177
    %v5179 = vlaneseq
    %v5180 = vshrl.u32 %v5179, 7
    %v5181 = vsub.s32 1, %v5180
    %v5182 = vrot.slane %v5173, %v5181
    %v5313 = vunpack.c.l.b16 %v5045
    %v5314 = vunpack.c.h.b16 %v5045
    %v5315 = vunpack.c.l.b16 %v5046
    %v5316 = vunpack.c.h.b16 %v5046
    %v5317 = vunpack.c.l.b16 %v5047
    %v5318 = vunpack.c.h.b16 %v5047
    %v5319 = vunpack.c.l.b16 %v5048
    %v5320 = vunpack.c.h.b16 %v5048
    %v5321 = vunpack.c.l.b16 %v5049
    %v5322 = vunpack.c.h.b16 %v5049
    %v5323 = vunpack.c.l.b16 %v5050
    %v5324 = vunpack.c.h.b16 %v5050
    %v5325 = vunpack.c.l.b16 %v5051
    %v5326 = vunpack.c.h.b16 %v5051
    %v5327 = vunpack.c.l.b16 %v5052
    %v5328 = vunpack.c.h.b16 %v5052
    %v5329 = vunpack.c.l.b16 %v5053
    %v5330 = vunpack.c.h.b16 %v5053
    %v5331 = vunpack.c.l.b16 %v5054
    %v5332 = vunpack.c.h.b16 %v5054
    %v5333 = vunpack.c.l.b16 %v5055
    %v5334 = vunpack.c.h.b16 %v5055
    %v5335 = vunpack.c.l.b16 %v5056
    %v5336 = vunpack.c.h.b16 %v5056
    %v5337 = vunpack.c.l.b16 %v5057
    %v5338 = vunpack.c.h.b16 %v5057
    %v5339 = vunpack.c.l.b16 %v5058
    %v5340 = vunpack.c.h.b16 %v5058
    %v5341 = vunpack.c.l.b16 %v5059
    %v5342 = vunpack.c.h.b16 %v5059
    %v5343 = vunpack.c.l.b16 %v5060
    %v5344 = vunpack.c.h.b16 %v5060
    %v5345 = vunpack.c.l.b16 %v5061
    %v5346 = vunpack.c.h.b16 %v5061
    %v5347 = vunpack.c.l.b16 %v5062
    %v5348 = vunpack.c.h.b16 %v5062
    %v5349 = vunpack.c.l.b16 %v5063
    %v5350 = vunpack.c.h.b16 %v5063
    %v5351 = vunpack.c.l.b16 %v5064
    %v5352 = vunpack.c.h.b16 %v5064
    %v5353 = vunpack.c.l.b16 %v5065
    %v5354 = vunpack.c.h.b16 %v5065
    %v5355 = vunpack.c.l.b16 %v5066
    %v5356 = vunpack.c.h.b16 %v5066
    %v5357 = vunpack.c.l.b16 %v5067
    %v5358 = vunpack.c.h.b16 %v5067
    %v5359 = vunpack.c.l.b16 %v5068
    %v5360 = vunpack.c.h.b16 %v5068
    %v5361 = vunpack.c.l.b16 %v5069
    %v5362 = vunpack.c.h.b16 %v5069
    %v5363 = vunpack.c.l.b16 %v5070
    %v5364 = vunpack.c.h.b16 %v5070
    %v5365 = vunpack.c.l.b16 %v5071
    %v5366 = vunpack.c.h.b16 %v5071
    %v5367 = vunpack.c.l.b16 %v5072
    %v5368 = vunpack.c.h.b16 %v5072
    %v5369 = vunpack.c.l.b16 %v5073
    %v5370 = vunpack.c.h.b16 %v5073
    %v5371 = vunpack.c.l.b16 %v5074
    %v5372 = vunpack.c.h.b16 %v5074
    %v5373 = vunpack.c.l.b16 %v5075
    %v5374 = vunpack.c.h.b16 %v5075
    %v5375 = vunpack.c.l.b16 %v5076
    %v5376 = vunpack.c.h.b16 %v5076
    %v5377 = vunpack.c.l.b16 %v5077
    %v5378 = vunpack.c.h.b16 %v5077
    %v5379 = vunpack.c.l.b16 %v5078
    %v5380 = vunpack.c.h.b16 %v5078
    %v5381 = vunpack.c.l.b16 %v5079
    %v5382 = vunpack.c.h.b16 %v5079
    %v5383 = vunpack.c.l.b16 %v5080
    %v5384 = vunpack.c.h.b16 %v5080
    %v5385 = vunpack.c.l.b16 %v5081
    %v5386 = vunpack.c.h.b16 %v5081
    %v5387 = vunpack.c.l.b16 %v5082
    %v5388 = vunpack.c.h.b16 %v5082
    %v5389 = vunpack.c.l.b16 %v5083
    %v5390 = vunpack.c.h.b16 %v5083
    %v5391 = vunpack.c.l.b16 %v5084
    %v5392 = vunpack.c.h.b16 %v5084
    %v5393 = vunpack.c.l.b16 %v5085
    %v5394 = vunpack.c.h.b16 %v5085
    %v5395 = vunpack.c.l.b16 %v5086
    %v5396 = vunpack.c.h.b16 %v5086
    %v5397 = vunpack.c.l.b16 %v5087
    %v5398 = vunpack.c.h.b16 %v5087
    %v5399 = vunpack.c.l.b16 %v5088
    %v5400 = vunpack.c.h.b16 %v5088
    %v5401 = vunpack.c.l.b16 %v5089
    %v5402 = vunpack.c.h.b16 %v5089
    %v5403 = vunpack.c.l.b16 %v5090
    %v5404 = vunpack.c.h.b16 %v5090
    %v5405 = vunpack.c.l.b16 %v5091
    %v5406 = vunpack.c.h.b16 %v5091
    %v5407 = vunpack.c.l.b16 %v5092
    %v5408 = vunpack.c.h.b16 %v5092
    %v5409 = vunpack.c.l.b16 %v5093
    %v5410 = vunpack.c.h.b16 %v5093
    %v5411 = vunpack.c.l.b16 %v5094
    %v5412 = vunpack.c.h.b16 %v5094
    %v5413 = vunpack.c.l.b16 %v5095
    %v5414 = vunpack.c.h.b16 %v5095
    %v5415 = vunpack.c.l.b16 %v5096
    %v5416 = vunpack.c.h.b16 %v5096
    %v5417 = vunpack.c.l.b16 %v5097
    %v5418 = vunpack.c.h.b16 %v5097
    %v5419 = vunpack.c.l.b16 %v5098
    %v5420 = vunpack.c.h.b16 %v5098
    %v5421 = vunpack.c.l.b16 %v5099
    %v5422 = vunpack.c.h.b16 %v5099
    %v5423 = vunpack.c.l.b16 %v5100
    %v5424 = vunpack.c.h.b16 %v5100
    %v5425 = vunpack.c.l.b16 %v5101
    %v5426 = vunpack.c.h.b16 %v5101
    %v5427 = vunpack.c.l.b16 %v5102
    %v5428 = vunpack.c.h.b16 %v5102
    %v5429 = vunpack.c.l.b16 %v5103
    %v5430 = vunpack.c.h.b16 %v5103
    %v5431 = vunpack.c.l.b16 %v5104
    %v5432 = vunpack.c.h.b16 %v5104
    %v5433 = vunpack.c.l.b16 %v5105
    %v5434 = vunpack.c.h.b16 %v5105
    %v5435 = vunpack.c.l.b16 %v5106
    %v5436 = vunpack.c.h.b16 %v5106
    %v5437 = vunpack.c.l.b16 %v5107
    %v5438 = vunpack.c.h.b16 %v5107
    %v5439 = vunpack.c.l.b16 %v5108
    %v5440 = vunpack.c.h.b16 %v5108
    %v5441 = vunpack.c.l.b16 %v5109
    %v5442 = vunpack.c.h.b16 %v5109
    %v5443 = vunpack.c.l.b16 %v5110
    %v5444 = vunpack.c.h.b16 %v5110
    %v5445 = vunpack.c.l.b16 %v5111
    %v5446 = vunpack.c.h.b16 %v5111
    %v5447 = vunpack.c.l.b16 %v5112
    %v5448 = vunpack.c.h.b16 %v5112
    %v5449 = vunpack.c.l.b16 %v5113
    %v5450 = vunpack.c.h.b16 %v5113
    %v5451 = vunpack.c.l.b16 %v5114
    %v5452 = vunpack.c.h.b16 %v5114
    %v5453 = vunpack.c.l.b16 %v5115
    %v5454 = vunpack.c.h.b16 %v5115
    %v5455 = vunpack.c.l.b16 %v5116
    %v5456 = vunpack.c.h.b16 %v5116
    %v5457 = vunpack.c.l.b16 %v5117
    %v5458 = vunpack.c.h.b16 %v5117
    %v5459 = vunpack.c.l.b16 %v5118
    %v5460 = vunpack.c.h.b16 %v5118
    %v5461 = vunpack.c.l.b16 %v5119
    %v5462 = vunpack.c.h.b16 %v5119
    %v5463 = vunpack.c.l.b16 %v5120
    %v5464 = vunpack.c.h.b16 %v5120
    %v5465 = vunpack.c.l.b16 %v5121
    %v5466 = vunpack.c.h.b16 %v5121
    %v5467 = vunpack.c.l.b16 %v5122
    %v5468 = vunpack.c.h.b16 %v5122
    %v5469 = vunpack.c.l.b16 %v5123
    %v5470 = vunpack.c.h.b16 %v5123
    %v5471 = vunpack.c.l.b16 %v5124
    %v5472 = vunpack.c.h.b16 %v5124
    %v5473 = vunpack.c.l.b16 %v5125
    %v5474 = vunpack.c.h.b16 %v5125
    %v5475 = vunpack.c.l.b16 %v5126
    %v5476 = vunpack.c.h.b16 %v5126
    %v5477 = vunpack.c.l.b16 %v5127
    %v5478 = vunpack.c.h.b16 %v5127
    %v5479 = vunpack.c.l.b16 %v5128
    %v5480 = vunpack.c.h.b16 %v5128
    %v5481 = vunpack.c.l.b16 %v5129
    %v5482 = vunpack.c.h.b16 %v5129
    %v5483 = vunpack.c.l.b16 %v5130
    %v5484 = vunpack.c.h.b16 %v5130
    %v5485 = vunpack.c.l.b16 %v5131
    %v5486 = vunpack.c.h.b16 %v5131
    %v5487 = vunpack.c.l.b16 %v5132
    %v5488 = vunpack.c.h.b16 %v5132
    %v5489 = vunpack.c.l.b16 %v5133
    %v5490 = vunpack.c.h.b16 %v5133
    %v5491 = vunpack.c.l.b16 %v5134
    %v5492 = vunpack.c.h.b16 %v5134
    %v5493 = vunpack.c.l.b16 %v5135
    %v5494 = vunpack.c.h.b16 %v5135
    %v5495 = vunpack.c.l.b16 %v5136
    %v5496 = vunpack.c.h.b16 %v5136
    %v5497 = vunpack.c.l.b16 %v5137
    %v5498 = vunpack.c.h.b16 %v5137
    %v5499 = vunpack.c.l.b16 %v5138
    %v5500 = vunpack.c.h.b16 %v5138
    %v5501 = vunpack.c.l.b16 %v5139
    %v5502 = vunpack.c.h.b16 %v5139
    %v5503 = vunpack.c.l.b16 %v5140
    %v5504 = vunpack.c.h.b16 %v5140
    %v5505 = vunpack.c.l.b16 %v5141
    %v5506 = vunpack.c.h.b16 %v5141
    %v5507 = vunpack.c.l.b16 %v5142
    %v5508 = vunpack.c.h.b16 %v5142
    %v5509 = vunpack.c.l.b16 %v5143
    %v5510 = vunpack.c.h.b16 %v5143
    %v5511 = vunpack.c.l.b16 %v5144
    %v5512 = vunpack.c.h.b16 %v5144
    %v5513 = vunpack.c.l.b16 %v5145
    %v5514 = vunpack.c.h.b16 %v5145
    %v5515 = vunpack.c.l.b16 %v5146
    %v5516 = vunpack.c.h.b16 %v5146
    %v5517 = vunpack.c.l.b16 %v5147
    %v5518 = vunpack.c.h.b16 %v5147
    %v5519 = vunpack.c.l.b16 %v5148
    %v5520 = vunpack.c.h.b16 %v5148
    %v5521 = vunpack.c.l.b16 %v5149
    %v5522 = vunpack.c.h.b16 %v5149
    %v5523 = vunpack.c.l.b16 %v5150
    %v5524 = vunpack.c.h.b16 %v5150
    %v5525 = vunpack.c.l.b16 %v5151
    %v5526 = vunpack.c.h.b16 %v5151
    %v5527 = vunpack.c.l.b16 %v5152
    %v5528 = vunpack.c.h.b16 %v5152
    %v5529 = vunpack.c.l.b16 %v5153
    %v5530 = vunpack.c.h.b16 %v5153
    %v5531 = vunpack.c.l.b16 %v5154
    %v5532 = vunpack.c.h.b16 %v5154
    %v5533 = vunpack.c.l.b16 %v5155
    %v5534 = vunpack.c.h.b16 %v5155
    %v5535 = vunpack.c.l.b16 %v5156
    %v5536 = vunpack.c.h.b16 %v5156
    %v5537 = vunpack.c.l.b16 %v5157
    %v5538 = vunpack.c.h.b16 %v5157
    %v5539 = vunpack.c.l.b16 %v5158
    %v5540 = vunpack.c.h.b16 %v5158
    %v5541 = vunpack.c.l.b16 %v5159
    %v5542 = vunpack.c.h.b16 %v5159
    %v5543 = vunpack.c.l.b16 %v5160
    %v5544 = vunpack.c.h.b16 %v5160
    %v5545 = vunpack.c.l.b16 %v5161
    %v5546 = vunpack.c.h.b16 %v5161
    %v5547 = vunpack.c.l.b16 %v5162
    %v5548 = vunpack.c.h.b16 %v5162
    %v5549 = vunpack.c.l.b16 %v5163
    %v5550 = vunpack.c.h.b16 %v5163
    %v5551 = vunpack.c.l.b16 %v5164
    %v5552 = vunpack.c.h.b16 %v5164
    %v5553 = vunpack.c.l.b16 %v5165
    %v5554 = vunpack.c.h.b16 %v5165
    %v5555 = vunpack.c.l.b16 %v5166
    %v5556 = vunpack.c.h.b16 %v5166
    %v5557 = vunpack.c.l.b16 %v5167
    %v5558 = vunpack.c.h.b16 %v5167
    %v5559 = vunpack.c.l.b16 %v5168
    %v5560 = vunpack.c.h.b16 %v5168
    %v5561 = vunpack.c.l.b16 %v5169
    %v5562 = vunpack.c.h.b16 %v5169
    %v5563 = vunpack.c.l.b16 %v5170
    %v5564 = vunpack.c.h.b16 %v5170
    %v5565 = vunpack.c.l.b16 %v5171
    %v5566 = vunpack.c.h.b16 %v5171
    %v5567 = vunpack.c.l.b16 %v5172
    %v5568 = vunpack.c.h.b16 %v5172
    %v5569 = vpack.c.b16 %v5315, %v5313
    %v5570 = vpack.c.b16 %v5316, %v5314
    %v5571 = vpack.c.b16 %v5319, %v5317
    %v5572 = vpack.c.b16 %v5320, %v5318
    %v5573 = vpack.c.b16 %v5323, %v5321
    %v5574 = vpack.c.b16 %v5324, %v5322
    %v5575 = vpack.c.b16 %v5327, %v5325
    %v5576 = vpack.c.b16 %v5328, %v5326
    %v5577 = vpack.c.b16 %v5331, %v5329
    %v5578 = vpack.c.b16 %v5332, %v5330
    %v5579 = vpack.c.b16 %v5335, %v5333
    %v5580 = vpack.c.b16 %v5336, %v5334
    %v5581 = vpack.c.b16 %v5339, %v5337
    %v5582 = vpack.c.b16 %v5340, %v5338
    %v5583 = vpack.c.b16 %v5343, %v5341
    %v5584 = vpack.c.b16 %v5344, %v5342
    %v5585 = vpack.c.b16 %v5347, %v5345
    %v5586 = vpack.c.b16 %v5348, %v5346
    %v5587 = vpack.c.b16 %v5351, %v5349
    %v5588 = vpack.c.b16 %v5352, %v5350
    %v5589 = vpack.c.b16 %v5355, %v5353
    %v5590 = vpack.c.b16 %v5356, %v5354
    %v5591 = vpack.c.b16 %v5359, %v5357
    %v5592 = vpack.c.b16 %v5360, %v5358
    %v5593 = vpack.c.b16 %v5363, %v5361
    %v5594 = vpack.c.b16 %v5364, %v5362
    %v5595 = vpack.c.b16 %v5367, %v5365
    %v5596 = vpack.c.b16 %v5368, %v5366
    %v5597 = vpack.c.b16 %v5371, %v5369
    %v5598 = vpack.c.b16 %v5372, %v5370
    %v5599 = vpack.c.b16 %v5375, %v5373
    %v5600 = vpack.c.b16 %v5376, %v5374
    %v5601 = vpack.c.b16 %v5379, %v5377
    %v5602 = vpack.c.b16 %v5380, %v5378
    %v5603 = vpack.c.b16 %v5383, %v5381
    %v5604 = vpack.c.b16 %v5384, %v5382
    %v5605 = vpack.c.b16 %v5387, %v5385
    %v5606 = vpack.c.b16 %v5388, %v5386
    %v5607 = vpack.c.b16 %v5391, %v5389
    %v5608 = vpack.c.b16 %v5392, %v5390
    %v5609 = vpack.c.b16 %v5395, %v5393
    %v5610 = vpack.c.b16 %v5396, %v5394
    %v5611 = vpack.c.b16 %v5399, %v5397
    %v5612 = vpack.c.b16 %v5400, %v5398
    %v5613 = vpack.c.b16 %v5403, %v5401
    %v5614 = vpack.c.b16 %v5404, %v5402
    %v5615 = vpack.c.b16 %v5407, %v5405
    %v5616 = vpack.c.b16 %v5408, %v5406
    %v5617 = vpack.c.b16 %v5411, %v5409
    %v5618 = vpack.c.b16 %v5412, %v5410
    %v5619 = vpack.c.b16 %v5415, %v5413
    %v5620 = vpack.c.b16 %v5416, %v5414
    %v5621 = vpack.c.b16 %v5419, %v5417
    %v5622 = vpack.c.b16 %v5420, %v5418
    %v5623 = vpack.c.b16 %v5423, %v5421
    %v5624 = vpack.c.b16 %v5424, %v5422
    %v5625 = vpack.c.b16 %v5427, %v5425
    %v5626 = vpack.c.b16 %v5428, %v5426
    %v5627 = vpack.c.b16 %v5431, %v5429
    %v5628 = vpack.c.b16 %v5432, %v5430
    %v5629 = vpack.c.b16 %v5435, %v5433
    %v5630 = vpack.c.b16 %v5436, %v5434
    %v5631 = vpack.c.b16 %v5439, %v5437
    %v5632 = vpack.c.b16 %v5440, %v5438
    %v5633 = vpack.c.b16 %v5443, %v5441
    %v5634 = vpack.c.b16 %v5444, %v5442
    %v5635 = vpack.c.b16 %v5447, %v5445
    %v5636 = vpack.c.b16 %v5448, %v5446
    %v5637 = vpack.c.b16 %v5451, %v5449
    %v5638 = vpack.c.b16 %v5452, %v5450
    %v5639 = vpack.c.b16 %v5455, %v5453
    %v5640 = vpack.c.b16 %v5456, %v5454
    %v5641 = vpack.c.b16 %v5459, %v5457
    %v5642 = vpack.c.b16 %v5460, %v5458
    %v5643 = vpack.c.b16 %v5463, %v5461
    %v5644 = vpack.c.b16 %v5464, %v5462
    %v5645 = vpack.c.b16 %v5467, %v5465
    %v5646 = vpack.c.b16 %v5468, %v5466
    %v5647 = vpack.c.b16 %v5471, %v5469
    %v5648 = vpack.c.b16 %v5472, %v5470
    %v5649 = vpack.c.b16 %v5475, %v5473
    %v5650 = vpack.c.b16 %v5476, %v5474
    %v5651 = vpack.c.b16 %v5479, %v5477
    %v5652 = vpack.c.b16 %v5480, %v5478
    %v5653 = vpack.c.b16 %v5483, %v5481
    %v5654 = vpack.c.b16 %v5484, %v5482
    %v5655 = vpack.c.b16 %v5487, %v5485
    %v5656 = vpack.c.b16 %v5488, %v5486
    %v5657 = vpack.c.b16 %v5491, %v5489
    %v5658 = vpack.c.b16 %v5492, %v5490
    %v5659 = vpack.c.b16 %v5495, %v5493
    %v5660 = vpack.c.b16 %v5496, %v5494
    %v5661 = vpack.c.b16 %v5499, %v5497
    %v5662 = vpack.c.b16 %v5500, %v5498
    %v5663 = vpack.c.b16 %v5503, %v5501
    %v5664 = vpack.c.b16 %v5504, %v5502
    %v5665 = vpack.c.b16 %v5507, %v5505
    %v5666 = vpack.c.b16 %v5508, %v5506
    %v5667 = vpack.c.b16 %v5511, %v5509
    %v5668 = vpack.c.b16 %v5512, %v5510
    %v5669 = vpack.c.b16 %v5515, %v5513
    %v5670 = vpack.c.b16 %v5516, %v5514
    %v5671 = vpack.c.b16 %v5519, %v5517
    %v5672 = vpack.c.b16 %v5520, %v5518
    %v5673 = vpack.c.b16 %v5523, %v5521
    %v5674 = vpack.c.b16 %v5524, %v5522
    %v5675 = vpack.c.b16 %v5527, %v5525
    %v5676 = vpack.c.b16 %v5528, %v5526
    %v5677 = vpack.c.b16 %v5531, %v5529
    %v5678 = vpack.c.b16 %v5532, %v5530
    %v5679 = vpack.c.b16 %v5535, %v5533
    %v5680 = vpack.c.b16 %v5536, %v5534
    %v5681 = vpack.c.b16 %v5539, %v5537
    %v5682 = vpack.c.b16 %v5540, %v5538
    %v5683 = vpack.c.b16 %v5543, %v5541
    %v5684 = vpack.c.b16 %v5544, %v5542
    %v5685 = vpack.c.b16 %v5547, %v5545
    %v5686 = vpack.c.b16 %v5548, %v5546
    %v5687 = vpack.c.b16 %v5551, %v5549
    %v5688 = vpack.c.b16 %v5552, %v5550
    %v5689 = vpack.c.b16 %v5555, %v5553
    %v5690 = vpack.c.b16 %v5556, %v5554
    %v5691 = vpack.c.b16 %v5559, %v5557
    %v5692 = vpack.c.b16 %v5560, %v5558
    %v5693 = vpack.c.b16 %v5563, %v5561
    %v5694 = vpack.c.b16 %v5564, %v5562
    %v5695 = vpack.c.b16 %v5567, %v5565
    %v5696 = vpack.c.b16 %v5568, %v5566
    %5825 = vmatprep.subr.bf16.mxu0 %v5570
    %5826 = vmatpush1.bf16.msra.mxu0 %v5569
    %5827 = vmatprep.subr.bf16.mxu0 %v5572
    %5828 = vmatpush1.bf16.msra.mxu0 %v5571
    %5829 = vmatprep.subr.bf16.mxu0 %v5574
    %5830 = vmatpush1.bf16.msra.mxu0 %v5573
    %5831 = vmatprep.subr.bf16.mxu0 %v5576
    %5832 = vmatpush1.bf16.msra.mxu0 %v5575
    %5833 = vmatprep.subr.bf16.mxu0 %v5578
    %5834 = vmatpush1.bf16.msra.mxu0 %v5577
    %5835 = vmatprep.subr.bf16.mxu0 %v5580
    %5836 = vmatpush1.bf16.msra.mxu0 %v5579
    %5837 = vmatprep.subr.bf16.mxu0 %v5582
    %5838 = vmatpush1.bf16.msra.mxu0 %v5581
    %5839 = vmatprep.subr.bf16.mxu0 %v5584
    %5840 = vmatpush1.bf16.msra.mxu0 %v5583
    %5841 = vmatprep.subr.bf16.mxu0 %v5586
    %5842 = vmatpush1.bf16.msra.mxu0 %v5585
    %5843 = vmatprep.subr.bf16.mxu0 %v5588
    %5844 = vmatpush1.bf16.msra.mxu0 %v5587
    %5845 = vmatprep.subr.bf16.mxu0 %v5590
    %5846 = vmatpush1.bf16.msra.mxu0 %v5589
    %5847 = vmatprep.subr.bf16.mxu0 %v5592
    %5848 = vmatpush1.bf16.msra.mxu0 %v5591
    %5849 = vmatprep.subr.bf16.mxu0 %v5594
    %5850 = vmatpush1.bf16.msra.mxu0 %v5593
    %5851 = vmatprep.subr.bf16.mxu0 %v5596
    %5852 = vmatpush1.bf16.msra.mxu0 %v5595
    %5853 = vmatprep.subr.bf16.mxu0 %v5598
    %5854 = vmatpush1.bf16.msra.mxu0 %v5597
    %5855 = vmatprep.subr.bf16.mxu0 %v5600
    %5856 = vmatpush1.bf16.msra.mxu0 %v5599
    %5857 = vmatprep.mubr.bf16.mxu0 %v5038
    %5858 = vmatmul.mubr.bf16.gmra.mrb[0].mxu0 %v5037
    %v5859 = vpop.f32.mrb[0].mxu0
    %v5860 = vadd.f32 %v5178, %v5859
    %v5861 = vpop.f32.mrb[0].mxu0
    %v5862 = vadd.f32 %v5182, %v5861
    %v5863 = vpop.f32.mrb[0].mxu0
    %v5864 = vpop.f32.mrb[0].mxu0
    %5865 = vdwg.mxu0
    %5866 = vmatprep.subr.bf16.mxu0 %v5602
    %5867 = vmatpush1.bf16.msra.mxu0 %v5601
    %5868 = vmatprep.subr.bf16.mxu0 %v5604
    %5869 = vmatpush1.bf16.msra.mxu0 %v5603
    %5870 = vmatprep.subr.bf16.mxu0 %v5606
    %5871 = vmatpush1.bf16.msra.mxu0 %v5605
    %5872 = vmatprep.subr.bf16.mxu0 %v5608
    %5873 = vmatpush1.bf16.msra.mxu0 %v5607
    %5874 = vmatprep.subr.bf16.mxu0 %v5610
    %5875 = vmatpush1.bf16.msra.mxu0 %v5609
    %5876 = vmatprep.subr.bf16.mxu0 %v5612
    %5877 = vmatpush1.bf16.msra.mxu0 %v5611
    %5878 = vmatprep.subr.bf16.mxu0 %v5614
    %5879 = vmatpush1.bf16.msra.mxu0 %v5613
    %5880 = vmatprep.subr.bf16.mxu0 %v5616
    %5881 = vmatpush1.bf16.msra.mxu0 %v5615
    %5882 = vmatprep.subr.bf16.mxu0 %v5618
    %5883 = vmatpush1.bf16.msra.mxu0 %v5617
    %5884 = vmatprep.subr.bf16.mxu0 %v5620
    %5885 = vmatpush1.bf16.msra.mxu0 %v5619
    %5886 = vmatprep.subr.bf16.mxu0 %v5622
    %5887 = vmatpush1.bf16.msra.mxu0 %v5621
    %5888 = vmatprep.subr.bf16.mxu0 %v5624
    %5889 = vmatpush1.bf16.msra.mxu0 %v5623
    %5890 = vmatprep.subr.bf16.mxu0 %v5626
    %5891 = vmatpush1.bf16.msra.mxu0 %v5625
    %5892 = vmatprep.subr.bf16.mxu0 %v5628
    %5893 = vmatpush1.bf16.msra.mxu0 %v5627
    %5894 = vmatprep.subr.bf16.mxu0 %v5630
    %5895 = vmatpush1.bf16.msra.mxu0 %v5629
    %5896 = vmatprep.subr.bf16.mxu0 %v5632
    %5897 = vmatpush1.bf16.msra.mxu0 %v5631
    %5898 = vmatprep.mubr.bf16.mxu0 %v5040
    %5899 = vmatmul.mubr.bf16.gmra.mrb[0].mxu0 %v5039
    %v5900 = vpop.f32.mrb[0].mxu0
    %v5901 = vadd.f32 %v5860, %v5900
    %v5902 = vpop.f32.mrb[0].mxu0
    %v5903 = vadd.f32 %v5862, %v5902
    %v5904 = vpop.f32.mrb[0].mxu0
    %v5905 = vpop.f32.mrb[0].mxu0
    %5906 = vdwg.mxu0
    %5907 = vmatprep.subr.bf16.mxu0 %v5634
    %5908 = vmatpush1.bf16.msra.mxu0 %v5633
    %5909 = vmatprep.subr.bf16.mxu0 %v5636
    %5910 = vmatpush1.bf16.msra.mxu0 %v5635
    %5911 = vmatprep.subr.bf16.mxu0 %v5638
    %5912 = vmatpush1.bf16.msra.mxu0 %v5637
    %5913 = vmatprep.subr.bf16.mxu0 %v5640
    %5914 = vmatpush1.bf16.msra.mxu0 %v5639
    %5915 = vmatprep.subr.bf16.mxu0 %v5642
    %5916 = vmatpush1.bf16.msra.mxu0 %v5641
    %5917 = vmatprep.subr.bf16.mxu0 %v5644
    %5918 = vmatpush1.bf16.msra.mxu0 %v5643
    %5919 = vmatprep.subr.bf16.mxu0 %v5646
    %5920 = vmatpush1.bf16.msra.mxu0 %v5645
    %5921 = vmatprep.subr.bf16.mxu0 %v5648
    %5922 = vmatpush1.bf16.msra.mxu0 %v5647
    %5923 = vmatprep.subr.bf16.mxu0 %v5650
    %5924 = vmatpush1.bf16.msra.mxu0 %v5649
    %5925 = vmatprep.subr.bf16.mxu0 %v5652
    %5926 = vmatpush1.bf16.msra.mxu0 %v5651
    %5927 = vmatprep.subr.bf16.mxu0 %v5654
    %5928 = vmatpush1.bf16.msra.mxu0 %v5653
    %5929 = vmatprep.subr.bf16.mxu0 %v5656
    %5930 = vmatpush1.bf16.msra.mxu0 %v5655
    %5931 = vmatprep.subr.bf16.mxu0 %v5658
    %5932 = vmatpush1.bf16.msra.mxu0 %v5657
    %5933 = vmatprep.subr.bf16.mxu0 %v5660
    %5934 = vmatpush1.bf16.msra.mxu0 %v5659
    %5935 = vmatprep.subr.bf16.mxu0 %v5662
    %5936 = vmatpush1.bf16.msra.mxu0 %v5661
    %5937 = vmatprep.subr.bf16.mxu0 %v5664
    %5938 = vmatpush1.bf16.msra.mxu0 %v5663
    %5939 = vmatprep.mubr.bf16.mxu0 %v5042
    %5940 = vmatmul.mubr.bf16.gmra.mrb[0].mxu0 %v5041
    %v5941 = vpop.f32.mrb[0].mxu0
    %v5942 = vadd.f32 %v5901, %v5941
    %v5943 = vpop.f32.mrb[0].mxu0
    %v5944 = vadd.f32 %v5903, %v5943
    %v5945 = vpop.f32.mrb[0].mxu0
    %v5946 = vpop.f32.mrb[0].mxu0
    %5947 = vdwg.mxu0
    %5948 = vmatprep.subr.bf16.mxu0 %v5666
    %5949 = vmatpush1.bf16.msra.mxu0 %v5665
    %5950 = vmatprep.subr.bf16.mxu0 %v5668
    %5951 = vmatpush1.bf16.msra.mxu0 %v5667
    %5952 = vmatprep.subr.bf16.mxu0 %v5670
    %5953 = vmatpush1.bf16.msra.mxu0 %v5669
    %5954 = vmatprep.subr.bf16.mxu0 %v5672
    %5955 = vmatpush1.bf16.msra.mxu0 %v5671
    %5956 = vmatprep.subr.bf16.mxu0 %v5674
    %5957 = vmatpush1.bf16.msra.mxu0 %v5673
    %5958 = vmatprep.subr.bf16.mxu0 %v5676
    %5959 = vmatpush1.bf16.msra.mxu0 %v5675
    %5960 = vmatprep.subr.bf16.mxu0 %v5678
    %5961 = vmatpush1.bf16.msra.mxu0 %v5677
    %5962 = vmatprep.subr.bf16.mxu0 %v5680
    %5963 = vmatpush1.bf16.msra.mxu0 %v5679
    %5964 = vmatprep.subr.bf16.mxu0 %v5682
    %5965 = vmatpush1.bf16.msra.mxu0 %v5681
    %5966 = vmatprep.subr.bf16.mxu0 %v5684
    %5967 = vmatpush1.bf16.msra.mxu0 %v5683
    %5968 = vmatprep.subr.bf16.mxu0 %v5686
    %5969 = vmatpush1.bf16.msra.mxu0 %v5685
    %5970 = vmatprep.subr.bf16.mxu0 %v5688
    %5971 = vmatpush1.bf16.msra.mxu0 %v5687
    %5972 = vmatprep.subr.bf16.mxu0 %v5690
    %5973 = vmatpush1.bf16.msra.mxu0 %v5689
    %5974 = vmatprep.subr.bf16.mxu0 %v5692
    %5975 = vmatpush1.bf16.msra.mxu0 %v5691
    %5976 = vmatprep.subr.bf16.mxu0 %v5694
    %5977 = vmatpush1.bf16.msra.mxu0 %v5693
    %5978 = vmatprep.subr.bf16.mxu0 %v5696
    %5979 = vmatpush1.bf16.msra.mxu0 %v5695
    %5980 = vmatprep.mubr.bf16.mxu0 %v5044
    %5981 = vmatmul.mubr.bf16.gmra.mrb[0].mxu0 %v5043
    %v5982 = vpop.f32.mrb[0].mxu0
    %v5983 = vadd.f32 %v5942, %v5982
    %v5984 = vpop.f32.mrb[0].mxu0
    %v5985 = vadd.f32 %v5944, %v5984
    %v5986 = vpop.f32.mrb[0].mxu0
    %v5987 = vpop.f32.mrb[0].mxu0
    %5988 = vdwg.mxu0
    %v5989 = vmul.f32 %v5983, 0.01
    %v5990 = vmul.f32 %v5985, 0.01
    %v5991 = vmax.f32 %v5983, %v5989
    %v5992 = vmax.f32 %v5985, %v5990
    %v5993 = vpack.c.bf16 %v5991, %v5991
    %v5994 = vpack.c.bf16 %v5992, %v5992
    %v5995 = vld [vmem:[#allocation17] sm:$0xf]
    %v5996 = vld [vmem:[#allocation17 + $0x4] sm:$0xf]
    %v5997 = vld [vmem:[#allocation17 + $0x8] sm:$0xf]
    %v5998 = vld [vmem:[#allocation17 + $0xc] sm:$0xf]
    %v5999 = vld [vmem:[#allocation17 + $0x10] sm:$0xf]
    %v6000 = vld [vmem:[#allocation17 + $0x14] sm:$0xf]
    %v6001 = vld [vmem:[#allocation17 + $0x18] sm:$0xf]
    %v6002 = vld [vmem:[#allocation17 + $0x1c] sm:$0xf]
    %v6003 = vld [vmem:[#allocation17 + $0x20] sm:$0xf]
    %v6004 = vld [vmem:[#allocation17 + $0x24] sm:$0xf]
    %v6005 = vld [vmem:[#allocation17 + $0x28] sm:$0xf]
    %v6006 = vld [vmem:[#allocation17 + $0x2c] sm:$0xf]
    %v6007 = vld [vmem:[#allocation17 + $0x30] sm:$0xf]
    %v6008 = vld [vmem:[#allocation17 + $0x34] sm:$0xf]
    %v6009 = vld [vmem:[#allocation17 + $0x38] sm:$0xf]
    %v6010 = vld [vmem:[#allocation17 + $0x3c] sm:$0xf]
    %v6011 = vld [vmem:[#allocation17 + $0x40] sm:$0xf]
    %v6012 = vld [vmem:[#allocation17 + $0x44] sm:$0xf]
    %v6013 = vld [vmem:[#allocation17 + $0x48] sm:$0xf]
    %v6014 = vld [vmem:[#allocation17 + $0x4c] sm:$0xf]
    %v6015 = vld [vmem:[#allocation17 + $0x50] sm:$0xf]
    %v6016 = vld [vmem:[#allocation17 + $0x54] sm:$0xf]
    %v6017 = vld [vmem:[#allocation17 + $0x58] sm:$0xf]
    %v6018 = vld [vmem:[#allocation17 + $0x5c] sm:$0xf]
    %v6019 = vld [vmem:[#allocation17 + $0x60] sm:$0xf]
    %v6020 = vld [vmem:[#allocation17 + $0x64] sm:$0xf]
    %v6021 = vld [vmem:[#allocation17 + $0x68] sm:$0xf]
    %v6022 = vld [vmem:[#allocation17 + $0x6c] sm:$0xf]
    %v6023 = vld [vmem:[#allocation17 + $0x70] sm:$0xf]
    %v6024 = vld [vmem:[#allocation17 + $0x74] sm:$0xf]
    %v6025 = vld [vmem:[#allocation17 + $0x78] sm:$0xf]
    %v6026 = vld [vmem:[#allocation17 + $0x7c] sm:$0xf]
    %v6027 = vld [vmem:[#allocation19] sm:$0x1]
    %v6029 = vlaneseq
    %v6030 = vshrl.u32 %v6029, 7
    %v6031 = vsub.s32 0, %v6030
    %v6032 = vrot.slane %v6027, %v6031
    %v6066 = vunpack.c.l.b16 %v5995
    %v6067 = vunpack.c.l.b16 %v5996
    %v6068 = vunpack.c.l.b16 %v5997
    %v6069 = vunpack.c.l.b16 %v5998
    %v6070 = vunpack.c.l.b16 %v5999
    %v6071 = vunpack.c.l.b16 %v6000
    %v6072 = vunpack.c.l.b16 %v6001
    %v6073 = vunpack.c.l.b16 %v6002
    %v6074 = vunpack.c.l.b16 %v6003
    %v6075 = vunpack.c.l.b16 %v6004
    %v6076 = vunpack.c.l.b16 %v6005
    %v6077 = vunpack.c.l.b16 %v6006
    %v6078 = vunpack.c.l.b16 %v6007
    %v6079 = vunpack.c.l.b16 %v6008
    %v6080 = vunpack.c.l.b16 %v6009
    %v6081 = vunpack.c.l.b16 %v6010
    %v6082 = vunpack.c.l.b16 %v6011
    %v6083 = vunpack.c.l.b16 %v6012
    %v6084 = vunpack.c.l.b16 %v6013
    %v6085 = vunpack.c.l.b16 %v6014
    %v6086 = vunpack.c.l.b16 %v6015
    %v6087 = vunpack.c.l.b16 %v6016
    %v6088 = vunpack.c.l.b16 %v6017
    %v6089 = vunpack.c.l.b16 %v6018
    %v6090 = vunpack.c.l.b16 %v6019
    %v6091 = vunpack.c.l.b16 %v6020
    %v6092 = vunpack.c.l.b16 %v6021
    %v6093 = vunpack.c.l.b16 %v6022
    %v6094 = vunpack.c.l.b16 %v6023
    %v6095 = vunpack.c.l.b16 %v6024
    %v6096 = vunpack.c.l.b16 %v6025
    %v6097 = vunpack.c.l.b16 %v6026
    %v6098 = vpack.c.b16 %v6067, %v6066
    %v6099 = vpack.c.b16 %v6069, %v6068
    %v6100 = vpack.c.b16 %v6071, %v6070
    %v6101 = vpack.c.b16 %v6073, %v6072
    %v6102 = vpack.c.b16 %v6075, %v6074
    %v6103 = vpack.c.b16 %v6077, %v6076
    %v6104 = vpack.c.b16 %v6079, %v6078
    %v6105 = vpack.c.b16 %v6081, %v6080
    %v6106 = vpack.c.b16 %v6083, %v6082
    %v6107 = vpack.c.b16 %v6085, %v6084
    %v6108 = vpack.c.b16 %v6087, %v6086
    %v6109 = vpack.c.b16 %v6089, %v6088
    %v6110 = vpack.c.b16 %v6091, %v6090
    %v6111 = vpack.c.b16 %v6093, %v6092
    %v6112 = vpack.c.b16 %v6095, %v6094
    %v6113 = vpack.c.b16 %v6097, %v6096
    %6130 = vmatprep.subr.bf16.mxu0 0
    %6131 = vmatpush1.bf16.msra.mxu0 %v6098
    %6132 = vmatprep.subr.bf16.mxu0 0
    %6133 = vmatpush1.bf16.msra.mxu0 %v6099
    %6134 = vmatprep.subr.bf16.mxu0 0
    %6135 = vmatpush1.bf16.msra.mxu0 %v6100
    %6136 = vmatprep.subr.bf16.mxu0 0
    %6137 = vmatpush1.bf16.msra.mxu0 %v6101
    %6138 = vmatprep.subr.bf16.mxu0 0
    %6139 = vmatpush1.bf16.msra.mxu0 %v6102
    %6140 = vmatprep.subr.bf16.mxu0 0
    %6141 = vmatpush1.bf16.msra.mxu0 %v6103
    %6142 = vmatprep.subr.bf16.mxu0 0
    %6143 = vmatpush1.bf16.msra.mxu0 %v6104
    %6144 = vmatprep.subr.bf16.mxu0 0
    %6145 = vmatpush1.bf16.msra.mxu0 %v6105
    %6146 = vmatprep.subr.bf16.mxu0 0
    %6147 = vmatpush1.bf16.msra.mxu0 %v6106
    %6148 = vmatprep.subr.bf16.mxu0 0
    %6149 = vmatpush1.bf16.msra.mxu0 %v6107
    %6150 = vmatprep.subr.bf16.mxu0 0
    %6151 = vmatpush1.bf16.msra.mxu0 %v6108
    %6152 = vmatprep.subr.bf16.mxu0 0
    %6153 = vmatpush1.bf16.msra.mxu0 %v6109
    %6154 = vmatprep.subr.bf16.mxu0 0
    %6155 = vmatpush1.bf16.msra.mxu0 %v6110
    %6156 = vmatprep.subr.bf16.mxu0 0
    %6157 = vmatpush1.bf16.msra.mxu0 %v6111
    %6158 = vmatprep.subr.bf16.mxu0 0
    %6159 = vmatpush1.bf16.msra.mxu0 %v6112
    %6160 = vmatprep.subr.bf16.mxu0 0
    %6161 = vmatpush1.bf16.msra.mxu0 %v6113
    %6162 = vmatprep.mubr.bf16.mxu0 %v5994
    %6163 = vmatmul.mubr.bf16.gmra.mrb[0].mxu0 %v5993
    %v6164 = vpop.f32.mrb[0].mxu0
    %v6165 = vadd.f32 %v6032, %v6164
    %v6166 = vpop.f32.mrb[0].mxu0
    %v6167 = vpop.f32.mrb[0].mxu0
    %v6168 = vpop.f32.mrb[0].mxu0
    %6169 = vdwg.mxu0
    %6170 = vst [vmem:[#allocation20] sm:$0xff] %v6165
    // Predicated region
    $region90: #{tpu_custom_call.1} parent=1 // pred_check
      _
    $region91: #{tpu_custom_call.1} parent=1 // pred_check_branch
      %6172 = sbr.rel (0) target = $region93
    $region92: #{tpu_custom_call.1} parent=1 // pred_region
      %s6174 = ssub.s32 128, 128
      %6175 = vsyncadd [#allocation4], %s6174
      %s6177 = sshll.u32 [#allocation20], 4
      %s6178 = int_to_ptr.vmem [resolvable:$true] %s6177
      %6180 = dma.vmem_to_hbm [thread:$0]  %s6178, 128, %s11, [#allocation4]
    $region93: #{tpu_custom_call.1} parent=1 // pred_fallthru
      _
    // Predicated region
    $region94: #{tpu_custom_call.1} parent=1 // pred_check
      _
    $region95: #{tpu_custom_call.1} parent=1 // pred_check_branch
      %6182 = sbr.rel (0) target = $region97
    $region96: #{tpu_custom_call.1} parent=1 // pred_region
      %6183 = dma.done [#allocation4], 128
    $region97: #{tpu_custom_call.1} parent=1 // pred_fallthru
      _
    %6184 = vsyncpa [#allocation3], 1
    %6185 = vsyncpa [#allocation6], 1
    %6186 = vsyncpa [#allocation9], 1
    %6187 = vsyncpa [#allocation12], 1
    %6188 = vsyncpa [#allocation15], 1
    %6189 = vsyncpa [#allocation18], 1
    %6190 = vsyncpa [#allocation4], 1

// kernel: tpu_custom_call.1
$region0: #{tpu_custom_call.1}
  #allocation0 [shape = 'u32[]', space=smem, size = 0x4, offset = 0x4, fixed_abs, tag = 'smem constant byte address 0x4 - core index']
  #allocation1 [shape = 'u32[144,128]{1,0:T(1,128)}', space=vmem, size = 0x12000, scoped, tag = 'internal scratch']
  %s0 = inlined_call_operand.hbm [shape: f32[8,6], index: 0, kind: input, shape index: {}]
  %s1 = inlined_call_operand.hbm [shape: bf16[6,256], index: 1, kind: input, shape index: {}]
  %s2 = inlined_call_operand.hbm [shape: f32[1,256], index: 2, kind: input, shape index: {}]
  %s3 = inlined_call_operand.hbm [shape: bf16[256,1024], index: 3, kind: input, shape index: {}]
  %s4 = inlined_call_operand.hbm [shape: f32[1,1024], index: 4, kind: input, shape index: {}]
  %s5 = inlined_call_operand.hbm [shape: bf16[1024,1024], index: 5, kind: input, shape index: {}]
  %s6 = inlined_call_operand.hbm [shape: f32[1,1024], index: 6, kind: input, shape index: {}]
  %s7 = inlined_call_operand.hbm [shape: bf16[1024,256], index: 7, kind: input, shape index: {}]
  %s8 = inlined_call_operand.hbm [shape: f32[1,256], index: 8, kind: input, shape index: {}]
  %s9 = inlined_call_operand.hbm [shape: bf16[256,128], index: 9, kind: input, shape index: {}]
  %s10 = inlined_call_operand.hbm [shape: f32[1,128], index: 10, kind: input, shape index: {}]
  %s11 = inlined_call_operand.hbm [shape: f32[8,128], index: 11, kind: output, shape index: {}]
  %s12 = sld [smem:[#allocation0]]
  $region98: #{tpu_custom_call.1} parent=0
    _
  %s14 = ssub.s32 1, %s12
  %s15 = scalar_select 0, %s14, %s12
  $region1: #{tpu_custom_call.1} parent=0
    #allocation2 [shape = 'u8[4096]{0}', space=vmem, size = 0x1000, scoped, tag = 'input window, operand 0, single buffered']
    #allocation3 [shape = 's32[1]{0}', space=sflag, size = 0x4, scoped, tag = 'scoped memory for tpu_custom_call.1']
    #allocation4 [shape = 's32[1]{0}', space=sflag, size = 0x4, scoped, tag = 'scoped memory for tpu_custom_call.1']
    #allocation5 [shape = 'u8[4096]{0}', space=vmem, size = 0x1000, scoped, tag = 'input window, operand 1, single buffered']
    #allocation6 [shape = 's32[1]{0}', space=sflag, size = 0x4, scoped, tag = 'scoped memory for tpu_custom_call.1']
    #allocation7 [shape = 'u8[1024]{0}', space=vmem, size = 0x400, scoped, tag = 'input window, operand 2, single buffered']
    #allocation8 [shape = 'u8[524288]{0}', space=vmem, size = 0x80000, scoped, tag = 'input window, operand 3, single buffered']
    #allocation9 [shape = 's32[1]{0}', space=sflag, size = 0x4, scoped, tag = 'scoped memory for tpu_custom_call.1']
    #allocation10 [shape = 'u8[4096]{0}', space=vmem, size = 0x1000, scoped, tag = 'input window, operand 4, single buffered']
    #allocation11 [shape = 'u8[2097152]{0}', space=vmem, size = 0x200000, scoped, tag = 'input window, operand 5, single buffered']
    #allocation12 [shape = 's32[1]{0}', space=sflag, size = 0x4, scoped, tag = 'scoped memory for tpu_custom_call.1']
    #allocation13 [shape = 'u8[4096]{0}', space=vmem, size = 0x1000, scoped, tag = 'input window, operand 6, single buffered']
    #allocation14 [shape = 'u8[524288]{0}', space=vmem, size = 0x80000, scoped, tag = 'input window, operand 7, single buffered']
    #allocation15 [shape = 's32[1]{0}', space=sflag, size = 0x4, scoped, tag = 'scoped memory for tpu_custom_call.1']
    #allocation16 [shape = 'u8[1024]{0}', space=vmem, size = 0x400, scoped, tag = 'input window, operand 8, single buffered']
    #allocation17 [shape = 'u8[65536]{0}', space=vmem, size = 0x10000, scoped, tag = 'input window, operand 9, single buffered']
    #allocation18 [shape = 's32[1]{0}', space=sflag, size = 0x4, scoped, tag = 'scoped memory for tpu_custom_call.1']
    #allocation19 [shape = 'u8[512]{0}', space=vmem, size = 0x400, scoped, tag = 'input window, operand 10, single buffered']
    #allocation20 [shape = 'u8[4096]{0}', space=vmem, size = 0x1000, scoped, tag = 'output window, operand 0, single buffered']
    %16 = vsyncpa [#allocation3], 0
    %17 = vsyncpa [#allocation6], 0
    %18 = vsyncpa [#allocation9], 0
    %19 = vsyncpa [#allocation12], 0
    %20 = vsyncpa [#allocation15], 0
    %21 = vsyncpa [#allocation18], 0
    %22 = vsyncpa [#allocation4], 0
    // Predicated region
    $region2: #{tpu_custom_call.1} parent=1 // pred_check
      _
    $region3: #{tpu_custom_call.1} parent=1 // pred_check_branch
      %24 = sbr.rel (0) target = $region5
    $region4: #{tpu_custom_call.1} parent=1 // pred_region
      %s26 = ssub.s32 128, 128
      %27 = vsyncadd [#allocation3], %s26
      %s29 = sshll.u32 [#allocation2], 4
      %s30 = int_to_ptr.vmem [resolvable:$true] %s29
      %32 = dma.hbm_to_vmem [thread:$0]  %s0, 128, %s30, [#allocation3]
    $region5: #{tpu_custom_call.1} parent=1 // pred_fallthru
      _
    // Predicated region
    $region6: #{tpu_custom_call.1} parent=1 // pred_check
      _
    $region7: #{tpu_custom_call.1} parent=1 // pred_check_branch
      %34 = sbr.rel (0) target = $region9
    $region8: #{tpu_custom_call.1} parent=1 // pred_region
      %s36 = ssub.s32 128, 128
      %37 = vsyncadd [#allocation6], %s36
      %s39 = sshll.u32 [#allocation5], 4
      %s40 = int_to_ptr.vmem [resolvable:$true] %s39
      %42 = dma.hbm_to_vmem [thread:$0]  %s1, 128, %s40, [#allocation6]
    $region9: #{tpu_custom_call.1} parent=1 // pred_fallthru
      _
    // Predicated region
    $region10: #{tpu_custom_call.1} parent=1 // pred_check
      _
    $region11: #{tpu_custom_call.1} parent=1 // pred_check_branch
      %44 = sbr.rel (0) target = $region13
    $region12: #{tpu_custom_call.1} parent=1 // pred_region
      %s46 = ssub.s32 32, 32
      %47 = vsyncadd [#allocation6], %s46
      %s49 = sshll.u32 [#allocation7], 4
      %s50 = int_to_ptr.vmem [resolvable:$true] %s49
      %52 = dma.hbm_to_vmem [thread:$0]  %s2, 32, %s50, [#allocation6]
    $region13: #{tpu_custom_call.1} parent=1 // pred_fallthru
      _
    // Predicated region
    $region14: #{tpu_custom_call.1} parent=1 // pred_check
      _
    $region15: #{tpu_custom_call.1} parent=1 // pred_check_branch
      %54 = sbr.rel (0) target = $region17
    $region16: #{tpu_custom_call.1} parent=1 // pred_region
      %s56 = ssub.s32 16384, 16384
      %57 = vsyncadd [#allocation9], %s56
      %s58 = sshll.u32 [#allocation8], 4
      %s59 = int_to_ptr.vmem [resolvable:$true] %s58
      %64 = dma.hbm_to_vmem [thread:$0]  %s3, 16384, %s59, [#allocation9], 512, 512, 32
    $region17: #{tpu_custom_call.1} parent=1 // pred_fallthru
      _
    // Predicated region
    $region18: #{tpu_custom_call.1} parent=1 // pred_check
      _
    $region19: #{tpu_custom_call.1} parent=1 // pred_check_branch
      %66 = sbr.rel (0) target = $region21
    $region20: #{tpu_custom_call.1} parent=1 // pred_region
      %s68 = ssub.s32 128, 128
      %69 = vsyncadd [#allocation9], %s68
      %s71 = sshll.u32 [#allocation10], 4
      %s72 = int_to_ptr.vmem [resolvable:$true] %s71
      %74 = dma.hbm_to_vmem [thread:$0]  %s4, 128, %s72, [#allocation9]
    $region21: #{tpu_custom_call.1} parent=1 // pred_fallthru
      _
    // Predicated region
    $region22: #{tpu_custom_call.1} parent=1 // pred_check
      _
    $region23: #{tpu_custom_call.1} parent=1 // pred_check_branch
      %76 = sbr.rel (0) target = $region25
    $region24: #{tpu_custom_call.1} parent=1 // pred_region
      %s78 = ssub.s32 65536, 65536
      %79 = vsyncadd [#allocation12], %s78
      %s80 = sshll.u32 [#allocation11], 4
      %s81 = int_to_ptr.vmem [resolvable:$true] %s80
      %86 = dma.hbm_to_vmem [thread:$0]  %s5, 65536, %s81, [#allocation12], 512, 512, 32
    $region25: #{tpu_custom_call.1} parent=1 // pred_fallthru
      _
    // Predicated region
    $region26: #{tpu_custom_call.1} parent=1 // pred_check
      _
    $region27: #{tpu_custom_call.1} parent=1 // pred_check_branch
      %88 = sbr.rel (0) target = $region29
    $region28: #{tpu_custom_call.1} parent=1 // pred_region
      %s90 = ssub.s32 128, 128
      %91 = vsyncadd [#allocation12], %s90
      %s93 = sshll.u32 [#allocation13], 4
      %s94 = int_to_ptr.vmem [resolvable:$true] %s93
      %96 = dma.hbm_to_vmem [thread:$0]  %s6, 128, %s94, [#allocation12]
    $region29: #{tpu_custom_call.1} parent=1 // pred_fallthru
      _
    // Predicated region
    $region30: #{tpu_custom_call.1} parent=1 // pred_check
      _
    $region31: #{tpu_custom_call.1} parent=1 // pred_check_branch
      %98 = sbr.rel (0) target = $region33
    $region32: #{tpu_custom_call.1} parent=1 // pred_region
      %s100 = ssub.s32 16384, 16384
      %101 = vsyncadd [#allocation15], %s100
      %s102 = sshll.u32 [#allocation14], 4
      %s103 = int_to_ptr.vmem [resolvable:$true] %s102
      %108 = dma.hbm_to_vmem [thread:$0]  %s7, 16384, %s103, [#allocation15], 128, 128, 8
    $region33: #{tpu_custom_call.1} parent=1 // pred_fallthru
      _
    // Predicated region
    $region34: #{tpu_custom_call.1} parent=1 // pred_check
      _
    $region35: #{tpu_custom_call.1} parent=1 // pred_check_branch
      %110 = sbr.rel (0) target = $region37
    $region36: #{tpu_custom_call.1} parent=1 // pred_region
      %s112 = ssub.s32 32, 32
      %113 = vsyncadd [#allocation15], %s112
      %s115 = sshll.u32 [#allocation16], 4
      %s116 = int_to_ptr.vmem [resolvable:$true] %s115
      %118 = dma.hbm_to_vmem [thread:$0]  %s8, 32, %s116, [#allocation15]
    $region37: #{tpu_custom_call.1} parent=1 // pred_fallthru
      _
    // Predicated region
    $region38: #{tpu_custom_call.1} parent=1 // pred_check
      _
    $region39: #{tpu_custom_call.1} parent=1 // pred_check_branch
      %120 = sbr.rel (0) target = $region41
    $region40: #{tpu_custom_call.1} parent=1 // pred_region
      %s122 = ssub.s32 2048, 2048
      %123 = vsyncadd [#allocation18], %s122
      %s124 = sshll.u32 [#allocation17], 4
      %s125 = int_to_ptr.vmem [resolvable:$true] %s124
      %130 = dma.hbm_to_vmem [thread:$0]  %s9, 2048, %s125, [#allocation18], 64, 64, 4
    $region41: #{tpu_custom_call.1} parent=1 // pred_fallthru
      _
    // Predicated region
    $region42: #{tpu_custom_call.1} parent=1 // pred_check
      _
    $region43: #{tpu_custom_call.1} parent=1 // pred_check_branch
      %132 = sbr.rel (0) target = $region45
    $region44: #{tpu_custom_call.1} parent=1 // pred_region
      %s134 = ssub.s32 16, 16
      %135 = vsyncadd [#allocation18], %s134
      %s137 = sshll.u32 [#allocation19], 4
      %s138 = int_to_ptr.vmem [resolvable:$true] %s137
      %140 = dma.hbm_to_vmem [thread:$0]  %s10, 16, %s138, [#allocation18]
    $region45: #{tpu_custom_call.1} parent=1 // pred_fallthru
      _
    // Predicated region
    $region46: #{tpu_custom_call.1} parent=1 // pred_check
      _
    $region47: #{tpu_custom_call.1} parent=1 // pred_check_branch
      %142 = sbr.rel (0) target = $region49
    $region48: #{tpu_custom_call.1} parent=1 // pred_region
      %143 = dma.done [#allocation3], 128
    $region49: #{tpu_custom_call.1} parent=1 // pred_fallthru
      _
    // Predicated region
    $region50: #{tpu_custom_call.1} parent=1 // pred_check
      _
    $region51: #{tpu_custom_call.1} parent=1 // pred_check_branch
      %145 = sbr.rel (0) target = $region53
    $region52: #{tpu_custom_call.1} parent=1 // pred_region
      %146 = dma.done [#allocation6], 128
    $region53: #{tpu_custom_call.1} parent=1 // pred_fallthru
      _
    // Predicated region
    $region54: #{tpu_custom_call.1} parent=1 // pred_check
      _
    $region55: #{tpu_custom_call.1} parent=1 // pred_check_branch
      %148 = sbr.rel (0) target = $region57
    $region56: #{tpu_custom_call.1} parent=1 // pred_region
      %149 = dma.done [#allocation6], 32
    $region57: #{tpu_custom_call.1} parent=1 // pred_fallthru
      _
    // Predicated region
    $region58: #{tpu_custom_call.1} parent=1 // pred_check
      _
    $region59: #{tpu_custom_call.1} parent=1 // pred_check_branch
      %151 = sbr.rel (0) target = $region61
    $region60: #{tpu_custom_call.1} parent=1 // pred_region
      %152 = dma.done [#allocation9], 16384
    $region61: #{tpu_custom_call.1} parent=1 // pred_fallthru
      _
    // Predicated region
    $region62: #{tpu_custom_call.1} parent=1 // pred_check
      _
    $region63: #{tpu_custom_call.1} parent=1 // pred_check_branch
      %154 = sbr.rel (0) target = $region65
    $region64: #{tpu_custom_call.1} parent=1 // pred_region
      %155 = dma.done [#allocation9], 128
    $region65: #{tpu_custom_call.1} parent=1 // pred_fallthru
      _
    // Predicated region
    $region66: #{tpu_custom_call.1} parent=1 // pred_check
      _
    $region67: #{tpu_custom_call.1} parent=1 // pred_check_branch
      %157 = sbr.rel (0) target = $region69
    $region68: #{tpu_custom_call.1} parent=1 // pred_region
      %158 = dma.done [#allocation12], 65536
    $region69: #{tpu_custom_call.1} parent=1 // pred_fallthru
      _
    // Predicated region
    $region70: #{tpu_custom_call.1} parent=1 // pred_check
      _
    $region71: #{tpu_custom_call.1} parent=1 // pred_check_branch
      %160 = sbr.rel (0) target = $region73
    $region72: #{tpu_custom_call.1} parent=1 // pred_region
      %161 = dma.done [#allocation12], 128
    $region73: #{tpu_custom_call.1} parent=1 // pred_fallthru
      _
    // Predicated region
    $region74: #{tpu_custom_call.1} parent=1 // pred_check
      _
    $region75: #{tpu_custom_call.1} parent=1 // pred_check_branch
      %163 = sbr.rel (0) target = $region77
    $region76: #{tpu_custom_call.1} parent=1 // pred_region
      %164 = dma.done [#allocation15], 16384
    $region77: #{tpu_custom_call.1} parent=1 // pred_fallthru
      _
    // Predicated region
    $region78: #{tpu_custom_call.1} parent=1 // pred_check
      _
    $region79: #{tpu_custom_call.1} parent=1 // pred_check_branch
      %166 = sbr.rel (0) target = $region81
    $region80: #{tpu_custom_call.1} parent=1 // pred_region
      %167 = dma.done [#allocation15], 32
    $region81: #{tpu_custom_call.1} parent=1 // pred_fallthru
      _
    // Predicated region
    $region82: #{tpu_custom_call.1} parent=1 // pred_check
      _
    $region83: #{tpu_custom_call.1} parent=1 // pred_check_branch
      %169 = sbr.rel (0) target = $region85
    $region84: #{tpu_custom_call.1} parent=1 // pred_region
      %170 = dma.done [#allocation18], 2048
    $region85: #{tpu_custom_call.1} parent=1 // pred_fallthru
      _
    // Predicated region
    $region86: #{tpu_custom_call.1} parent=1 // pred_check
      _
    $region87: #{tpu_custom_call.1} parent=1 // pred_check_branch
      %172 = sbr.rel (0) target = $region89
    $region88: #{tpu_custom_call.1} parent=1 // pred_region
      %173 = dma.done [#allocation18], 16
    $region89: #{tpu_custom_call.1} parent=1 // pred_fallthru
      _
    %v175 = vld [vmem:[#allocation2] sm:$0xff]
    %v176 = vpack.c.bf16 %v175, %v175
    %v177 = vld [vmem:[#allocation5] sm:$0x77]
    %v178 = vld [vmem:[#allocation7] sm:$0x3]
    %v180 = vlaneseq
    %v181 = vshrl.u32 %v180, 7
    %v182 = vsub.s32 0, %v181
    %v183 = vrot.slane %v178, %v182
    %v184 = vlaneseq
    %v185 = vshrl.u32 %v184, 7
    %v186 = vsub.s32 1, %v185
    %v187 = vrot.slane %v178, %v186
    %v191 = vunpack.c.l.b16 %v177
    %v192 = vunpack.c.h.b16 %v177
    %v193 = vpack.c.b16 %v191, %v191
    %v194 = vpack.c.b16 %v192, %v192
    %vm195 = vcmask 48128
    %v197 = vsel %vm195, %v176, 0
    %vm199 = vcmask 1042432
    %v201 = vsel %vm199, %v193, 0
    %v204 = vsel %vm199, %v194, 0
    %206 = vmatprep.subr.bf16.mxu0 %v204
    %207 = vmatpush1.bf16.msra.mxu0 %v201
    %208 = vmatprep.subr.bf16.mxu0 0
    %209 = vmatpush1.bf16.msra.mxu0 0
    %210 = vmatprep.subr.bf16.mxu0 0
    %211 = vmatpush1.bf16.msra.mxu0 0
    %212 = vmatprep.subr.bf16.mxu0 0
    %213 = vmatpush1.bf16.msra.mxu0 0
    %214 = vmatprep.subr.bf16.mxu0 0
    %215 = vmatpush1.bf16.msra.mxu0 0
    %216 = vmatprep.subr.bf16.mxu0 0
    %217 = vmatpush1.bf16.msra.mxu0 0
    %218 = vmatprep.subr.bf16.mxu0 0
    %219 = vmatpush1.bf16.msra.mxu0 0
    %220 = vmatprep.subr.bf16.mxu0 0
    %221 = vmatpush1.bf16.msra.mxu0 0
    %222 = vmatprep.subr.bf16.mxu0 0
    %223 = vmatpush1.bf16.msra.mxu0 0
    %224 = vmatprep.subr.bf16.mxu0 0
    %225 = vmatpush1.bf16.msra.mxu0 0
    %226 = vmatprep.subr.bf16.mxu0 0
    %227 = vmatpush1.bf16.msra.mxu0 0
    %228 = vmatprep.subr.bf16.mxu0 0
    %229 = vmatpush1.bf16.msra.mxu0 0
    %230 = vmatprep.subr.bf16.mxu0 0
    %231 = vmatpush1.bf16.msra.mxu0 0
    %232 = vmatprep.subr.bf16.mxu0 0
    %233 = vmatpush1.bf16.msra.mxu0 0
    %234 = vmatprep.subr.bf16.mxu0 0
    %235 = vmatpush1.bf16.msra.mxu0 0
    %236 = vmatprep.subr.bf16.mxu0 0
    %237 = vmatpush1.bf16.msra.mxu0 0
    %238 = vmatprep.mubr.bf16.mxu0 0
    %239 = vmatmul.mubr.bf16.gmra.mrb[0].mxu0 %v197
    %v240 = vpop.f32.mrb[0].mxu0
    %v241 = vadd.f32 %v183, %v240
    %v242 = vpop.f32.mrb[0].mxu0
    %v243 = vadd.f32 %v187, %v242
    %v244 = vpop.f32.mrb[0].mxu0
    %v245 = vpop.f32.mrb[0].mxu0
    %246 = vdwg.mxu0
    %v247 = vmul.f32 %v241, 0.01
    %v248 = vmul.f32 %v243, 0.01
    %v249 = vmax.f32 %v241, %v247
    %v250 = vmax.f32 %v243, %v248
    %v251 = vpack.c.bf16 %v249, %v249
    %v252 = vpack.c.bf16 %v250, %v250
    %v253 = vld [vmem:[#allocation8] sm:$0xff]
    %v254 = vld [vmem:[#allocation8 + $0x8] sm:$0xff]
    %v255 = vld [vmem:[#allocation8 + $0x10] sm:$0xff]
    %v256 = vld [vmem:[#allocation8 + $0x18] sm:$0xff]
    %v257 = vld [vmem:[#allocation8 + $0x20] sm:$0xff]
    %v258 = vld [vmem:[#allocation8 + $0x28] sm:$0xff]
    %v259 = vld [vmem:[#allocation8 + $0x30] sm:$0xff]
    %v260 = vld [vmem:[#allocation8 + $0x38] sm:$0xff]
    %v261 = vld [vmem:[#allocation8 + $0x40] sm:$0xff]
    %v262 = vld [vmem:[#allocation8 + $0x48] sm:$0xff]
    %v263 = vld [vmem:[#allocation8 + $0x50] sm:$0xff]
    %v264 = vld [vmem:[#allocation8 + $0x58] sm:$0xff]
    %v265 = vld [vmem:[#allocation8 + $0x60] sm:$0xff]
    %v266 = vld [vmem:[#allocation8 + $0x68] sm:$0xff]
    %v267 = vld [vmem:[#allocation8 + $0x70] sm:$0xff]
    %v268 = vld [vmem:[#allocation8 + $0x78] sm:$0xff]
    %v269 = vld [vmem:[#allocation8 + $0x80] sm:$0xff]
    %v270 = vld [vmem:[#allocation8 + $0x88] sm:$0xff]
    %v271 = vld [vmem:[#allocation8 + $0x90] sm:$0xff]
    %v272 = vld [vmem:[#allocation8 + $0x98] sm:$0xff]
    %v273 = vld [vmem:[#allocation8 + $0xa0] sm:$0xff]
    %v274 = vld [vmem:[#allocation8 + $0xa8] sm:$0xff]
    %v275 = vld [vmem:[#allocation8 + $0xb0] sm:$0xff]
    %v276 = vld [vmem:[#allocation8 + $0xb8] sm:$0xff]
    %v277 = vld [vmem:[#allocation8 + $0xc0] sm:$0xff]
    %v278 = vld [vmem:[#allocation8 + $0xc8] sm:$0xff]
    %v279 = vld [vmem:[#allocation8 + $0xd0] sm:$0xff]
    %v280 = vld [vmem:[#allocation8 + $0xd8] sm:$0xff]
    %v281 = vld [vmem:[#allocation8 + $0xe0] sm:$0xff]
    %v282 = vld [vmem:[#allocation8 + $0xe8] sm:$0xff]
    %v283 = vld [vmem:[#allocation8 + $0xf0] sm:$0xff]
    %v284 = vld [vmem:[#allocation8 + $0xf8] sm:$0xff]
    %v285 = vld [vmem:[#allocation8 + $0x100] sm:$0xff]
    %v286 = vld [vmem:[#allocation8 + $0x108] sm:$0xff]
    %v287 = vld [vmem:[#allocation8 + $0x110] sm:$0xff]
    %v288 = vld [vmem:[#allocation8 + $0x118] sm:$0xff]
    %v289 = vld [vmem:[#allocation8 + $0x120] sm:$0xff]
    %v290 = vld [vmem:[#allocation8 + $0x128] sm:$0xff]
    %v291 = vld [vmem:[#allocation8 + $0x130] sm:$0xff]
    %v292 = vld [vmem:[#allocation8 + $0x138] sm:$0xff]
    %v293 = vld [vmem:[#allocation8 + $0x140] sm:$0xff]
    %v294 = vld [vmem:[#allocation8 + $0x148] sm:$0xff]
    %v295 = vld [vmem:[#allocation8 + $0x150] sm:$0xff]
    %v296 = vld [vmem:[#allocation8 + $0x158] sm:$0xff]
    %v297 = vld [vmem:[#allocation8 + $0x160] sm:$0xff]
    %v298 = vld [vmem:[#allocation8 + $0x168] sm:$0xff]
    %v299 = vld [vmem:[#allocation8 + $0x170] sm:$0xff]
    %v300 = vld [vmem:[#allocation8 + $0x178] sm:$0xff]
    %v301 = vld [vmem:[#allocation8 + $0x180] sm:$0xff]
    %v302 = vld [vmem:[#allocation8 + $0x188] sm:$0xff]
    %v303 = vld [vmem:[#allocation8 + $0x190] sm:$0xff]
    %v304 = vld [vmem:[#allocation8 + $0x198] sm:$0xff]
    %v305 = vld [vmem:[#allocation8 + $0x1a0] sm:$0xff]
    %v306 = vld [vmem:[#allocation8 + $0x1a8] sm:$0xff]
    %v307 = vld [vmem:[#allocation8 + $0x1b0] sm:$0xff]
    %v308 = vld [vmem:[#allocation8 + $0x1b8] sm:$0xff]
    %v309 = vld [vmem:[#allocation8 + $0x1c0] sm:$0xff]
    %v310 = vld [vmem:[#allocation8 + $0x1c8] sm:$0xff]
    %v311 = vld [vmem:[#allocation8 + $0x1d0] sm:$0xff]
    %v312 = vld [vmem:[#allocation8 + $0x1d8] sm:$0xff]
    %v313 = vld [vmem:[#allocation8 + $0x1e0] sm:$0xff]
    %v314 = vld [vmem:[#allocation8 + $0x1e8] sm:$0xff]
    %v315 = vld [vmem:[#allocation8 + $0x1f0] sm:$0xff]
    %v316 = vld [vmem:[#allocation8 + $0x1f8] sm:$0xff]
    %v317 = vld [vmem:[#allocation8 + $0x200] sm:$0xff]
    %v318 = vld [vmem:[#allocation8 + $0x208] sm:$0xff]
    %v319 = vld [vmem:[#allocation8 + $0x210] sm:$0xff]
    %v320 = vld [vmem:[#allocation8 + $0x218] sm:$0xff]
    %v321 = vld [vmem:[#allocation8 + $0x220] sm:$0xff]
    %v322 = vld [vmem:[#allocation8 + $0x228] sm:$0xff]
    %v323 = vld [vmem:[#allocation8 + $0x230] sm:$0xff]
    %v324 = vld [vmem:[#allocation8 + $0x238] sm:$0xff]
    %v325 = vld [vmem:[#allocation8 + $0x240] sm:$0xff]
    %v326 = vld [vmem:[#allocation8 + $0x248] sm:$0xff]
    %v327 = vld [vmem:[#allocation8 + $0x250] sm:$0xff]
    %v328 = vld [vmem:[#allocation8 + $0x258] sm:$0xff]
    %v329 = vld [vmem:[#allocation8 + $0x260] sm:$0xff]
    %v330 = vld [vmem:[#allocation8 + $0x268] sm:$0xff]
    %v331 = vld [vmem:[#allocation8 + $0x270] sm:$0xff]
    %v332 = vld [vmem:[#allocation8 + $0x278] sm:$0xff]
    %v333 = vld [vmem:[#allocation8 + $0x280] sm:$0xff]
    %v334 = vld [vmem:[#allocation8 + $0x288] sm:$0xff]
    %v335 = vld [vmem:[#allocation8 + $0x290] sm:$0xff]
    %v336 = vld [vmem:[#allocation8 + $0x298] sm:$0xff]
    %v337 = vld [vmem:[#allocation8 + $0x2a0] sm:$0xff]
    %v338 = vld [vmem:[#allocation8 + $0x2a8] sm:$0xff]
    %v339 = vld [vmem:[#allocation8 + $0x2b0] sm:$0xff]
    %v340 = vld [vmem:[#allocation8 + $0x2b8] sm:$0xff]
    %v341 = vld [vmem:[#allocation8 + $0x2c0] sm:$0xff]
    %v342 = vld [vmem:[#allocation8 + $0x2c8] sm:$0xff]
    %v343 = vld [vmem:[#allocation8 + $0x2d0] sm:$0xff]
    %v344 = vld [vmem:[#allocation8 + $0x2d8] sm:$0xff]
    %v345 = vld [vmem:[#allocation8 + $0x2e0] sm:$0xff]
    %v346 = vld [vmem:[#allocation8 + $0x2e8] sm:$0xff]
    %v347 = vld [vmem:[#allocation8 + $0x2f0] sm:$0xff]
    %v348 = vld [vmem:[#allocation8 + $0x2f8] sm:$0xff]
    %v349 = vld [vmem:[#allocation8 + $0x300] sm:$0xff]
    %v350 = vld [vmem:[#allocation8 + $0x308] sm:$0xff]
    %v351 = vld [vmem:[#allocation8 + $0x310] sm:$0xff]
    %v352 = vld [vmem:[#allocation8 + $0x318] sm:$0xff]
    %v353 = vld [vmem:[#allocation8 + $0x320] sm:$0xff]
    %v354 = vld [vmem:[#allocation8 + $0x328] sm:$0xff]
    %v355 = vld [vmem:[#allocation8 + $0x330] sm:$0xff]
    %v356 = vld [vmem:[#allocation8 + $0x338] sm:$0xff]
    %v357 = vld [vmem:[#allocation8 + $0x340] sm:$0xff]
    %v358 = vld [vmem:[#allocation8 + $0x348] sm:$0xff]
    %v359 = vld [vmem:[#allocation8 + $0x350] sm:$0xff]
    %v360 = vld [vmem:[#allocation8 + $0x358] sm:$0xff]
    %v361 = vld [vmem:[#allocation8 + $0x360] sm:$0xff]
    %v362 = vld [vmem:[#allocation8 + $0x368] sm:$0xff]
    %v363 = vld [vmem:[#allocation8 + $0x370] sm:$0xff]
    %v364 = vld [vmem:[#allocation8 + $0x378] sm:$0xff]
    %v365 = vld [vmem:[#allocation8 + $0x380] sm:$0xff]
    %v366 = vld [vmem:[#allocation8 + $0x388] sm:$0xff]
    %v367 = vld [vmem:[#allocation8 + $0x390] sm:$0xff]
    %v368 = vld [vmem:[#allocation8 + $0x398] sm:$0xff]
    %v369 = vld [vmem:[#allocation8 + $0x3a0] sm:$0xff]
    %v370 = vld [vmem:[#allocation8 + $0x3a8] sm:$0xff]
    %v371 = vld [vmem:[#allocation8 + $0x3b0] sm:$0xff]
    %v372 = vld [vmem:[#allocation8 + $0x3b8] sm:$0xff]
    %v373 = vld [vmem:[#allocation8 + $0x3c0] sm:$0xff]
    %v374 = vld [vmem:[#allocation8 + $0x3c8] sm:$0xff]
    %v375 = vld [vmem:[#allocation8 + $0x3d0] sm:$0xff]
    %v376 = vld [vmem:[#allocation8 + $0x3d8] sm:$0xff]
    %v377 = vld [vmem:[#allocation8 + $0x3e0] sm:$0xff]
    %v378 = vld [vmem:[#allocation8 + $0x3e8] sm:$0xff]
    %v379 = vld [vmem:[#allocation8 + $0x3f0] sm:$0xff]
    %v380 = vld [vmem:[#allocation8 + $0x3f8] sm:$0xff]
    %v381 = vld [vmem:[#allocation10] sm:$0xff]
    %v383 = vlaneseq
    %v384 = vshrl.u32 %v383, 7
    %v385 = vsub.s32 0, %v384
    %v386 = vrot.slane %v381, %v385
    %v387 = vlaneseq
    %v388 = vshrl.u32 %v387, 7
    %v389 = vsub.s32 1, %v388
    %v390 = vrot.slane %v381, %v389
    %v391 = vlaneseq
    %v392 = vshrl.u32 %v391, 7
    %v393 = vsub.s32 2, %v392
    %v394 = vrot.slane %v381, %v393
    %v395 = vlaneseq
    %v396 = vshrl.u32 %v395, 7
    %v397 = vsub.s32 3, %v396
    %v398 = vrot.slane %v381, %v397
    %v399 = vlaneseq
    %v400 = vshrl.u32 %v399, 7
    %v401 = vsub.s32 4, %v400
    %v402 = vrot.slane %v381, %v401
    %v403 = vlaneseq
    %v404 = vshrl.u32 %v403, 7
    %v405 = vsub.s32 5, %v404
    %v406 = vrot.slane %v381, %v405
    %v407 = vlaneseq
    %v408 = vshrl.u32 %v407, 7
    %v409 = vsub.s32 6, %v408
    %v410 = vrot.slane %v381, %v409
    %v411 = vlaneseq
    %v412 = vshrl.u32 %v411, 7
    %v413 = vsub.s32 7, %v412
    %v414 = vrot.slane %v381, %v413
    %v551 = vunpack.c.l.b16 %v253
    %v552 = vunpack.c.h.b16 %v253
    %v553 = vunpack.c.l.b16 %v254
    %v554 = vunpack.c.h.b16 %v254
    %v555 = vunpack.c.l.b16 %v255
    %v556 = vunpack.c.h.b16 %v255
    %v557 = vunpack.c.l.b16 %v256
    %v558 = vunpack.c.h.b16 %v256
    %v559 = vunpack.c.l.b16 %v257
    %v560 = vunpack.c.h.b16 %v257
    %v561 = vunpack.c.l.b16 %v258
    %v562 = vunpack.c.h.b16 %v258
    %v563 = vunpack.c.l.b16 %v259
    %v564 = vunpack.c.h.b16 %v259
    %v565 = vunpack.c.l.b16 %v260
    %v566 = vunpack.c.h.b16 %v260
    %v567 = vunpack.c.l.b16 %v261
    %v568 = vunpack.c.h.b16 %v261
    %v569 = vunpack.c.l.b16 %v262
    %v570 = vunpack.c.h.b16 %v262
    %v571 = vunpack.c.l.b16 %v263
    %v572 = vunpack.c.h.b16 %v263
    %v573 = vunpack.c.l.b16 %v264
    %v574 = vunpack.c.h.b16 %v264
    %v575 = vunpack.c.l.b16 %v265
    %v576 = vunpack.c.h.b16 %v265
    %v577 = vunpack.c.l.b16 %v266
    %v578 = vunpack.c.h.b16 %v266
    %v579 = vunpack.c.l.b16 %v267
    %v580 = vunpack.c.h.b16 %v267
    %v581 = vunpack.c.l.b16 %v268
    %v582 = vunpack.c.h.b16 %v268
    %v583 = vunpack.c.l.b16 %v269
    %v584 = vunpack.c.h.b16 %v269
    %v585 = vunpack.c.l.b16 %v270
    %v586 = vunpack.c.h.b16 %v270
    %v587 = vunpack.c.l.b16 %v271
    %v588 = vunpack.c.h.b16 %v271
    %v589 = vunpack.c.l.b16 %v272
    %v590 = vunpack.c.h.b16 %v272
    %v591 = vunpack.c.l.b16 %v273
    %v592 = vunpack.c.h.b16 %v273
    %v593 = vunpack.c.l.b16 %v274
    %v594 = vunpack.c.h.b16 %v274
    %v595 = vunpack.c.l.b16 %v275
    %v596 = vunpack.c.h.b16 %v275
    %v597 = vunpack.c.l.b16 %v276
    %v598 = vunpack.c.h.b16 %v276
    %v599 = vunpack.c.l.b16 %v277
    %v600 = vunpack.c.h.b16 %v277
    %v601 = vunpack.c.l.b16 %v278
    %v602 = vunpack.c.h.b16 %v278
    %v603 = vunpack.c.l.b16 %v279
    %v604 = vunpack.c.h.b16 %v279
    %v605 = vunpack.c.l.b16 %v280
    %v606 = vunpack.c.h.b16 %v280
    %v607 = vunpack.c.l.b16 %v281
    %v608 = vunpack.c.h.b16 %v281
    %v609 = vunpack.c.l.b16 %v282
    %v610 = vunpack.c.h.b16 %v282
    %v611 = vunpack.c.l.b16 %v283
    %v612 = vunpack.c.h.b16 %v283
    %v613 = vunpack.c.l.b16 %v284
    %v614 = vunpack.c.h.b16 %v284
    %v615 = vunpack.c.l.b16 %v285
    %v616 = vunpack.c.h.b16 %v285
    %v617 = vunpack.c.l.b16 %v286
    %v618 = vunpack.c.h.b16 %v286
    %v619 = vunpack.c.l.b16 %v287
    %v620 = vunpack.c.h.b16 %v287
    %v621 = vunpack.c.l.b16 %v288
    %v622 = vunpack.c.h.b16 %v288
    %v623 = vunpack.c.l.b16 %v289
    %v624 = vunpack.c.h.b16 %v289
    %v625 = vunpack.c.l.b16 %v290
    %v626 = vunpack.c.h.b16 %v290
    %v627 = vunpack.c.l.b16 %v291
    %v628 = vunpack.c.h.b16 %v291
    %v629 = vunpack.c.l.b16 %v292
    %v630 = vunpack.c.h.b16 %v292
    %v631 = vunpack.c.l.b16 %v293
    %v632 = vunpack.c.h.b16 %v293
    %v633 = vunpack.c.l.b16 %v294
    %v634 = vunpack.c.h.b16 %v294
    %v635 = vunpack.c.l.b16 %v295
    %v636 = vunpack.c.h.b16 %v295
    %v637 = vunpack.c.l.b16 %v296
    %v638 = vunpack.c.h.b16 %v296
    %v639 = vunpack.c.l.b16 %v297
    %v640 = vunpack.c.h.b16 %v297
    %v641 = vunpack.c.l.b16 %v298
    %v642 = vunpack.c.h.b16 %v298
    %v643 = vunpack.c.l.b16 %v299
    %v644 = vunpack.c.h.b16 %v299
    %v645 = vunpack.c.l.b16 %v300
    %v646 = vunpack.c.h.b16 %v300
    %v647 = vunpack.c.l.b16 %v301
    %v648 = vunpack.c.h.b16 %v301
    %v649 = vunpack.c.l.b16 %v302
    %v650 = vunpack.c.h.b16 %v302
    %v651 = vunpack.c.l.b16 %v303
    %v652 = vunpack.c.h.b16 %v303
    %v653 = vunpack.c.l.b16 %v304
    %v654 = vunpack.c.h.b16 %v304
    %v655 = vunpack.c.l.b16 %v305
    %v656 = vunpack.c.h.b16 %v305
    %v657 = vunpack.c.l.b16 %v306
    %v658 = vunpack.c.h.b16 %v306
    %v659 = vunpack.c.l.b16 %v307
    %v660 = vunpack.c.h.b16 %v307
    %v661 = vunpack.c.l.b16 %v308
    %v662 = vunpack.c.h.b16 %v308
    %v663 = vunpack.c.l.b16 %v309
    %v664 = vunpack.c.h.b16 %v309
    %v665 = vunpack.c.l.b16 %v310
    %v666 = vunpack.c.h.b16 %v310
    %v667 = vunpack.c.l.b16 %v311
    %v668 = vunpack.c.h.b16 %v311
    %v669 = vunpack.c.l.b16 %v312
    %v670 = vunpack.c.h.b16 %v312
    %v671 = vunpack.c.l.b16 %v313
    %v672 = vunpack.c.h.b16 %v313
    %v673 = vunpack.c.l.b16 %v314
    %v674 = vunpack.c.h.b16 %v314
    %v675 = vunpack.c.l.b16 %v315
    %v676 = vunpack.c.h.b16 %v315
    %v677 = vunpack.c.l.b16 %v316
    %v678 = vunpack.c.h.b16 %v316
    %v679 = vunpack.c.l.b16 %v317
    %v680 = vunpack.c.h.b16 %v317
    %v681 = vunpack.c.l.b16 %v318
    %v682 = vunpack.c.h.b16 %v318
    %v683 = vunpack.c.l.b16 %v319
    %v684 = vunpack.c.h.b16 %v319
    %v685 = vunpack.c.l.b16 %v320
    %v686 = vunpack.c.h.b16 %v320
    %v687 = vunpack.c.l.b16 %v321
    %v688 = vunpack.c.h.b16 %v321
    %v689 = vunpack.c.l.b16 %v322
    %v690 = vunpack.c.h.b16 %v322
    %v691 = vunpack.c.l.b16 %v323
    %v692 = vunpack.c.h.b16 %v323
    %v693 = vunpack.c.l.b16 %v324
    %v694 = vunpack.c.h.b16 %v324
    %v695 = vunpack.c.l.b16 %v325
    %v696 = vunpack.c.h.b16 %v325
    %v697 = vunpack.c.l.b16 %v326
    %v698 = vunpack.c.h.b16 %v326
    %v699 = vunpack.c.l.b16 %v327
    %v700 = vunpack.c.h.b16 %v327
    %v701 = vunpack.c.l.b16 %v328
    %v702 = vunpack.c.h.b16 %v328
    %v703 = vunpack.c.l.b16 %v329
    %v704 = vunpack.c.h.b16 %v329
    %v705 = vunpack.c.l.b16 %v330
    %v706 = vunpack.c.h.b16 %v330
    %v707 = vunpack.c.l.b16 %v331
    %v708 = vunpack.c.h.b16 %v331
    %v709 = vunpack.c.l.b16 %v332
    %v710 = vunpack.c.h.b16 %v332
    %v711 = vunpack.c.l.b16 %v333
    %v712 = vunpack.c.h.b16 %v333
    %v713 = vunpack.c.l.b16 %v334
    %v714 = vunpack.c.h.b16 %v334
    %v715 = vunpack.c.l.b16 %v335
    %v716 = vunpack.c.h.b16 %v335
    %v717 = vunpack.c.l.b16 %v336
    %v718 = vunpack.c.h.b16 %v336
    %v719 = vunpack.c.l.b16 %v337
    %v720 = vunpack.c.h.b16 %v337
    %v721 = vunpack.c.l.b16 %v338
    %v722 = vunpack.c.h.b16 %v338
    %v723 = vunpack.c.l.b16 %v339
    %v724 = vunpack.c.h.b16 %v339
    %v725 = vunpack.c.l.b16 %v340
    %v726 = vunpack.c.h.b16 %v340
    %v727 = vunpack.c.l.b16 %v341
    %v728 = vunpack.c.h.b16 %v341
    %v729 = vunpack.c.l.b16 %v342
    %v730 = vunpack.c.h.b16 %v342
    %v731 = vunpack.c.l.b16 %v343
    %v732 = vunpack.c.h.b16 %v343
    %v733 = vunpack.c.l.b16 %v344
    %v734 = vunpack.c.h.b16 %v344
    %v735 = vunpack.c.l.b16 %v345
    %v736 = vunpack.c.h.b16 %v345
    %v737 = vunpack.c.l.b16 %v346
    %v738 = vunpack.c.h.b16 %v346
    %v739 = vunpack.c.l.b16 %v347
    %v740 = vunpack.c.h.b16 %v347
    %v741 = vunpack.c.l.b16 %v348
    %v742 = vunpack.c.h.b16 %v348
    %v743 = vunpack.c.l.b16 %v349
    %v744 = vunpack.c.h.b16 %v349
    %v745 = vunpack.c.l.b16 %v350
    %v746 = vunpack.c.h.b16 %v350
    %v747 = vunpack.c.l.b16 %v351
    %v748 = vunpack.c.h.b16 %v351
    %v749 = vunpack.c.l.b16 %v352
    %v750 = vunpack.c.h.b16 %v352
    %v751 = vunpack.c.l.b16 %v353
    %v752 = vunpack.c.h.b16 %v353
    %v753 = vunpack.c.l.b16 %v354
    %v754 = vunpack.c.h.b16 %v354
    %v755 = vunpack.c.l.b16 %v355
    %v756 = vunpack.c.h.b16 %v355
    %v757 = vunpack.c.l.b16 %v356
    %v758 = vunpack.c.h.b16 %v356
    %v759 = vunpack.c.l.b16 %v357
    %v760 = vunpack.c.h.b16 %v357
    %v761 = vunpack.c.l.b16 %v358
    %v762 = vunpack.c.h.b16 %v358
    %v763 = vunpack.c.l.b16 %v359
    %v764 = vunpack.c.h.b16 %v359
    %v765 = vunpack.c.l.b16 %v360
    %v766 = vunpack.c.h.b16 %v360
    %v767 = vunpack.c.l.b16 %v361
    %v768 = vunpack.c.h.b16 %v361
    %v769 = vunpack.c.l.b16 %v362
    %v770 = vunpack.c.h.b16 %v362
    %v771 = vunpack.c.l.b16 %v363
    %v772 = vunpack.c.h.b16 %v363
    %v773 = vunpack.c.l.b16 %v364
    %v774 = vunpack.c.h.b16 %v364
    %v775 = vunpack.c.l.b16 %v365
    %v776 = vunpack.c.h.b16 %v365
    %v777 = vunpack.c.l.b16 %v366
    %v778 = vunpack.c.h.b16 %v366
    %v779 = vunpack.c.l.b16 %v367
    %v780 = vunpack.c.h.b16 %v367
    %v781 = vunpack.c.l.b16 %v368
    %v782 = vunpack.c.h.b16 %v368
    %v783 = vunpack.c.l.b16 %v369
    %v784 = vunpack.c.h.b16 %v369
    %v785 = vunpack.c.l.b16 %v370
    %v786 = vunpack.c.h.b16 %v370
    %v787 = vunpack.c.l.b16 %v371
    %v788 = vunpack.c.h.b16 %v371
    %v789 = vunpack.c.l.b16 %v372
    %v790 = vunpack.c.h.b16 %v372
    %v791 = vunpack.c.l.b16 %v373
    %v792 = vunpack.c.h.b16 %v373
    %v793 = vunpack.c.l.b16 %v374
    %v794 = vunpack.c.h.b16 %v374
    %v795 = vunpack.c.l.b16 %v375
    %v796 = vunpack.c.h.b16 %v375
    %v797 = vunpack.c.l.b16 %v376
    %v798 = vunpack.c.h.b16 %v376
    %v799 = vunpack.c.l.b16 %v377
    %v800 = vunpack.c.h.b16 %v377
    %v801 = vunpack.c.l.b16 %v378
    %v802 = vunpack.c.h.b16 %v378
    %v803 = vunpack.c.l.b16 %v379
    %v804 = vunpack.c.h.b16 %v379
    %v805 = vunpack.c.l.b16 %v380
    %v806 = vunpack.c.h.b16 %v380
    %v807 = vpack.c.b16 %v559, %v551
    %v808 = vpack.c.b16 %v560, %v552
    %v809 = vpack.c.b16 %v561, %v553
    %v810 = vpack.c.b16 %v562, %v554
    %v811 = vpack.c.b16 %v563, %v555
    %v812 = vpack.c.b16 %v564, %v556
    %v813 = vpack.c.b16 %v565, %v557
    %v814 = vpack.c.b16 %v566, %v558
    %v815 = vpack.c.b16 %v575, %v567
    %v816 = vpack.c.b16 %v576, %v568
    %v817 = vpack.c.b16 %v577, %v569
    %v818 = vpack.c.b16 %v578, %v570
    %v819 = vpack.c.b16 %v579, %v571
    %v820 = vpack.c.b16 %v580, %v572
    %v821 = vpack.c.b16 %v581, %v573
    %v822 = vpack.c.b16 %v582, %v574
    %v823 = vpack.c.b16 %v591, %v583
    %v824 = vpack.c.b16 %v592, %v584
    %v825 = vpack.c.b16 %v593, %v585
    %v826 = vpack.c.b16 %v594, %v586
    %v827 = vpack.c.b16 %v595, %v587
    %v828 = vpack.c.b16 %v596, %v588
    %v829 = vpack.c.b16 %v597, %v589
    %v830 = vpack.c.b16 %v598, %v590
    %v831 = vpack.c.b16 %v607, %v599
    %v832 = vpack.c.b16 %v608, %v600
    %v833 = vpack.c.b16 %v609, %v601
    %v834 = vpack.c.b16 %v610, %v602
    %v835 = vpack.c.b16 %v611, %v603
    %v836 = vpack.c.b16 %v612, %v604
    %v837 = vpack.c.b16 %v613, %v605
    %v838 = vpack.c.b16 %v614, %v606
    %v839 = vpack.c.b16 %v623, %v615
    %v840 = vpack.c.b16 %v624, %v616
    %v841 = vpack.c.b16 %v625, %v617
    %v842 = vpack.c.b16 %v626, %v618
    %v843 = vpack.c.b16 %v627, %v619
    %v844 = vpack.c.b16 %v628, %v620
    %v845 = vpack.c.b16 %v629, %v621
    %v846 = vpack.c.b16 %v630, %v622
    %v847 = vpack.c.b16 %v639, %v631
    %v848 = vpack.c.b16 %v640, %v632
    %v849 = vpack.c.b16 %v641, %v633
    %v850 = vpack.c.b16 %v642, %v634
    %v851 = vpack.c.b16 %v643, %v635
    %v852 = vpack.c.b16 %v644, %v636
    %v853 = vpack.c.b16 %v645, %v637
    %v854 = vpack.c.b16 %v646, %v638
    %v855 = vpack.c.b16 %v655, %v647
    %v856 = vpack.c.b16 %v656, %v648
    %v857 = vpack.c.b16 %v657, %v649
    %v858 = vpack.c.b16 %v658, %v650
    %v859 = vpack.c.b16 %v659, %v651
    %v860 = vpack.c.b16 %v660, %v652
    %v861 = vpack.c.b16 %v661, %v653
    %v862 = vpack.c.b16 %v662, %v654
    %v863 = vpack.c.b16 %v671, %v663
    %v864 = vpack.c.b16 %v672, %v664
    %v865 = vpack.c.b16 %v673, %v665
    %v866 = vpack.c.b16 %v674, %v666
    %v867 = vpack.c.b16 %v675, %v667
    %v868 = vpack.c.b16 %v676, %v668
    %v869 = vpack.c.b16 %v677, %v669
    %v870 = vpack.c.b16 %v678, %v670
    %v871 = vpack.c.b16 %v687, %v679
    %v872 = vpack.c.b16 %v688, %v680
    %v873 = vpack.c.b16 %v689, %v681
    %v874 = vpack.c.b16 %v690, %v682
    %v875 = vpack.c.b16 %v691, %v683
    %v876 = vpack.c.b16 %v692, %v684
    %v877 = vpack.c.b16 %v693, %v685
    %v878 = vpack.c.b16 %v694, %v686
    %v879 = vpack.c.b16 %v703, %v695
    %v880 = vpack.c.b16 %v704, %v696
    %v881 = vpack.c.b16 %v705, %v697
    %v882 = vpack.c.b16 %v706, %v698
    %v883 = vpack.c.b16 %v707, %v699
    %v884 = vpack.c.b16 %v708, %v700
    %v885 = vpack.c.b16 %v709, %v701
    %v886 = vpack.c.b16 %v710, %v702
    %v887 = vpack.c.b16 %v719, %v711
    %v888 = vpack.c.b16 %v720, %v712
    %v889 = vpack.c.b16 %v721, %v713
    %v890 = vpack.c.b16 %v722, %v714
    %v891 = vpack.c.b16 %v723, %v715
    %v892 = vpack.c.b16 %v724, %v716
    %v893 = vpack.c.b16 %v725, %v717
    %v894 = vpack.c.b16 %v726, %v718
    %v895 = vpack.c.b16 %v735, %v727
    %v896 = vpack.c.b16 %v736, %v728
    %v897 = vpack.c.b16 %v737, %v729
    %v898 = vpack.c.b16 %v738, %v730
    %v899 = vpack.c.b16 %v739, %v731
    %v900 = vpack.c.b16 %v740, %v732
    %v901 = vpack.c.b16 %v741, %v733
    %v902 = vpack.c.b16 %v742, %v734
    %v903 = vpack.c.b16 %v751, %v743
    %v904 = vpack.c.b16 %v752, %v744
    %v905 = vpack.c.b16 %v753, %v745
    %v906 = vpack.c.b16 %v754, %v746
    %v907 = vpack.c.b16 %v755, %v747
    %v908 = vpack.c.b16 %v756, %v748
    %v909 = vpack.c.b16 %v757, %v749
    %v910 = vpack.c.b16 %v758, %v750
    %v911 = vpack.c.b16 %v767, %v759
    %v912 = vpack.c.b16 %v768, %v760
    %v913 = vpack.c.b16 %v769, %v761
    %v914 = vpack.c.b16 %v770, %v762
    %v915 = vpack.c.b16 %v771, %v763
    %v916 = vpack.c.b16 %v772, %v764
    %v917 = vpack.c.b16 %v773, %v765
    %v918 = vpack.c.b16 %v774, %v766
    %v919 = vpack.c.b16 %v783, %v775
    %v920 = vpack.c.b16 %v784, %v776
    %v921 = vpack.c.b16 %v785, %v777
    %v922 = vpack.c.b16 %v786, %v778
    %v923 = vpack.c.b16 %v787, %v779
    %v924 = vpack.c.b16 %v788, %v780
    %v925 = vpack.c.b16 %v789, %v781
    %v926 = vpack.c.b16 %v790, %v782
    %v927 = vpack.c.b16 %v799, %v791
    %v928 = vpack.c.b16 %v800, %v792
    %v929 = vpack.c.b16 %v801, %v793
    %v930 = vpack.c.b16 %v802, %v794
    %v931 = vpack.c.b16 %v803, %v795
    %v932 = vpack.c.b16 %v804, %v796
    %v933 = vpack.c.b16 %v805, %v797
    %v934 = vpack.c.b16 %v806, %v798
    %1063 = vmatprep.subr.bf16.mxu0 %v808
    %1064 = vmatpush1.bf16.msra.mxu0 %v807
    %1065 = vmatprep.subr.bf16.mxu0 %v816
    %1066 = vmatpush1.bf16.msra.mxu0 %v815
    %1067 = vmatprep.subr.bf16.mxu0 %v824
    %1068 = vmatpush1.bf16.msra.mxu0 %v823
    %1069 = vmatprep.subr.bf16.mxu0 %v832
    %1070 = vmatpush1.bf16.msra.mxu0 %v831
    %1071 = vmatprep.subr.bf16.mxu0 %v840
    %1072 = vmatpush1.bf16.msra.mxu0 %v839
    %1073 = vmatprep.subr.bf16.mxu0 %v848
    %1074 = vmatpush1.bf16.msra.mxu0 %v847
    %1075 = vmatprep.subr.bf16.mxu0 %v856
    %1076 = vmatpush1.bf16.msra.mxu0 %v855
    %1077 = vmatprep.subr.bf16.mxu0 %v864
    %1078 = vmatpush1.bf16.msra.mxu0 %v863
    %1079 = vmatprep.subr.bf16.mxu0 %v872
    %1080 = vmatpush1.bf16.msra.mxu0 %v871
    %1081 = vmatprep.subr.bf16.mxu0 %v880
    %1082 = vmatpush1.bf16.msra.mxu0 %v879
    %1083 = vmatprep.subr.bf16.mxu0 %v888
    %1084 = vmatpush1.bf16.msra.mxu0 %v887
    %1085 = vmatprep.subr.bf16.mxu0 %v896
    %1086 = vmatpush1.bf16.msra.mxu0 %v895
    %1087 = vmatprep.subr.bf16.mxu0 %v904
    %1088 = vmatpush1.bf16.msra.mxu0 %v903
    %1089 = vmatprep.subr.bf16.mxu0 %v912
    %1090 = vmatpush1.bf16.msra.mxu0 %v911
    %1091 = vmatprep.subr.bf16.mxu0 %v920
    %1092 = vmatpush1.bf16.msra.mxu0 %v919
    %1093 = vmatprep.subr.bf16.mxu0 %v928
    %1094 = vmatpush1.bf16.msra.mxu0 %v927
    %1095 = vmatprep.mubr.bf16.mxu0 %v252
    %1096 = vmatmul.mubr.bf16.gmra.mrb[0].mxu0 %v251
    %v1097 = vpop.f32.mrb[0].mxu0
    %v1098 = vadd.f32 %v386, %v1097
    %v1099 = vpop.f32.mrb[0].mxu0
    %v1100 = vadd.f32 %v390, %v1099
    %v1101 = vpop.f32.mrb[0].mxu0
    %v1102 = vpop.f32.mrb[0].mxu0
    %1103 = vdwg.mxu0
    %1104 = vmatprep.subr.bf16.mxu0 %v810
    %1105 = vmatpush1.bf16.msra.mxu0 %v809
    %1106 = vmatprep.subr.bf16.mxu0 %v818
    %1107 = vmatpush1.bf16.msra.mxu0 %v817
    %1108 = vmatprep.subr.bf16.mxu0 %v826
    %1109 = vmatpush1.bf16.msra.mxu0 %v825
    %1110 = vmatprep.subr.bf16.mxu0 %v834
    %1111 = vmatpush1.bf16.msra.mxu0 %v833
    %1112 = vmatprep.subr.bf16.mxu0 %v842
    %1113 = vmatpush1.bf16.msra.mxu0 %v841
    %1114 = vmatprep.subr.bf16.mxu0 %v850
    %1115 = vmatpush1.bf16.msra.mxu0 %v849
    %1116 = vmatprep.subr.bf16.mxu0 %v858
    %1117 = vmatpush1.bf16.msra.mxu0 %v857
    %1118 = vmatprep.subr.bf16.mxu0 %v866
    %1119 = vmatpush1.bf16.msra.mxu0 %v865
    %1120 = vmatprep.subr.bf16.mxu0 %v874
    %1121 = vmatpush1.bf16.msra.mxu0 %v873
    %1122 = vmatprep.subr.bf16.mxu0 %v882
    %1123 = vmatpush1.bf16.msra.mxu0 %v881
    %1124 = vmatprep.subr.bf16.mxu0 %v890
    %1125 = vmatpush1.bf16.msra.mxu0 %v889
    %1126 = vmatprep.subr.bf16.mxu0 %v898
    %1127 = vmatpush1.bf16.msra.mxu0 %v897
    %1128 = vmatprep.subr.bf16.mxu0 %v906
    %1129 = vmatpush1.bf16.msra.mxu0 %v905
    %1130 = vmatprep.subr.bf16.mxu0 %v914
    %1131 = vmatpush1.bf16.msra.mxu0 %v913
    %1132 = vmatprep.subr.bf16.mxu0 %v922
    %1133 = vmatpush1.bf16.msra.mxu0 %v921
    %1134 = vmatprep.subr.bf16.mxu0 %v930
    %1135 = vmatpush1.bf16.msra.mxu0 %v929
    %1136 = vmatprep.mubr.bf16.mxu0 %v252
    %1137 = vmatmul.mubr.bf16.gmra.mrb[0].mxu0 %v251
    %v1138 = vpop.f32.mrb[0].mxu0
    %v1139 = vadd.f32 %v394, %v1138
    %v1140 = vpop.f32.mrb[0].mxu0
    %v1141 = vadd.f32 %v398, %v1140
    %v1142 = vpop.f32.mrb[0].mxu0
    %v1143 = vpop.f32.mrb[0].mxu0
    %1144 = vdwg.mxu0
    %1145 = vmatprep.subr.bf16.mxu0 %v812
    %1146 = vmatpush1.bf16.msra.mxu0 %v811
    %1147 = vmatprep.subr.bf16.mxu0 %v820
    %1148 = vmatpush1.bf16.msra.mxu0 %v819
    %1149 = vmatprep.subr.bf16.mxu0 %v828
    %1150 = vmatpush1.bf16.msra.mxu0 %v827
    %1151 = vmatprep.subr.bf16.mxu0 %v836
    %1152 = vmatpush1.bf16.msra.mxu0 %v835
    %1153 = vmatprep.subr.bf16.mxu0 %v844
    %1154 = vmatpush1.bf16.msra.mxu0 %v843
    %1155 = vmatprep.subr.bf16.mxu0 %v852
    %1156 = vmatpush1.bf16.msra.mxu0 %v851
    %1157 = vmatprep.subr.bf16.mxu0 %v860
    %1158 = vmatpush1.bf16.msra.mxu0 %v859
    %1159 = vmatprep.subr.bf16.mxu0 %v868
    %1160 = vmatpush1.bf16.msra.mxu0 %v867
    %1161 = vmatprep.subr.bf16.mxu0 %v876
    %1162 = vmatpush1.bf16.msra.mxu0 %v875
    %1163 = vmatprep.subr.bf16.mxu0 %v884
    %1164 = vmatpush1.bf16.msra.mxu0 %v883
    %1165 = vmatprep.subr.bf16.mxu0 %v892
    %1166 = vmatpush1.bf16.msra.mxu0 %v891
    %1167 = vmatprep.subr.bf16.mxu0 %v900
    %1168 = vmatpush1.bf16.msra.mxu0 %v899
    %1169 = vmatprep.subr.bf16.mxu0 %v908
    %1170 = vmatpush1.bf16.msra.mxu0 %v907
    %1171 = vmatprep.subr.bf16.mxu0 %v916
    %1172 = vmatpush1.bf16.msra.mxu0 %v915
    %1173 = vmatprep.subr.bf16.mxu0 %v924
    %1174 = vmatpush1.bf16.msra.mxu0 %v923
    %1175 = vmatprep.subr.bf16.mxu0 %v932
    %1176 = vmatpush1.bf16.msra.mxu0 %v931
    %1177 = vmatprep.mubr.bf16.mxu0 %v252
    %1178 = vmatmul.mubr.bf16.gmra.mrb[0].mxu0 %v251
    %v1179 = vpop.f32.mrb[0].mxu0
    %v1180 = vadd.f32 %v402, %v1179
    %v1181 = vpop.f32.mrb[0].mxu0
    %v1182 = vadd.f32 %v406, %v1181
    %v1183 = vpop.f32.mrb[0].mxu0
    %v1184 = vpop.f32.mrb[0].mxu0
    %1185 = vdwg.mxu0
    %1186 = vmatprep.subr.bf16.mxu0 %v814
    %1187 = vmatpush1.bf16.msra.mxu0 %v813
    %1188 = vmatprep.subr.bf16.mxu0 %v822
    %1189 = vmatpush1.bf16.msra.mxu0 %v821
    %1190 = vmatprep.subr.bf16.mxu0 %v830
    %1191 = vmatpush1.bf16.msra.mxu0 %v829
    %1192 = vmatprep.subr.bf16.mxu0 %v838
    %1193 = vmatpush1.bf16.msra.mxu0 %v837
    %1194 = vmatprep.subr.bf16.mxu0 %v846
    %1195 = vmatpush1.bf16.msra.mxu0 %v845
    %1196 = vmatprep.subr.bf16.mxu0 %v854
    %1197 = vmatpush1.bf16.msra.mxu0 %v853
    %1198 = vmatprep.subr.bf16.mxu0 %v862
    %1199 = vmatpush1.bf16.msra.mxu0 %v861
    %1200 = vmatprep.subr.bf16.mxu0 %v870
    %1201 = vmatpush1.bf16.msra.mxu0 %v869
    %1202 = vmatprep.subr.bf16.mxu0 %v878
    %1203 = vmatpush1.bf16.msra.mxu0 %v877
    %1204 = vmatprep.subr.bf16.mxu0 %v886
    %1205 = vmatpush1.bf16.msra.mxu0 %v885
    %1206 = vmatprep.subr.bf16.mxu0 %v894
    %1207 = vmatpush1.bf16.msra.mxu0 %v893
    %1208 = vmatprep.subr.bf16.mxu0 %v902
    %1209 = vmatpush1.bf16.msra.mxu0 %v901
    %1210 = vmatprep.subr.bf16.mxu0 %v910
    %1211 = vmatpush1.bf16.msra.mxu0 %v909
    %1212 = vmatprep.subr.bf16.mxu0 %v918
    %1213 = vmatpush1.bf16.msra.mxu0 %v917
    %1214 = vmatprep.subr.bf16.mxu0 %v926
    %1215 = vmatpush1.bf16.msra.mxu0 %v925
    %1216 = vmatprep.subr.bf16.mxu0 %v934
    %1217 = vmatpush1.bf16.msra.mxu0 %v933
    %1218 = vmatprep.mubr.bf16.mxu0 %v252
    %1219 = vmatmul.mubr.bf16.gmra.mrb[0].mxu0 %v251
    %v1220 = vpop.f32.mrb[0].mxu0
    %v1221 = vadd.f32 %v410, %v1220
    %v1222 = vpop.f32.mrb[0].mxu0
    %v1223 = vadd.f32 %v414, %v1222
    %v1224 = vpop.f32.mrb[0].mxu0
    %v1225 = vpop.f32.mrb[0].mxu0
    %1226 = vdwg.mxu0
    %v1227 = vmul.f32 %v1098, 0.01
    %v1228 = vmul.f32 %v1100, 0.01
    %v1229 = vmul.f32 %v1139, 0.01
    %v1230 = vmul.f32 %v1141, 0.01
    %v1231 = vmul.f32 %v1180, 0.01
    %v1232 = vmul.f32 %v1182, 0.01
    %v1233 = vmul.f32 %v1221, 0.01
    %v1234 = vmul.f32 %v1223, 0.01
    %v1235 = vmax.f32 %v1098, %v1227
    %v1236 = vmax.f32 %v1100, %v1228
    %v1237 = vmax.f32 %v1139, %v1229
    %v1238 = vmax.f32 %v1141, %v1230
    %v1239 = vmax.f32 %v1180, %v1231
    %v1240 = vmax.f32 %v1182, %v1232
    %v1241 = vmax.f32 %v1221, %v1233
    %v1242 = vmax.f32 %v1223, %v1234
    %v1243 = vpack.c.bf16 %v1235, %v1235
    %v1244 = vpack.c.bf16 %v1236, %v1236
    %v1245 = vpack.c.bf16 %v1237, %v1237
    %v1246 = vpack.c.bf16 %v1238, %v1238
    %v1247 = vpack.c.bf16 %v1239, %v1239
    %v1248 = vpack.c.bf16 %v1240, %v1240
    %v1249 = vpack.c.bf16 %v1241, %v1241
    %v1250 = vpack.c.bf16 %v1242, %v1242
    %v1251 = vld [vmem:[#allocation11] sm:$0xff]
    %v1252 = vld [vmem:[#allocation11 + $0x8] sm:$0xff]
    %v1253 = vld [vmem:[#allocation11 + $0x10] sm:$0xff]
    %v1254 = vld [vmem:[#allocation11 + $0x18] sm:$0xff]
    %v1255 = vld [vmem:[#allocation11 + $0x20] sm:$0xff]
    %v1256 = vld [vmem:[#allocation11 + $0x28] sm:$0xff]
    %v1257 = vld [vmem:[#allocation11 + $0x30] sm:$0xff]
    %v1258 = vld [vmem:[#allocation11 + $0x38] sm:$0xff]
    %v1259 = vld [vmem:[#allocation11 + $0x40] sm:$0xff]
    %v1260 = vld [vmem:[#allocation11 + $0x48] sm:$0xff]
    %v1261 = vld [vmem:[#allocation11 + $0x50] sm:$0xff]
    %v1262 = vld [vmem:[#allocation11 + $0x58] sm:$0xff]
    %v1263 = vld [vmem:[#allocation11 + $0x60] sm:$0xff]
    %v1264 = vld [vmem:[#allocation11 + $0x68] sm:$0xff]
    %v1265 = vld [vmem:[#allocation11 + $0x70] sm:$0xff]
    %v1266 = vld [vmem:[#allocation11 + $0x78] sm:$0xff]
    %v1267 = vld [vmem:[#allocation11 + $0x80] sm:$0xff]
    %v1268 = vld [vmem:[#allocation11 + $0x88] sm:$0xff]
    %v1269 = vld [vmem:[#allocation11 + $0x90] sm:$0xff]
    %v1270 = vld [vmem:[#allocation11 + $0x98] sm:$0xff]
    %v1271 = vld [vmem:[#allocation11 + $0xa0] sm:$0xff]
    %v1272 = vld [vmem:[#allocation11 + $0xa8] sm:$0xff]
    %v1273 = vld [vmem:[#allocation11 + $0xb0] sm:$0xff]
    %v1274 = vld [vmem:[#allocation11 + $0xb8] sm:$0xff]
    %v1275 = vld [vmem:[#allocation11 + $0xc0] sm:$0xff]
    %v1276 = vld [vmem:[#allocation11 + $0xc8] sm:$0xff]
    %v1277 = vld [vmem:[#allocation11 + $0xd0] sm:$0xff]
    %v1278 = vld [vmem:[#allocation11 + $0xd8] sm:$0xff]
    %v1279 = vld [vmem:[#allocation11 + $0xe0] sm:$0xff]
    %v1280 = vld [vmem:[#allocation11 + $0xe8] sm:$0xff]
    %v1281 = vld [vmem:[#allocation11 + $0xf0] sm:$0xff]
    %v1282 = vld [vmem:[#allocation11 + $0xf8] sm:$0xff]
    %v1283 = vld [vmem:[#allocation11 + $0x100] sm:$0xff]
    %v1284 = vld [vmem:[#allocation11 + $0x108] sm:$0xff]
    %v1285 = vld [vmem:[#allocation11 + $0x110] sm:$0xff]
    %v1286 = vld [vmem:[#allocation11 + $0x118] sm:$0xff]
    %v1287 = vld [vmem:[#allocation11 + $0x120] sm:$0xff]
    %v1288 = vld [vmem:[#allocation11 + $0x128] sm:$0xff]
    %v1289 = vld [vmem:[#allocation11 + $0x130] sm:$0xff]
    %v1290 = vld [vmem:[#allocation11 + $0x138] sm:$0xff]
    %v1291 = vld [vmem:[#allocation11 + $0x140] sm:$0xff]
    %v1292 = vld [vmem:[#allocation11 + $0x148] sm:$0xff]
    %v1293 = vld [vmem:[#allocation11 + $0x150] sm:$0xff]
    %v1294 = vld [vmem:[#allocation11 + $0x158] sm:$0xff]
    %v1295 = vld [vmem:[#allocation11 + $0x160] sm:$0xff]
    %v1296 = vld [vmem:[#allocation11 + $0x168] sm:$0xff]
    %v1297 = vld [vmem:[#allocation11 + $0x170] sm:$0xff]
    %v1298 = vld [vmem:[#allocation11 + $0x178] sm:$0xff]
    %v1299 = vld [vmem:[#allocation11 + $0x180] sm:$0xff]
    %v1300 = vld [vmem:[#allocation11 + $0x188] sm:$0xff]
    %v1301 = vld [vmem:[#allocation11 + $0x190] sm:$0xff]
    %v1302 = vld [vmem:[#allocation11 + $0x198] sm:$0xff]
    %v1303 = vld [vmem:[#allocation11 + $0x1a0] sm:$0xff]
    %v1304 = vld [vmem:[#allocation11 + $0x1a8] sm:$0xff]
    %v1305 = vld [vmem:[#allocation11 + $0x1b0] sm:$0xff]
    %v1306 = vld [vmem:[#allocation11 + $0x1b8] sm:$0xff]
    %v1307 = vld [vmem:[#allocation11 + $0x1c0] sm:$0xff]
    %v1308 = vld [vmem:[#allocation11 + $0x1c8] sm:$0xff]
    %v1309 = vld [vmem:[#allocation11 + $0x1d0] sm:$0xff]
    %v1310 = vld [vmem:[#allocation11 + $0x1d8] sm:$0xff]
    %v1311 = vld [vmem:[#allocation11 + $0x1e0] sm:$0xff]
    %v1312 = vld [vmem:[#allocation11 + $0x1e8] sm:$0xff]
    %v1313 = vld [vmem:[#allocation11 + $0x1f0] sm:$0xff]
    %v1314 = vld [vmem:[#allocation11 + $0x1f8] sm:$0xff]
    %v1315 = vld [vmem:[#allocation11 + $0x200] sm:$0xff]
    %v1316 = vld [vmem:[#allocation11 + $0x208] sm:$0xff]
    %v1317 = vld [vmem:[#allocation11 + $0x210] sm:$0xff]
    %v1318 = vld [vmem:[#allocation11 + $0x218] sm:$0xff]
    %v1319 = vld [vmem:[#allocation11 + $0x220] sm:$0xff]
    %v1320 = vld [vmem:[#allocation11 + $0x228] sm:$0xff]
    %v1321 = vld [vmem:[#allocation11 + $0x230] sm:$0xff]
    %v1322 = vld [vmem:[#allocation11 + $0x238] sm:$0xff]
    %v1323 = vld [vmem:[#allocation11 + $0x240] sm:$0xff]
    %v1324 = vld [vmem:[#allocation11 + $0x248] sm:$0xff]
    %v1325 = vld [vmem:[#allocation11 + $0x250] sm:$0xff]
    %v1326 = vld [vmem:[#allocation11 + $0x258] sm:$0xff]
    %v1327 = vld [vmem:[#allocation11 + $0x260] sm:$0xff]
    %v1328 = vld [vmem:[#allocation11 + $0x268] sm:$0xff]
    %v1329 = vld [vmem:[#allocation11 + $0x270] sm:$0xff]
    %v1330 = vld [vmem:[#allocation11 + $0x278] sm:$0xff]
    %v1331 = vld [vmem:[#allocation11 + $0x280] sm:$0xff]
    %v1332 = vld [vmem:[#allocation11 + $0x288] sm:$0xff]
    %v1333 = vld [vmem:[#allocation11 + $0x290] sm:$0xff]
    %v1334 = vld [vmem:[#allocation11 + $0x298] sm:$0xff]
    %v1335 = vld [vmem:[#allocation11 + $0x2a0] sm:$0xff]
    %v1336 = vld [vmem:[#allocation11 + $0x2a8] sm:$0xff]
    %v1337 = vld [vmem:[#allocation11 + $0x2b0] sm:$0xff]
    %v1338 = vld [vmem:[#allocation11 + $0x2b8] sm:$0xff]
    %v1339 = vld [vmem:[#allocation11 + $0x2c0] sm:$0xff]
    %v1340 = vld [vmem:[#allocation11 + $0x2c8] sm:$0xff]
    %v1341 = vld [vmem:[#allocation11 + $0x2d0] sm:$0xff]
    %v1342 = vld [vmem:[#allocation11 + $0x2d8] sm:$0xff]
    %v1343 = vld [vmem:[#allocation11 + $0x2e0] sm:$0xff]
    %v1344 = vld [vmem:[#allocation11 + $0x2e8] sm:$0xff]
    %v1345 = vld [vmem:[#allocation11 + $0x2f0] sm:$0xff]
    %v1346 = vld [vmem:[#allocation11 + $0x2f8] sm:$0xff]
    %v1347 = vld [vmem:[#allocation11 + $0x300] sm:$0xff]
    %v1348 = vld [vmem:[#allocation11 + $0x308] sm:$0xff]
    %v1349 = vld [vmem:[#allocation11 + $0x310] sm:$0xff]
    %v1350 = vld [vmem:[#allocation11 + $0x318] sm:$0xff]
    %v1351 = vld [vmem:[#allocation11 + $0x320] sm:$0xff]
    %v1352 = vld [vmem:[#allocation11 + $0x328] sm:$0xff]
    %v1353 = vld [vmem:[#allocation11 + $0x330] sm:$0xff]
    %v1354 = vld [vmem:[#allocation11 + $0x338] sm:$0xff]
    %v1355 = vld [vmem:[#allocation11 + $0x340] sm:$0xff]
    %v1356 = vld [vmem:[#allocation11 + $0x348] sm:$0xff]
    %v1357 = vld [vmem:[#allocation11 + $0x350] sm:$0xff]
    %v1358 = vld [vmem:[#allocation11 + $0x358] sm:$0xff]
    %v1359 = vld [vmem:[#allocation11 + $0x360] sm:$0xff]
    %v1360 = vld [vmem:[#allocation11 + $0x368] sm:$0xff]
    %v1361 = vld [vmem:[#allocation11 + $0x370] sm:$0xff]
    %v1362 = vld [vmem:[#allocation11 + $0x378] sm:$0xff]
    %v1363 = vld [vmem:[#allocation11 + $0x380] sm:$0xff]
    %v1364 = vld [vmem:[#allocation11 + $0x388] sm:$0xff]
    %v1365 = vld [vmem:[#allocation11 + $0x390] sm:$0xff]
    %v1366 = vld [vmem:[#allocation11 + $0x398] sm:$0xff]
    %v1367 = vld [vmem:[#allocation11 + $0x3a0] sm:$0xff]
    %v1368 = vld [vmem:[#allocation11 + $0x3a8] sm:$0xff]
    %v1369 = vld [vmem:[#allocation11 + $0x3b0] sm:$0xff]
    %v1370 = vld [vmem:[#allocation11 + $0x3b8] sm:$0xff]
    %v1371 = vld [vmem:[#allocation11 + $0x3c0] sm:$0xff]
    %v1372 = vld [vmem:[#allocation11 + $0x3c8] sm:$0xff]
    %v1373 = vld [vmem:[#allocation11 + $0x3d0] sm:$0xff]
    %v1374 = vld [vmem:[#allocation11 + $0x3d8] sm:$0xff]
    %v1375 = vld [vmem:[#allocation11 + $0x3e0] sm:$0xff]
    %v1376 = vld [vmem:[#allocation11 + $0x3e8] sm:$0xff]
    %v1377 = vld [vmem:[#allocation11 + $0x3f0] sm:$0xff]
    %v1378 = vld [vmem:[#allocation11 + $0x3f8] sm:$0xff]
    %v1379 = vld [vmem:[#allocation11 + $0x400] sm:$0xff]
    %v1380 = vld [vmem:[#allocation11 + $0x408] sm:$0xff]
    %v1381 = vld [vmem:[#allocation11 + $0x410] sm:$0xff]
    %v1382 = vld [vmem:[#allocation11 + $0x418] sm:$0xff]
    %v1383 = vld [vmem:[#allocation11 + $0x420] sm:$0xff]
    %v1384 = vld [vmem:[#allocation11 + $0x428] sm:$0xff]
    %v1385 = vld [vmem:[#allocation11 + $0x430] sm:$0xff]
    %v1386 = vld [vmem:[#allocation11 + $0x438] sm:$0xff]
    %v1387 = vld [vmem:[#allocation11 + $0x440] sm:$0xff]
    %v1388 = vld [vmem:[#allocation11 + $0x448] sm:$0xff]
    %v1389 = vld [vmem:[#allocation11 + $0x450] sm:$0xff]
    %v1390 = vld [vmem:[#allocation11 + $0x458] sm:$0xff]
    %v1391 = vld [vmem:[#allocation11 + $0x460] sm:$0xff]
    %v1392 = vld [vmem:[#allocation11 + $0x468] sm:$0xff]
    %v1393 = vld [vmem:[#allocation11 + $0x470] sm:$0xff]
    %v1394 = vld [vmem:[#allocation11 + $0x478] sm:$0xff]
    %v1395 = vld [vmem:[#allocation11 + $0x480] sm:$0xff]
    %v1396 = vld [vmem:[#allocation11 + $0x488] sm:$0xff]
    %v1397 = vld [vmem:[#allocation11 + $0x490] sm:$0xff]
    %v1398 = vld [vmem:[#allocation11 + $0x498] sm:$0xff]
    %v1399 = vld [vmem:[#allocation11 + $0x4a0] sm:$0xff]
    %v1400 = vld [vmem:[#allocation11 + $0x4a8] sm:$0xff]
    %v1401 = vld [vmem:[#allocation11 + $0x4b0] sm:$0xff]
    %v1402 = vld [vmem:[#allocation11 + $0x4b8] sm:$0xff]
    %v1403 = vld [vmem:[#allocation11 + $0x4c0] sm:$0xff]
    %v1404 = vld [vmem:[#allocation11 + $0x4c8] sm:$0xff]
    %v1405 = vld [vmem:[#allocation11 + $0x4d0] sm:$0xff]
    %v1406 = vld [vmem:[#allocation11 + $0x4d8] sm:$0xff]
    %v1407 = vld [vmem:[#allocation11 + $0x4e0] sm:$0xff]
    %v1408 = vld [vmem:[#allocation11 + $0x4e8] sm:$0xff]
    %v1409 = vld [vmem:[#allocation11 + $0x4f0] sm:$0xff]
    %v1410 = vld [vmem:[#allocation11 + $0x4f8] sm:$0xff]
    %v1411 = vld [vmem:[#allocation11 + $0x500] sm:$0xff]
    %v1412 = vld [vmem:[#allocation11 + $0x508] sm:$0xff]
    %v1413 = vld [vmem:[#allocation11 + $0x510] sm:$0xff]
    %v1414 = vld [vmem:[#allocation11 + $0x518] sm:$0xff]
    %v1415 = vld [vmem:[#allocation11 + $0x520] sm:$0xff]
    %v1416 = vld [vmem:[#allocation11 + $0x528] sm:$0xff]
    %v1417 = vld [vmem:[#allocation11 + $0x530] sm:$0xff]
    %v1418 = vld [vmem:[#allocation11 + $0x538] sm:$0xff]
    %v1419 = vld [vmem:[#allocation11 + $0x540] sm:$0xff]
    %v1420 = vld [vmem:[#allocation11 + $0x548] sm:$0xff]
    %v1421 = vld [vmem:[#allocation11 + $0x550] sm:$0xff]
    %v1422 = vld [vmem:[#allocation11 + $0x558] sm:$0xff]
    %v1423 = vld [vmem:[#allocation11 + $0x560] sm:$0xff]
    %v1424 = vld [vmem:[#allocation11 + $0x568] sm:$0xff]
    %v1425 = vld [vmem:[#allocation11 + $0x570] sm:$0xff]
    %v1426 = vld [vmem:[#allocation11 + $0x578] sm:$0xff]
    %v1427 = vld [vmem:[#allocation11 + $0x580] sm:$0xff]
    %v1428 = vld [vmem:[#allocation11 + $0x588] sm:$0xff]
    %v1429 = vld [vmem:[#allocation11 + $0x590] sm:$0xff]
    %v1430 = vld [vmem:[#allocation11 + $0x598] sm:$0xff]
    %v1431 = vld [vmem:[#allocation11 + $0x5a0] sm:$0xff]
    %v1432 = vld [vmem:[#allocation11 + $0x5a8] sm:$0xff]
    %v1433 = vld [vmem:[#allocation11 + $0x5b0] sm:$0xff]
    %v1434 = vld [vmem:[#allocation11 + $0x5b8] sm:$0xff]
    %v1435 = vld [vmem:[#allocation11 + $0x5c0] sm:$0xff]
    %v1436 = vld [vmem:[#allocation11 + $0x5c8] sm:$0xff]
    %v1437 = vld [vmem:[#allocation11 + $0x5d0] sm:$0xff]
    %v1438 = vld [vmem:[#allocation11 + $0x5d8] sm:$0xff]
    %v1439 = vld [vmem:[#allocation11 + $0x5e0] sm:$0xff]
    %v1440 = vld [vmem:[#allocation11 + $0x5e8] sm:$0xff]
    %v1441 = vld [vmem:[#allocation11 + $0x5f0] sm:$0xff]
    %v1442 = vld [vmem:[#allocation11 + $0x5f8] sm:$0xff]
    %v1443 = vld [vmem:[#allocation11 + $0x600] sm:$0xff]
    %v1444 = vld [vmem:[#allocation11 + $0x608] sm:$0xff]
    %v1445 = vld [vmem:[#allocation11 + $0x610] sm:$0xff]
    %v1446 = vld [vmem:[#allocation11 + $0x618] sm:$0xff]
    %v1447 = vld [vmem:[#allocation11 + $0x620] sm:$0xff]
    %v1448 = vld [vmem:[#allocation11 + $0x628] sm:$0xff]
    %v1449 = vld [vmem:[#allocation11 + $0x630] sm:$0xff]
    %v1450 = vld [vmem:[#allocation11 + $0x638] sm:$0xff]
    %v1451 = vld [vmem:[#allocation11 + $0x640] sm:$0xff]
    %v1452 = vld [vmem:[#allocation11 + $0x648] sm:$0xff]
    %v1453 = vld [vmem:[#allocation11 + $0x650] sm:$0xff]
    %v1454 = vld [vmem:[#allocation11 + $0x658] sm:$0xff]
    %v1455 = vld [vmem:[#allocation11 + $0x660] sm:$0xff]
    %v1456 = vld [vmem:[#allocation11 + $0x668] sm:$0xff]
    %v1457 = vld [vmem:[#allocation11 + $0x670] sm:$0xff]
    %v1458 = vld [vmem:[#allocation11 + $0x678] sm:$0xff]
    %v1459 = vld [vmem:[#allocation11 + $0x680] sm:$0xff]
    %v1460 = vld [vmem:[#allocation11 + $0x688] sm:$0xff]
    %v1461 = vld [vmem:[#allocation11 + $0x690] sm:$0xff]
    %v1462 = vld [vmem:[#allocation11 + $0x698] sm:$0xff]
    %v1463 = vld [vmem:[#allocation11 + $0x6a0] sm:$0xff]
    %v1464 = vld [vmem:[#allocation11 + $0x6a8] sm:$0xff]
    %v1465 = vld [vmem:[#allocation11 + $0x6b0] sm:$0xff]
    %v1466 = vld [vmem:[#allocation11 + $0x6b8] sm:$0xff]
    %v1467 = vld [vmem:[#allocation11 + $0x6c0] sm:$0xff]
    %v1468 = vld [vmem:[#allocation11 + $0x6c8] sm:$0xff]
    %v1469 = vld [vmem:[#allocation11 + $0x6d0] sm:$0xff]
    %v1470 = vld [vmem:[#allocation11 + $0x6d8] sm:$0xff]
    %v1471 = vld [vmem:[#allocation11 + $0x6e0] sm:$0xff]
    %v1472 = vld [vmem:[#allocation11 + $0x6e8] sm:$0xff]
    %v1473 = vld [vmem:[#allocation11 + $0x6f0] sm:$0xff]
    %v1474 = vld [vmem:[#allocation11 + $0x6f8] sm:$0xff]
    %v1475 = vld [vmem:[#allocation11 + $0x700] sm:$0xff]
    %v1476 = vld [vmem:[#allocation11 + $0x708] sm:$0xff]
    %v1477 = vld [vmem:[#allocation11 + $0x710] sm:$0xff]
    %v1478 = vld [vmem:[#allocation11 + $0x718] sm:$0xff]
    %v1479 = vld [vmem:[#allocation11 + $0x720] sm:$0xff]
    %v1480 = vld [vmem:[#allocation11 + $0x728] sm:$0xff]
    %v1481 = vld [vmem:[#allocation11 + $0x730] sm:$0xff]
    %v1482 = vld [vmem:[#allocation11 + $0x738] sm:$0xff]
    %v1483 = vld [vmem:[#allocation11 + $0x740] sm:$0xff]
    %v1484 = vld [vmem:[#allocation11 + $0x748] sm:$0xff]
    %v1485 = vld [vmem:[#allocation11 + $0x750] sm:$0xff]
    %v1486 = vld [vmem:[#allocation11 + $0x758] sm:$0xff]
    %v1487 = vld [vmem:[#allocation11 + $0x760] sm:$0xff]
    %v1488 = vld [vmem:[#allocation11 + $0x768] sm:$0xff]
    %v1489 = vld [vmem:[#allocation11 + $0x770] sm:$0xff]
    %v1490 = vld [vmem:[#allocation11 + $0x778] sm:$0xff]
    %v1491 = vld [vmem:[#allocation11 + $0x780] sm:$0xff]
    %v1492 = vld [vmem:[#allocation11 + $0x788] sm:$0xff]
    %v1493 = vld [vmem:[#allocation11 + $0x790] sm:$0xff]
    %v1494 = vld [vmem:[#allocation11 + $0x798] sm:$0xff]
    %v1495 = vld [vmem:[#allocation11 + $0x7a0] sm:$0xff]
    %v1496 = vld [vmem:[#allocation11 + $0x7a8] sm:$0xff]
    %v1497 = vld [vmem:[#allocation11 + $0x7b0] sm:$0xff]
    %v1498 = vld [vmem:[#allocation11 + $0x7b8] sm:$0xff]
    %v1499 = vld [vmem:[#allocation11 + $0x7c0] sm:$0xff]
    %v1500 = vld [vmem:[#allocation11 + $0x7c8] sm:$0xff]
    %v1501 = vld [vmem:[#allocation11 + $0x7d0] sm:$0xff]
    %v1502 = vld [vmem:[#allocation11 + $0x7d8] sm:$0xff]
    %v1503 = vld [vmem:[#allocation11 + $0x7e0] sm:$0xff]
    %v1504 = vld [vmem:[#allocation11 + $0x7e8] sm:$0xff]
    %v1505 = vld [vmem:[#allocation11 + $0x7f0] sm:$0xff]
    %v1506 = vld [vmem:[#allocation11 + $0x7f8] sm:$0xff]
    %v1507 = vld [vmem:[#allocation11 + $0x800] sm:$0xff]
    %v1508 = vld [vmem:[#allocation11 + $0x808] sm:$0xff]
    %v1509 = vld [vmem:[#allocation11 + $0x810] sm:$0xff]
    %v1510 = vld [vmem:[#allocation11 + $0x818] sm:$0xff]
    %v1511 = vld [vmem:[#allocation11 + $0x820] sm:$0xff]
    %v1512 = vld [vmem:[#allocation11 + $0x828] sm:$0xff]
    %v1513 = vld [vmem:[#allocation11 + $0x830] sm:$0xff]
    %v1514 = vld [vmem:[#allocation11 + $0x838] sm:$0xff]
    %v1515 = vld [vmem:[#allocation11 + $0x840] sm:$0xff]
    %v1516 = vld [vmem:[#allocation11 + $0x848] sm:$0xff]
    %v1517 = vld [vmem:[#allocation11 + $0x850] sm:$0xff]
    %v1518 = vld [vmem:[#allocation11 + $0x858] sm:$0xff]
    %v1519 = vld [vmem:[#allocation11 + $0x860] sm:$0xff]
    %v1520 = vld [vmem:[#allocation11 + $0x868] sm:$0xff]
    %v1521 = vld [vmem:[#allocation11 + $0x870] sm:$0xff]
    %v1522 = vld [vmem:[#allocation11 + $0x878] sm:$0xff]
    %v1523 = vld [vmem:[#allocation11 + $0x880] sm:$0xff]
    %v1524 = vld [vmem:[#allocation11 + $0x888] sm:$0xff]
    %v1525 = vld [vmem:[#allocation11 + $0x890] sm:$0xff]
    %v1526 = vld [vmem:[#allocation11 + $0x898] sm:$0xff]
    %v1527 = vld [vmem:[#allocation11 + $0x8a0] sm:$0xff]
    %v1528 = vld [vmem:[#allocation11 + $0x8a8] sm:$0xff]
    %v1529 = vld [vmem:[#allocation11 + $0x8b0] sm:$0xff]
    %v1530 = vld [vmem:[#allocation11 + $0x8b8] sm:$0xff]
    %v1531 = vld [vmem:[#allocation11 + $0x8c0] sm:$0xff]
    %v1532 = vld [vmem:[#allocation11 + $0x8c8] sm:$0xff]
    %v1533 = vld [vmem:[#allocation11 + $0x8d0] sm:$0xff]
    %v1534 = vld [vmem:[#allocation11 + $0x8d8] sm:$0xff]
    %v1535 = vld [vmem:[#allocation11 + $0x8e0] sm:$0xff]
    %v1536 = vld [vmem:[#allocation11 + $0x8e8] sm:$0xff]
    %v1537 = vld [vmem:[#allocation11 + $0x8f0] sm:$0xff]
    %v1538 = vld [vmem:[#allocation11 + $0x8f8] sm:$0xff]
    %v1539 = vld [vmem:[#allocation11 + $0x900] sm:$0xff]
    %v1540 = vld [vmem:[#allocation11 + $0x908] sm:$0xff]
    %v1541 = vld [vmem:[#allocation11 + $0x910] sm:$0xff]
    %v1542 = vld [vmem:[#allocation11 + $0x918] sm:$0xff]
    %v1543 = vld [vmem:[#allocation11 + $0x920] sm:$0xff]
    %v1544 = vld [vmem:[#allocation11 + $0x928] sm:$0xff]
    %v1545 = vld [vmem:[#allocation11 + $0x930] sm:$0xff]
    %v1546 = vld [vmem:[#allocation11 + $0x938] sm:$0xff]
    %v1547 = vld [vmem:[#allocation11 + $0x940] sm:$0xff]
    %v1548 = vld [vmem:[#allocation11 + $0x948] sm:$0xff]
    %v1549 = vld [vmem:[#allocation11 + $0x950] sm:$0xff]
    %v1550 = vld [vmem:[#allocation11 + $0x958] sm:$0xff]
    %v1551 = vld [vmem:[#allocation11 + $0x960] sm:$0xff]
    %v1552 = vld [vmem:[#allocation11 + $0x968] sm:$0xff]
    %v1553 = vld [vmem:[#allocation11 + $0x970] sm:$0xff]
    %v1554 = vld [vmem:[#allocation11 + $0x978] sm:$0xff]
    %v1555 = vld [vmem:[#allocation11 + $0x980] sm:$0xff]
    %v1556 = vld [vmem:[#allocation11 + $0x988] sm:$0xff]
    %v1557 = vld [vmem:[#allocation11 + $0x990] sm:$0xff]
    %v1558 = vld [vmem:[#allocation11 + $0x998] sm:$0xff]
    %v1559 = vld [vmem:[#allocation11 + $0x9a0] sm:$0xff]
    %v1560 = vld [vmem:[#allocation11 + $0x9a8] sm:$0xff]
    %v1561 = vld [vmem:[#allocation11 + $0x9b0] sm:$0xff]
    %v1562 = vld [vmem:[#allocation11 + $0x9b8] sm:$0xff]
    %v1563 = vld [vmem:[#allocation11 + $0x9c0] sm:$0xff]
    %v1564 = vld [vmem:[#allocation11 + $0x9c8] sm:$0xff]
    %v1565 = vld [vmem:[#allocation11 + $0x9d0] sm:$0xff]
    %v1566 = vld [vmem:[#allocation11 + $0x9d8] sm:$0xff]
    %v1567 = vld [vmem:[#allocation11 + $0x9e0] sm:$0xff]
    %v1568 = vld [vmem:[#allocation11 + $0x9e8] sm:$0xff]
    %v1569 = vld [vmem:[#allocation11 + $0x9f0] sm:$0xff]
    %v1570 = vld [vmem:[#allocation11 + $0x9f8] sm:$0xff]
    %v1571 = vld [vmem:[#allocation11 + $0xa00] sm:$0xff]
    %v1572 = vld [vmem:[#allocation11 + $0xa08] sm:$0xff]
    %v1573 = vld [vmem:[#allocation11 + $0xa10] sm:$0xff]
    %v1574 = vld [vmem:[#allocation11 + $0xa18] sm:$0xff]
    %v1575 = vld [vmem:[#allocation11 + $0xa20] sm:$0xff]
    %v1576 = vld [vmem:[#allocation11 + $0xa28] sm:$0xff]
    %v1577 = vld [vmem:[#allocation11 + $0xa30] sm:$0xff]
    %v1578 = vld [vmem:[#allocation11 + $0xa38] sm:$0xff]
    %v1579 = vld [vmem:[#allocation11 + $0xa40] sm:$0xff]
    %v1580 = vld [vmem:[#allocation11 + $0xa48] sm:$0xff]
    %v1581 = vld [vmem:[#allocation11 + $0xa50] sm:$0xff]
    %v1582 = vld [vmem:[#allocation11 + $0xa58] sm:$0xff]
    %v1583 = vld [vmem:[#allocation11 + $0xa60] sm:$0xff]
    %v1584 = vld [vmem:[#allocation11 + $0xa68] sm:$0xff]
    %v1585 = vld [vmem:[#allocation11 + $0xa70] sm:$0xff]
    %v1586 = vld [vmem:[#allocation11 + $0xa78] sm:$0xff]
    %v1587 = vld [vmem:[#allocation11 + $0xa80] sm:$0xff]
    %v1588 = vld [vmem:[#allocation11 + $0xa88] sm:$0xff]
    %v1589 = vld [vmem:[#allocation11 + $0xa90] sm:$0xff]
    %v1590 = vld [vmem:[#allocation11 + $0xa98] sm:$0xff]
    %v1591 = vld [vmem:[#allocation11 + $0xaa0] sm:$0xff]
    %v1592 = vld [vmem:[#allocation11 + $0xaa8] sm:$0xff]
    %v1593 = vld [vmem:[#allocation11 + $0xab0] sm:$0xff]
    %v1594 = vld [vmem:[#allocation11 + $0xab8] sm:$0xff]
    %v1595 = vld [vmem:[#allocation11 + $0xac0] sm:$0xff]
    %v1596 = vld [vmem:[#allocation11 + $0xac8] sm:$0xff]
    %v1597 = vld [vmem:[#allocation11 + $0xad0] sm:$0xff]
    %v1598 = vld [vmem:[#allocation11 + $0xad8] sm:$0xff]
    %v1599 = vld [vmem:[#allocation11 + $0xae0] sm:$0xff]
    %v1600 = vld [vmem:[#allocation11 + $0xae8] sm:$0xff]
    %v1601 = vld [vmem:[#allocation11 + $0xaf0] sm:$0xff]
    %v1602 = vld [vmem:[#allocation11 + $0xaf8] sm:$0xff]
    %v1603 = vld [vmem:[#allocation11 + $0xb00] sm:$0xff]
    %v1604 = vld [vmem:[#allocation11 + $0xb08] sm:$0xff]
    %v1605 = vld [vmem:[#allocation11 + $0xb10] sm:$0xff]
    %v1606 = vld [vmem:[#allocation11 + $0xb18] sm:$0xff]
    %v1607 = vld [vmem:[#allocation11 + $0xb20] sm:$0xff]
    %v1608 = vld [vmem:[#allocation11 + $0xb28] sm:$0xff]
    %v1609 = vld [vmem:[#allocation11 + $0xb30] sm:$0xff]
    %v1610 = vld [vmem:[#allocation11 + $0xb38] sm:$0xff]
    %v1611 = vld [vmem:[#allocation11 + $0xb40] sm:$0xff]
    %v1612 = vld [vmem:[#allocation11 + $0xb48] sm:$0xff]
    %v1613 = vld [vmem:[#allocation11 + $0xb50] sm:$0xff]
    %v1614 = vld [vmem:[#allocation11 + $0xb58] sm:$0xff]
    %v1615 = vld [vmem:[#allocation11 + $0xb60] sm:$0xff]
    %v1616 = vld [vmem:[#allocation11 + $0xb68] sm:$0xff]
    %v1617 = vld [vmem:[#allocation11 + $0xb70] sm:$0xff]
    %v1618 = vld [vmem:[#allocation11 + $0xb78] sm:$0xff]
    %v1619 = vld [vmem:[#allocation11 + $0xb80] sm:$0xff]
    %v1620 = vld [vmem:[#allocation11 + $0xb88] sm:$0xff]
    %v1621 = vld [vmem:[#allocation11 + $0xb90] sm:$0xff]
    %v1622 = vld [vmem:[#allocation11 + $0xb98] sm:$0xff]
    %v1623 = vld [vmem:[#allocation11 + $0xba0] sm:$0xff]
    %v1624 = vld [vmem:[#allocation11 + $0xba8] sm:$0xff]
    %v1625 = vld [vmem:[#allocation11 + $0xbb0] sm:$0xff]
    %v1626 = vld [vmem:[#allocation11 + $0xbb8] sm:$0xff]
    %v1627 = vld [vmem:[#allocation11 + $0xbc0] sm:$0xff]
    %v1628 = vld [vmem:[#allocation11 + $0xbc8] sm:$0xff]
    %v1629 = vld [vmem:[#allocation11 + $0xbd0] sm:$0xff]
    %v1630 = vld [vmem:[#allocation11 + $0xbd8] sm:$0xff]
    %v1631 = vld [vmem:[#allocation11 + $0xbe0] sm:$0xff]
    %v1632 = vld [vmem:[#allocation11 + $0xbe8] sm:$0xff]
    %v1633 = vld [vmem:[#allocation11 + $0xbf0] sm:$0xff]
    %v1634 = vld [vmem:[#allocation11 + $0xbf8] sm:$0xff]
    %v1635 = vld [vmem:[#allocation11 + $0xc00] sm:$0xff]
    %v1636 = vld [vmem:[#allocation11 + $0xc08] sm:$0xff]
    %v1637 = vld [vmem:[#allocation11 + $0xc10] sm:$0xff]
    %v1638 = vld [vmem:[#allocation11 + $0xc18] sm:$0xff]
    %v1639 = vld [vmem:[#allocation11 + $0xc20] sm:$0xff]
    %v1640 = vld [vmem:[#allocation11 + $0xc28] sm:$0xff]
    %v1641 = vld [vmem:[#allocation11 + $0xc30] sm:$0xff]
    %v1642 = vld [vmem:[#allocation11 + $0xc38] sm:$0xff]
    %v1643 = vld [vmem:[#allocation11 + $0xc40] sm:$0xff]
    %v1644 = vld [vmem:[#allocation11 + $0xc48] sm:$0xff]
    %v1645 = vld [vmem:[#allocation11 + $0xc50] sm:$0xff]
    %v1646 = vld [vmem:[#allocation11 + $0xc58] sm:$0xff]
    %v1647 = vld [vmem:[#allocation11 + $0xc60] sm:$0xff]
    %v1648 = vld [vmem:[#allocation11 + $0xc68] sm:$0xff]
    %v1649 = vld [vmem:[#allocation11 + $0xc70] sm:$0xff]
    %v1650 = vld [vmem:[#allocation11 + $0xc78] sm:$0xff]
    %v1651 = vld [vmem:[#allocation11 + $0xc80] sm:$0xff]
    %v1652 = vld [vmem:[#allocation11 + $0xc88] sm:$0xff]
    %v1653 = vld [vmem:[#allocation11 + $0xc90] sm:$0xff]
    %v1654 = vld [vmem:[#allocation11 + $0xc98] sm:$0xff]
    %v1655 = vld [vmem:[#allocation11 + $0xca0] sm:$0xff]
    %v1656 = vld [vmem:[#allocation11 + $0xca8] sm:$0xff]
    %v1657 = vld [vmem:[#allocation11 + $0xcb0] sm:$0xff]
    %v1658 = vld [vmem:[#allocation11 + $0xcb8] sm:$0xff]
    %v1659 = vld [vmem:[#allocation11 + $0xcc0] sm:$0xff]
    %v1660 = vld [vmem:[#allocation11 + $0xcc8] sm:$0xff]
    %v1661 = vld [vmem:[#allocation11 + $0xcd0] sm:$0xff]
    %v1662 = vld [vmem:[#allocation11 + $0xcd8] sm:$0xff]
    %v1663 = vld [vmem:[#allocation11 + $0xce0] sm:$0xff]
    %v1664 = vld [vmem:[#allocation11 + $0xce8] sm:$0xff]
    %v1665 = vld [vmem:[#allocation11 + $0xcf0] sm:$0xff]
    %v1666 = vld [vmem:[#allocation11 + $0xcf8] sm:$0xff]
    %v1667 = vld [vmem:[#allocation11 + $0xd00] sm:$0xff]
    %v1668 = vld [vmem:[#allocation11 + $0xd08] sm:$0xff]
    %v1669 = vld [vmem:[#allocation11 + $0xd10] sm:$0xff]
    %v1670 = vld [vmem:[#allocation11 + $0xd18] sm:$0xff]
    %v1671 = vld [vmem:[#allocation11 + $0xd20] sm:$0xff]
    %v1672 = vld [vmem:[#allocation11 + $0xd28] sm:$0xff]
    %v1673 = vld [vmem:[#allocation11 + $0xd30] sm:$0xff]
    %v1674 = vld [vmem:[#allocation11 + $0xd38] sm:$0xff]
    %v1675 = vld [vmem:[#allocation11 + $0xd40] sm:$0xff]
    %v1676 = vld [vmem:[#allocation11 + $0xd48] sm:$0xff]
    %v1677 = vld [vmem:[#allocation11 + $0xd50] sm:$0xff]
    %v1678 = vld [vmem:[#allocation11 + $0xd58] sm:$0xff]
    %v1679 = vld [vmem:[#allocation11 + $0xd60] sm:$0xff]
    %v1680 = vld [vmem:[#allocation11 + $0xd68] sm:$0xff]
    %v1681 = vld [vmem:[#allocation11 + $0xd70] sm:$0xff]
    %v1682 = vld [vmem:[#allocation11 + $0xd78] sm:$0xff]
    %v1683 = vld [vmem:[#allocation11 + $0xd80] sm:$0xff]
    %v1684 = vld [vmem:[#allocation11 + $0xd88] sm:$0xff]
    %v1685 = vld [vmem:[#allocation11 + $0xd90] sm:$0xff]
    %v1686 = vld [vmem:[#allocation11 + $0xd98] sm:$0xff]
    %v1687 = vld [vmem:[#allocation11 + $0xda0] sm:$0xff]
    %v1688 = vld [vmem:[#allocation11 + $0xda8] sm:$0xff]
    %v1689 = vld [vmem:[#allocation11 + $0xdb0] sm:$0xff]
    %v1690 = vld [vmem:[#allocation11 + $0xdb8] sm:$0xff]
    %v1691 = vld [vmem:[#allocation11 + $0xdc0] sm:$0xff]
    %v1692 = vld [vmem:[#allocation11 + $0xdc8] sm:$0xff]
    %v1693 = vld [vmem:[#allocation11 + $0xdd0] sm:$0xff]
    %v1694 = vld [vmem:[#allocation11 + $0xdd8] sm:$0xff]
    %v1695 = vld [vmem:[#allocation11 + $0xde0] sm:$0xff]
    %v1696 = vld [vmem:[#allocation11 + $0xde8] sm:$0xff]
    %v1697 = vld [vmem:[#allocation11 + $0xdf0] sm:$0xff]
    %v1698 = vld [vmem:[#allocation11 + $0xdf8] sm:$0xff]
    %v1699 = vld [vmem:[#allocation11 + $0xe00] sm:$0xff]
    %v1700 = vld [vmem:[#allocation11 + $0xe08] sm:$0xff]
    %v1701 = vld [vmem:[#allocation11 + $0xe10] sm:$0xff]
    %v1702 = vld [vmem:[#allocation11 + $0xe18] sm:$0xff]
    %v1703 = vld [vmem:[#allocation11 + $0xe20] sm:$0xff]
    %v1704 = vld [vmem:[#allocation11 + $0xe28] sm:$0xff]
    %v1705 = vld [vmem:[#allocation11 + $0xe30] sm:$0xff]
    %v1706 = vld [vmem:[#allocation11 + $0xe38] sm:$0xff]
    %v1707 = vld [vmem:[#allocation11 + $0xe40] sm:$0xff]
    %v1708 = vld [vmem:[#allocation11 + $0xe48] sm:$0xff]
    %v1709 = vld [vmem:[#allocation11 + $0xe50] sm:$0xff]
    %v1710 = vld [vmem:[#allocation11 + $0xe58] sm:$0xff]
    %v1711 = vld [vmem:[#allocation11 + $0xe60] sm:$0xff]
    %v1712 = vld [vmem:[#allocation11 + $0xe68] sm:$0xff]
    %v1713 = vld [vmem:[#allocation11 + $0xe70] sm:$0xff]
    %v1714 = vld [vmem:[#allocation11 + $0xe78] sm:$0xff]
    %v1715 = vld [vmem:[#allocation11 + $0xe80] sm:$0xff]
    %v1716 = vld [vmem:[#allocation11 + $0xe88] sm:$0xff]
    %v1717 = vld [vmem:[#allocation11 + $0xe90] sm:$0xff]
    %v1718 = vld [vmem:[#allocation11 + $0xe98] sm:$0xff]
    %v1719 = vld [vmem:[#allocation11 + $0xea0] sm:$0xff]
    %v1720 = vld [vmem:[#allocation11 + $0xea8] sm:$0xff]
    %v1721 = vld [vmem:[#allocation11 + $0xeb0] sm:$0xff]
    %v1722 = vld [vmem:[#allocation11 + $0xeb8] sm:$0xff]
    %v1723 = vld [vmem:[#allocation11 + $0xec0] sm:$0xff]
    %v1724 = vld [vmem:[#allocation11 + $0xec8] sm:$0xff]
    %v1725 = vld [vmem:[#allocation11 + $0xed0] sm:$0xff]
    %v1726 = vld [vmem:[#allocation11 + $0xed8] sm:$0xff]
    %v1727 = vld [vmem:[#allocation11 + $0xee0] sm:$0xff]
    %v1728 = vld [vmem:[#allocation11 + $0xee8] sm:$0xff]
    %v1729 = vld [vmem:[#allocation11 + $0xef0] sm:$0xff]
    %v1730 = vld [vmem:[#allocation11 + $0xef8] sm:$0xff]
    %v1731 = vld [vmem:[#allocation11 + $0xf00] sm:$0xff]
    %v1732 = vld [vmem:[#allocation11 + $0xf08] sm:$0xff]
    %v1733 = vld [vmem:[#allocation11 + $0xf10] sm:$0xff]
    %v1734 = vld [vmem:[#allocation11 + $0xf18] sm:$0xff]
    %v1735 = vld [vmem:[#allocation11 + $0xf20] sm:$0xff]
    %v1736 = vld [vmem:[#allocation11 + $0xf28] sm:$0xff]
    %v1737 = vld [vmem:[#allocation11 + $0xf30] sm:$0xff]
    %v1738 = vld [vmem:[#allocation11 + $0xf38] sm:$0xff]
    %v1739 = vld [vmem:[#allocation11 + $0xf40] sm:$0xff]
    %v1740 = vld [vmem:[#allocation11 + $0xf48] sm:$0xff]
    %v1741 = vld [vmem:[#allocation11 + $0xf50] sm:$0xff]
    %v1742 = vld [vmem:[#allocation11 + $0xf58] sm:$0xff]
    %v1743 = vld [vmem:[#allocation11 + $0xf60] sm:$0xff]
    %v1744 = vld [vmem:[#allocation11 + $0xf68] sm:$0xff]
    %v1745 = vld [vmem:[#allocation11 + $0xf70] sm:$0xff]
    %v1746 = vld [vmem:[#allocation11 + $0xf78] sm:$0xff]
    %v1747 = vld [vmem:[#allocation11 + $0xf80] sm:$0xff]
    %v1748 = vld [vmem:[#allocation11 + $0xf88] sm:$0xff]
    %v1749 = vld [vmem:[#allocation11 + $0xf90] sm:$0xff]
    %v1750 = vld [vmem:[#allocation11 + $0xf98] sm:$0xff]
    %v1751 = vld [vmem:[#allocation11 + $0xfa0] sm:$0xff]
    %v1752 = vld [vmem:[#allocation11 + $0xfa8] sm:$0xff]
    %v1753 = vld [vmem:[#allocation11 + $0xfb0] sm:$0xff]
    %v1754 = vld [vmem:[#allocation11 + $0xfb8] sm:$0xff]
    %v1755 = vld [vmem:[#allocation11 + $0xfc0] sm:$0xff]
    %v1756 = vld [vmem:[#allocation11 + $0xfc8] sm:$0xff]
    %v1757 = vld [vmem:[#allocation11 + $0xfd0] sm:$0xff]
    %v1758 = vld [vmem:[#allocation11 + $0xfd8] sm:$0xff]
    %v1759 = vld [vmem:[#allocation11 + $0xfe0] sm:$0xff]
    %v1760 = vld [vmem:[#allocation11 + $0xfe8] sm:$0xff]
    %v1761 = vld [vmem:[#allocation11 + $0xff0] sm:$0xff]
    %v1762 = vld [vmem:[#allocation11 + $0xff8] sm:$0xff]
    %v1763 = vld [vmem:[#allocation13] sm:$0xff]
    %v1765 = vlaneseq
    %v1766 = vshrl.u32 %v1765, 7
    %v1767 = vsub.s32 0, %v1766
    %v1768 = vrot.slane %v1763, %v1767
    %v1769 = vlaneseq
    %v1770 = vshrl.u32 %v1769, 7
    %v1771 = vsub.s32 1, %v1770
    %v1772 = vrot.slane %v1763, %v1771
    %v1773 = vlaneseq
    %v1774 = vshrl.u32 %v1773, 7
    %v1775 = vsub.s32 2, %v1774
    %v1776 = vrot.slane %v1763, %v1775
    %v1777 = vlaneseq
    %v1778 = vshrl.u32 %v1777, 7
    %v1779 = vsub.s32 3, %v1778
    %v1780 = vrot.slane %v1763, %v1779
    %v1781 = vlaneseq
    %v1782 = vshrl.u32 %v1781, 7
    %v1783 = vsub.s32 4, %v1782
    %v1784 = vrot.slane %v1763, %v1783
    %v1785 = vlaneseq
    %v1786 = vshrl.u32 %v1785, 7
    %v1787 = vsub.s32 5, %v1786
    %v1788 = vrot.slane %v1763, %v1787
    %v1789 = vlaneseq
    %v1790 = vshrl.u32 %v1789, 7
    %v1791 = vsub.s32 6, %v1790
    %v1792 = vrot.slane %v1763, %v1791
    %v1793 = vlaneseq
    %v1794 = vshrl.u32 %v1793, 7
    %v1795 = vsub.s32 7, %v1794
    %v1796 = vrot.slane %v1763, %v1795
    %v2317 = vunpack.c.l.b16 %v1251
    %v2318 = vunpack.c.h.b16 %v1251
    %v2319 = vunpack.c.l.b16 %v1252
    %v2320 = vunpack.c.h.b16 %v1252
    %v2321 = vunpack.c.l.b16 %v1253
    %v2322 = vunpack.c.h.b16 %v1253
    %v2323 = vunpack.c.l.b16 %v1254
    %v2324 = vunpack.c.h.b16 %v1254
    %v2325 = vunpack.c.l.b16 %v1255
    %v2326 = vunpack.c.h.b16 %v1255
    %v2327 = vunpack.c.l.b16 %v1256
    %v2328 = vunpack.c.h.b16 %v1256
    %v2329 = vunpack.c.l.b16 %v1257
    %v2330 = vunpack.c.h.b16 %v1257
    %v2331 = vunpack.c.l.b16 %v1258
    %v2332 = vunpack.c.h.b16 %v1258
    %v2333 = vunpack.c.l.b16 %v1259
    %v2334 = vunpack.c.h.b16 %v1259
    %v2335 = vunpack.c.l.b16 %v1260
    %v2336 = vunpack.c.h.b16 %v1260
    %v2337 = vunpack.c.l.b16 %v1261
    %v2338 = vunpack.c.h.b16 %v1261
    %v2339 = vunpack.c.l.b16 %v1262
    %v2340 = vunpack.c.h.b16 %v1262
    %v2341 = vunpack.c.l.b16 %v1263
    %v2342 = vunpack.c.h.b16 %v1263
    %v2343 = vunpack.c.l.b16 %v1264
    %v2344 = vunpack.c.h.b16 %v1264
    %v2345 = vunpack.c.l.b16 %v1265
    %v2346 = vunpack.c.h.b16 %v1265
    %v2347 = vunpack.c.l.b16 %v1266
    %v2348 = vunpack.c.h.b16 %v1266
    %v2349 = vunpack.c.l.b16 %v1267
    %v2350 = vunpack.c.h.b16 %v1267
    %v2351 = vunpack.c.l.b16 %v1268
    %v2352 = vunpack.c.h.b16 %v1268
    %v2353 = vunpack.c.l.b16 %v1269
    %v2354 = vunpack.c.h.b16 %v1269
    %v2355 = vunpack.c.l.b16 %v1270
    %v2356 = vunpack.c.h.b16 %v1270
    %v2357 = vunpack.c.l.b16 %v1271
    %v2358 = vunpack.c.h.b16 %v1271
    %v2359 = vunpack.c.l.b16 %v1272
    %v2360 = vunpack.c.h.b16 %v1272
    %v2361 = vunpack.c.l.b16 %v1273
    %v2362 = vunpack.c.h.b16 %v1273
    %v2363 = vunpack.c.l.b16 %v1274
    %v2364 = vunpack.c.h.b16 %v1274
    %v2365 = vunpack.c.l.b16 %v1275
    %v2366 = vunpack.c.h.b16 %v1275
    %v2367 = vunpack.c.l.b16 %v1276
    %v2368 = vunpack.c.h.b16 %v1276
    %v2369 = vunpack.c.l.b16 %v1277
    %v2370 = vunpack.c.h.b16 %v1277
    %v2371 = vunpack.c.l.b16 %v1278
    %v2372 = vunpack.c.h.b16 %v1278
    %v2373 = vunpack.c.l.b16 %v1279
    %v2374 = vunpack.c.h.b16 %v1279
    %v2375 = vunpack.c.l.b16 %v1280
    %v2376 = vunpack.c.h.b16 %v1280
    %v2377 = vunpack.c.l.b16 %v1281
    %v2378 = vunpack.c.h.b16 %v1281
    %v2379 = vunpack.c.l.b16 %v1282
    %v2380 = vunpack.c.h.b16 %v1282
    %v2381 = vunpack.c.l.b16 %v1283
    %v2382 = vunpack.c.h.b16 %v1283
    %v2383 = vunpack.c.l.b16 %v1284
    %v2384 = vunpack.c.h.b16 %v1284
    %v2385 = vunpack.c.l.b16 %v1285
    %v2386 = vunpack.c.h.b16 %v1285
    %v2387 = vunpack.c.l.b16 %v1286
    %v2388 = vunpack.c.h.b16 %v1286
    %v2389 = vunpack.c.l.b16 %v1287
    %v2390 = vunpack.c.h.b16 %v1287
    %v2391 = vunpack.c.l.b16 %v1288
    %v2392 = vunpack.c.h.b16 %v1288
    %v2393 = vunpack.c.l.b16 %v1289
    %v2394 = vunpack.c.h.b16 %v1289
    %v2395 = vunpack.c.l.b16 %v1290
    %v2396 = vunpack.c.h.b16 %v1290
    %v2397 = vunpack.c.l.b16 %v1291
    %v2398 = vunpack.c.h.b16 %v1291
    %v2399 = vunpack.c.l.b16 %v1292
    %v2400 = vunpack.c.h.b16 %v1292
    %v2401 = vunpack.c.l.b16 %v1293
    %v2402 = vunpack.c.h.b16 %v1293
    %v2403 = vunpack.c.l.b16 %v1294
    %v2404 = vunpack.c.h.b16 %v1294
    %v2405 = vunpack.c.l.b16 %v1295
    %v2406 = vunpack.c.h.b16 %v1295
    %v2407 = vunpack.c.l.b16 %v1296
    %v2408 = vunpack.c.h.b16 %v1296
    %v2409 = vunpack.c.l.b16 %v1297
    %v2410 = vunpack.c.h.b16 %v1297
    %v2411 = vunpack.c.l.b16 %v1298
    %v2412 = vunpack.c.h.b16 %v1298
    %v2413 = vunpack.c.l.b16 %v1299
    %v2414 = vunpack.c.h.b16 %v1299
    %v2415 = vunpack.c.l.b16 %v1300
    %v2416 = vunpack.c.h.b16 %v1300
    %v2417 = vunpack.c.l.b16 %v1301
    %v2418 = vunpack.c.h.b16 %v1301
    %v2419 = vunpack.c.l.b16 %v1302
    %v2420 = vunpack.c.h.b16 %v1302
    %v2421 = vunpack.c.l.b16 %v1303
    %v2422 = vunpack.c.h.b16 %v1303
    %v2423 = vunpack.c.l.b16 %v1304
    %v2424 = vunpack.c.h.b16 %v1304
    %v2425 = vunpack.c.l.b16 %v1305
    %v2426 = vunpack.c.h.b16 %v1305
    %v2427 = vunpack.c.l.b16 %v1306
    %v2428 = vunpack.c.h.b16 %v1306
    %v2429 = vunpack.c.l.b16 %v1307
    %v2430 = vunpack.c.h.b16 %v1307
    %v2431 = vunpack.c.l.b16 %v1308
    %v2432 = vunpack.c.h.b16 %v1308
    %v2433 = vunpack.c.l.b16 %v1309
    %v2434 = vunpack.c.h.b16 %v1309
    %v2435 = vunpack.c.l.b16 %v1310
    %v2436 = vunpack.c.h.b16 %v1310
    %v2437 = vunpack.c.l.b16 %v1311
    %v2438 = vunpack.c.h.b16 %v1311
    %v2439 = vunpack.c.l.b16 %v1312
    %v2440 = vunpack.c.h.b16 %v1312
    %v2441 = vunpack.c.l.b16 %v1313
    %v2442 = vunpack.c.h.b16 %v1313
    %v2443 = vunpack.c.l.b16 %v1314
    %v2444 = vunpack.c.h.b16 %v1314
    %v2445 = vunpack.c.l.b16 %v1315
    %v2446 = vunpack.c.h.b16 %v1315
    %v2447 = vunpack.c.l.b16 %v1316
    %v2448 = vunpack.c.h.b16 %v1316
    %v2449 = vunpack.c.l.b16 %v1317
    %v2450 = vunpack.c.h.b16 %v1317
    %v2451 = vunpack.c.l.b16 %v1318
    %v2452 = vunpack.c.h.b16 %v1318
    %v2453 = vunpack.c.l.b16 %v1319
    %v2454 = vunpack.c.h.b16 %v1319
    %v2455 = vunpack.c.l.b16 %v1320
    %v2456 = vunpack.c.h.b16 %v1320
    %v2457 = vunpack.c.l.b16 %v1321
    %v2458 = vunpack.c.h.b16 %v1321
    %v2459 = vunpack.c.l.b16 %v1322
    %v2460 = vunpack.c.h.b16 %v1322
    %v2461 = vunpack.c.l.b16 %v1323
    %v2462 = vunpack.c.h.b16 %v1323
    %v2463 = vunpack.c.l.b16 %v1324
    %v2464 = vunpack.c.h.b16 %v1324
    %v2465 = vunpack.c.l.b16 %v1325
    %v2466 = vunpack.c.h.b16 %v1325
    %v2467 = vunpack.c.l.b16 %v1326
    %v2468 = vunpack.c.h.b16 %v1326
    %v2469 = vunpack.c.l.b16 %v1327
    %v2470 = vunpack.c.h.b16 %v1327
    %v2471 = vunpack.c.l.b16 %v1328
    %v2472 = vunpack.c.h.b16 %v1328
    %v2473 = vunpack.c.l.b16 %v1329
    %v2474 = vunpack.c.h.b16 %v1329
    %v2475 = vunpack.c.l.b16 %v1330
    %v2476 = vunpack.c.h.b16 %v1330
    %v2477 = vunpack.c.l.b16 %v1331
    %v2478 = vunpack.c.h.b16 %v1331
    %v2479 = vunpack.c.l.b16 %v1332
    %v2480 = vunpack.c.h.b16 %v1332
    %v2481 = vunpack.c.l.b16 %v1333
    %v2482 = vunpack.c.h.b16 %v1333
    %v2483 = vunpack.c.l.b16 %v1334
    %v2484 = vunpack.c.h.b16 %v1334
    %v2485 = vunpack.c.l.b16 %v1335
    %v2486 = vunpack.c.h.b16 %v1335
    %v2487 = vunpack.c.l.b16 %v1336
    %v2488 = vunpack.c.h.b16 %v1336
    %v2489 = vunpack.c.l.b16 %v1337
    %v2490 = vunpack.c.h.b16 %v1337
    %v2491 = vunpack.c.l.b16 %v1338
    %v2492 = vunpack.c.h.b16 %v1338
    %v2493 = vunpack.c.l.b16 %v1339
    %v2494 = vunpack.c.h.b16 %v1339
    %v2495 = vunpack.c.l.b16 %v1340
    %v2496 = vunpack.c.h.b16 %v1340
    %v2497 = vunpack.c.l.b16 %v1341
    %v2498 = vunpack.c.h.b16 %v1341
    %v2499 = vunpack.c.l.b16 %v1342
    %v2500 = vunpack.c.h.b16 %v1342
    %v2501 = vunpack.c.l.b16 %v1343
    %v2502 = vunpack.c.h.b16 %v1343
    %v2503 = vunpack.c.l.b16 %v1344
    %v2504 = vunpack.c.h.b16 %v1344
    %v2505 = vunpack.c.l.b16 %v1345
    %v2506 = vunpack.c.h.b16 %v1345
    %v2507 = vunpack.c.l.b16 %v1346
    %v2508 = vunpack.c.h.b16 %v1346
    %v2509 = vunpack.c.l.b16 %v1347
    %v2510 = vunpack.c.h.b16 %v1347
    %v2511 = vunpack.c.l.b16 %v1348
    %v2512 = vunpack.c.h.b16 %v1348
    %v2513 = vunpack.c.l.b16 %v1349
    %v2514 = vunpack.c.h.b16 %v1349
    %v2515 = vunpack.c.l.b16 %v1350
    %v2516 = vunpack.c.h.b16 %v1350
    %v2517 = vunpack.c.l.b16 %v1351
    %v2518 = vunpack.c.h.b16 %v1351
    %v2519 = vunpack.c.l.b16 %v1352
    %v2520 = vunpack.c.h.b16 %v1352
    %v2521 = vunpack.c.l.b16 %v1353
    %v2522 = vunpack.c.h.b16 %v1353
    %v2523 = vunpack.c.l.b16 %v1354
    %v2524 = vunpack.c.h.b16 %v1354
    %v2525 = vunpack.c.l.b16 %v1355
    %v2526 = vunpack.c.h.b16 %v1355
    %v2527 = vunpack.c.l.b16 %v1356
    %v2528 = vunpack.c.h.b16 %v1356
    %v2529 = vunpack.c.l.b16 %v1357
    %v2530 = vunpack.c.h.b16 %v1357
    %v2531 = vunpack.c.l.b16 %v1358
    %v2532 = vunpack.c.h.b16 %v1358
    %v2533 = vunpack.c.l.b16 %v1359
    %v2534 = vunpack.c.h.b16 %v1359
    %v2535 = vunpack.c.l.b16 %v1360
    %v2536 = vunpack.c.h.b16 %v1360
    %v2537 = vunpack.c.l.b16 %v1361
    %v2538 = vunpack.c.h.b16 %v1361
    %v2539 = vunpack.c.l.b16 %v1362
    %v2540 = vunpack.c.h.b16 %v1362
    %v2541 = vunpack.c.l.b16 %v1363
    %v2542 = vunpack.c.h.b16 %v1363
    %v2543 = vunpack.c.l.b16 %v1364
    %v2544 = vunpack.c.h.b16 %v1364
    %v2545 = vunpack.c.l.b16 %v1365
    %v2546 = vunpack.c.h.b16 %v1365
    %v2547 = vunpack.c.l.b16 %v1366
    %v2548 = vunpack.c.h.b16 %v1366
    %v2549 = vunpack.c.l.b16 %v1367
    %v2550 = vunpack.c.h.b16 %v1367
    %v2551 = vunpack.c.l.b16 %v1368
    %v2552 = vunpack.c.h.b16 %v1368
    %v2553 = vunpack.c.l.b16 %v1369
    %v2554 = vunpack.c.h.b16 %v1369
    %v2555 = vunpack.c.l.b16 %v1370
    %v2556 = vunpack.c.h.b16 %v1370
    %v2557 = vunpack.c.l.b16 %v1371
    %v2558 = vunpack.c.h.b16 %v1371
    %v2559 = vunpack.c.l.b16 %v1372
    %v2560 = vunpack.c.h.b16 %v1372
    %v2561 = vunpack.c.l.b16 %v1373
    %v2562 = vunpack.c.h.b16 %v1373
    %v2563 = vunpack.c.l.b16 %v1374
    %v2564 = vunpack.c.h.b16 %v1374
    %v2565 = vunpack.c.l.b16 %v1375
    %v2566 = vunpack.c.h.b16 %v1375
    %v2567 = vunpack.c.l.b16 %v1376
    %v2568 = vunpack.c.h.b16 %v1376
    %v2569 = vunpack.c.l.b16 %v1377
    %v2570 = vunpack.c.h.b16 %v1377
    %v2571 = vunpack.c.l.b16 %v1378
    %v2572 = vunpack.c.h.b16 %v1378
    %v2573 = vunpack.c.l.b16 %v1379
    %v2574 = vunpack.c.h.b16 %v1379
    %v2575 = vunpack.c.l.b16 %v1380
    %v2576 = vunpack.c.h.b16 %v1380
    %v2577 = vunpack.c.l.b16 %v1381
    %v2578 = vunpack.c.h.b16 %v1381
    %v2579 = vunpack.c.l.b16 %v1382
    %v2580 = vunpack.c.h.b16 %v1382
    %v2581 = vunpack.c.l.b16 %v1383
    %v2582 = vunpack.c.h.b16 %v1383
    %v2583 = vunpack.c.l.b16 %v1384
    %v2584 = vunpack.c.h.b16 %v1384
    %v2585 = vunpack.c.l.b16 %v1385
    %v2586 = vunpack.c.h.b16 %v1385
    %v2587 = vunpack.c.l.b16 %v1386
    %v2588 = vunpack.c.h.b16 %v1386
    %v2589 = vunpack.c.l.b16 %v1387
    %v2590 = vunpack.c.h.b16 %v1387
    %v2591 = vunpack.c.l.b16 %v1388
    %v2592 = vunpack.c.h.b16 %v1388
    %v2593 = vunpack.c.l.b16 %v1389
    %v2594 = vunpack.c.h.b16 %v1389
    %v2595 = vunpack.c.l.b16 %v1390
    %v2596 = vunpack.c.h.b16 %v1390
    %v2597 = vunpack.c.l.b16 %v1391
    %v2598 = vunpack.c.h.b16 %v1391
    %v2599 = vunpack.c.l.b16 %v1392
    %v2600 = vunpack.c.h.b16 %v1392
    %v2601 = vunpack.c.l.b16 %v1393
    %v2602 = vunpack.c.h.b16 %v1393
    %v2603 = vunpack.c.l.b16 %v1394
    %v2604 = vunpack.c.h.b16 %v1394
    %v2605 = vunpack.c.l.b16 %v1395
    %v2606 = vunpack.c.h.b16 %v1395
    %v2607 = vunpack.c.l.b16 %v1396
    %v2608 = vunpack.c.h.b16 %v1396
    %v2609 = vunpack.c.l.b16 %v1397
    %v2610 = vunpack.c.h.b16 %v1397
    %v2611 = vunpack.c.l.b16 %v1398
    %v2612 = vunpack.c.h.b16 %v1398
    %v2613 = vunpack.c.l.b16 %v1399
    %v2614 = vunpack.c.h.b16 %v1399
    %v2615 = vunpack.c.l.b16 %v1400
    %v2616 = vunpack.c.h.b16 %v1400
    %v2617 = vunpack.c.l.b16 %v1401
    %v2618 = vunpack.c.h.b16 %v1401
    %v2619 = vunpack.c.l.b16 %v1402
    %v2620 = vunpack.c.h.b16 %v1402
    %v2621 = vunpack.c.l.b16 %v1403
    %v2622 = vunpack.c.h.b16 %v1403
    %v2623 = vunpack.c.l.b16 %v1404
    %v2624 = vunpack.c.h.b16 %v1404
    %v2625 = vunpack.c.l.b16 %v1405
    %v2626 = vunpack.c.h.b16 %v1405
    %v2627 = vunpack.c.l.b16 %v1406
    %v2628 = vunpack.c.h.b16 %v1406
    %v2629 = vunpack.c.l.b16 %v1407
    %v2630 = vunpack.c.h.b16 %v1407
    %v2631 = vunpack.c.l.b16 %v1408
    %v2632 = vunpack.c.h.b16 %v1408
    %v2633 = vunpack.c.l.b16 %v1409
    %v2634 = vunpack.c.h.b16 %v1409
    %v2635 = vunpack.c.l.b16 %v1410
    %v2636 = vunpack.c.h.b16 %v1410
    %v2637 = vunpack.c.l.b16 %v1411
    %v2638 = vunpack.c.h.b16 %v1411
    %v2639 = vunpack.c.l.b16 %v1412
    %v2640 = vunpack.c.h.b16 %v1412
    %v2641 = vunpack.c.l.b16 %v1413
    %v2642 = vunpack.c.h.b16 %v1413
    %v2643 = vunpack.c.l.b16 %v1414
    %v2644 = vunpack.c.h.b16 %v1414
    %v2645 = vunpack.c.l.b16 %v1415
    %v2646 = vunpack.c.h.b16 %v1415
    %v2647 = vunpack.c.l.b16 %v1416
    %v2648 = vunpack.c.h.b16 %v1416
    %v2649 = vunpack.c.l.b16 %v1417
    %v2650 = vunpack.c.h.b16 %v1417
    %v2651 = vunpack.c.l.b16 %v1418
    %v2652 = vunpack.c.h.b16 %v1418
    %v2653 = vunpack.c.l.b16 %v1419
    %v2654 = vunpack.c.h.b16 %v1419
    %v2655 = vunpack.c.l.b16 %v1420
    %v2656 = vunpack.c.h.b16 %v1420
    %v2657 = vunpack.c.l.b16 %v1421
    %v2658 = vunpack.c.h.b16 %v1421
    %v2659 = vunpack.c.l.b16 %v1422
    %v2660 = vunpack.c.h.b16 %v1422
    %v2661 = vunpack.c.l.b16 %v1423
    %v2662 = vunpack.c.h.b16 %v1423
    %v2663 = vunpack.c.l.b16 %v1424
    %v2664 = vunpack.c.h.b16 %v1424
    %v2665 = vunpack.c.l.b16 %v1425
    %v2666 = vunpack.c.h.b16 %v1425
    %v2667 = vunpack.c.l.b16 %v1426
    %v2668 = vunpack.c.h.b16 %v1426
    %v2669 = vunpack.c.l.b16 %v1427
    %v2670 = vunpack.c.h.b16 %v1427
    %v2671 = vunpack.c.l.b16 %v1428
    %v2672 = vunpack.c.h.b16 %v1428
    %v2673 = vunpack.c.l.b16 %v1429
    %v2674 = vunpack.c.h.b16 %v1429
    %v2675 = vunpack.c.l.b16 %v1430
    %v2676 = vunpack.c.h.b16 %v1430
    %v2677 = vunpack.c.l.b16 %v1431
    %v2678 = vunpack.c.h.b16 %v1431
    %v2679 = vunpack.c.l.b16 %v1432
    %v2680 = vunpack.c.h.b16 %v1432
    %v2681 = vunpack.c.l.b16 %v1433
    %v2682 = vunpack.c.h.b16 %v1433
    %v2683 = vunpack.c.l.b16 %v1434
    %v2684 = vunpack.c.h.b16 %v1434
    %v2685 = vunpack.c.l.b16 %v1435
    %v2686 = vunpack.c.h.b16 %v1435
    %v2687 = vunpack.c.l.b16 %v1436
    %v2688 = vunpack.c.h.b16 %v1436
    %v2689 = vunpack.c.l.b16 %v1437
    %v2690 = vunpack.c.h.b16 %v1437
    %v2691 = vunpack.c.l.b16 %v1438
    %v2692 = vunpack.c.h.b16 %v1438
    %v2693 = vunpack.c.l.b16 %v1439
    %v2694 = vunpack.c.h.b16 %v1439
    %v2695 = vunpack.c.l.b16 %v1440
    %v2696 = vunpack.c.h.b16 %v1440
    %v2697 = vunpack.c.l.b16 %v1441
    %v2698 = vunpack.c.h.b16 %v1441
    %v2699 = vunpack.c.l.b16 %v1442
    %v2700 = vunpack.c.h.b16 %v1442
    %v2701 = vunpack.c.l.b16 %v1443
    %v2702 = vunpack.c.h.b16 %v1443
    %v2703 = vunpack.c.l.b16 %v1444
    %v2704 = vunpack.c.h.b16 %v1444
    %v2705 = vunpack.c.l.b16 %v1445
    %v2706 = vunpack.c.h.b16 %v1445
    %v2707 = vunpack.c.l.b16 %v1446
    %v2708 = vunpack.c.h.b16 %v1446
    %v2709 = vunpack.c.l.b16 %v1447
    %v2710 = vunpack.c.h.b16 %v1447
    %v2711 = vunpack.c.l.b16 %v1448
    %v2712 = vunpack.c.h.b16 %v1448
    %v2713 = vunpack.c.l.b16 %v1449
    %v2714 = vunpack.c.h.b16 %v1449
    %v2715 = vunpack.c.l.b16 %v1450
    %v2716 = vunpack.c.h.b16 %v1450
    %v2717 = vunpack.c.l.b16 %v1451
    %v2718 = vunpack.c.h.b16 %v1451
    %v2719 = vunpack.c.l.b16 %v1452
    %v2720 = vunpack.c.h.b16 %v1452
    %v2721 = vunpack.c.l.b16 %v1453
    %v2722 = vunpack.c.h.b16 %v1453
    %v2723 = vunpack.c.l.b16 %v1454
    %v2724 = vunpack.c.h.b16 %v1454
    %v2725 = vunpack.c.l.b16 %v1455
    %v2726 = vunpack.c.h.b16 %v1455
    %v2727 = vunpack.c.l.b16 %v1456
    %v2728 = vunpack.c.h.b16 %v1456
    %v2729 = vunpack.c.l.b16 %v1457
    %v2730 = vunpack.c.h.b16 %v1457
    %v2731 = vunpack.c.l.b16 %v1458
    %v2732 = vunpack.c.h.b16 %v1458
    %v2733 = vunpack.c.l.b16 %v1459
    %v2734 = vunpack.c.h.b16 %v1459
    %v2735 = vunpack.c.l.b16 %v1460
    %v2736 = vunpack.c.h.b16 %v1460
    %v2737 = vunpack.c.l.b16 %v1461
    %v2738 = vunpack.c.h.b16 %v1461
    %v2739 = vunpack.c.l.b16 %v1462
    %v2740 = vunpack.c.h.b16 %v1462
    %v2741 = vunpack.c.l.b16 %v1463
    %v2742 = vunpack.c.h.b16 %v1463
    %v2743 = vunpack.c.l.b16 %v1464
    %v2744 = vunpack.c.h.b16 %v1464
    %v2745 = vunpack.c.l.b16 %v1465
    %v2746 = vunpack.c.h.b16 %v1465
    %v2747 = vunpack.c.l.b16 %v1466
    %v2748 = vunpack.c.h.b16 %v1466
    %v2749 = vunpack.c.l.b16 %v1467
    %v2750 = vunpack.c.h.b16 %v1467
    %v2751 = vunpack.c.l.b16 %v1468
    %v2752 = vunpack.c.h.b16 %v1468
    %v2753 = vunpack.c.l.b16 %v1469
    %v2754 = vunpack.c.h.b16 %v1469
    %v2755 = vunpack.c.l.b16 %v1470
    %v2756 = vunpack.c.h.b16 %v1470
    %v2757 = vunpack.c.l.b16 %v1471
    %v2758 = vunpack.c.h.b16 %v1471
    %v2759 = vunpack.c.l.b16 %v1472
    %v2760 = vunpack.c.h.b16 %v1472
    %v2761 = vunpack.c.l.b16 %v1473
    %v2762 = vunpack.c.h.b16 %v1473
    %v2763 = vunpack.c.l.b16 %v1474
    %v2764 = vunpack.c.h.b16 %v1474
    %v2765 = vunpack.c.l.b16 %v1475
    %v2766 = vunpack.c.h.b16 %v1475
    %v2767 = vunpack.c.l.b16 %v1476
    %v2768 = vunpack.c.h.b16 %v1476
    %v2769 = vunpack.c.l.b16 %v1477
    %v2770 = vunpack.c.h.b16 %v1477
    %v2771 = vunpack.c.l.b16 %v1478
    %v2772 = vunpack.c.h.b16 %v1478
    %v2773 = vunpack.c.l.b16 %v1479
    %v2774 = vunpack.c.h.b16 %v1479
    %v2775 = vunpack.c.l.b16 %v1480
    %v2776 = vunpack.c.h.b16 %v1480
    %v2777 = vunpack.c.l.b16 %v1481
    %v2778 = vunpack.c.h.b16 %v1481
    %v2779 = vunpack.c.l.b16 %v1482
    %v2780 = vunpack.c.h.b16 %v1482
    %v2781 = vunpack.c.l.b16 %v1483
    %v2782 = vunpack.c.h.b16 %v1483
    %v2783 = vunpack.c.l.b16 %v1484
    %v2784 = vunpack.c.h.b16 %v1484
    %v2785 = vunpack.c.l.b16 %v1485
    %v2786 = vunpack.c.h.b16 %v1485
    %v2787 = vunpack.c.l.b16 %v1486
    %v2788 = vunpack.c.h.b16 %v1486
    %v2789 = vunpack.c.l.b16 %v1487
    %v2790 = vunpack.c.h.b16 %v1487
    %v2791 = vunpack.c.l.b16 %v1488
    %v2792 = vunpack.c.h.b16 %v1488
    %v2793 = vunpack.c.l.b16 %v1489
    %v2794 = vunpack.c.h.b16 %v1489
    %v2795 = vunpack.c.l.b16 %v1490
    %v2796 = vunpack.c.h.b16 %v1490
    %v2797 = vunpack.c.l.b16 %v1491
    %v2798 = vunpack.c.h.b16 %v1491
    %v2799 = vunpack.c.l.b16 %v1492
    %v2800 = vunpack.c.h.b16 %v1492
    %v2801 = vunpack.c.l.b16 %v1493
    %v2802 = vunpack.c.h.b16 %v1493
    %v2803 = vunpack.c.l.b16 %v1494
    %v2804 = vunpack.c.h.b16 %v1494
    %v2805 = vunpack.c.l.b16 %v1495
    %v2806 = vunpack.c.h.b16 %v1495
    %v2807 = vunpack.c.l.b16 %v1496
    %v2808 = vunpack.c.h.b16 %v1496
    %v2809 = vunpack.c.l.b16 %v1497
    %v2810 = vunpack.c.h.b16 %v1497
    %v2811 = vunpack.c.l.b16 %v1498
    %v2812 = vunpack.c.h.b16 %v1498
    %v2813 = vunpack.c.l.b16 %v1499
    %v2814 = vunpack.c.h.b16 %v1499
    %v2815 = vunpack.c.l.b16 %v1500
    %v2816 = vunpack.c.h.b16 %v1500
    %v2817 = vunpack.c.l.b16 %v1501
    %v2818 = vunpack.c.h.b16 %v1501
    %v2819 = vunpack.c.l.b16 %v1502
    %v2820 = vunpack.c.h.b16 %v1502
    %v2821 = vunpack.c.l.b16 %v1503
    %v2822 = vunpack.c.h.b16 %v1503
    %v2823 = vunpack.c.l.b16 %v1504
    %v2824 = vunpack.c.h.b16 %v1504
    %v2825 = vunpack.c.l.b16 %v1505
    %v2826 = vunpack.c.h.b16 %v1505
    %v2827 = vunpack.c.l.b16 %v1506
    %v2828 = vunpack.c.h.b16 %v1506
    %v2829 = vunpack.c.l.b16 %v1507
    %v2830 = vunpack.c.h.b16 %v1507
    %v2831 = vunpack.c.l.b16 %v1508
    %v2832 = vunpack.c.h.b16 %v1508
    %v2833 = vunpack.c.l.b16 %v1509
    %v2834 = vunpack.c.h.b16 %v1509
    %v2835 = vunpack.c.l.b16 %v1510
    %v2836 = vunpack.c.h.b16 %v1510
    %v2837 = vunpack.c.l.b16 %v1511
    %v2838 = vunpack.c.h.b16 %v1511
    %v2839 = vunpack.c.l.b16 %v1512
    %v2840 = vunpack.c.h.b16 %v1512
    %v2841 = vunpack.c.l.b16 %v1513
    %v2842 = vunpack.c.h.b16 %v1513
    %v2843 = vunpack.c.l.b16 %v1514
    %v2844 = vunpack.c.h.b16 %v1514
    %v2845 = vunpack.c.l.b16 %v1515
    %v2846 = vunpack.c.h.b16 %v1515
    %v2847 = vunpack.c.l.b16 %v1516
    %v2848 = vunpack.c.h.b16 %v1516
    %v2849 = vunpack.c.l.b16 %v1517
    %v2850 = vunpack.c.h.b16 %v1517
    %v2851 = vunpack.c.l.b16 %v1518
    %v2852 = vunpack.c.h.b16 %v1518
    %v2853 = vunpack.c.l.b16 %v1519
    %v2854 = vunpack.c.h.b16 %v1519
    %v2855 = vunpack.c.l.b16 %v1520
    %v2856 = vunpack.c.h.b16 %v1520
    %v2857 = vunpack.c.l.b16 %v1521
    %v2858 = vunpack.c.h.b16 %v1521
    %v2859 = vunpack.c.l.b16 %v1522
    %v2860 = vunpack.c.h.b16 %v1522
    %v2861 = vunpack.c.l.b16 %v1523
    %v2862 = vunpack.c.h.b16 %v1523
    %v2863 = vunpack.c.l.b16 %v1524
    %v2864 = vunpack.c.h.b16 %v1524
    %v2865 = vunpack.c.l.b16 %v1525
    %v2866 = vunpack.c.h.b16 %v1525
    %v2867 = vunpack.c.l.b16 %v1526
    %v2868 = vunpack.c.h.b16 %v1526
    %v2869 = vunpack.c.l.b16 %v1527
    %v2870 = vunpack.c.h.b16 %v1527
    %v2871 = vunpack.c.l.b16 %v1528
    %v2872 = vunpack.c.h.b16 %v1528
    %v2873 = vunpack.c.l.b16 %v1529
    %v2874 = vunpack.c.h.b16 %v1529
    %v2875 = vunpack.c.l.b16 %v1530
    %v2876 = vunpack.c.h.b16 %v1530
    %v2877 = vunpack.c.l.b16 %v1531
    %v2878 = vunpack.c.h.b16 %v1531
    %v2879 = vunpack.c.l.b16 %v1532
    %v2880 = vunpack.c.h.b16 %v1532
    %v2881 = vunpack.c.l.b16 %v1533
    %v2882 = vunpack.c.h.b16 %v1533
    %v2883 = vunpack.c.l.b16 %v1534
    %v2884 = vunpack.c.h.b16 %v1534
    %v2885 = vunpack.c.l.b16 %v1535
    %v2886 = vunpack.c.h.b16 %v1535
    %v2887 = vunpack.c.l.b16 %v1536
    %v2888 = vunpack.c.h.b16 %v1536
    %v2889 = vunpack.c.l.b16 %v1537
    %v2890 = vunpack.c.h.b16 %v1537
    %v2891 = vunpack.c.l.b16 %v1538
    %v2892 = vunpack.c.h.b16 %v1538
    %v2893 = vunpack.c.l.b16 %v1539
    %v2894 = vunpack.c.h.b16 %v1539
    %v2895 = vunpack.c.l.b16 %v1540
    %v2896 = vunpack.c.h.b16 %v1540
    %v2897 = vunpack.c.l.b16 %v1541
    %v2898 = vunpack.c.h.b16 %v1541
    %v2899 = vunpack.c.l.b16 %v1542
    %v2900 = vunpack.c.h.b16 %v1542
    %v2901 = vunpack.c.l.b16 %v1543
    %v2902 = vunpack.c.h.b16 %v1543
    %v2903 = vunpack.c.l.b16 %v1544
    %v2904 = vunpack.c.h.b16 %v1544
    %v2905 = vunpack.c.l.b16 %v1545
    %v2906 = vunpack.c.h.b16 %v1545
    %v2907 = vunpack.c.l.b16 %v1546
    %v2908 = vunpack.c.h.b16 %v1546
    %v2909 = vunpack.c.l.b16 %v1547
    %v2910 = vunpack.c.h.b16 %v1547
    %v2911 = vunpack.c.l.b16 %v1548
    %v2912 = vunpack.c.h.b16 %v1548
    %v2913 = vunpack.c.l.b16 %v1549
    %v2914 = vunpack.c.h.b16 %v1549
    %v2915 = vunpack.c.l.b16 %v1550
    %v2916 = vunpack.c.h.b16 %v1550
    %v2917 = vunpack.c.l.b16 %v1551
    %v2918 = vunpack.c.h.b16 %v1551
    %v2919 = vunpack.c.l.b16 %v1552
    %v2920 = vunpack.c.h.b16 %v1552
    %v2921 = vunpack.c.l.b16 %v1553
    %v2922 = vunpack.c.h.b16 %v1553
    %v2923 = vunpack.c.l.b16 %v1554
    %v2924 = vunpack.c.h.b16 %v1554
    %v2925 = vunpack.c.l.b16 %v1555
    %v2926 = vunpack.c.h.b16 %v1555
    %v2927 = vunpack.c.l.b16 %v1556
    %v2928 = vunpack.c.h.b16 %v1556
    %v2929 = vunpack.c.l.b16 %v1557
    %v2930 = vunpack.c.h.b16 %v1557
    %v2931 = vunpack.c.l.b16 %v1558
    %v2932 = vunpack.c.h.b16 %v1558
    %v2933 = vunpack.c.l.b16 %v1559
    %v2934 = vunpack.c.h.b16 %v1559
    %v2935 = vunpack.c.l.b16 %v1560
    %v2936 = vunpack.c.h.b16 %v1560
    %v2937 = vunpack.c.l.b16 %v1561
    %v2938 = vunpack.c.h.b16 %v1561
    %v2939 = vunpack.c.l.b16 %v1562
    %v2940 = vunpack.c.h.b16 %v1562
    %v2941 = vunpack.c.l.b16 %v1563
    %v2942 = vunpack.c.h.b16 %v1563
    %v2943 = vunpack.c.l.b16 %v1564
    %v2944 = vunpack.c.h.b16 %v1564
    %v2945 = vunpack.c.l.b16 %v1565
    %v2946 = vunpack.c.h.b16 %v1565
    %v2947 = vunpack.c.l.b16 %v1566
    %v2948 = vunpack.c.h.b16 %v1566
    %v2949 = vunpack.c.l.b16 %v1567
    %v2950 = vunpack.c.h.b16 %v1567
    %v2951 = vunpack.c.l.b16 %v1568
    %v2952 = vunpack.c.h.b16 %v1568
    %v2953 = vunpack.c.l.b16 %v1569
    %v2954 = vunpack.c.h.b16 %v1569
    %v2955 = vunpack.c.l.b16 %v1570
    %v2956 = vunpack.c.h.b16 %v1570
    %v2957 = vunpack.c.l.b16 %v1571
    %v2958 = vunpack.c.h.b16 %v1571
    %v2959 = vunpack.c.l.b16 %v1572
    %v2960 = vunpack.c.h.b16 %v1572
    %v2961 = vunpack.c.l.b16 %v1573
    %v2962 = vunpack.c.h.b16 %v1573
    %v2963 = vunpack.c.l.b16 %v1574
    %v2964 = vunpack.c.h.b16 %v1574
    %v2965 = vunpack.c.l.b16 %v1575
    %v2966 = vunpack.c.h.b16 %v1575
    %v2967 = vunpack.c.l.b16 %v1576
    %v2968 = vunpack.c.h.b16 %v1576
    %v2969 = vunpack.c.l.b16 %v1577
    %v2970 = vunpack.c.h.b16 %v1577
    %v2971 = vunpack.c.l.b16 %v1578
    %v2972 = vunpack.c.h.b16 %v1578
    %v2973 = vunpack.c.l.b16 %v1579
    %v2974 = vunpack.c.h.b16 %v1579
    %v2975 = vunpack.c.l.b16 %v1580
    %v2976 = vunpack.c.h.b16 %v1580
    %v2977 = vunpack.c.l.b16 %v1581
    %v2978 = vunpack.c.h.b16 %v1581
    %v2979 = vunpack.c.l.b16 %v1582
    %v2980 = vunpack.c.h.b16 %v1582
    %v2981 = vunpack.c.l.b16 %v1583
    %v2982 = vunpack.c.h.b16 %v1583
    %v2983 = vunpack.c.l.b16 %v1584
    %v2984 = vunpack.c.h.b16 %v1584
    %v2985 = vunpack.c.l.b16 %v1585
    %v2986 = vunpack.c.h.b16 %v1585
    %v2987 = vunpack.c.l.b16 %v1586
    %v2988 = vunpack.c.h.b16 %v1586
    %v2989 = vunpack.c.l.b16 %v1587
    %v2990 = vunpack.c.h.b16 %v1587
    %v2991 = vunpack.c.l.b16 %v1588
    %v2992 = vunpack.c.h.b16 %v1588
    %v2993 = vunpack.c.l.b16 %v1589
    %v2994 = vunpack.c.h.b16 %v1589
    %v2995 = vunpack.c.l.b16 %v1590
    %v2996 = vunpack.c.h.b16 %v1590
    %v2997 = vunpack.c.l.b16 %v1591
    %v2998 = vunpack.c.h.b16 %v1591
    %v2999 = vunpack.c.l.b16 %v1592
    %v3000 = vunpack.c.h.b16 %v1592
    %v3001 = vunpack.c.l.b16 %v1593
    %v3002 = vunpack.c.h.b16 %v1593
    %v3003 = vunpack.c.l.b16 %v1594
    %v3004 = vunpack.c.h.b16 %v1594
    %v3005 = vunpack.c.l.b16 %v1595
    %v3006 = vunpack.c.h.b16 %v1595
    %v3007 = vunpack.c.l.b16 %v1596
    %v3008 = vunpack.c.h.b16 %v1596
    %v3009 = vunpack.c.l.b16 %v1597
    %v3010 = vunpack.c.h.b16 %v1597
    %v3011 = vunpack.c.l.b16 %v1598
    %v3012 = vunpack.c.h.b16 %v1598
    %v3013 = vunpack.c.l.b16 %v1599
    %v3014 = vunpack.c.h.b16 %v1599
    %v3015 = vunpack.c.l.b16 %v1600
    %v3016 = vunpack.c.h.b16 %v1600
    %v3017 = vunpack.c.l.b16 %v1601
    %v3018 = vunpack.c.h.b16 %v1601
    %v3019 = vunpack.c.l.b16 %v1602
    %v3020 = vunpack.c.h.b16 %v1602
    %v3021 = vunpack.c.l.b16 %v1603
    %v3022 = vunpack.c.h.b16 %v1603
    %v3023 = vunpack.c.l.b16 %v1604
    %v3024 = vunpack.c.h.b16 %v1604
    %v3025 = vunpack.c.l.b16 %v1605
    %v3026 = vunpack.c.h.b16 %v1605
    %v3027 = vunpack.c.l.b16 %v1606
    %v3028 = vunpack.c.h.b16 %v1606
    %v3029 = vunpack.c.l.b16 %v1607
    %v3030 = vunpack.c.h.b16 %v1607
    %v3031 = vunpack.c.l.b16 %v1608
    %v3032 = vunpack.c.h.b16 %v1608
    %v3033 = vunpack.c.l.b16 %v1609
    %v3034 = vunpack.c.h.b16 %v1609
    %v3035 = vunpack.c.l.b16 %v1610
    %v3036 = vunpack.c.h.b16 %v1610
    %v3037 = vunpack.c.l.b16 %v1611
    %v3038 = vunpack.c.h.b16 %v1611
    %v3039 = vunpack.c.l.b16 %v1612
    %v3040 = vunpack.c.h.b16 %v1612
    %v3041 = vunpack.c.l.b16 %v1613
    %v3042 = vunpack.c.h.b16 %v1613
    %v3043 = vunpack.c.l.b16 %v1614
    %v3044 = vunpack.c.h.b16 %v1614
    %v3045 = vunpack.c.l.b16 %v1615
    %v3046 = vunpack.c.h.b16 %v1615
    %v3047 = vunpack.c.l.b16 %v1616
    %v3048 = vunpack.c.h.b16 %v1616
    %v3049 = vunpack.c.l.b16 %v1617
    %v3050 = vunpack.c.h.b16 %v1617
    %v3051 = vunpack.c.l.b16 %v1618
    %v3052 = vunpack.c.h.b16 %v1618
    %v3053 = vunpack.c.l.b16 %v1619
    %v3054 = vunpack.c.h.b16 %v1619
    %v3055 = vunpack.c.l.b16 %v1620
    %v3056 = vunpack.c.h.b16 %v1620
    %v3057 = vunpack.c.l.b16 %v1621
    %v3058 = vunpack.c.h.b16 %v1621
    %v3059 = vunpack.c.l.b16 %v1622
    %v3060 = vunpack.c.h.b16 %v1622
    %v3061 = vunpack.c.l.b16 %v1623
    %v3062 = vunpack.c.h.b16 %v1623
    %v3063 = vunpack.c.l.b16 %v1624
    %v3064 = vunpack.c.h.b16 %v1624
    %v3065 = vunpack.c.l.b16 %v1625
    %v3066 = vunpack.c.h.b16 %v1625
    %v3067 = vunpack.c.l.b16 %v1626
    %v3068 = vunpack.c.h.b16 %v1626
    %v3069 = vunpack.c.l.b16 %v1627
    %v3070 = vunpack.c.h.b16 %v1627
    %v3071 = vunpack.c.l.b16 %v1628
    %v3072 = vunpack.c.h.b16 %v1628
    %v3073 = vunpack.c.l.b16 %v1629
    %v3074 = vunpack.c.h.b16 %v1629
    %v3075 = vunpack.c.l.b16 %v1630
    %v3076 = vunpack.c.h.b16 %v1630
    %v3077 = vunpack.c.l.b16 %v1631
    %v3078 = vunpack.c.h.b16 %v1631
    %v3079 = vunpack.c.l.b16 %v1632
    %v3080 = vunpack.c.h.b16 %v1632
    %v3081 = vunpack.c.l.b16 %v1633
    %v3082 = vunpack.c.h.b16 %v1633
    %v3083 = vunpack.c.l.b16 %v1634
    %v3084 = vunpack.c.h.b16 %v1634
    %v3085 = vunpack.c.l.b16 %v1635
    %v3086 = vunpack.c.h.b16 %v1635
    %v3087 = vunpack.c.l.b16 %v1636
    %v3088 = vunpack.c.h.b16 %v1636
    %v3089 = vunpack.c.l.b16 %v1637
    %v3090 = vunpack.c.h.b16 %v1637
    %v3091 = vunpack.c.l.b16 %v1638
    %v3092 = vunpack.c.h.b16 %v1638
    %v3093 = vunpack.c.l.b16 %v1639
    %v3094 = vunpack.c.h.b16 %v1639
    %v3095 = vunpack.c.l.b16 %v1640
    %v3096 = vunpack.c.h.b16 %v1640
    %v3097 = vunpack.c.l.b16 %v1641
    %v3098 = vunpack.c.h.b16 %v1641
    %v3099 = vunpack.c.l.b16 %v1642
    %v3100 = vunpack.c.h.b16 %v1642
    %v3101 = vunpack.c.l.b16 %v1643
    %v3102 = vunpack.c.h.b16 %v1643
    %v3103 = vunpack.c.l.b16 %v1644
    %v3104 = vunpack.c.h.b16 %v1644
    %v3105 = vunpack.c.l.b16 %v1645
    %v3106 = vunpack.c.h.b16 %v1645
    %v3107 = vunpack.c.l.b16 %v1646
    %v3108 = vunpack.c.h.b16 %v1646
    %v3109 = vunpack.c.l.b16 %v1647
    %v3110 = vunpack.c.h.b16 %v1647
    %v3111 = vunpack.c.l.b16 %v1648
    %v3112 = vunpack.c.h.b16 %v1648
    %v3113 = vunpack.c.l.b16 %v1649
    %v3114 = vunpack.c.h.b16 %v1649
    %v3115 = vunpack.c.l.b16 %v1650
    %v3116 = vunpack.c.h.b16 %v1650
    %v3117 = vunpack.c.l.b16 %v1651
    %v3118 = vunpack.c.h.b16 %v1651
    %v3119 = vunpack.c.l.b16 %v1652
    %v3120 = vunpack.c.h.b16 %v1652
    %v3121 = vunpack.c.l.b16 %v1653
    %v3122 = vunpack.c.h.b16 %v1653
    %v3123 = vunpack.c.l.b16 %v1654
    %v3124 = vunpack.c.h.b16 %v1654
    %v3125 = vunpack.c.l.b16 %v1655
    %v3126 = vunpack.c.h.b16 %v1655
    %v3127 = vunpack.c.l.b16 %v1656
    %v3128 = vunpack.c.h.b16 %v1656
    %v3129 = vunpack.c.l.b16 %v1657
    %v3130 = vunpack.c.h.b16 %v1657
    %v3131 = vunpack.c.l.b16 %v1658
    %v3132 = vunpack.c.h.b16 %v1658
    %v3133 = vunpack.c.l.b16 %v1659
    %v3134 = vunpack.c.h.b16 %v1659
    %v3135 = vunpack.c.l.b16 %v1660
    %v3136 = vunpack.c.h.b16 %v1660
    %v3137 = vunpack.c.l.b16 %v1661
    %v3138 = vunpack.c.h.b16 %v1661
    %v3139 = vunpack.c.l.b16 %v1662
    %v3140 = vunpack.c.h.b16 %v1662
    %v3141 = vunpack.c.l.b16 %v1663
    %v3142 = vunpack.c.h.b16 %v1663
    %v3143 = vunpack.c.l.b16 %v1664
    %v3144 = vunpack.c.h.b16 %v1664
    %v3145 = vunpack.c.l.b16 %v1665
    %v3146 = vunpack.c.h.b16 %v1665
    %v3147 = vunpack.c.l.b16 %v1666
    %v3148 = vunpack.c.h.b16 %v1666
    %v3149 = vunpack.c.l.b16 %v1667
    %v3150 = vunpack.c.h.b16 %v1667
    %v3151 = vunpack.c.l.b16 %v1668
    %v3152 = vunpack.c.h.b16 %v1668
    %v3153 = vunpack.c.l.b16 %v1669
    %v3154 = vunpack.c.h.b16 %v1669
    %v3155 = vunpack.c.l.b16 %v1670
    %v3156 = vunpack.c.h.b16 %v1670
    %v3157 = vunpack.c.l.b16 %v1671
    %v3158 = vunpack.c.h.b16 %v1671
    %v3159 = vunpack.c.l.b16 %v1672
    %v3160 = vunpack.c.h.b16 %v1672
    %v3161 = vunpack.c.l.b16 %v1673
    %v3162 = vunpack.c.h.b16 %v1673
    %v3163 = vunpack.c.l.b16 %v1674
    %v3164 = vunpack.c.h.b16 %v1674
    %v3165 = vunpack.c.l.b16 %v1675
    %v3166 = vunpack.c.h.b16 %v1675
    %v3167 = vunpack.c.l.b16 %v1676
    %v3168 = vunpack.c.h.b16 %v1676
    %v3169 = vunpack.c.l.b16 %v1677
    %v3170 = vunpack.c.h.b16 %v1677
    %v3171 = vunpack.c.l.b16 %v1678
    %v3172 = vunpack.c.h.b16 %v1678
    %v3173 = vunpack.c.l.b16 %v1679
    %v3174 = vunpack.c.h.b16 %v1679
    %v3175 = vunpack.c.l.b16 %v1680
    %v3176 = vunpack.c.h.b16 %v1680
    %v3177 = vunpack.c.l.b16 %v1681
    %v3178 = vunpack.c.h.b16 %v1681
    %v3179 = vunpack.c.l.b16 %v1682
    %v3180 = vunpack.c.h.b16 %v1682
    %v3181 = vunpack.c.l.b16 %v1683
    %v3182 = vunpack.c.h.b16 %v1683
    %v3183 = vunpack.c.l.b16 %v1684
    %v3184 = vunpack.c.h.b16 %v1684
    %v3185 = vunpack.c.l.b16 %v1685
    %v3186 = vunpack.c.h.b16 %v1685
    %v3187 = vunpack.c.l.b16 %v1686
    %v3188 = vunpack.c.h.b16 %v1686
    %v3189 = vunpack.c.l.b16 %v1687
    %v3190 = vunpack.c.h.b16 %v1687
    %v3191 = vunpack.c.l.b16 %v1688
    %v3192 = vunpack.c.h.b16 %v1688
    %v3193 = vunpack.c.l.b16 %v1689
    %v3194 = vunpack.c.h.b16 %v1689
    %v3195 = vunpack.c.l.b16 %v1690
    %v3196 = vunpack.c.h.b16 %v1690
    %v3197 = vunpack.c.l.b16 %v1691
    %v3198 = vunpack.c.h.b16 %v1691
    %v3199 = vunpack.c.l.b16 %v1692
    %v3200 = vunpack.c.h.b16 %v1692
    %v3201 = vunpack.c.l.b16 %v1693
    %v3202 = vunpack.c.h.b16 %v1693
    %v3203 = vunpack.c.l.b16 %v1694
    %v3204 = vunpack.c.h.b16 %v1694
    %v3205 = vunpack.c.l.b16 %v1695
    %v3206 = vunpack.c.h.b16 %v1695
    %v3207 = vunpack.c.l.b16 %v1696
    %v3208 = vunpack.c.h.b16 %v1696
    %v3209 = vunpack.c.l.b16 %v1697
    %v3210 = vunpack.c.h.b16 %v1697
    %v3211 = vunpack.c.l.b16 %v1698
    %v3212 = vunpack.c.h.b16 %v1698
    %v3213 = vunpack.c.l.b16 %v1699
    %v3214 = vunpack.c.h.b16 %v1699
    %v3215 = vunpack.c.l.b16 %v1700
    %v3216 = vunpack.c.h.b16 %v1700
    %v3217 = vunpack.c.l.b16 %v1701
    %v3218 = vunpack.c.h.b16 %v1701
    %v3219 = vunpack.c.l.b16 %v1702
    %v3220 = vunpack.c.h.b16 %v1702
    %v3221 = vunpack.c.l.b16 %v1703
    %v3222 = vunpack.c.h.b16 %v1703
    %v3223 = vunpack.c.l.b16 %v1704
    %v3224 = vunpack.c.h.b16 %v1704
    %v3225 = vunpack.c.l.b16 %v1705
    %v3226 = vunpack.c.h.b16 %v1705
    %v3227 = vunpack.c.l.b16 %v1706
    %v3228 = vunpack.c.h.b16 %v1706
    %v3229 = vunpack.c.l.b16 %v1707
    %v3230 = vunpack.c.h.b16 %v1707
    %v3231 = vunpack.c.l.b16 %v1708
    %v3232 = vunpack.c.h.b16 %v1708
    %v3233 = vunpack.c.l.b16 %v1709
    %v3234 = vunpack.c.h.b16 %v1709
    %v3235 = vunpack.c.l.b16 %v1710
    %v3236 = vunpack.c.h.b16 %v1710
    %v3237 = vunpack.c.l.b16 %v1711
    %v3238 = vunpack.c.h.b16 %v1711
    %v3239 = vunpack.c.l.b16 %v1712
    %v3240 = vunpack.c.h.b16 %v1712
    %v3241 = vunpack.c.l.b16 %v1713
    %v3242 = vunpack.c.h.b16 %v1713
    %v3243 = vunpack.c.l.b16 %v1714
    %v3244 = vunpack.c.h.b16 %v1714
    %v3245 = vunpack.c.l.b16 %v1715
    %v3246 = vunpack.c.h.b16 %v1715
    %v3247 = vunpack.c.l.b16 %v1716
    %v3248 = vunpack.c.h.b16 %v1716
    %v3249 = vunpack.c.l.b16 %v1717
    %v3250 = vunpack.c.h.b16 %v1717
    %v3251 = vunpack.c.l.b16 %v1718
    %v3252 = vunpack.c.h.b16 %v1718
    %v3253 = vunpack.c.l.b16 %v1719
    %v3254 = vunpack.c.h.b16 %v1719
    %v3255 = vunpack.c.l.b16 %v1720
    %v3256 = vunpack.c.h.b16 %v1720
    %v3257 = vunpack.c.l.b16 %v1721
    %v3258 = vunpack.c.h.b16 %v1721
    %v3259 = vunpack.c.l.b16 %v1722
    %v3260 = vunpack.c.h.b16 %v1722
    %v3261 = vunpack.c.l.b16 %v1723
    %v3262 = vunpack.c.h.b16 %v1723
    %v3263 = vunpack.c.l.b16 %v1724
    %v3264 = vunpack.c.h.b16 %v1724
    %v3265 = vunpack.c.l.b16 %v1725
    %v3266 = vunpack.c.h.b16 %v1725
    %v3267 = vunpack.c.l.b16 %v1726
    %v3268 = vunpack.c.h.b16 %v1726
    %v3269 = vunpack.c.l.b16 %v1727
    %v3270 = vunpack.c.h.b16 %v1727
    %v3271 = vunpack.c.l.b16 %v1728
    %v3272 = vunpack.c.h.b16 %v1728
    %v3273 = vunpack.c.l.b16 %v1729
    %v3274 = vunpack.c.h.b16 %v1729
    %v3275 = vunpack.c.l.b16 %v1730
    %v3276 = vunpack.c.h.b16 %v1730
    %v3277 = vunpack.c.l.b16 %v1731
    %v3278 = vunpack.c.h.b16 %v1731
    %v3279 = vunpack.c.l.b16 %v1732
    %v3280 = vunpack.c.h.b16 %v1732
    %v3281 = vunpack.c.l.b16 %v1733
    %v3282 = vunpack.c.h.b16 %v1733
    %v3283 = vunpack.c.l.b16 %v1734
    %v3284 = vunpack.c.h.b16 %v1734
    %v3285 = vunpack.c.l.b16 %v1735
    %v3286 = vunpack.c.h.b16 %v1735
    %v3287 = vunpack.c.l.b16 %v1736
    %v3288 = vunpack.c.h.b16 %v1736
    %v3289 = vunpack.c.l.b16 %v1737
    %v3290 = vunpack.c.h.b16 %v1737
    %v3291 = vunpack.c.l.b16 %v1738
    %v3292 = vunpack.c.h.b16 %v1738
    %v3293 = vunpack.c.l.b16 %v1739
    %v3294 = vunpack.c.h.b16 %v1739
    %v3295 = vunpack.c.l.b16 %v1740
    %v3296 = vunpack.c.h.b16 %v1740
    %v3297 = vunpack.c.l.b16 %v1741
    %v3298 = vunpack.c.h.b16 %v1741
    %v3299 = vunpack.c.l.b16 %v1742
    %v3300 = vunpack.c.h.b16 %v1742
    %v3301 = vunpack.c.l.b16 %v1743
    %v3302 = vunpack.c.h.b16 %v1743
    %v3303 = vunpack.c.l.b16 %v1744
    %v3304 = vunpack.c.h.b16 %v1744
    %v3305 = vunpack.c.l.b16 %v1745
    %v3306 = vunpack.c.h.b16 %v1745
    %v3307 = vunpack.c.l.b16 %v1746
    %v3308 = vunpack.c.h.b16 %v1746
    %v3309 = vunpack.c.l.b16 %v1747
    %v3310 = vunpack.c.h.b16 %v1747
    %v3311 = vunpack.c.l.b16 %v1748
    %v3312 = vunpack.c.h.b16 %v1748
    %v3313 = vunpack.c.l.b16 %v1749
    %v3314 = vunpack.c.h.b16 %v1749
    %v3315 = vunpack.c.l.b16 %v1750
    %v3316 = vunpack.c.h.b16 %v1750
    %v3317 = vunpack.c.l.b16 %v1751
    %v3318 = vunpack.c.h.b16 %v1751
    %v3319 = vunpack.c.l.b16 %v1752
    %v3320 = vunpack.c.h.b16 %v1752
    %v3321 = vunpack.c.l.b16 %v1753
    %v3322 = vunpack.c.h.b16 %v1753
    %v3323 = vunpack.c.l.b16 %v1754
    %v3324 = vunpack.c.h.b16 %v1754
    %v3325 = vunpack.c.l.b16 %v1755
    %v3326 = vunpack.c.h.b16 %v1755
    %v3327 = vunpack.c.l.b16 %v1756
    %v3328 = vunpack.c.h.b16 %v1756
    %v3329 = vunpack.c.l.b16 %v1757
    %v3330 = vunpack.c.h.b16 %v1757
    %v3331 = vunpack.c.l.b16 %v1758
    %v3332 = vunpack.c.h.b16 %v1758
    %v3333 = vunpack.c.l.b16 %v1759
    %v3334 = vunpack.c.h.b16 %v1759
    %v3335 = vunpack.c.l.b16 %v1760
    %v3336 = vunpack.c.h.b16 %v1760
    %v3337 = vunpack.c.l.b16 %v1761
    %v3338 = vunpack.c.h.b16 %v1761
    %v3339 = vunpack.c.l.b16 %v1762
    %v3340 = vunpack.c.h.b16 %v1762
    %v3341 = vpack.c.b16 %v2325, %v2317
    %v3342 = vpack.c.b16 %v2326, %v2318
    %v3343 = vpack.c.b16 %v2327, %v2319
    %v3344 = vpack.c.b16 %v2328, %v2320
    %v3345 = vpack.c.b16 %v2329, %v2321
    %v3346 = vpack.c.b16 %v2330, %v2322
    %v3347 = vpack.c.b16 %v2331, %v2323
    %v3348 = vpack.c.b16 %v2332, %v2324
    %v3349 = vpack.c.b16 %v2341, %v2333
    %v3350 = vpack.c.b16 %v2342, %v2334
    %v3351 = vpack.c.b16 %v2343, %v2335
    %v3352 = vpack.c.b16 %v2344, %v2336
    %v3353 = vpack.c.b16 %v2345, %v2337
    %v3354 = vpack.c.b16 %v2346, %v2338
    %v3355 = vpack.c.b16 %v2347, %v2339
    %v3356 = vpack.c.b16 %v2348, %v2340
    %v3357 = vpack.c.b16 %v2357, %v2349
    %v3358 = vpack.c.b16 %v2358, %v2350
    %v3359 = vpack.c.b16 %v2359, %v2351
    %v3360 = vpack.c.b16 %v2360, %v2352
    %v3361 = vpack.c.b16 %v2361, %v2353
    %v3362 = vpack.c.b16 %v2362, %v2354
    %v3363 = vpack.c.b16 %v2363, %v2355
    %v3364 = vpack.c.b16 %v2364, %v2356
    %v3365 = vpack.c.b16 %v2373, %v2365
    %v3366 = vpack.c.b16 %v2374, %v2366
    %v3367 = vpack.c.b16 %v2375, %v2367
    %v3368 = vpack.c.b16 %v2376, %v2368
    %v3369 = vpack.c.b16 %v2377, %v2369
    %v3370 = vpack.c.b16 %v2378, %v2370
    %v3371 = vpack.c.b16 %v2379, %v2371
    %v3372 = vpack.c.b16 %v2380, %v2372
    %v3373 = vpack.c.b16 %v2389, %v2381
    %v3374 = vpack.c.b16 %v2390, %v2382
    %v3375 = vpack.c.b16 %v2391, %v2383
    %v3376 = vpack.c.b16 %v2392, %v2384
    %v3377 = vpack.c.b16 %v2393, %v2385
    %v3378 = vpack.c.b16 %v2394, %v2386
    %v3379 = vpack.c.b16 %v2395, %v2387
    %v3380 = vpack.c.b16 %v2396, %v2388
    %v3381 = vpack.c.b16 %v2405, %v2397
    %v3382 = vpack.c.b16 %v2406, %v2398
    %v3383 = vpack.c.b16 %v2407, %v2399
    %v3384 = vpack.c.b16 %v2408, %v2400
    %v3385 = vpack.c.b16 %v2409, %v2401
    %v3386 = vpack.c.b16 %v2410, %v2402
    %v3387 = vpack.c.b16 %v2411, %v2403
    %v3388 = vpack.c.b16 %v2412, %v2404
    %v3389 = vpack.c.b16 %v2421, %v2413
    %v3390 = vpack.c.b16 %v2422, %v2414
    %v3391 = vpack.c.b16 %v2423, %v2415
    %v3392 = vpack.c.b16 %v2424, %v2416
    %v3393 = vpack.c.b16 %v2425, %v2417
    %v3394 = vpack.c.b16 %v2426, %v2418
    %v3395 = vpack.c.b16 %v2427, %v2419
    %v3396 = vpack.c.b16 %v2428, %v2420
    %v3397 = vpack.c.b16 %v2437, %v2429
    %v3398 = vpack.c.b16 %v2438, %v2430
    %v3399 = vpack.c.b16 %v2439, %v2431
    %v3400 = vpack.c.b16 %v2440, %v2432
    %v3401 = vpack.c.b16 %v2441, %v2433
    %v3402 = vpack.c.b16 %v2442, %v2434
    %v3403 = vpack.c.b16 %v2443, %v2435
    %v3404 = vpack.c.b16 %v2444, %v2436
    %v3405 = vpack.c.b16 %v2453, %v2445
    %v3406 = vpack.c.b16 %v2454, %v2446
    %v3407 = vpack.c.b16 %v2455, %v2447
    %v3408 = vpack.c.b16 %v2456, %v2448
    %v3409 = vpack.c.b16 %v2457, %v2449
    %v3410 = vpack.c.b16 %v2458, %v2450
    %v3411 = vpack.c.b16 %v2459, %v2451
    %v3412 = vpack.c.b16 %v2460, %v2452
    %v3413 = vpack.c.b16 %v2469, %v2461
    %v3414 = vpack.c.b16 %v2470, %v2462
    %v3415 = vpack.c.b16 %v2471, %v2463
    %v3416 = vpack.c.b16 %v2472, %v2464
    %v3417 = vpack.c.b16 %v2473, %v2465
    %v3418 = vpack.c.b16 %v2474, %v2466
    %v3419 = vpack.c.b16 %v2475, %v2467
    %v3420 = vpack.c.b16 %v2476, %v2468
    %v3421 = vpack.c.b16 %v2485, %v2477
    %v3422 = vpack.c.b16 %v2486, %v2478
    %v3423 = vpack.c.b16 %v2487, %v2479
    %v3424 = vpack.c.b16 %v2488, %v2480
    %v3425 = vpack.c.b16 %v2489, %v2481
    %v3426 = vpack.c.b16 %v2490, %v2482
    %v3427 = vpack.c.b16 %v2491, %v2483
    %v3428 = vpack.c.b16 %v2492, %v2484
    %v3429 = vpack.c.b16 %v2501, %v2493
    %v3430 = vpack.c.b16 %v2502, %v2494
    %v3431 = vpack.c.b16 %v2503, %v2495
    %v3432 = vpack.c.b16 %v2504, %v2496
    %v3433 = vpack.c.b16 %v2505, %v2497
    %v3434 = vpack.c.b16 %v2506, %v2498
    %v3435 = vpack.c.b16 %v2507, %v2499
    %v3436 = vpack.c.b16 %v2508, %v2500
    %v3437 = vpack.c.b16 %v2517, %v2509
    %v3438 = vpack.c.b16 %v2518, %v2510
    %v3439 = vpack.c.b16 %v2519, %v2511
    %v3440 = vpack.c.b16 %v2520, %v2512
    %v3441 = vpack.c.b16 %v2521, %v2513
    %v3442 = vpack.c.b16 %v2522, %v2514
    %v3443 = vpack.c.b16 %v2523, %v2515
    %v3444 = vpack.c.b16 %v2524, %v2516
    %v3445 = vpack.c.b16 %v2533, %v2525
    %v3446 = vpack.c.b16 %v2534, %v2526
    %v3447 = vpack.c.b16 %v2535, %v2527
    %v3448 = vpack.c.b16 %v2536, %v2528
    %v3449 = vpack.c.b16 %v2537, %v2529
    %v3450 = vpack.c.b16 %v2538, %v2530
    %v3451 = vpack.c.b16 %v2539, %v2531
    %v3452 = vpack.c.b16 %v2540, %v2532
    %v3453 = vpack.c.b16 %v2549, %v2541
    %v3454 = vpack.c.b16 %v2550, %v2542
    %v3455 = vpack.c.b16 %v2551, %v2543
    %v3456 = vpack.c.b16 %v2552, %v2544
    %v3457 = vpack.c.b16 %v2553, %v2545
    %v3458 = vpack.c.b16 %v2554, %v2546
    %v3459 = vpack.c.b16 %v2555, %v2547
    %v3460 = vpack.c.b16 %v2556, %v2548
    %v3461 = vpack.c.b16 %v2565, %v2557
    %v3462 = vpack.c.b16 %v2566, %v2558
    %v3463 = vpack.c.b16 %v2567, %v2559
    %v3464 = vpack.c.b16 %v2568, %v2560
    %v3465 = vpack.c.b16 %v2569, %v2561
    %v3466 = vpack.c.b16 %v2570, %v2562
    %v3467 = vpack.c.b16 %v2571, %v2563
    %v3468 = vpack.c.b16 %v2572, %v2564
    %v3469 = vpack.c.b16 %v2581, %v2573
    %v3470 = vpack.c.b16 %v2582, %v2574
    %v3471 = vpack.c.b16 %v2583, %v2575
    %v3472 = vpack.c.b16 %v2584, %v2576
    %v3473 = vpack.c.b16 %v2585, %v2577
    %v3474 = vpack.c.b16 %v2586, %v2578
    %v3475 = vpack.c.b16 %v2587, %v2579
    %v3476 = vpack.c.b16 %v2588, %v2580
    %v3477 = vpack.c.b16 %v2597, %v2589
    %v3478 = vpack.c.b16 %v2598, %v2590
    %v3479 = vpack.c.b16 %v2599, %v2591
    %v3480 = vpack.c.b16 %v2600, %v2592
    %v3481 = vpack.c.b16 %v2601, %v2593
    %v3482 = vpack.c.b16 %v2602, %v2594
    %v3483 = vpack.c.b16 %v2603, %v2595
    %v3484 = vpack.c.b16 %v2604, %v2596
    %v3485 = vpack.c.b16 %v2613, %v2605
    %v3486 = vpack.c.b16 %v2614, %v2606
    %v3487 = vpack.c.b16 %v2615, %v2607
    %v3488 = vpack.c.b16 %v2616, %v2608
    %v3489 = vpack.c.b16 %v2617, %v2609
    %v3490 = vpack.c.b16 %v2618, %v2610
    %v3491 = vpack.c.b16 %v2619, %v2611
    %v3492 = vpack.c.b16 %v2620, %v2612
    %v3493 = vpack.c.b16 %v2629, %v2621
    %v3494 = vpack.c.b16 %v2630, %v2622
    %v3495 = vpack.c.b16 %v2631, %v2623
    %v3496 = vpack.c.b16 %v2632, %v2624
    %v3497 = vpack.c.b16 %v2633, %v2625
    %v3498 = vpack.c.b16 %v2634, %v2626
    %v3499 = vpack.c.b16 %v2635, %v2627
    %v3500 = vpack.c.b16 %v2636, %v2628
    %v3501 = vpack.c.b16 %v2645, %v2637
    %v3502 = vpack.c.b16 %v2646, %v2638
    %v3503 = vpack.c.b16 %v2647, %v2639
    %v3504 = vpack.c.b16 %v2648, %v2640
    %v3505 = vpack.c.b16 %v2649, %v2641
    %v3506 = vpack.c.b16 %v2650, %v2642
    %v3507 = vpack.c.b16 %v2651, %v2643
    %v3508 = vpack.c.b16 %v2652, %v2644
    %v3509 = vpack.c.b16 %v2661, %v2653
    %v3510 = vpack.c.b16 %v2662, %v2654
    %v3511 = vpack.c.b16 %v2663, %v2655
    %v3512 = vpack.c.b16 %v2664, %v2656
    %v3513 = vpack.c.b16 %v2665, %v2657
    %v3514 = vpack.c.b16 %v2666, %v2658
    %v3515 = vpack.c.b16 %v2667, %v2659
    %v3516 = vpack.c.b16 %v2668, %v2660
    %v3517 = vpack.c.b16 %v2677, %v2669
    %v3518 = vpack.c.b16 %v2678, %v2670
    %v3519 = vpack.c.b16 %v2679, %v2671
    %v3520 = vpack.c.b16 %v2680, %v2672
    %v3521 = vpack.c.b16 %v2681, %v2673
    %v3522 = vpack.c.b16 %v2682, %v2674
    %v3523 = vpack.c.b16 %v2683, %v2675
    %v3524 = vpack.c.b16 %v2684, %v2676
    %v3525 = vpack.c.b16 %v2693, %v2685
    %v3526 = vpack.c.b16 %v2694, %v2686
    %v3527 = vpack.c.b16 %v2695, %v2687
    %v3528 = vpack.c.b16 %v2696, %v2688
    %v3529 = vpack.c.b16 %v2697, %v2689
    %v3530 = vpack.c.b16 %v2698, %v2690
    %v3531 = vpack.c.b16 %v2699, %v2691
    %v3532 = vpack.c.b16 %v2700, %v2692
    %v3533 = vpack.c.b16 %v2709, %v2701
    %v3534 = vpack.c.b16 %v2710, %v2702
    %v3535 = vpack.c.b16 %v2711, %v2703
    %v3536 = vpack.c.b16 %v2712, %v2704
    %v3537 = vpack.c.b16 %v2713, %v2705
    %v3538 = vpack.c.b16 %v2714, %v2706
    %v3539 = vpack.c.b16 %v2715, %v2707
    %v3540 = vpack.c.b16 %v2716, %v2708
    %v3541 = vpack.c.b16 %v2725, %v2717
    %v3542 = vpack.c.b16 %v2726, %v2718
    %v3543 = vpack.c.b16 %v2727, %v2719
    %v3544 = vpack.c.b16 %v2728, %v2720
    %v3545 = vpack.c.b16 %v2729, %v2721
    %v3546 = vpack.c.b16 %v2730, %v2722
    %v3547 = vpack.c.b16 %v2731, %v2723
    %v3548 = vpack.c.b16 %v2732, %v2724
    %v3549 = vpack.c.b16 %v2741, %v2733
    %v3550 = vpack.c.b16 %v2742, %v2734
    %v3551 = vpack.c.b16 %v2743, %v2735
    %v3552 = vpack.c.b16 %v2744, %v2736
    %v3553 = vpack.c.b16 %v2745, %v2737
    %v3554 = vpack.c.b16 %v2746, %v2738
    %v3555 = vpack.c.b16 %v2747, %v2739
    %v3556 = vpack.c.b16 %v2748, %v2740
    %v3557 = vpack.c.b16 %v2757, %v2749
    %v3558 = vpack.c.b16 %v2758, %v2750
    %v3559 = vpack.c.b16 %v2759, %v2751
    %v3560 = vpack.c.b16 %v2760, %v2752
    %v3561 = vpack.c.b16 %v2761, %v2753
    %v3562 = vpack.c.b16 %v2762, %v2754
    %v3563 = vpack.c.b16 %v2763, %v2755
    %v3564 = vpack.c.b16 %v2764, %v2756
    %v3565 = vpack.c.b16 %v2773, %v2765
    %v3566 = vpack.c.b16 %v2774, %v2766
    %v3567 = vpack.c.b16 %v2775, %v2767
    %v3568 = vpack.c.b16 %v2776, %v2768
    %v3569 = vpack.c.b16 %v2777, %v2769
    %v3570 = vpack.c.b16 %v2778, %v2770
    %v3571 = vpack.c.b16 %v2779, %v2771
    %v3572 = vpack.c.b16 %v2780, %v2772
    %v3573 = vpack.c.b16 %v2789, %v2781
    %v3574 = vpack.c.b16 %v2790, %v2782
    %v3575 = vpack.c.b16 %v2791, %v2783
    %v3576 = vpack.c.b16 %v2792, %v2784
    %v3577 = vpack.c.b16 %v2793, %v2785
    %v3578 = vpack.c.b16 %v2794, %v2786
    %v3579 = vpack.c.b16 %v2795, %v2787
    %v3580 = vpack.c.b16 %v2796, %v2788
    %v3581 = vpack.c.b16 %v2805, %v2797
    %v3582 = vpack.c.b16 %v2806, %v2798
    %v3583 = vpack.c.b16 %v2807, %v2799
    %v3584 = vpack.c.b16 %v2808, %v2800
    %v3585 = vpack.c.b16 %v2809, %v2801
    %v3586 = vpack.c.b16 %v2810, %v2802
    %v3587 = vpack.c.b16 %v2811, %v2803
    %v3588 = vpack.c.b16 %v2812, %v2804
    %v3589 = vpack.c.b16 %v2821, %v2813
    %v3590 = vpack.c.b16 %v2822, %v2814
    %v3591 = vpack.c.b16 %v2823, %v2815
    %v3592 = vpack.c.b16 %v2824, %v2816
    %v3593 = vpack.c.b16 %v2825, %v2817
    %v3594 = vpack.c.b16 %v2826, %v2818
    %v3595 = vpack.c.b16 %v2827, %v2819
    %v3596 = vpack.c.b16 %v2828, %v2820
    %v3597 = vpack.c.b16 %v2837, %v2829
    %v3598 = vpack.c.b16 %v2838, %v2830
    %v3599 = vpack.c.b16 %v2839, %v2831
    %v3600 = vpack.c.b16 %v2840, %v2832
    %v3601 = vpack.c.b16 %v2841, %v2833
    %v3602 = vpack.c.b16 %v2842, %v2834
    %v3603 = vpack.c.b16 %v2843, %v2835
    %v3604 = vpack.c.b16 %v2844, %v2836
    %v3605 = vpack.c.b16 %v2853, %v2845
    %v3606 = vpack.c.b16 %v2854, %v2846
    %v3607 = vpack.c.b16 %v2855, %v2847
    %v3608 = vpack.c.b16 %v2856, %v2848
    %v3609 = vpack.c.b16 %v2857, %v2849
    %v3610 = vpack.c.b16 %v2858, %v2850
    %v3611 = vpack.c.b16 %v2859, %v2851
    %v3612 = vpack.c.b16 %v2860, %v2852
    %v3613 = vpack.c.b16 %v2869, %v2861
    %v3614 = vpack.c.b16 %v2870, %v2862
    %v3615 = vpack.c.b16 %v2871, %v2863
    %v3616 = vpack.c.b16 %v2872, %v2864
    %v3617 = vpack.c.b16 %v2873, %v2865
    %v3618 = vpack.c.b16 %v2874, %v2866
    %v3619 = vpack.c.b16 %v2875, %v2867
    %v3620 = vpack.c.b16 %v2876, %v2868
    %v3621 = vpack.c.b16 %v2885, %v2877
    %v3622 = vpack.c.b16 %v2886, %v2878
    %v3623 = vpack.c.b16 %v2887, %v2879
    %v3624 = vpack.c.b16 %v2888, %v2880
    %v3625 = vpack.c.b16 %v2889, %v2881
    %v3626 = vpack.c.b16 %v2890, %v2882
    %v3627 = vpack.c.b16 %v2891, %v2883
    %v3628 = vpack.c.b16 %v2892, %v2884
    %v3629 = vpack.c.b16 %v2901, %v2893
    %v3630 = vpack.c.b16 %v2902, %v2894
    %v3631 = vpack.c.b16 %v2903, %v2895
    %v3632 = vpack.c.b16 %v2904, %v2896
    %v3633 = vpack.c.b16 %v2905, %v2897
    %v3634 = vpack.c.b16 %v2906, %v2898
    %v3635 = vpack.c.b16 %v2907, %v2899
    %v3636 = vpack.c.b16 %v2908, %v2900
    %v3637 = vpack.c.b16 %v2917, %v2909
    %v3638 = vpack.c.b16 %v2918, %v2910
    %v3639 = vpack.c.b16 %v2919, %v2911
    %v3640 = vpack.c.b16 %v2920, %v2912
    %v3641 = vpack.c.b16 %v2921, %v2913
    %v3642 = vpack.c.b16 %v2922, %v2914
    %v3643 = vpack.c.b16 %v2923, %v2915
    %v3644 = vpack.c.b16 %v2924, %v2916
    %v3645 = vpack.c.b16 %v2933, %v2925
    %v3646 = vpack.c.b16 %v2934, %v2926
    %v3647 = vpack.c.b16 %v2935, %v2927
    %v3648 = vpack.c.b16 %v2936, %v2928
    %v3649 = vpack.c.b16 %v2937, %v2929
    %v3650 = vpack.c.b16 %v2938, %v2930
    %v3651 = vpack.c.b16 %v2939, %v2931
    %v3652 = vpack.c.b16 %v2940, %v2932
    %v3653 = vpack.c.b16 %v2949, %v2941
    %v3654 = vpack.c.b16 %v2950, %v2942
    %v3655 = vpack.c.b16 %v2951, %v2943
    %v3656 = vpack.c.b16 %v2952, %v2944
    %v3657 = vpack.c.b16 %v2953, %v2945
    %v3658 = vpack.c.b16 %v2954, %v2946
    %v3659 = vpack.c.b16 %v2955, %v2947
    %v3660 = vpack.c.b16 %v2956, %v2948
    %v3661 = vpack.c.b16 %v2965, %v2957
    %v3662 = vpack.c.b16 %v2966, %v2958
    %v3663 = vpack.c.b16 %v2967, %v2959
    %v3664 = vpack.c.b16 %v2968, %v2960
    %v3665 = vpack.c.b16 %v2969, %v2961
    %v3666 = vpack.c.b16 %v2970, %v2962
    %v3667 = vpack.c.b16 %v2971, %v2963
    %v3668 = vpack.c.b16 %v2972, %v2964
    %v3669 = vpack.c.b16 %v2981, %v2973
    %v3670 = vpack.c.b16 %v2982, %v2974
    %v3671 = vpack.c.b16 %v2983, %v2975
    %v3672 = vpack.c.b16 %v2984, %v2976
    %v3673 = vpack.c.b16 %v2985, %v2977
    %v3674 = vpack.c.b16 %v2986, %v2978
    %v3675 = vpack.c.b16 %v2987, %v2979
    %v3676 = vpack.c.b16 %v2988, %v2980
    %v3677 = vpack.c.b16 %v2997, %v2989
    %v3678 = vpack.c.b16 %v2998, %v2990
    %v3679 = vpack.c.b16 %v2999, %v2991
    %v3680 = vpack.c.b16 %v3000, %v2992
    %v3681 = vpack.c.b16 %v3001, %v2993
    %v3682 = vpack.c.b16 %v3002, %v2994
    %v3683 = vpack.c.b16 %v3003, %v2995
    %v3684 = vpack.c.b16 %v3004, %v2996
    %v3685 = vpack.c.b16 %v3013, %v3005
    %v3686 = vpack.c.b16 %v3014, %v3006
    %v3687 = vpack.c.b16 %v3015, %v3007
    %v3688 = vpack.c.b16 %v3016, %v3008
    %v3689 = vpack.c.b16 %v3017, %v3009
    %v3690 = vpack.c.b16 %v3018, %v3010
    %v3691 = vpack.c.b16 %v3019, %v3011
    %v3692 = vpack.c.b16 %v3020, %v3012
    %v3693 = vpack.c.b16 %v3029, %v3021
    %v3694 = vpack.c.b16 %v3030, %v3022
    %v3695 = vpack.c.b16 %v3031, %v3023
    %v3696 = vpack.c.b16 %v3032, %v3024
    %v3697 = vpack.c.b16 %v3033, %v3025
    %v3698 = vpack.c.b16 %v3034, %v3026
    %v3699 = vpack.c.b16 %v3035, %v3027
    %v3700 = vpack.c.b16 %v3036, %v3028
    %v3701 = vpack.c.b16 %v3045, %v3037
    %v3702 = vpack.c.b16 %v3046, %v3038
    %v3703 = vpack.c.b16 %v3047, %v3039
    %v3704 = vpack.c.b16 %v3048, %v3040
    %v3705 = vpack.c.b16 %v3049, %v3041
    %v3706 = vpack.c.b16 %v3050, %v3042
    %v3707 = vpack.c.b16 %v3051, %v3043
    %v3708 = vpack.c.b16 %v3052, %v3044
    %v3709 = vpack.c.b16 %v3061, %v3053
    %v3710 = vpack.c.b16 %v3062, %v3054
    %v3711 = vpack.c.b16 %v3063, %v3055
    %v3712 = vpack.c.b16 %v3064, %v3056
    %v3713 = vpack.c.b16 %v3065, %v3057
    %v3714 = vpack.c.b16 %v3066, %v3058
    %v3715 = vpack.c.b16 %v3067, %v3059
    %v3716 = vpack.c.b16 %v3068, %v3060
    %v3717 = vpack.c.b16 %v3077, %v3069
    %v3718 = vpack.c.b16 %v3078, %v3070
    %v3719 = vpack.c.b16 %v3079, %v3071
    %v3720 = vpack.c.b16 %v3080, %v3072
    %v3721 = vpack.c.b16 %v3081, %v3073
    %v3722 = vpack.c.b16 %v3082, %v3074
    %v3723 = vpack.c.b16 %v3083, %v3075
    %v3724 = vpack.c.b16 %v3084, %v3076
    %v3725 = vpack.c.b16 %v3093, %v3085
    %v3726 = vpack.c.b16 %v3094, %v3086
    %v3727 = vpack.c.b16 %v3095, %v3087
    %v3728 = vpack.c.b16 %v3096, %v3088
    %v3729 = vpack.c.b16 %v3097, %v3089
    %v3730 = vpack.c.b16 %v3098, %v3090
    %v3731 = vpack.c.b16 %v3099, %v3091
    %v3732 = vpack.c.b16 %v3100, %v3092
    %v3733 = vpack.c.b16 %v3109, %v3101
    %v3734 = vpack.c.b16 %v3110, %v3102
    %v3735 = vpack.c.b16 %v3111, %v3103
    %v3736 = vpack.c.b16 %v3112, %v3104
    %v3737 = vpack.c.b16 %v3113, %v3105
    %v3738 = vpack.c.b16 %v3114, %v3106
    %v3739 = vpack.c.b16 %v3115, %v3107
    %v3740 = vpack.c.b16 %v3116, %v3108
    %v3741 = vpack.c.b16 %v3125, %v3117
    %v3742 = vpack.c.b16 %v3126, %v3118
    %v3743 = vpack.c.b16 %v3127, %v3119
    %v3744 = vpack.c.b16 %v3128, %v3120
    %v3745 = vpack.c.b16 %v3129, %v3121
    %v3746 = vpack.c.b16 %v3130, %v3122
    %v3747 = vpack.c.b16 %v3131, %v3123
    %v3748 = vpack.c.b16 %v3132, %v3124
    %v3749 = vpack.c.b16 %v3141, %v3133
    %v3750 = vpack.c.b16 %v3142, %v3134
    %v3751 = vpack.c.b16 %v3143, %v3135
    %v3752 = vpack.c.b16 %v3144, %v3136
    %v3753 = vpack.c.b16 %v3145, %v3137
    %v3754 = vpack.c.b16 %v3146, %v3138
    %v3755 = vpack.c.b16 %v3147, %v3139
    %v3756 = vpack.c.b16 %v3148, %v3140
    %v3757 = vpack.c.b16 %v3157, %v3149
    %v3758 = vpack.c.b16 %v3158, %v3150
    %v3759 = vpack.c.b16 %v3159, %v3151
    %v3760 = vpack.c.b16 %v3160, %v3152
    %v3761 = vpack.c.b16 %v3161, %v3153
    %v3762 = vpack.c.b16 %v3162, %v3154
    %v3763 = vpack.c.b16 %v3163, %v3155
    %v3764 = vpack.c.b16 %v3164, %v3156
    %v3765 = vpack.c.b16 %v3173, %v3165
    %v3766 = vpack.c.b16 %v3174, %v3166
    %v3767 = vpack.c.b16 %v3175, %v3167
    %v3768 = vpack.c.b16 %v3176, %v3168
    %v3769 = vpack.c.b16 %v3177, %v3169
    %v3770 = vpack.c.b16 %v3178, %v3170
    %v3771 = vpack.c.b16 %v3179, %v3171
    %v3772 = vpack.c.b16 %v3180, %v3172
    %v3773 = vpack.c.b16 %v3189, %v3181
    %v3774 = vpack.c.b16 %v3190, %v3182
    %v3775 = vpack.c.b16 %v3191, %v3183
    %v3776 = vpack.c.b16 %v3192, %v3184
    %v3777 = vpack.c.b16 %v3193, %v3185
    %v3778 = vpack.c.b16 %v3194, %v3186
    %v3779 = vpack.c.b16 %v3195, %v3187
    %v3780 = vpack.c.b16 %v3196, %v3188
    %v3781 = vpack.c.b16 %v3205, %v3197
    %v3782 = vpack.c.b16 %v3206, %v3198
    %v3783 = vpack.c.b16 %v3207, %v3199
    %v3784 = vpack.c.b16 %v3208, %v3200
    %v3785 = vpack.c.b16 %v3209, %v3201
    %v3786 = vpack.c.b16 %v3210, %v3202
    %v3787 = vpack.c.b16 %v3211, %v3203
    %v3788 = vpack.c.b16 %v3212, %v3204
    %v3789 = vpack.c.b16 %v3221, %v3213
    %v3790 = vpack.c.b16 %v3222, %v3214
    %v3791 = vpack.c.b16 %v3223, %v3215
    %v3792 = vpack.c.b16 %v3224, %v3216
    %v3793 = vpack.c.b16 %v3225, %v3217
    %v3794 = vpack.c.b16 %v3226, %v3218
    %v3795 = vpack.c.b16 %v3227, %v3219
    %v3796 = vpack.c.b16 %v3228, %v3220
    %v3797 = vpack.c.b16 %v3237, %v3229
    %v3798 = vpack.c.b16 %v3238, %v3230
    %v3799 = vpack.c.b16 %v3239, %v3231
    %v3800 = vpack.c.b16 %v3240, %v3232
    %v3801 = vpack.c.b16 %v3241, %v3233
    %v3802 = vpack.c.b16 %v3242, %v3234
    %v3803 = vpack.c.b16 %v3243, %v3235
    %v3804 = vpack.c.b16 %v3244, %v3236
    %v3805 = vpack.c.b16 %v3253, %v3245
    %v3806 = vpack.c.b16 %v3254, %v3246
    %v3807 = vpack.c.b16 %v3255, %v3247
    %v3808 = vpack.c.b16 %v3256, %v3248
    %v3809 = vpack.c.b16 %v3257, %v3249
    %v3810 = vpack.c.b16 %v3258, %v3250
    %v3811 = vpack.c.b16 %v3259, %v3251
    %v3812 = vpack.c.b16 %v3260, %v3252
    %v3813 = vpack.c.b16 %v3269, %v3261
    %v3814 = vpack.c.b16 %v3270, %v3262
    %v3815 = vpack.c.b16 %v3271, %v3263
    %v3816 = vpack.c.b16 %v3272, %v3264
    %v3817 = vpack.c.b16 %v3273, %v3265
    %v3818 = vpack.c.b16 %v3274, %v3266
    %v3819 = vpack.c.b16 %v3275, %v3267
    %v3820 = vpack.c.b16 %v3276, %v3268
    %v3821 = vpack.c.b16 %v3285, %v3277
    %v3822 = vpack.c.b16 %v3286, %v3278
    %v3823 = vpack.c.b16 %v3287, %v3279
    %v3824 = vpack.c.b16 %v3288, %v3280
    %v3825 = vpack.c.b16 %v3289, %v3281
    %v3826 = vpack.c.b16 %v3290, %v3282
    %v3827 = vpack.c.b16 %v3291, %v3283
    %v3828 = vpack.c.b16 %v3292, %v3284
    %v3829 = vpack.c.b16 %v3301, %v3293
    %v3830 = vpack.c.b16 %v3302, %v3294
    %v3831 = vpack.c.b16 %v3303, %v3295
    %v3832 = vpack.c.b16 %v3304, %v3296
    %v3833 = vpack.c.b16 %v3305, %v3297
    %v3834 = vpack.c.b16 %v3306, %v3298
    %v3835 = vpack.c.b16 %v3307, %v3299
    %v3836 = vpack.c.b16 %v3308, %v3300
    %v3837 = vpack.c.b16 %v3317, %v3309
    %v3838 = vpack.c.b16 %v3318, %v3310
    %v3839 = vpack.c.b16 %v3319, %v3311
    %v3840 = vpack.c.b16 %v3320, %v3312
    %v3841 = vpack.c.b16 %v3321, %v3313
    %v3842 = vpack.c.b16 %v3322, %v3314
    %v3843 = vpack.c.b16 %v3323, %v3315
    %v3844 = vpack.c.b16 %v3324, %v3316
    %v3845 = vpack.c.b16 %v3333, %v3325
    %v3846 = vpack.c.b16 %v3334, %v3326
    %v3847 = vpack.c.b16 %v3335, %v3327
    %v3848 = vpack.c.b16 %v3336, %v3328
    %v3849 = vpack.c.b16 %v3337, %v3329
    %v3850 = vpack.c.b16 %v3338, %v3330
    %v3851 = vpack.c.b16 %v3339, %v3331
    %v3852 = vpack.c.b16 %v3340, %v3332
    %4365 = vmatprep.subr.bf16.mxu0 %v3342
    %4366 = vmatpush1.bf16.msra.mxu0 %v3341
    %4367 = vmatprep.subr.bf16.mxu0 %v3350
    %4368 = vmatpush1.bf16.msra.mxu0 %v3349
    %4369 = vmatprep.subr.bf16.mxu0 %v3358
    %4370 = vmatpush1.bf16.msra.mxu0 %v3357
    %4371 = vmatprep.subr.bf16.mxu0 %v3366
    %4372 = vmatpush1.bf16.msra.mxu0 %v3365
    %4373 = vmatprep.subr.bf16.mxu0 %v3374
    %4374 = vmatpush1.bf16.msra.mxu0 %v3373
    %4375 = vmatprep.subr.bf16.mxu0 %v3382
    %4376 = vmatpush1.bf16.msra.mxu0 %v3381
    %4377 = vmatprep.subr.bf16.mxu0 %v3390
    %4378 = vmatpush1.bf16.msra.mxu0 %v3389
    %4379 = vmatprep.subr.bf16.mxu0 %v3398
    %4380 = vmatpush1.bf16.msra.mxu0 %v3397
    %4381 = vmatprep.subr.bf16.mxu0 %v3406
    %4382 = vmatpush1.bf16.msra.mxu0 %v3405
    %4383 = vmatprep.subr.bf16.mxu0 %v3414
    %4384 = vmatpush1.bf16.msra.mxu0 %v3413
    %4385 = vmatprep.subr.bf16.mxu0 %v3422
    %4386 = vmatpush1.bf16.msra.mxu0 %v3421
    %4387 = vmatprep.subr.bf16.mxu0 %v3430
    %4388 = vmatpush1.bf16.msra.mxu0 %v3429
    %4389 = vmatprep.subr.bf16.mxu0 %v3438
    %4390 = vmatpush1.bf16.msra.mxu0 %v3437
    %4391 = vmatprep.subr.bf16.mxu0 %v3446
    %4392 = vmatpush1.bf16.msra.mxu0 %v3445
    %4393 = vmatprep.subr.bf16.mxu0 %v3454
    %4394 = vmatpush1.bf16.msra.mxu0 %v3453
    %4395 = vmatprep.subr.bf16.mxu0 %v3462
    %4396 = vmatpush1.bf16.msra.mxu0 %v3461
    %4397 = vmatprep.mubr.bf16.mxu0 %v1244
    %4398 = vmatmul.mubr.bf16.gmra.mrb[0].mxu0 %v1243
    %v4399 = vpop.f32.mrb[0].mxu0
    %v4400 = vadd.f32 %v1768, %v4399
    %v4401 = vpop.f32.mrb[0].mxu0
    %v4402 = vadd.f32 %v1772, %v4401
    %v4403 = vpop.f32.mrb[0].mxu0
    %v4404 = vpop.f32.mrb[0].mxu0
    %4405 = vdwg.mxu0
    %4406 = vmatprep.subr.bf16.mxu0 %v3470
    %4407 = vmatpush1.bf16.msra.mxu0 %v3469
    %4408 = vmatprep.subr.bf16.mxu0 %v3478
    %4409 = vmatpush1.bf16.msra.mxu0 %v3477
    %4410 = vmatprep.subr.bf16.mxu0 %v3486
    %4411 = vmatpush1.bf16.msra.mxu0 %v3485
    %4412 = vmatprep.subr.bf16.mxu0 %v3494
    %4413 = vmatpush1.bf16.msra.mxu0 %v3493
    %4414 = vmatprep.subr.bf16.mxu0 %v3502
    %4415 = vmatpush1.bf16.msra.mxu0 %v3501
    %4416 = vmatprep.subr.bf16.mxu0 %v3510
    %4417 = vmatpush1.bf16.msra.mxu0 %v3509
    %4418 = vmatprep.subr.bf16.mxu0 %v3518
    %4419 = vmatpush1.bf16.msra.mxu0 %v3517
    %4420 = vmatprep.subr.bf16.mxu0 %v3526
    %4421 = vmatpush1.bf16.msra.mxu0 %v3525
    %4422 = vmatprep.subr.bf16.mxu0 %v3534
    %4423 = vmatpush1.bf16.msra.mxu0 %v3533
    %4424 = vmatprep.subr.bf16.mxu0 %v3542
    %4425 = vmatpush1.bf16.msra.mxu0 %v3541
    %4426 = vmatprep.subr.bf16.mxu0 %v3550
    %4427 = vmatpush1.bf16.msra.mxu0 %v3549
    %4428 = vmatprep.subr.bf16.mxu0 %v3558
    %4429 = vmatpush1.bf16.msra.mxu0 %v3557
    %4430 = vmatprep.subr.bf16.mxu0 %v3566
    %4431 = vmatpush1.bf16.msra.mxu0 %v3565
    %4432 = vmatprep.subr.bf16.mxu0 %v3574
    %4433 = vmatpush1.bf16.msra.mxu0 %v3573
    %4434 = vmatprep.subr.bf16.mxu0 %v3582
    %4435 = vmatpush1.bf16.msra.mxu0 %v3581
    %4436 = vmatprep.subr.bf16.mxu0 %v3590
    %4437 = vmatpush1.bf16.msra.mxu0 %v3589
    %4438 = vmatprep.mubr.bf16.mxu0 %v1246
    %4439 = vmatmul.mubr.bf16.gmra.mrb[0].mxu0 %v1245
    %v4440 = vpop.f32.mrb[0].mxu0
    %v4441 = vadd.f32 %v4400, %v4440
    %v4442 = vpop.f32.mrb[0].mxu0
    %v4443 = vadd.f32 %v4402, %v4442
    %v4444 = vpop.f32.mrb[0].mxu0
    %v4445 = vpop.f32.mrb[0].mxu0
    %4446 = vdwg.mxu0
    %4447 = vmatprep.subr.bf16.mxu0 %v3598
    %4448 = vmatpush1.bf16.msra.mxu0 %v3597
    %4449 = vmatprep.subr.bf16.mxu0 %v3606
    %4450 = vmatpush1.bf16.msra.mxu0 %v3605
    %4451 = vmatprep.subr.bf16.mxu0 %v3614
    %4452 = vmatpush1.bf16.msra.mxu0 %v3613
    %4453 = vmatprep.subr.bf16.mxu0 %v3622
    %4454 = vmatpush1.bf16.msra.mxu0 %v3621
    %4455 = vmatprep.subr.bf16.mxu0 %v3630
    %4456 = vmatpush1.bf16.msra.mxu0 %v3629
    %4457 = vmatprep.subr.bf16.mxu0 %v3638
    %4458 = vmatpush1.bf16.msra.mxu0 %v3637
    %4459 = vmatprep.subr.bf16.mxu0 %v3646
    %4460 = vmatpush1.bf16.msra.mxu0 %v3645
    %4461 = vmatprep.subr.bf16.mxu0 %v3654
    %4462 = vmatpush1.bf16.msra.mxu0 %v3653
    %4463 = vmatprep.subr.bf16.mxu0 %v3662
    %4464 = vmatpush1.bf16.msra.mxu0 %v3661
    %4465 = vmatprep.subr.bf16.mxu0 %v3670
    %4466 = vmatpush1.bf16.msra.mxu0 %v3669
    %4467 = vmatprep.subr.bf16.mxu0 %v3678
    %4468 = vmatpush1.bf16.msra.mxu0 %v3677
    %4469 = vmatprep.subr.bf16.mxu0 %v3686
    %4470 = vmatpush1.bf16.msra.mxu0 %v3685
    %4471 = vmatprep.subr.bf16.mxu0 %v3694
    %4472 = vmatpush1.bf16.msra.mxu0 %v3693
    %4473 = vmatprep.subr.bf16.mxu0 %v3702
    %4474 = vmatpush1.bf16.msra.mxu0 %v3701
    %4475 = vmatprep.subr.bf16.mxu0 %v3710
    %4476 = vmatpush1.bf16.msra.mxu0 %v3709
    %4477 = vmatprep.subr.bf16.mxu0 %v3718
    %4478 = vmatpush1.bf16.msra.mxu0 %v3717
    %4479 = vmatprep.mubr.bf16.mxu0 %v1248
    %4480 = vmatmul.mubr.bf16.gmra.mrb[0].mxu0 %v1247
    %v4481 = vpop.f32.mrb[0].mxu0
    %v4482 = vadd.f32 %v4441, %v4481
    %v4483 = vpop.f32.mrb[0].mxu0
    %v4484 = vadd.f32 %v4443, %v4483
    %v4485 = vpop.f32.mrb[0].mxu0
    %v4486 = vpop.f32.mrb[0].mxu0
    %4487 = vdwg.mxu0
    %4488 = vmatprep.subr.bf16.mxu0 %v3726
    %4489 = vmatpush1.bf16.msra.mxu0 %v3725
    %4490 = vmatprep.subr.bf16.mxu0 %v3734
    %4491 = vmatpush1.bf16.msra.mxu0 %v3733
    %4492 = vmatprep.subr.bf16.mxu0 %v3742
    %4493 = vmatpush1.bf16.msra.mxu0 %v3741
    %4494 = vmatprep.subr.bf16.mxu0 %v3750
    %4495 = vmatpush1.bf16.msra.mxu0 %v3749
    %4496 = vmatprep.subr.bf16.mxu0 %v3758
    %4497 = vmatpush1.bf16.msra.mxu0 %v3757
    %4498 = vmatprep.subr.bf16.mxu0 %v3766
    %4499 = vmatpush1.bf16.msra.mxu0 %v3765
    %4500 = vmatprep.subr.bf16.mxu0 %v3774
    %4501 = vmatpush1.bf16.msra.mxu0 %v3773
    %4502 = vmatprep.subr.bf16.mxu0 %v3782
    %4503 = vmatpush1.bf16.msra.mxu0 %v3781
    %4504 = vmatprep.subr.bf16.mxu0 %v3790
    %4505 = vmatpush1.bf16.msra.mxu0 %v3789
    %4506 = vmatprep.subr.bf16.mxu0 %v3798
    %4507 = vmatpush1.bf16.msra.mxu0 %v3797
    %4508 = vmatprep.subr.bf16.mxu0 %v3806
    %4509 = vmatpush1.bf16.msra.mxu0 %v3805
    %4510 = vmatprep.subr.bf16.mxu0 %v3814
    %4511 = vmatpush1.bf16.msra.mxu0 %v3813
    %4512 = vmatprep.subr.bf16.mxu0 %v3822
    %4513 = vmatpush1.bf16.msra.mxu0 %v3821
    %4514 = vmatprep.subr.bf16.mxu0 %v3830
    %4515 = vmatpush1.bf16.msra.mxu0 %v3829
    %4516 = vmatprep.subr.bf16.mxu0 %v3838
    %4517 = vmatpush1.bf16.msra.mxu0 %v3837
    %4518 = vmatprep.subr.bf16.mxu0 %v3846
    %4519 = vmatpush1.bf16.msra.mxu0 %v3845
    %4520 = vmatprep.mubr.bf16.mxu0 %v1250
    %4521 = vmatmul.mubr.bf16.gmra.mrb[0].mxu0 %v1249
    %v4522 = vpop.f32.mrb[0].mxu0
    %v4523 = vadd.f32 %v4482, %v4522
    %v4524 = vpop.f32.mrb[0].mxu0
    %v4525 = vadd.f32 %v4484, %v4524
    %v4526 = vpop.f32.mrb[0].mxu0
    %v4527 = vpop.f32.mrb[0].mxu0
    %4528 = vdwg.mxu0
    %4529 = vmatprep.subr.bf16.mxu0 %v3344
    %4530 = vmatpush1.bf16.msra.mxu0 %v3343
    %4531 = vmatprep.subr.bf16.mxu0 %v3352
    %4532 = vmatpush1.bf16.msra.mxu0 %v3351
    %4533 = vmatprep.subr.bf16.mxu0 %v3360
    %4534 = vmatpush1.bf16.msra.mxu0 %v3359
    %4535 = vmatprep.subr.bf16.mxu0 %v3368
    %4536 = vmatpush1.bf16.msra.mxu0 %v3367
    %4537 = vmatprep.subr.bf16.mxu0 %v3376
    %4538 = vmatpush1.bf16.msra.mxu0 %v3375
    %4539 = vmatprep.subr.bf16.mxu0 %v3384
    %4540 = vmatpush1.bf16.msra.mxu0 %v3383
    %4541 = vmatprep.subr.bf16.mxu0 %v3392
    %4542 = vmatpush1.bf16.msra.mxu0 %v3391
    %4543 = vmatprep.subr.bf16.mxu0 %v3400
    %4544 = vmatpush1.bf16.msra.mxu0 %v3399
    %4545 = vmatprep.subr.bf16.mxu0 %v3408
    %4546 = vmatpush1.bf16.msra.mxu0 %v3407
    %4547 = vmatprep.subr.bf16.mxu0 %v3416
    %4548 = vmatpush1.bf16.msra.mxu0 %v3415
    %4549 = vmatprep.subr.bf16.mxu0 %v3424
    %4550 = vmatpush1.bf16.msra.mxu0 %v3423
    %4551 = vmatprep.subr.bf16.mxu0 %v3432
    %4552 = vmatpush1.bf16.msra.mxu0 %v3431
    %4553 = vmatprep.subr.bf16.mxu0 %v3440
    %4554 = vmatpush1.bf16.msra.mxu0 %v3439
    %4555 = vmatprep.subr.bf16.mxu0 %v3448
    %4556 = vmatpush1.bf16.msra.mxu0 %v3447
    %4557 = vmatprep.subr.bf16.mxu0 %v3456
    %4558 = vmatpush1.bf16.msra.mxu0 %v3455
    %4559 = vmatprep.subr.bf16.mxu0 %v3464
    %4560 = vmatpush1.bf16.msra.mxu0 %v3463
    %4561 = vmatprep.mubr.bf16.mxu0 %v1244
    %4562 = vmatmul.mubr.bf16.gmra.mrb[0].mxu0 %v1243
    %v4563 = vpop.f32.mrb[0].mxu0
    %v4564 = vadd.f32 %v1776, %v4563
    %v4565 = vpop.f32.mrb[0].mxu0
    %v4566 = vadd.f32 %v1780, %v4565
    %v4567 = vpop.f32.mrb[0].mxu0
    %v4568 = vpop.f32.mrb[0].mxu0
    %4569 = vdwg.mxu0
    %4570 = vmatprep.subr.bf16.mxu0 %v3472
    %4571 = vmatpush1.bf16.msra.mxu0 %v3471
    %4572 = vmatprep.subr.bf16.mxu0 %v3480
    %4573 = vmatpush1.bf16.msra.mxu0 %v3479
    %4574 = vmatprep.subr.bf16.mxu0 %v3488
    %4575 = vmatpush1.bf16.msra.mxu0 %v3487
    %4576 = vmatprep.subr.bf16.mxu0 %v3496
    %4577 = vmatpush1.bf16.msra.mxu0 %v3495
    %4578 = vmatprep.subr.bf16.mxu0 %v3504
    %4579 = vmatpush1.bf16.msra.mxu0 %v3503
    %4580 = vmatprep.subr.bf16.mxu0 %v3512
    %4581 = vmatpush1.bf16.msra.mxu0 %v3511
    %4582 = vmatprep.subr.bf16.mxu0 %v3520
    %4583 = vmatpush1.bf16.msra.mxu0 %v3519
    %4584 = vmatprep.subr.bf16.mxu0 %v3528
    %4585 = vmatpush1.bf16.msra.mxu0 %v3527
    %4586 = vmatprep.subr.bf16.mxu0 %v3536
    %4587 = vmatpush1.bf16.msra.mxu0 %v3535
    %4588 = vmatprep.subr.bf16.mxu0 %v3544
    %4589 = vmatpush1.bf16.msra.mxu0 %v3543
    %4590 = vmatprep.subr.bf16.mxu0 %v3552
    %4591 = vmatpush1.bf16.msra.mxu0 %v3551
    %4592 = vmatprep.subr.bf16.mxu0 %v3560
    %4593 = vmatpush1.bf16.msra.mxu0 %v3559
    %4594 = vmatprep.subr.bf16.mxu0 %v3568
    %4595 = vmatpush1.bf16.msra.mxu0 %v3567
    %4596 = vmatprep.subr.bf16.mxu0 %v3576
    %4597 = vmatpush1.bf16.msra.mxu0 %v3575
    %4598 = vmatprep.subr.bf16.mxu0 %v3584
    %4599 = vmatpush1.bf16.msra.mxu0 %v3583
    %4600 = vmatprep.subr.bf16.mxu0 %v3592
    %4601 = vmatpush1.bf16.msra.mxu0 %v3591
    %4602 = vmatprep.mubr.bf16.mxu0 %v1246
    %4603 = vmatmul.mubr.bf16.gmra.mrb[0].mxu0 %v1245
    %v4604 = vpop.f32.mrb[0].mxu0
    %v4605 = vadd.f32 %v4564, %v4604
    %v4606 = vpop.f32.mrb[0].mxu0
    %v4607 = vadd.f32 %v4566, %v4606
    %v4608 = vpop.f32.mrb[0].mxu0
    %v4609 = vpop.f32.mrb[0].mxu0
    %4610 = vdwg.mxu0
    %4611 = vmatprep.subr.bf16.mxu0 %v3600
    %4612 = vmatpush1.bf16.msra.mxu0 %v3599
    %4613 = vmatprep.subr.bf16.mxu0 %v3608
    %4614 = vmatpush1.bf16.msra.mxu0 %v3607
    %4615 = vmatprep.subr.bf16.mxu0 %v3616
    %4616 = vmatpush1.bf16.msra.mxu0 %v3615
    %4617 = vmatprep.subr.bf16.mxu0 %v3624
    %4618 = vmatpush1.bf16.msra.mxu0 %v3623
    %4619 = vmatprep.subr.bf16.mxu0 %v3632
    %4620 = vmatpush1.bf16.msra.mxu0 %v3631
    %4621 = vmatprep.subr.bf16.mxu0 %v3640
    %4622 = vmatpush1.bf16.msra.mxu0 %v3639
    %4623 = vmatprep.subr.bf16.mxu0 %v3648
    %4624 = vmatpush1.bf16.msra.mxu0 %v3647
    %4625 = vmatprep.subr.bf16.mxu0 %v3656
    %4626 = vmatpush1.bf16.msra.mxu0 %v3655
    %4627 = vmatprep.subr.bf16.mxu0 %v3664
    %4628 = vmatpush1.bf16.msra.mxu0 %v3663
    %4629 = vmatprep.subr.bf16.mxu0 %v3672
    %4630 = vmatpush1.bf16.msra.mxu0 %v3671
    %4631 = vmatprep.subr.bf16.mxu0 %v3680
    %4632 = vmatpush1.bf16.msra.mxu0 %v3679
    %4633 = vmatprep.subr.bf16.mxu0 %v3688
    %4634 = vmatpush1.bf16.msra.mxu0 %v3687
    %4635 = vmatprep.subr.bf16.mxu0 %v3696
    %4636 = vmatpush1.bf16.msra.mxu0 %v3695
    %4637 = vmatprep.subr.bf16.mxu0 %v3704
    %4638 = vmatpush1.bf16.msra.mxu0 %v3703
    %4639 = vmatprep.subr.bf16.mxu0 %v3712
    %4640 = vmatpush1.bf16.msra.mxu0 %v3711
    %4641 = vmatprep.subr.bf16.mxu0 %v3720
    %4642 = vmatpush1.bf16.msra.mxu0 %v3719
    %4643 = vmatprep.mubr.bf16.mxu0 %v1248
    %4644 = vmatmul.mubr.bf16.gmra.mrb[0].mxu0 %v1247
    %v4645 = vpop.f32.mrb[0].mxu0
    %v4646 = vadd.f32 %v4605, %v4645
    %v4647 = vpop.f32.mrb[0].mxu0
    %v4648 = vadd.f32 %v4607, %v4647
    %v4649 = vpop.f32.mrb[0].mxu0
    %v4650 = vpop.f32.mrb[0].mxu0
    %4651 = vdwg.mxu0
    %4652 = vmatprep.subr.bf16.mxu0 %v3728
    %4653 = vmatpush1.bf16.msra.mxu0 %v3727
    %4654 = vmatprep.subr.bf16.mxu0 %v3736
    %4655 = vmatpush1.bf16.msra.mxu0 %v3735
    %4656 = vmatprep.subr.bf16.mxu0 %v3744
    %4657 = vmatpush1.bf16.msra.mxu0 %v3743
    %4658 = vmatprep.subr.bf16.mxu0 %v3752
    %4659 = vmatpush1.bf16.msra.mxu0 %v3751
    %4660 = vmatprep.subr.bf16.mxu0 %v3760
    %4661 = vmatpush1.bf16.msra.mxu0 %v3759
    %4662 = vmatprep.subr.bf16.mxu0 %v3768
    %4663 = vmatpush1.bf16.msra.mxu0 %v3767
    %4664 = vmatprep.subr.bf16.mxu0 %v3776
    %4665 = vmatpush1.bf16.msra.mxu0 %v3775
    %4666 = vmatprep.subr.bf16.mxu0 %v3784
    %4667 = vmatpush1.bf16.msra.mxu0 %v3783
    %4668 = vmatprep.subr.bf16.mxu0 %v3792
    %4669 = vmatpush1.bf16.msra.mxu0 %v3791
    %4670 = vmatprep.subr.bf16.mxu0 %v3800
    %4671 = vmatpush1.bf16.msra.mxu0 %v3799
    %4672 = vmatprep.subr.bf16.mxu0 %v3808
    %4673 = vmatpush1.bf16.msra.mxu0 %v3807
    %4674 = vmatprep.subr.bf16.mxu0 %v3816
    %4675 = vmatpush1.bf16.msra.mxu0 %v3815
    %4676 = vmatprep.subr.bf16.mxu0 %v3824
    %4677 = vmatpush1.bf16.msra.mxu0 %v3823
    %4678 = vmatprep.subr.bf16.mxu0 %v3832
    %4679 = vmatpush1.bf16.msra.mxu0 %v3831
    %4680 = vmatprep.subr.bf16.mxu0 %v3840
    %4681 = vmatpush1.bf16.msra.mxu0 %v3839
    %4682 = vmatprep.subr.bf16.mxu0 %v3848
    %4683 = vmatpush1.bf16.msra.mxu0 %v3847
    %4684 = vmatprep.mubr.bf16.mxu0 %v1250
    %4685 = vmatmul.mubr.bf16.gmra.mrb[0].mxu0 %v1249
    %v4686 = vpop.f32.mrb[0].mxu0
    %v4687 = vadd.f32 %v4646, %v4686
    %v4688 = vpop.f32.mrb[0].mxu0
    %v4689 = vadd.f32 %v4648, %v4688
    %v4690 = vpop.f32.mrb[0].mxu0
    %v4691 = vpop.f32.mrb[0].mxu0
    %4692 = vdwg.mxu0
    %4693 = vmatprep.subr.bf16.mxu0 %v3346
    %4694 = vmatpush1.bf16.msra.mxu0 %v3345
    %4695 = vmatprep.subr.bf16.mxu0 %v3354
    %4696 = vmatpush1.bf16.msra.mxu0 %v3353
    %4697 = vmatprep.subr.bf16.mxu0 %v3362
    %4698 = vmatpush1.bf16.msra.mxu0 %v3361
    %4699 = vmatprep.subr.bf16.mxu0 %v3370
    %4700 = vmatpush1.bf16.msra.mxu0 %v3369
    %4701 = vmatprep.subr.bf16.mxu0 %v3378
    %4702 = vmatpush1.bf16.msra.mxu0 %v3377
    %4703 = vmatprep.subr.bf16.mxu0 %v3386
    %4704 = vmatpush1.bf16.msra.mxu0 %v3385
    %4705 = vmatprep.subr.bf16.mxu0 %v3394
    %4706 = vmatpush1.bf16.msra.mxu0 %v3393
    %4707 = vmatprep.subr.bf16.mxu0 %v3402
    %4708 = vmatpush1.bf16.msra.mxu0 %v3401
    %4709 = vmatprep.subr.bf16.mxu0 %v3410
    %4710 = vmatpush1.bf16.msra.mxu0 %v3409
    %4711 = vmatprep.subr.bf16.mxu0 %v3418
    %4712 = vmatpush1.bf16.msra.mxu0 %v3417
    %4713 = vmatprep.subr.bf16.mxu0 %v3426
    %4714 = vmatpush1.bf16.msra.mxu0 %v3425
    %4715 = vmatprep.subr.bf16.mxu0 %v3434
    %4716 = vmatpush1.bf16.msra.mxu0 %v3433
    %4717 = vmatprep.subr.bf16.mxu0 %v3442
    %4718 = vmatpush1.bf16.msra.mxu0 %v3441
    %4719 = vmatprep.subr.bf16.mxu0 %v3450
    %4720 = vmatpush1.bf16.msra.mxu0 %v3449
    %4721 = vmatprep.subr.bf16.mxu0 %v3458
    %4722 = vmatpush1.bf16.msra.mxu0 %v3457
    %4723 = vmatprep.subr.bf16.mxu0 %v3466
    %4724 = vmatpush1.bf16.msra.mxu0 %v3465
    %4725 = vmatprep.mubr.bf16.mxu0 %v1244
    %4726 = vmatmul.mubr.bf16.gmra.mrb[0].mxu0 %v1243
    %v4727 = vpop.f32.mrb[0].mxu0
    %v4728 = vadd.f32 %v1784, %v4727
    %v4729 = vpop.f32.mrb[0].mxu0
    %v4730 = vadd.f32 %v1788, %v4729
    %v4731 = vpop.f32.mrb[0].mxu0
    %v4732 = vpop.f32.mrb[0].mxu0
    %4733 = vdwg.mxu0
    %4734 = vmatprep.subr.bf16.mxu0 %v3474
    %4735 = vmatpush1.bf16.msra.mxu0 %v3473
    %4736 = vmatprep.subr.bf16.mxu0 %v3482
    %4737 = vmatpush1.bf16.msra.mxu0 %v3481
    %4738 = vmatprep.subr.bf16.mxu0 %v3490
    %4739 = vmatpush1.bf16.msra.mxu0 %v3489
    %4740 = vmatprep.subr.bf16.mxu0 %v3498
    %4741 = vmatpush1.bf16.msra.mxu0 %v3497
    %4742 = vmatprep.subr.bf16.mxu0 %v3506
    %4743 = vmatpush1.bf16.msra.mxu0 %v3505
    %4744 = vmatprep.subr.bf16.mxu0 %v3514
    %4745 = vmatpush1.bf16.msra.mxu0 %v3513
    %4746 = vmatprep.subr.bf16.mxu0 %v3522
    %4747 = vmatpush1.bf16.msra.mxu0 %v3521
    %4748 = vmatprep.subr.bf16.mxu0 %v3530
    %4749 = vmatpush1.bf16.msra.mxu0 %v3529
    %4750 = vmatprep.subr.bf16.mxu0 %v3538
    %4751 = vmatpush1.bf16.msra.mxu0 %v3537
    %4752 = vmatprep.subr.bf16.mxu0 %v3546
    %4753 = vmatpush1.bf16.msra.mxu0 %v3545
    %4754 = vmatprep.subr.bf16.mxu0 %v3554
    %4755 = vmatpush1.bf16.msra.mxu0 %v3553
    %4756 = vmatprep.subr.bf16.mxu0 %v3562
    %4757 = vmatpush1.bf16.msra.mxu0 %v3561
    %4758 = vmatprep.subr.bf16.mxu0 %v3570
    %4759 = vmatpush1.bf16.msra.mxu0 %v3569
    %4760 = vmatprep.subr.bf16.mxu0 %v3578
    %4761 = vmatpush1.bf16.msra.mxu0 %v3577
    %4762 = vmatprep.subr.bf16.mxu0 %v3586
    %4763 = vmatpush1.bf16.msra.mxu0 %v3585
    %4764 = vmatprep.subr.bf16.mxu0 %v3594
    %4765 = vmatpush1.bf16.msra.mxu0 %v3593
    %4766 = vmatprep.mubr.bf16.mxu0 %v1246
    %4767 = vmatmul.mubr.bf16.gmra.mrb[0].mxu0 %v1245
    %v4768 = vpop.f32.mrb[0].mxu0
    %v4769 = vadd.f32 %v4728, %v4768
    %v4770 = vpop.f32.mrb[0].mxu0
    %v4771 = vadd.f32 %v4730, %v4770
    %v4772 = vpop.f32.mrb[0].mxu0
    %v4773 = vpop.f32.mrb[0].mxu0
    %4774 = vdwg.mxu0
    %4775 = vmatprep.subr.bf16.mxu0 %v3602
    %4776 = vmatpush1.bf16.msra.mxu0 %v3601
    %4777 = vmatprep.subr.bf16.mxu0 %v3610
    %4778 = vmatpush1.bf16.msra.mxu0 %v3609
    %4779 = vmatprep.subr.bf16.mxu0 %v3618
    %4780 = vmatpush1.bf16.msra.mxu0 %v3617
    %4781 = vmatprep.subr.bf16.mxu0 %v3626
    %4782 = vmatpush1.bf16.msra.mxu0 %v3625
    %4783 = vmatprep.subr.bf16.mxu0 %v3634
    %4784 = vmatpush1.bf16.msra.mxu0 %v3633
    %4785 = vmatprep.subr.bf16.mxu0 %v3642
    %4786 = vmatpush1.bf16.msra.mxu0 %v3641
    %4787 = vmatprep.subr.bf16.mxu0 %v3650
    %4788 = vmatpush1.bf16.msra.mxu0 %v3649
    %4789 = vmatprep.subr.bf16.mxu0 %v3658
    %4790 = vmatpush1.bf16.msra.mxu0 %v3657
    %4791 = vmatprep.subr.bf16.mxu0 %v3666
    %4792 = vmatpush1.bf16.msra.mxu0 %v3665
    %4793 = vmatprep.subr.bf16.mxu0 %v3674
    %4794 = vmatpush1.bf16.msra.mxu0 %v3673
    %4795 = vmatprep.subr.bf16.mxu0 %v3682
    %4796 = vmatpush1.bf16.msra.mxu0 %v3681
    %4797 = vmatprep.subr.bf16.mxu0 %v3690
    %4798 = vmatpush1.bf16.msra.mxu0 %v3689
    %4799 = vmatprep.subr.bf16.mxu0 %v3698
    %4800 = vmatpush1.bf16.msra.mxu0 %v3697
    %4801 = vmatprep.subr.bf16.mxu0 %v3706
    %4802 = vmatpush1.bf16.msra.mxu0 %v3705
    %4803 = vmatprep.subr.bf16.mxu0 %v3714
    %4804 = vmatpush1.bf16.msra.mxu0 %v3713
    %4805 = vmatprep.subr.bf16.mxu0 %v3722
    %4806 = vmatpush1.bf16.msra.mxu0 %v3721
    %4807 = vmatprep.mubr.bf16.mxu0 %v1248
    %4808 = vmatmul.mubr.bf16.gmra.mrb[0].mxu0 %v1247
    %v4809 = vpop.f32.mrb[0].mxu0
    %v4810 = vadd.f32 %v4769, %v4809
    %v4811 = vpop.f32.mrb[0].mxu0
    %v4812 = vadd.f32 %v4771, %v4811
    %v4813 = vpop.f32.mrb[0].mxu0
    %v4814 = vpop.f32.mrb[0].mxu0
    %4815 = vdwg.mxu0
    %4816 = vmatprep.subr.bf16.mxu0 %v3730
    %4817 = vmatpush1.bf16.msra.mxu0 %v3729
    %4818 = vmatprep.subr.bf16.mxu0 %v3738
    %4819 = vmatpush1.bf16.msra.mxu0 %v3737
    %4820 = vmatprep.subr.bf16.mxu0 %v3746
    %4821 = vmatpush1.bf16.msra.mxu0 %v3745
    %4822 = vmatprep.subr.bf16.mxu0 %v3754
    %4823 = vmatpush1.bf16.msra.mxu0 %v3753
    %4824 = vmatprep.subr.bf16.mxu0 %v3762
    %4825 = vmatpush1.bf16.msra.mxu0 %v3761
    %4826 = vmatprep.subr.bf16.mxu0 %v3770
    %4827 = vmatpush1.bf16.msra.mxu0 %v3769
    %4828 = vmatprep.subr.bf16.mxu0 %v3778
    %4829 = vmatpush1.bf16.msra.mxu0 %v3777
    %4830 = vmatprep.subr.bf16.mxu0 %v3786
    %4831 = vmatpush1.bf16.msra.mxu0 %v3785
    %4832 = vmatprep.subr.bf16.mxu0 %v3794
    %4833 = vmatpush1.bf16.msra.mxu0 %v3793
    %4834 = vmatprep.subr.bf16.mxu0 %v3802
    %4835 = vmatpush1.bf16.msra.mxu0 %v3801
    %4836 = vmatprep.subr.bf16.mxu0 %v3810
    %4837 = vmatpush1.bf16.msra.mxu0 %v3809
    %4838 = vmatprep.subr.bf16.mxu0 %v3818
    %4839 = vmatpush1.bf16.msra.mxu0 %v3817
    %4840 = vmatprep.subr.bf16.mxu0 %v3826
    %4841 = vmatpush1.bf16.msra.mxu0 %v3825
    %4842 = vmatprep.subr.bf16.mxu0 %v3834
    %4843 = vmatpush1.bf16.msra.mxu0 %v3833
    %4844 = vmatprep.subr.bf16.mxu0 %v3842
    %4845 = vmatpush1.bf16.msra.mxu0 %v3841
    %4846 = vmatprep.subr.bf16.mxu0 %v3850
    %4847 = vmatpush1.bf16.msra.mxu0 %v3849
    %4848 = vmatprep.mubr.bf16.mxu0 %v1250
    %4849 = vmatmul.mubr.bf16.gmra.mrb[0].mxu0 %v1249
    %v4850 = vpop.f32.mrb[0].mxu0
    %v4851 = vadd.f32 %v4810, %v4850
    %v4852 = vpop.f32.mrb[0].mxu0
    %v4853 = vadd.f32 %v4812, %v4852
    %v4854 = vpop.f32.mrb[0].mxu0
    %v4855 = vpop.f32.mrb[0].mxu0
    %4856 = vdwg.mxu0
    %4857 = vmatprep.subr.bf16.mxu0 %v3348
    %4858 = vmatpush1.bf16.msra.mxu0 %v3347
    %4859 = vmatprep.subr.bf16.mxu0 %v3356
    %4860 = vmatpush1.bf16.msra.mxu0 %v3355
    %4861 = vmatprep.subr.bf16.mxu0 %v3364
    %4862 = vmatpush1.bf16.msra.mxu0 %v3363
    %4863 = vmatprep.subr.bf16.mxu0 %v3372
    %4864 = vmatpush1.bf16.msra.mxu0 %v3371
    %4865 = vmatprep.subr.bf16.mxu0 %v3380
    %4866 = vmatpush1.bf16.msra.mxu0 %v3379
    %4867 = vmatprep.subr.bf16.mxu0 %v3388
    %4868 = vmatpush1.bf16.msra.mxu0 %v3387
    %4869 = vmatprep.subr.bf16.mxu0 %v3396
    %4870 = vmatpush1.bf16.msra.mxu0 %v3395
    %4871 = vmatprep.subr.bf16.mxu0 %v3404
    %4872 = vmatpush1.bf16.msra.mxu0 %v3403
    %4873 = vmatprep.subr.bf16.mxu0 %v3412
    %4874 = vmatpush1.bf16.msra.mxu0 %v3411
    %4875 = vmatprep.subr.bf16.mxu0 %v3420
    %4876 = vmatpush1.bf16.msra.mxu0 %v3419
    %4877 = vmatprep.subr.bf16.mxu0 %v3428
    %4878 = vmatpush1.bf16.msra.mxu0 %v3427
    %4879 = vmatprep.subr.bf16.mxu0 %v3436
    %4880 = vmatpush1.bf16.msra.mxu0 %v3435
    %4881 = vmatprep.subr.bf16.mxu0 %v3444
    %4882 = vmatpush1.bf16.msra.mxu0 %v3443
    %4883 = vmatprep.subr.bf16.mxu0 %v3452
    %4884 = vmatpush1.bf16.msra.mxu0 %v3451
    %4885 = vmatprep.subr.bf16.mxu0 %v3460
    %4886 = vmatpush1.bf16.msra.mxu0 %v3459
    %4887 = vmatprep.subr.bf16.mxu0 %v3468
    %4888 = vmatpush1.bf16.msra.mxu0 %v3467
    %4889 = vmatprep.mubr.bf16.mxu0 %v1244
    %4890 = vmatmul.mubr.bf16.gmra.mrb[0].mxu0 %v1243
    %v4891 = vpop.f32.mrb[0].mxu0
    %v4892 = vadd.f32 %v1792, %v4891
    %v4893 = vpop.f32.mrb[0].mxu0
    %v4894 = vadd.f32 %v1796, %v4893
    %v4895 = vpop.f32.mrb[0].mxu0
    %v4896 = vpop.f32.mrb[0].mxu0
    %4897 = vdwg.mxu0
    %4898 = vmatprep.subr.bf16.mxu0 %v3476
    %4899 = vmatpush1.bf16.msra.mxu0 %v3475
    %4900 = vmatprep.subr.bf16.mxu0 %v3484
    %4901 = vmatpush1.bf16.msra.mxu0 %v3483
    %4902 = vmatprep.subr.bf16.mxu0 %v3492
    %4903 = vmatpush1.bf16.msra.mxu0 %v3491
    %4904 = vmatprep.subr.bf16.mxu0 %v3500
    %4905 = vmatpush1.bf16.msra.mxu0 %v3499
    %4906 = vmatprep.subr.bf16.mxu0 %v3508
    %4907 = vmatpush1.bf16.msra.mxu0 %v3507
    %4908 = vmatprep.subr.bf16.mxu0 %v3516
    %4909 = vmatpush1.bf16.msra.mxu0 %v3515
    %4910 = vmatprep.subr.bf16.mxu0 %v3524
    %4911 = vmatpush1.bf16.msra.mxu0 %v3523
    %4912 = vmatprep.subr.bf16.mxu0 %v3532
    %4913 = vmatpush1.bf16.msra.mxu0 %v3531
    %4914 = vmatprep.subr.bf16.mxu0 %v3540
    %4915 = vmatpush1.bf16.msra.mxu0 %v3539
    %4916 = vmatprep.subr.bf16.mxu0 %v3548
    %4917 = vmatpush1.bf16.msra.mxu0 %v3547
    %4918 = vmatprep.subr.bf16.mxu0 %v3556
    %4919 = vmatpush1.bf16.msra.mxu0 %v3555
    %4920 = vmatprep.subr.bf16.mxu0 %v3564
    %4921 = vmatpush1.bf16.msra.mxu0 %v3563
    %4922 = vmatprep.subr.bf16.mxu0 %v3572
    %4923 = vmatpush1.bf16.msra.mxu0 %v3571
    %4924 = vmatprep.subr.bf16.mxu0 %v3580
    %4925 = vmatpush1.bf16.msra.mxu0 %v3579
    %4926 = vmatprep.subr.bf16.mxu0 %v3588
    %4927 = vmatpush1.bf16.msra.mxu0 %v3587
    %4928 = vmatprep.subr.bf16.mxu0 %v3596
    %4929 = vmatpush1.bf16.msra.mxu0 %v3595
    %4930 = vmatprep.mubr.bf16.mxu0 %v1246
    %4931 = vmatmul.mubr.bf16.gmra.mrb[0].mxu0 %v1245
    %v4932 = vpop.f32.mrb[0].mxu0
    %v4933 = vadd.f32 %v4892, %v4932
    %v4934 = vpop.f32.mrb[0].mxu0
    %v4935 = vadd.f32 %v4894, %v4934
    %v4936 = vpop.f32.mrb[0].mxu0
    %v4937 = vpop.f32.mrb[0].mxu0
    %4938 = vdwg.mxu0
    %4939 = vmatprep.subr.bf16.mxu0 %v3604
    %4940 = vmatpush1.bf16.msra.mxu0 %v3603
    %4941 = vmatprep.subr.bf16.mxu0 %v3612
    %4942 = vmatpush1.bf16.msra.mxu0 %v3611
    %4943 = vmatprep.subr.bf16.mxu0 %v3620
    %4944 = vmatpush1.bf16.msra.mxu0 %v3619
    %4945 = vmatprep.subr.bf16.mxu0 %v3628
    %4946 = vmatpush1.bf16.msra.mxu0 %v3627
    %4947 = vmatprep.subr.bf16.mxu0 %v3636
    %4948 = vmatpush1.bf16.msra.mxu0 %v3635
    %4949 = vmatprep.subr.bf16.mxu0 %v3644
    %4950 = vmatpush1.bf16.msra.mxu0 %v3643
    %4951 = vmatprep.subr.bf16.mxu0 %v3652
    %4952 = vmatpush1.bf16.msra.mxu0 %v3651
    %4953 = vmatprep.subr.bf16.mxu0 %v3660
    %4954 = vmatpush1.bf16.msra.mxu0 %v3659
    %4955 = vmatprep.subr.bf16.mxu0 %v3668
    %4956 = vmatpush1.bf16.msra.mxu0 %v3667
    %4957 = vmatprep.subr.bf16.mxu0 %v3676
    %4958 = vmatpush1.bf16.msra.mxu0 %v3675
    %4959 = vmatprep.subr.bf16.mxu0 %v3684
    %4960 = vmatpush1.bf16.msra.mxu0 %v3683
    %4961 = vmatprep.subr.bf16.mxu0 %v3692
    %4962 = vmatpush1.bf16.msra.mxu0 %v3691
    %4963 = vmatprep.subr.bf16.mxu0 %v3700
    %4964 = vmatpush1.bf16.msra.mxu0 %v3699
    %4965 = vmatprep.subr.bf16.mxu0 %v3708
    %4966 = vmatpush1.bf16.msra.mxu0 %v3707
    %4967 = vmatprep.subr.bf16.mxu0 %v3716
    %4968 = vmatpush1.bf16.msra.mxu0 %v3715
    %4969 = vmatprep.subr.bf16.mxu0 %v3724
    %4970 = vmatpush1.bf16.msra.mxu0 %v3723
    %4971 = vmatprep.mubr.bf16.mxu0 %v1248
    %4972 = vmatmul.mubr.bf16.gmra.mrb[0].mxu0 %v1247
    %v4973 = vpop.f32.mrb[0].mxu0
    %v4974 = vadd.f32 %v4933, %v4973
    %v4975 = vpop.f32.mrb[0].mxu0
    %v4976 = vadd.f32 %v4935, %v4975
    %v4977 = vpop.f32.mrb[0].mxu0
    %v4978 = vpop.f32.mrb[0].mxu0
    %4979 = vdwg.mxu0
    %4980 = vmatprep.subr.bf16.mxu0 %v3732
    %4981 = vmatpush1.bf16.msra.mxu0 %v3731
    %4982 = vmatprep.subr.bf16.mxu0 %v3740
    %4983 = vmatpush1.bf16.msra.mxu0 %v3739
    %4984 = vmatprep.subr.bf16.mxu0 %v3748
    %4985 = vmatpush1.bf16.msra.mxu0 %v3747
    %4986 = vmatprep.subr.bf16.mxu0 %v3756
    %4987 = vmatpush1.bf16.msra.mxu0 %v3755
    %4988 = vmatprep.subr.bf16.mxu0 %v3764
    %4989 = vmatpush1.bf16.msra.mxu0 %v3763
    %4990 = vmatprep.subr.bf16.mxu0 %v3772
    %4991 = vmatpush1.bf16.msra.mxu0 %v3771
    %4992 = vmatprep.subr.bf16.mxu0 %v3780
    %4993 = vmatpush1.bf16.msra.mxu0 %v3779
    %4994 = vmatprep.subr.bf16.mxu0 %v3788
    %4995 = vmatpush1.bf16.msra.mxu0 %v3787
    %4996 = vmatprep.subr.bf16.mxu0 %v3796
    %4997 = vmatpush1.bf16.msra.mxu0 %v3795
    %4998 = vmatprep.subr.bf16.mxu0 %v3804
    %4999 = vmatpush1.bf16.msra.mxu0 %v3803
    %5000 = vmatprep.subr.bf16.mxu0 %v3812
    %5001 = vmatpush1.bf16.msra.mxu0 %v3811
    %5002 = vmatprep.subr.bf16.mxu0 %v3820
    %5003 = vmatpush1.bf16.msra.mxu0 %v3819
    %5004 = vmatprep.subr.bf16.mxu0 %v3828
    %5005 = vmatpush1.bf16.msra.mxu0 %v3827
    %5006 = vmatprep.subr.bf16.mxu0 %v3836
    %5007 = vmatpush1.bf16.msra.mxu0 %v3835
    %5008 = vmatprep.subr.bf16.mxu0 %v3844
    %5009 = vmatpush1.bf16.msra.mxu0 %v3843
    %5010 = vmatprep.subr.bf16.mxu0 %v3852
    %5011 = vmatpush1.bf16.msra.mxu0 %v3851
    %5012 = vmatprep.mubr.bf16.mxu0 %v1250
    %5013 = vmatmul.mubr.bf16.gmra.mrb[0].mxu0 %v1249
    %v5014 = vpop.f32.mrb[0].mxu0
    %v5015 = vadd.f32 %v4974, %v5014
    %v5016 = vpop.f32.mrb[0].mxu0
    %v5017 = vadd.f32 %v4976, %v5016
    %v5018 = vpop.f32.mrb[0].mxu0
    %v5019 = vpop.f32.mrb[0].mxu0
    %5020 = vdwg.mxu0
    %v5021 = vmul.f32 %v4523, 0.01
    %v5022 = vmul.f32 %v4525, 0.01
    %v5023 = vmul.f32 %v4687, 0.01
    %v5024 = vmul.f32 %v4689, 0.01
    %v5025 = vmul.f32 %v4851, 0.01
    %v5026 = vmul.f32 %v4853, 0.01
    %v5027 = vmul.f32 %v5015, 0.01
    %v5028 = vmul.f32 %v5017, 0.01
    %v5029 = vmax.f32 %v4523, %v5021
    %v5030 = vmax.f32 %v4525, %v5022
    %v5031 = vmax.f32 %v4687, %v5023
    %v5032 = vmax.f32 %v4689, %v5024
    %v5033 = vmax.f32 %v4851, %v5025
    %v5034 = vmax.f32 %v4853, %v5026
    %v5035 = vmax.f32 %v5015, %v5027
    %v5036 = vmax.f32 %v5017, %v5028
    %v5037 = vpack.c.bf16 %v5029, %v5029
    %v5038 = vpack.c.bf16 %v5030, %v5030
    %v5039 = vpack.c.bf16 %v5031, %v5031
    %v5040 = vpack.c.bf16 %v5032, %v5032
    %v5041 = vpack.c.bf16 %v5033, %v5033
    %v5042 = vpack.c.bf16 %v5034, %v5034
    %v5043 = vpack.c.bf16 %v5035, %v5035
    %v5044 = vpack.c.bf16 %v5036, %v5036
    %v5045 = vld [vmem:[#allocation14] sm:$0xff]
    %v5046 = vld [vmem:[#allocation14 + $0x8] sm:$0xff]
    %v5047 = vld [vmem:[#allocation14 + $0x10] sm:$0xff]
    %v5048 = vld [vmem:[#allocation14 + $0x18] sm:$0xff]
    %v5049 = vld [vmem:[#allocation14 + $0x20] sm:$0xff]
    %v5050 = vld [vmem:[#allocation14 + $0x28] sm:$0xff]
    %v5051 = vld [vmem:[#allocation14 + $0x30] sm:$0xff]
    %v5052 = vld [vmem:[#allocation14 + $0x38] sm:$0xff]
    %v5053 = vld [vmem:[#allocation14 + $0x40] sm:$0xff]
    %v5054 = vld [vmem:[#allocation14 + $0x48] sm:$0xff]
    %v5055 = vld [vmem:[#allocation14 + $0x50] sm:$0xff]
    %v5056 = vld [vmem:[#allocation14 + $0x58] sm:$0xff]
    %v5057 = vld [vmem:[#allocation14 + $0x60] sm:$0xff]
    %v5058 = vld [vmem:[#allocation14 + $0x68] sm:$0xff]
    %v5059 = vld [vmem:[#allocation14 + $0x70] sm:$0xff]
    %v5060 = vld [vmem:[#allocation14 + $0x78] sm:$0xff]
    %v5061 = vld [vmem:[#allocation14 + $0x80] sm:$0xff]
    %v5062 = vld [vmem:[#allocation14 + $0x88] sm:$0xff]
    %v5063 = vld [vmem:[#allocation14 + $0x90] sm:$0xff]
    %v5064 = vld [vmem:[#allocation14 + $0x98] sm:$0xff]
    %v5065 = vld [vmem:[#allocation14 + $0xa0] sm:$0xff]
    %v5066 = vld [vmem:[#allocation14 + $0xa8] sm:$0xff]
    %v5067 = vld [vmem:[#allocation14 + $0xb0] sm:$0xff]
    %v5068 = vld [vmem:[#allocation14 + $0xb8] sm:$0xff]
    %v5069 = vld [vmem:[#allocation14 + $0xc0] sm:$0xff]
    %v5070 = vld [vmem:[#allocation14 + $0xc8] sm:$0xff]
    %v5071 = vld [vmem:[#allocation14 + $0xd0] sm:$0xff]
    %v5072 = vld [vmem:[#allocation14 + $0xd8] sm:$0xff]
    %v5073 = vld [vmem:[#allocation14 + $0xe0] sm:$0xff]
    %v5074 = vld [vmem:[#allocation14 + $0xe8] sm:$0xff]
    %v5075 = vld [vmem:[#allocation14 + $0xf0] sm:$0xff]
    %v5076 = vld [vmem:[#allocation14 + $0xf8] sm:$0xff]
    %v5077 = vld [vmem:[#allocation14 + $0x100] sm:$0xff]
    %v5078 = vld [vmem:[#allocation14 + $0x108] sm:$0xff]
    %v5079 = vld [vmem:[#allocation14 + $0x110] sm:$0xff]
    %v5080 = vld [vmem:[#allocation14 + $0x118] sm:$0xff]
    %v5081 = vld [vmem:[#allocation14 + $0x120] sm:$0xff]
    %v5082 = vld [vmem:[#allocation14 + $0x128] sm:$0xff]
    %v5083 = vld [vmem:[#allocation14 + $0x130] sm:$0xff]
    %v5084 = vld [vmem:[#allocation14 + $0x138] sm:$0xff]
    %v5085 = vld [vmem:[#allocation14 + $0x140] sm:$0xff]
    %v5086 = vld [vmem:[#allocation14 + $0x148] sm:$0xff]
    %v5087 = vld [vmem:[#allocation14 + $0x150] sm:$0xff]
    %v5088 = vld [vmem:[#allocation14 + $0x158] sm:$0xff]
    %v5089 = vld [vmem:[#allocation14 + $0x160] sm:$0xff]
    %v5090 = vld [vmem:[#allocation14 + $0x168] sm:$0xff]
    %v5091 = vld [vmem:[#allocation14 + $0x170] sm:$0xff]
    %v5092 = vld [vmem:[#allocation14 + $0x178] sm:$0xff]
    %v5093 = vld [vmem:[#allocation14 + $0x180] sm:$0xff]
    %v5094 = vld [vmem:[#allocation14 + $0x188] sm:$0xff]
    %v5095 = vld [vmem:[#allocation14 + $0x190] sm:$0xff]
    %v5096 = vld [vmem:[#allocation14 + $0x198] sm:$0xff]
    %v5097 = vld [vmem:[#allocation14 + $0x1a0] sm:$0xff]
    %v5098 = vld [vmem:[#allocation14 + $0x1a8] sm:$0xff]
    %v5099 = vld [vmem:[#allocation14 + $0x1b0] sm:$0xff]
    %v5100 = vld [vmem:[#allocation14 + $0x1b8] sm:$0xff]
    %v5101 = vld [vmem:[#allocation14 + $0x1c0] sm:$0xff]
    %v5102 = vld [vmem:[#allocation14 + $0x1c8] sm:$0xff]
    %v5103 = vld [vmem:[#allocation14 + $0x1d0] sm:$0xff]
    %v5104 = vld [vmem:[#allocation14 + $0x1d8] sm:$0xff]
    %v5105 = vld [vmem:[#allocation14 + $0x1e0] sm:$0xff]
    %v5106 = vld [vmem:[#allocation14 + $0x1e8] sm:$0xff]
    %v5107 = vld [vmem:[#allocation14 + $0x1f0] sm:$0xff]
    %v5108 = vld [vmem:[#allocation14 + $0x1f8] sm:$0xff]
    %v5109 = vld [vmem:[#allocation14 + $0x200] sm:$0xff]
    %v5110 = vld [vmem:[#allocation14 + $0x208] sm:$0xff]
    %v5111 = vld [vmem:[#allocation14 + $0x210] sm:$0xff]
    %v5112 = vld [vmem:[#allocation14 + $0x218] sm:$0xff]
    %v5113 = vld [vmem:[#allocation14 + $0x220] sm:$0xff]
    %v5114 = vld [vmem:[#allocation14 + $0x228] sm:$0xff]
    %v5115 = vld [vmem:[#allocation14 + $0x230] sm:$0xff]
    %v5116 = vld [vmem:[#allocation14 + $0x238] sm:$0xff]
    %v5117 = vld [vmem:[#allocation14 + $0x240] sm:$0xff]
    %v5118 = vld [vmem:[#allocation14 + $0x248] sm:$0xff]
    %v5119 = vld [vmem:[#allocation14 + $0x250] sm:$0xff]
    %v5120 = vld [vmem:[#allocation14 + $0x258] sm:$0xff]
    %v5121 = vld [vmem:[#allocation14 + $0x260] sm:$0xff]
    %v5122 = vld [vmem:[#allocation14 + $0x268] sm:$0xff]
    %v5123 = vld [vmem:[#allocation14 + $0x270] sm:$0xff]
    %v5124 = vld [vmem:[#allocation14 + $0x278] sm:$0xff]
    %v5125 = vld [vmem:[#allocation14 + $0x280] sm:$0xff]
    %v5126 = vld [vmem:[#allocation14 + $0x288] sm:$0xff]
    %v5127 = vld [vmem:[#allocation14 + $0x290] sm:$0xff]
    %v5128 = vld [vmem:[#allocation14 + $0x298] sm:$0xff]
    %v5129 = vld [vmem:[#allocation14 + $0x2a0] sm:$0xff]
    %v5130 = vld [vmem:[#allocation14 + $0x2a8] sm:$0xff]
    %v5131 = vld [vmem:[#allocation14 + $0x2b0] sm:$0xff]
    %v5132 = vld [vmem:[#allocation14 + $0x2b8] sm:$0xff]
    %v5133 = vld [vmem:[#allocation14 + $0x2c0] sm:$0xff]
    %v5134 = vld [vmem:[#allocation14 + $0x2c8] sm:$0xff]
    %v5135 = vld [vmem:[#allocation14 + $0x2d0] sm:$0xff]
    %v5136 = vld [vmem:[#allocation14 + $0x2d8] sm:$0xff]
    %v5137 = vld [vmem:[#allocation14 + $0x2e0] sm:$0xff]
    %v5138 = vld [vmem:[#allocation14 + $0x2e8] sm:$0xff]
    %v5139 = vld [vmem:[#allocation14 + $0x2f0] sm:$0xff]
    %v5140 = vld [vmem:[#allocation14 + $0x2f8] sm:$0xff]
    %v5141 = vld [vmem:[#allocation14 + $0x300] sm:$0xff]
    %v5142 = vld [vmem:[#allocation14 + $0x308] sm:$0xff]
    %v5143 = vld [vmem:[#allocation14 + $0x310] sm:$0xff]
    %v5144 = vld [vmem:[#allocation14 + $0x318] sm:$0xff]
    %v5145 = vld [vmem:[#allocation14 + $0x320] sm:$0xff]
    %v5146 = vld [vmem:[#allocation14 + $0x328] sm:$0xff]
    %v5147 = vld [vmem:[#allocation14 + $0x330] sm:$0xff]
    %v5148 = vld [vmem:[#allocation14 + $0x338] sm:$0xff]
    %v5149 = vld [vmem:[#allocation14 + $0x340] sm:$0xff]
    %v5150 = vld [vmem:[#allocation14 + $0x348] sm:$0xff]
    %v5151 = vld [vmem:[#allocation14 + $0x350] sm:$0xff]
    %v5152 = vld [vmem:[#allocation14 + $0x358] sm:$0xff]
    %v5153 = vld [vmem:[#allocation14 + $0x360] sm:$0xff]
    %v5154 = vld [vmem:[#allocation14 + $0x368] sm:$0xff]
    %v5155 = vld [vmem:[#allocation14 + $0x370] sm:$0xff]
    %v5156 = vld [vmem:[#allocation14 + $0x378] sm:$0xff]
    %v5157 = vld [vmem:[#allocation14 + $0x380] sm:$0xff]
    %v5158 = vld [vmem:[#allocation14 + $0x388] sm:$0xff]
    %v5159 = vld [vmem:[#allocation14 + $0x390] sm:$0xff]
    %v5160 = vld [vmem:[#allocation14 + $0x398] sm:$0xff]
    %v5161 = vld [vmem:[#allocation14 + $0x3a0] sm:$0xff]
    %v5162 = vld [vmem:[#allocation14 + $0x3a8] sm:$0xff]
    %v5163 = vld [vmem:[#allocation14 + $0x3b0] sm:$0xff]
    %v5164 = vld [vmem:[#allocation14 + $0x3b8] sm:$0xff]
    %v5165 = vld [vmem:[#allocation14 + $0x3c0] sm:$0xff]
    %v5166 = vld [vmem:[#allocation14 + $0x3c8] sm:$0xff]
    %v5167 = vld [vmem:[#allocation14 + $0x3d0] sm:$0xff]
    %v5168 = vld [vmem:[#allocation14 + $0x3d8] sm:$0xff]
    %v5169 = vld [vmem:[#allocation14 + $0x3e0] sm:$0xff]
    %v5170 = vld [vmem:[#allocation14 + $0x3e8] sm:$0xff]
    %v5171 = vld [vmem:[#allocation14 + $0x3f0] sm:$0xff]
    %v5172 = vld [vmem:[#allocation14 + $0x3f8] sm:$0xff]
    %v5173 = vld [vmem:[#allocation16] sm:$0x3]
    %v5175 = vlaneseq
    %v5176 = vshrl.u32 %v5175, 7
    %v5177 = vsub.s32 0, %v5176
    %v5178 = vrot.slane %v5173, %v5177
    %v5179 = vlaneseq
    %v5180 = vshrl.u32 %v5179, 7
    %v5181 = vsub.s32 1, %v5180
    %v5182 = vrot.slane %v5173, %v5181
    %v5313 = vunpack.c.l.b16 %v5045
    %v5314 = vunpack.c.h.b16 %v5045
    %v5315 = vunpack.c.l.b16 %v5046
    %v5316 = vunpack.c.h.b16 %v5046
    %v5317 = vunpack.c.l.b16 %v5047
    %v5318 = vunpack.c.h.b16 %v5047
    %v5319 = vunpack.c.l.b16 %v5048
    %v5320 = vunpack.c.h.b16 %v5048
    %v5321 = vunpack.c.l.b16 %v5049
    %v5322 = vunpack.c.h.b16 %v5049
    %v5323 = vunpack.c.l.b16 %v5050
    %v5324 = vunpack.c.h.b16 %v5050
    %v5325 = vunpack.c.l.b16 %v5051
    %v5326 = vunpack.c.h.b16 %v5051
    %v5327 = vunpack.c.l.b16 %v5052
    %v5328 = vunpack.c.h.b16 %v5052
    %v5329 = vunpack.c.l.b16 %v5053
    %v5330 = vunpack.c.h.b16 %v5053
    %v5331 = vunpack.c.l.b16 %v5054
    %v5332 = vunpack.c.h.b16 %v5054
    %v5333 = vunpack.c.l.b16 %v5055
    %v5334 = vunpack.c.h.b16 %v5055
    %v5335 = vunpack.c.l.b16 %v5056
    %v5336 = vunpack.c.h.b16 %v5056
    %v5337 = vunpack.c.l.b16 %v5057
    %v5338 = vunpack.c.h.b16 %v5057
    %v5339 = vunpack.c.l.b16 %v5058
    %v5340 = vunpack.c.h.b16 %v5058
    %v5341 = vunpack.c.l.b16 %v5059
    %v5342 = vunpack.c.h.b16 %v5059
    %v5343 = vunpack.c.l.b16 %v5060
    %v5344 = vunpack.c.h.b16 %v5060
    %v5345 = vunpack.c.l.b16 %v5061
    %v5346 = vunpack.c.h.b16 %v5061
    %v5347 = vunpack.c.l.b16 %v5062
    %v5348 = vunpack.c.h.b16 %v5062
    %v5349 = vunpack.c.l.b16 %v5063
    %v5350 = vunpack.c.h.b16 %v5063
    %v5351 = vunpack.c.l.b16 %v5064
    %v5352 = vunpack.c.h.b16 %v5064
    %v5353 = vunpack.c.l.b16 %v5065
    %v5354 = vunpack.c.h.b16 %v5065
    %v5355 = vunpack.c.l.b16 %v5066
    %v5356 = vunpack.c.h.b16 %v5066
    %v5357 = vunpack.c.l.b16 %v5067
    %v5358 = vunpack.c.h.b16 %v5067
    %v5359 = vunpack.c.l.b16 %v5068
    %v5360 = vunpack.c.h.b16 %v5068
    %v5361 = vunpack.c.l.b16 %v5069
    %v5362 = vunpack.c.h.b16 %v5069
    %v5363 = vunpack.c.l.b16 %v5070
    %v5364 = vunpack.c.h.b16 %v5070
    %v5365 = vunpack.c.l.b16 %v5071
    %v5366 = vunpack.c.h.b16 %v5071
    %v5367 = vunpack.c.l.b16 %v5072
    %v5368 = vunpack.c.h.b16 %v5072
    %v5369 = vunpack.c.l.b16 %v5073
    %v5370 = vunpack.c.h.b16 %v5073
    %v5371 = vunpack.c.l.b16 %v5074
    %v5372 = vunpack.c.h.b16 %v5074
    %v5373 = vunpack.c.l.b16 %v5075
    %v5374 = vunpack.c.h.b16 %v5075
    %v5375 = vunpack.c.l.b16 %v5076
    %v5376 = vunpack.c.h.b16 %v5076
    %v5377 = vunpack.c.l.b16 %v5077
    %v5378 = vunpack.c.h.b16 %v5077
    %v5379 = vunpack.c.l.b16 %v5078
    %v5380 = vunpack.c.h.b16 %v5078
    %v5381 = vunpack.c.l.b16 %v5079
    %v5382 = vunpack.c.h.b16 %v5079
    %v5383 = vunpack.c.l.b16 %v5080
    %v5384 = vunpack.c.h.b16 %v5080
    %v5385 = vunpack.c.l.b16 %v5081
    %v5386 = vunpack.c.h.b16 %v5081
    %v5387 = vunpack.c.l.b16 %v5082
    %v5388 = vunpack.c.h.b16 %v5082
    %v5389 = vunpack.c.l.b16 %v5083
    %v5390 = vunpack.c.h.b16 %v5083
    %v5391 = vunpack.c.l.b16 %v5084
    %v5392 = vunpack.c.h.b16 %v5084
    %v5393 = vunpack.c.l.b16 %v5085
    %v5394 = vunpack.c.h.b16 %v5085
    %v5395 = vunpack.c.l.b16 %v5086
    %v5396 = vunpack.c.h.b16 %v5086
    %v5397 = vunpack.c.l.b16 %v5087
    %v5398 = vunpack.c.h.b16 %v5087
    %v5399 = vunpack.c.l.b16 %v5088
    %v5400 = vunpack.c.h.b16 %v5088
    %v5401 = vunpack.c.l.b16 %v5089
    %v5402 = vunpack.c.h.b16 %v5089
    %v5403 = vunpack.c.l.b16 %v5090
    %v5404 = vunpack.c.h.b16 %v5090
    %v5405 = vunpack.c.l.b16 %v5091
    %v5406 = vunpack.c.h.b16 %v5091
    %v5407 = vunpack.c.l.b16 %v5092
    %v5408 = vunpack.c.h.b16 %v5092
    %v5409 = vunpack.c.l.b16 %v5093
    %v5410 = vunpack.c.h.b16 %v5093
    %v5411 = vunpack.c.l.b16 %v5094
    %v5412 = vunpack.c.h.b16 %v5094
    %v5413 = vunpack.c.l.b16 %v5095
    %v5414 = vunpack.c.h.b16 %v5095
    %v5415 = vunpack.c.l.b16 %v5096
    %v5416 = vunpack.c.h.b16 %v5096
    %v5417 = vunpack.c.l.b16 %v5097
    %v5418 = vunpack.c.h.b16 %v5097
    %v5419 = vunpack.c.l.b16 %v5098
    %v5420 = vunpack.c.h.b16 %v5098
    %v5421 = vunpack.c.l.b16 %v5099
    %v5422 = vunpack.c.h.b16 %v5099
    %v5423 = vunpack.c.l.b16 %v5100
    %v5424 = vunpack.c.h.b16 %v5100
    %v5425 = vunpack.c.l.b16 %v5101
    %v5426 = vunpack.c.h.b16 %v5101
    %v5427 = vunpack.c.l.b16 %v5102
    %v5428 = vunpack.c.h.b16 %v5102
    %v5429 = vunpack.c.l.b16 %v5103
    %v5430 = vunpack.c.h.b16 %v5103
    %v5431 = vunpack.c.l.b16 %v5104
    %v5432 = vunpack.c.h.b16 %v5104
    %v5433 = vunpack.c.l.b16 %v5105
    %v5434 = vunpack.c.h.b16 %v5105
    %v5435 = vunpack.c.l.b16 %v5106
    %v5436 = vunpack.c.h.b16 %v5106
    %v5437 = vunpack.c.l.b16 %v5107
    %v5438 = vunpack.c.h.b16 %v5107
    %v5439 = vunpack.c.l.b16 %v5108
    %v5440 = vunpack.c.h.b16 %v5108
    %v5441 = vunpack.c.l.b16 %v5109
    %v5442 = vunpack.c.h.b16 %v5109
    %v5443 = vunpack.c.l.b16 %v5110
    %v5444 = vunpack.c.h.b16 %v5110
    %v5445 = vunpack.c.l.b16 %v5111
    %v5446 = vunpack.c.h.b16 %v5111
    %v5447 = vunpack.c.l.b16 %v5112
    %v5448 = vunpack.c.h.b16 %v5112
    %v5449 = vunpack.c.l.b16 %v5113
    %v5450 = vunpack.c.h.b16 %v5113
    %v5451 = vunpack.c.l.b16 %v5114
    %v5452 = vunpack.c.h.b16 %v5114
    %v5453 = vunpack.c.l.b16 %v5115
    %v5454 = vunpack.c.h.b16 %v5115
    %v5455 = vunpack.c.l.b16 %v5116
    %v5456 = vunpack.c.h.b16 %v5116
    %v5457 = vunpack.c.l.b16 %v5117
    %v5458 = vunpack.c.h.b16 %v5117
    %v5459 = vunpack.c.l.b16 %v5118
    %v5460 = vunpack.c.h.b16 %v5118
    %v5461 = vunpack.c.l.b16 %v5119
    %v5462 = vunpack.c.h.b16 %v5119
    %v5463 = vunpack.c.l.b16 %v5120
    %v5464 = vunpack.c.h.b16 %v5120
    %v5465 = vunpack.c.l.b16 %v5121
    %v5466 = vunpack.c.h.b16 %v5121
    %v5467 = vunpack.c.l.b16 %v5122
    %v5468 = vunpack.c.h.b16 %v5122
    %v5469 = vunpack.c.l.b16 %v5123
    %v5470 = vunpack.c.h.b16 %v5123
    %v5471 = vunpack.c.l.b16 %v5124
    %v5472 = vunpack.c.h.b16 %v5124
    %v5473 = vunpack.c.l.b16 %v5125
    %v5474 = vunpack.c.h.b16 %v5125
    %v5475 = vunpack.c.l.b16 %v5126
    %v5476 = vunpack.c.h.b16 %v5126
    %v5477 = vunpack.c.l.b16 %v5127
    %v5478 = vunpack.c.h.b16 %v5127
    %v5479 = vunpack.c.l.b16 %v5128
    %v5480 = vunpack.c.h.b16 %v5128
    %v5481 = vunpack.c.l.b16 %v5129
    %v5482 = vunpack.c.h.b16 %v5129
    %v5483 = vunpack.c.l.b16 %v5130
    %v5484 = vunpack.c.h.b16 %v5130
    %v5485 = vunpack.c.l.b16 %v5131
    %v5486 = vunpack.c.h.b16 %v5131
    %v5487 = vunpack.c.l.b16 %v5132
    %v5488 = vunpack.c.h.b16 %v5132
    %v5489 = vunpack.c.l.b16 %v5133
    %v5490 = vunpack.c.h.b16 %v5133
    %v5491 = vunpack.c.l.b16 %v5134
    %v5492 = vunpack.c.h.b16 %v5134
    %v5493 = vunpack.c.l.b16 %v5135
    %v5494 = vunpack.c.h.b16 %v5135
    %v5495 = vunpack.c.l.b16 %v5136
    %v5496 = vunpack.c.h.b16 %v5136
    %v5497 = vunpack.c.l.b16 %v5137
    %v5498 = vunpack.c.h.b16 %v5137
    %v5499 = vunpack.c.l.b16 %v5138
    %v5500 = vunpack.c.h.b16 %v5138
    %v5501 = vunpack.c.l.b16 %v5139
    %v5502 = vunpack.c.h.b16 %v5139
    %v5503 = vunpack.c.l.b16 %v5140
    %v5504 = vunpack.c.h.b16 %v5140
    %v5505 = vunpack.c.l.b16 %v5141
    %v5506 = vunpack.c.h.b16 %v5141
    %v5507 = vunpack.c.l.b16 %v5142
    %v5508 = vunpack.c.h.b16 %v5142
    %v5509 = vunpack.c.l.b16 %v5143
    %v5510 = vunpack.c.h.b16 %v5143
    %v5511 = vunpack.c.l.b16 %v5144
    %v5512 = vunpack.c.h.b16 %v5144
    %v5513 = vunpack.c.l.b16 %v5145
    %v5514 = vunpack.c.h.b16 %v5145
    %v5515 = vunpack.c.l.b16 %v5146
    %v5516 = vunpack.c.h.b16 %v5146
    %v5517 = vunpack.c.l.b16 %v5147
    %v5518 = vunpack.c.h.b16 %v5147
    %v5519 = vunpack.c.l.b16 %v5148
    %v5520 = vunpack.c.h.b16 %v5148
    %v5521 = vunpack.c.l.b16 %v5149
    %v5522 = vunpack.c.h.b16 %v5149
    %v5523 = vunpack.c.l.b16 %v5150
    %v5524 = vunpack.c.h.b16 %v5150
    %v5525 = vunpack.c.l.b16 %v5151
    %v5526 = vunpack.c.h.b16 %v5151
    %v5527 = vunpack.c.l.b16 %v5152
    %v5528 = vunpack.c.h.b16 %v5152
    %v5529 = vunpack.c.l.b16 %v5153
    %v5530 = vunpack.c.h.b16 %v5153
    %v5531 = vunpack.c.l.b16 %v5154
    %v5532 = vunpack.c.h.b16 %v5154
    %v5533 = vunpack.c.l.b16 %v5155
    %v5534 = vunpack.c.h.b16 %v5155
    %v5535 = vunpack.c.l.b16 %v5156
    %v5536 = vunpack.c.h.b16 %v5156
    %v5537 = vunpack.c.l.b16 %v5157
    %v5538 = vunpack.c.h.b16 %v5157
    %v5539 = vunpack.c.l.b16 %v5158
    %v5540 = vunpack.c.h.b16 %v5158
    %v5541 = vunpack.c.l.b16 %v5159
    %v5542 = vunpack.c.h.b16 %v5159
    %v5543 = vunpack.c.l.b16 %v5160
    %v5544 = vunpack.c.h.b16 %v5160
    %v5545 = vunpack.c.l.b16 %v5161
    %v5546 = vunpack.c.h.b16 %v5161
    %v5547 = vunpack.c.l.b16 %v5162
    %v5548 = vunpack.c.h.b16 %v5162
    %v5549 = vunpack.c.l.b16 %v5163
    %v5550 = vunpack.c.h.b16 %v5163
    %v5551 = vunpack.c.l.b16 %v5164
    %v5552 = vunpack.c.h.b16 %v5164
    %v5553 = vunpack.c.l.b16 %v5165
    %v5554 = vunpack.c.h.b16 %v5165
    %v5555 = vunpack.c.l.b16 %v5166
    %v5556 = vunpack.c.h.b16 %v5166
    %v5557 = vunpack.c.l.b16 %v5167
    %v5558 = vunpack.c.h.b16 %v5167
    %v5559 = vunpack.c.l.b16 %v5168
    %v5560 = vunpack.c.h.b16 %v5168
    %v5561 = vunpack.c.l.b16 %v5169
    %v5562 = vunpack.c.h.b16 %v5169
    %v5563 = vunpack.c.l.b16 %v5170
    %v5564 = vunpack.c.h.b16 %v5170
    %v5565 = vunpack.c.l.b16 %v5171
    %v5566 = vunpack.c.h.b16 %v5171
    %v5567 = vunpack.c.l.b16 %v5172
    %v5568 = vunpack.c.h.b16 %v5172
    %v5569 = vpack.c.b16 %v5315, %v5313
    %v5570 = vpack.c.b16 %v5316, %v5314
    %v5571 = vpack.c.b16 %v5319, %v5317
    %v5572 = vpack.c.b16 %v5320, %v5318
    %v5573 = vpack.c.b16 %v5323, %v5321
    %v5574 = vpack.c.b16 %v5324, %v5322
    %v5575 = vpack.c.b16 %v5327, %v5325
    %v5576 = vpack.c.b16 %v5328, %v5326
    %v5577 = vpack.c.b16 %v5331, %v5329
    %v5578 = vpack.c.b16 %v5332, %v5330
    %v5579 = vpack.c.b16 %v5335, %v5333
    %v5580 = vpack.c.b16 %v5336, %v5334
    %v5581 = vpack.c.b16 %v5339, %v5337
    %v5582 = vpack.c.b16 %v5340, %v5338
    %v5583 = vpack.c.b16 %v5343, %v5341
    %v5584 = vpack.c.b16 %v5344, %v5342
    %v5585 = vpack.c.b16 %v5347, %v5345
    %v5586 = vpack.c.b16 %v5348, %v5346
    %v5587 = vpack.c.b16 %v5351, %v5349
    %v5588 = vpack.c.b16 %v5352, %v5350
    %v5589 = vpack.c.b16 %v5355, %v5353
    %v5590 = vpack.c.b16 %v5356, %v5354
    %v5591 = vpack.c.b16 %v5359, %v5357
    %v5592 = vpack.c.b16 %v5360, %v5358
    %v5593 = vpack.c.b16 %v5363, %v5361
    %v5594 = vpack.c.b16 %v5364, %v5362
    %v5595 = vpack.c.b16 %v5367, %v5365
    %v5596 = vpack.c.b16 %v5368, %v5366
    %v5597 = vpack.c.b16 %v5371, %v5369
    %v5598 = vpack.c.b16 %v5372, %v5370
    %v5599 = vpack.c.b16 %v5375, %v5373
    %v5600 = vpack.c.b16 %v5376, %v5374
    %v5601 = vpack.c.b16 %v5379, %v5377
    %v5602 = vpack.c.b16 %v5380, %v5378
    %v5603 = vpack.c.b16 %v5383, %v5381
    %v5604 = vpack.c.b16 %v5384, %v5382
    %v5605 = vpack.c.b16 %v5387, %v5385
    %v5606 = vpack.c.b16 %v5388, %v5386
    %v5607 = vpack.c.b16 %v5391, %v5389
    %v5608 = vpack.c.b16 %v5392, %v5390
    %v5609 = vpack.c.b16 %v5395, %v5393
    %v5610 = vpack.c.b16 %v5396, %v5394
    %v5611 = vpack.c.b16 %v5399, %v5397
    %v5612 = vpack.c.b16 %v5400, %v5398
    %v5613 = vpack.c.b16 %v5403, %v5401
    %v5614 = vpack.c.b16 %v5404, %v5402
    %v5615 = vpack.c.b16 %v5407, %v5405
    %v5616 = vpack.c.b16 %v5408, %v5406
    %v5617 = vpack.c.b16 %v5411, %v5409
    %v5618 = vpack.c.b16 %v5412, %v5410
    %v5619 = vpack.c.b16 %v5415, %v5413
    %v5620 = vpack.c.b16 %v5416, %v5414
    %v5621 = vpack.c.b16 %v5419, %v5417
    %v5622 = vpack.c.b16 %v5420, %v5418
    %v5623 = vpack.c.b16 %v5423, %v5421
    %v5624 = vpack.c.b16 %v5424, %v5422
    %v5625 = vpack.c.b16 %v5427, %v5425
    %v5626 = vpack.c.b16 %v5428, %v5426
    %v5627 = vpack.c.b16 %v5431, %v5429
    %v5628 = vpack.c.b16 %v5432, %v5430
    %v5629 = vpack.c.b16 %v5435, %v5433
    %v5630 = vpack.c.b16 %v5436, %v5434
    %v5631 = vpack.c.b16 %v5439, %v5437
    %v5632 = vpack.c.b16 %v5440, %v5438
    %v5633 = vpack.c.b16 %v5443, %v5441
    %v5634 = vpack.c.b16 %v5444, %v5442
    %v5635 = vpack.c.b16 %v5447, %v5445
    %v5636 = vpack.c.b16 %v5448, %v5446
    %v5637 = vpack.c.b16 %v5451, %v5449
    %v5638 = vpack.c.b16 %v5452, %v5450
    %v5639 = vpack.c.b16 %v5455, %v5453
    %v5640 = vpack.c.b16 %v5456, %v5454
    %v5641 = vpack.c.b16 %v5459, %v5457
    %v5642 = vpack.c.b16 %v5460, %v5458
    %v5643 = vpack.c.b16 %v5463, %v5461
    %v5644 = vpack.c.b16 %v5464, %v5462
    %v5645 = vpack.c.b16 %v5467, %v5465
    %v5646 = vpack.c.b16 %v5468, %v5466
    %v5647 = vpack.c.b16 %v5471, %v5469
    %v5648 = vpack.c.b16 %v5472, %v5470
    %v5649 = vpack.c.b16 %v5475, %v5473
    %v5650 = vpack.c.b16 %v5476, %v5474
    %v5651 = vpack.c.b16 %v5479, %v5477
    %v5652 = vpack.c.b16 %v5480, %v5478
    %v5653 = vpack.c.b16 %v5483, %v5481
    %v5654 = vpack.c.b16 %v5484, %v5482
    %v5655 = vpack.c.b16 %v5487, %v5485
    %v5656 = vpack.c.b16 %v5488, %v5486
    %v5657 = vpack.c.b16 %v5491, %v5489
    %v5658 = vpack.c.b16 %v5492, %v5490
    %v5659 = vpack.c.b16 %v5495, %v5493
    %v5660 = vpack.c.b16 %v5496, %v5494
    %v5661 = vpack.c.b16 %v5499, %v5497
    %v5662 = vpack.c.b16 %v5500, %v5498
    %v5663 = vpack.c.b16 %v5503, %v5501
    %v5664 = vpack.c.b16 %v5504, %v5502
    %v5665 = vpack.c.b16 %v5507, %v5505
    %v5666 = vpack.c.b16 %v5508, %v5506
    %v5667 = vpack.c.b16 %v5511, %v5509
    %v5668 = vpack.c.b16 %v5512, %v5510
    %v5669 = vpack.c.b16 %v5515, %v5513
    %v5670 = vpack.c.b16 %v5516, %v5514
    %v5671 = vpack.c.b16 %v5519, %v5517
    %v5672 = vpack.c.b16 %v5520, %v5518
    %v5673 = vpack.c.b16 %v5523, %v5521
    %v5674 = vpack.c.b16 %v5524, %v5522
    %v5675 = vpack.c.b16 %v5527, %v5525
    %v5676 = vpack.c.b16 %v5528, %v5526
    %v5677 = vpack.c.b16 %v5531, %v5529
    %v5678 = vpack.c.b16 %v5532, %v5530
    %v5679 = vpack.c.b16 %v5535, %v5533
    %v5680 = vpack.c.b16 %v5536, %v5534
    %v5681 = vpack.c.b16 %v5539, %v5537
    %v5682 = vpack.c.b16 %v5540, %v5538
    %v5683 = vpack.c.b16 %v5543, %v5541
    %v5684 = vpack.c.b16 %v5544, %v5542
    %v5685 = vpack.c.b16 %v5547, %v5545
    %v5686 = vpack.c.b16 %v5548, %v5546
    %v5687 = vpack.c.b16 %v5551, %v5549
    %v5688 = vpack.c.b16 %v5552, %v5550
    %v5689 = vpack.c.b16 %v5555, %v5553
    %v5690 = vpack.c.b16 %v5556, %v5554
    %v5691 = vpack.c.b16 %v5559, %v5557
    %v5692 = vpack.c.b16 %v5560, %v5558
    %v5693 = vpack.c.b16 %v5563, %v5561
    %v5694 = vpack.c.b16 %v5564, %v5562
    %v5695 = vpack.c.b16 %v5567, %v5565
    %v5696 = vpack.c.b16 %v5568, %v5566
    %5825 = vmatprep.subr.bf16.mxu0 %v5570
    %5826 = vmatpush1.bf16.msra.mxu0 %v5569
    %5827 = vmatprep.subr.bf16.mxu0 %v5572
    %5828 = vmatpush1.bf16.msra.mxu0 %v5571
    %5829 = vmatprep.subr.bf16.mxu0 %v5574
    %5830 = vmatpush1.bf16.msra.mxu0 %v5573
    %5831 = vmatprep.subr.bf16.mxu0 %v5576
    %5832 = vmatpush1.bf16.msra.mxu0 %v5575
    %5833 = vmatprep.subr.bf16.mxu0 %v5578
    %5834 = vmatpush1.bf16.msra.mxu0 %v5577
    %5835 = vmatprep.subr.bf16.mxu0 %v5580
    %5836 = vmatpush1.bf16.msra.mxu0 %v5579
    %5837 = vmatprep.subr.bf16.mxu0 %v5582
    %5838 = vmatpush1.bf16.msra.mxu0 %v5581
    %5839 = vmatprep.subr.bf16.mxu0 %v5584
    %5840 = vmatpush1.bf16.msra.mxu0 %v5583
    %5841 = vmatprep.subr.bf16.mxu0 %v5586
    %5842 = vmatpush1.bf16.msra.mxu0 %v5585
    %5843 = vmatprep.subr.bf16.mxu0 %v5588
    %5844 = vmatpush1.bf16.msra.mxu0 %v5587
    %5845 = vmatprep.subr.bf16.mxu0 %v5590
    %5846 = vmatpush1.bf16.msra.mxu0 %v5589
    %5847 = vmatprep.subr.bf16.mxu0 %v5592
    %5848 = vmatpush1.bf16.msra.mxu0 %v5591
    %5849 = vmatprep.subr.bf16.mxu0 %v5594
    %5850 = vmatpush1.bf16.msra.mxu0 %v5593
    %5851 = vmatprep.subr.bf16.mxu0 %v5596
    %5852 = vmatpush1.bf16.msra.mxu0 %v5595
    %5853 = vmatprep.subr.bf16.mxu0 %v5598
    %5854 = vmatpush1.bf16.msra.mxu0 %v5597
    %5855 = vmatprep.subr.bf16.mxu0 %v5600
    %5856 = vmatpush1.bf16.msra.mxu0 %v5599
    %5857 = vmatprep.mubr.bf16.mxu0 %v5038
    %5858 = vmatmul.mubr.bf16.gmra.mrb[0].mxu0 %v5037
    %v5859 = vpop.f32.mrb[0].mxu0
    %v5860 = vadd.f32 %v5178, %v5859
    %v5861 = vpop.f32.mrb[0].mxu0
    %v5862 = vadd.f32 %v5182, %v5861
    %v5863 = vpop.f32.mrb[0].mxu0
    %v5864 = vpop.f32.mrb[0].mxu0
    %5865 = vdwg.mxu0
    %5866 = vmatprep.subr.bf16.mxu0 %v5602
    %5867 = vmatpush1.bf16.msra.mxu0 %v5601
    %5868 = vmatprep.subr.bf16.mxu0 %v5604
    %5869 = vmatpush1.bf16.msra.mxu0 %v5603
    %5870 = vmatprep.subr.bf16.mxu0 %v5606
    %5871 = vmatpush1.bf16.msra.mxu0 %v5605
    %5872 = vmatprep.subr.bf16.mxu0 %v5608
    %5873 = vmatpush1.bf16.msra.mxu0 %v5607
    %5874 = vmatprep.subr.bf16.mxu0 %v5610
    %5875 = vmatpush1.bf16.msra.mxu0 %v5609
    %5876 = vmatprep.subr.bf16.mxu0 %v5612
    %5877 = vmatpush1.bf16.msra.mxu0 %v5611
    %5878 = vmatprep.subr.bf16.mxu0 %v5614
    %5879 = vmatpush1.bf16.msra.mxu0 %v5613
    %5880 = vmatprep.subr.bf16.mxu0 %v5616
    %5881 = vmatpush1.bf16.msra.mxu0 %v5615
    %5882 = vmatprep.subr.bf16.mxu0 %v5618
    %5883 = vmatpush1.bf16.msra.mxu0 %v5617
    %5884 = vmatprep.subr.bf16.mxu0 %v5620
    %5885 = vmatpush1.bf16.msra.mxu0 %v5619
    %5886 = vmatprep.subr.bf16.mxu0 %v5622
    %5887 = vmatpush1.bf16.msra.mxu0 %v5621
    %5888 = vmatprep.subr.bf16.mxu0 %v5624
    %5889 = vmatpush1.bf16.msra.mxu0 %v5623
    %5890 = vmatprep.subr.bf16.mxu0 %v5626
    %5891 = vmatpush1.bf16.msra.mxu0 %v5625
    %5892 = vmatprep.subr.bf16.mxu0 %v5628
    %5893 = vmatpush1.bf16.msra.mxu0 %v5627
    %5894 = vmatprep.subr.bf16.mxu0 %v5630
    %5895 = vmatpush1.bf16.msra.mxu0 %v5629
    %5896 = vmatprep.subr.bf16.mxu0 %v5632
    %5897 = vmatpush1.bf16.msra.mxu0 %v5631
    %5898 = vmatprep.mubr.bf16.mxu0 %v5040
    %5899 = vmatmul.mubr.bf16.gmra.mrb[0].mxu0 %v5039
    %v5900 = vpop.f32.mrb[0].mxu0
    %v5901 = vadd.f32 %v5860, %v5900
    %v5902 = vpop.f32.mrb[0].mxu0
    %v5903 = vadd.f32 %v5862, %v5902
    %v5904 = vpop.f32.mrb[0].mxu0
    %v5905 = vpop.f32.mrb[0].mxu0
    %5906 = vdwg.mxu0
    %5907 = vmatprep.subr.bf16.mxu0 %v5634
    %5908 = vmatpush1.bf16.msra.mxu0 %v5633
    %5909 = vmatprep.subr.bf16.mxu0 %v5636
    %5910 = vmatpush1.bf16.msra.mxu0 %v5635
    %5911 = vmatprep.subr.bf16.mxu0 %v5638
    %5912 = vmatpush1.bf16.msra.mxu0 %v5637
    %5913 = vmatprep.subr.bf16.mxu0 %v5640
    %5914 = vmatpush1.bf16.msra.mxu0 %v5639
    %5915 = vmatprep.subr.bf16.mxu0 %v5642
    %5916 = vmatpush1.bf16.msra.mxu0 %v5641
    %5917 = vmatprep.subr.bf16.mxu0 %v5644
    %5918 = vmatpush1.bf16.msra.mxu0 %v5643
    %5919 = vmatprep.subr.bf16.mxu0 %v5646
    %5920 = vmatpush1.bf16.msra.mxu0 %v5645
    %5921 = vmatprep.subr.bf16.mxu0 %v5648
    %5922 = vmatpush1.bf16.msra.mxu0 %v5647
    %5923 = vmatprep.subr.bf16.mxu0 %v5650
    %5924 = vmatpush1.bf16.msra.mxu0 %v5649
    %5925 = vmatprep.subr.bf16.mxu0 %v5652
    %5926 = vmatpush1.bf16.msra.mxu0 %v5651
    %5927 = vmatprep.subr.bf16.mxu0 %v5654
    %5928 = vmatpush1.bf16.msra.mxu0 %v5653
    %5929 = vmatprep.subr.bf16.mxu0 %v5656
    %5930 = vmatpush1.bf16.msra.mxu0 %v5655
    %5931 = vmatprep.subr.bf16.mxu0 %v5658
    %5932 = vmatpush1.bf16.msra.mxu0 %v5657
    %5933 = vmatprep.subr.bf16.mxu0 %v5660
    %5934 = vmatpush1.bf16.msra.mxu0 %v5659
    %5935 = vmatprep.subr.bf16.mxu0 %v5662
    %5936 = vmatpush1.bf16.msra.mxu0 %v5661
    %5937 = vmatprep.subr.bf16.mxu0 %v5664
    %5938 = vmatpush1.bf16.msra.mxu0 %v5663
    %5939 = vmatprep.mubr.bf16.mxu0 %v5042
    %5940 = vmatmul.mubr.bf16.gmra.mrb[0].mxu0 %v5041
    %v5941 = vpop.f32.mrb[0].mxu0
    %v5942 = vadd.f32 %v5901, %v5941
    %v5943 = vpop.f32.mrb[0].mxu0
    %v5944 = vadd.f32 %v5903, %v5943
    %v5945 = vpop.f32.mrb[0].mxu0
    %v5946 = vpop.f32.mrb[0].mxu0
    %5947 = vdwg.mxu0
    %5948 = vmatprep.subr.bf16.mxu0 %v5666
    %5949 = vmatpush1.bf16.msra.mxu0 %v5665
    %5950 = vmatprep.subr.bf16.mxu0 %v5668
    %5951 = vmatpush1.bf16.msra.mxu0 %v5667
    %5952 = vmatprep.subr.bf16.mxu0 %v5670
    %5953 = vmatpush1.bf16.msra.mxu0 %v5669
    %5954 = vmatprep.subr.bf16.mxu0 %v5672
    %5955 = vmatpush1.bf16.msra.mxu0 %v5671
    %5956 = vmatprep.subr.bf16.mxu0 %v5674
    %5957 = vmatpush1.bf16.msra.mxu0 %v5673
    %5958 = vmatprep.subr.bf16.mxu0 %v5676
    %5959 = vmatpush1.bf16.msra.mxu0 %v5675
    %5960 = vmatprep.subr.bf16.mxu0 %v5678
    %5961 = vmatpush1.bf16.msra.mxu0 %v5677
    %5962 = vmatprep.subr.bf16.mxu0 %v5680
    %5963 = vmatpush1.bf16.msra.mxu0 %v5679
    %5964 = vmatprep.subr.bf16.mxu0 %v5682
    %5965 = vmatpush1.bf16.msra.mxu0 %v5681
    %5966 = vmatprep.subr.bf16.mxu0 %v5684
    %5967 = vmatpush1.bf16.msra.mxu0 %v5683
    %5968 = vmatprep.subr.bf16.mxu0 %v5686
    %5969 = vmatpush1.bf16.msra.mxu0 %v5685
    %5970 = vmatprep.subr.bf16.mxu0 %v5688
    %5971 = vmatpush1.bf16.msra.mxu0 %v5687
    %5972 = vmatprep.subr.bf16.mxu0 %v5690
    %5973 = vmatpush1.bf16.msra.mxu0 %v5689
    %5974 = vmatprep.subr.bf16.mxu0 %v5692
    %5975 = vmatpush1.bf16.msra.mxu0 %v5691
    %5976 = vmatprep.subr.bf16.mxu0 %v5694
    %5977 = vmatpush1.bf16.msra.mxu0 %v5693
    %5978 = vmatprep.subr.bf16.mxu0 %v5696
    %5979 = vmatpush1.bf16.msra.mxu0 %v5695
    %5980 = vmatprep.mubr.bf16.mxu0 %v5044
    %5981 = vmatmul.mubr.bf16.gmra.mrb[0].mxu0 %v5043
    %v5982 = vpop.f32.mrb[0].mxu0
    %v5983 = vadd.f32 %v5942, %v5982
    %v5984 = vpop.f32.mrb[0].mxu0
    %v5985 = vadd.f32 %v5944, %v5984
    %v5986 = vpop.f32.mrb[0].mxu0
    %v5987 = vpop.f32.mrb[0].mxu0
    %5988 = vdwg.mxu0
    %v5989 = vmul.f32 %v5983, 0.01
    %v5990 = vmul.f32 %v5985, 0.01
    %v5991 = vmax.f32 %v5983, %v5989
    %v5992 = vmax.f32 %v5985, %v5990
    %v5993 = vpack.c.bf16 %v5991, %v5991
    %v5994 = vpack.c.bf16 %v5992, %v5992
    %v5995 = vld [vmem:[#allocation17] sm:$0xf]
    %v5996 = vld [vmem:[#allocation17 + $0x4] sm:$0xf]
    %v5997 = vld [vmem:[#allocation17 + $0x8] sm:$0xf]
    %v5998 = vld [vmem:[#allocation17 + $0xc] sm:$0xf]
    %v5999 = vld [vmem:[#allocation17 + $0x10] sm:$0xf]
    %v6000 = vld [vmem:[#allocation17 + $0x14] sm:$0xf]
    %v6001 = vld [vmem:[#allocation17 + $0x18] sm:$0xf]
    %v6002 = vld [vmem:[#allocation17 + $0x1c] sm:$0xf]
    %v6003 = vld [vmem:[#allocation17 + $0x20] sm:$0xf]
    %v6004 = vld [vmem:[#allocation17 + $0x24] sm:$0xf]
    %v6005 = vld [vmem:[#allocation17 + $0x28] sm:$0xf]
    %v6006 = vld [vmem:[#allocation17 + $0x2c] sm:$0xf]
    %v6007 = vld [vmem:[#allocation17 + $0x30] sm:$0xf]
    %v6008 = vld [vmem:[#allocation17 + $0x34] sm:$0xf]
    %v6009 = vld [vmem:[#allocation17 + $0x38] sm:$0xf]
    %v6010 = vld [vmem:[#allocation17 + $0x3c] sm:$0xf]
    %v6011 = vld [vmem:[#allocation17 + $0x40] sm:$0xf]
    %v6012 = vld [vmem:[#allocation17 + $0x44] sm:$0xf]
    %v6013 = vld [vmem:[#allocation17 + $0x48] sm:$0xf]
    %v6014 = vld [vmem:[#allocation17 + $0x4c] sm:$0xf]
    %v6015 = vld [vmem:[#allocation17 + $0x50] sm:$0xf]
    %v6016 = vld [vmem:[#allocation17 + $0x54] sm:$0xf]
    %v6017 = vld [vmem:[#allocation17 + $0x58] sm:$0xf]
    %v6018 = vld [vmem:[#allocation17 + $0x5c] sm:$0xf]
    %v6019 = vld [vmem:[#allocation17 + $0x60] sm:$0xf]
    %v6020 = vld [vmem:[#allocation17 + $0x64] sm:$0xf]
    %v6021 = vld [vmem:[#allocation17 + $0x68] sm:$0xf]
    %v6022 = vld [vmem:[#allocation17 + $0x6c] sm:$0xf]
    %v6023 = vld [vmem:[#allocation17 + $0x70] sm:$0xf]
    %v6024 = vld [vmem:[#allocation17 + $0x74] sm:$0xf]
    %v6025 = vld [vmem:[#allocation17 + $0x78] sm:$0xf]
    %v6026 = vld [vmem:[#allocation17 + $0x7c] sm:$0xf]
    %v6027 = vld [vmem:[#allocation19] sm:$0x1]
    %v6029 = vlaneseq
    %v6030 = vshrl.u32 %v6029, 7
    %v6031 = vsub.s32 0, %v6030
    %v6032 = vrot.slane %v6027, %v6031
    %v6066 = vunpack.c.l.b16 %v5995
    %v6067 = vunpack.c.l.b16 %v5996
    %v6068 = vunpack.c.l.b16 %v5997
    %v6069 = vunpack.c.l.b16 %v5998
    %v6070 = vunpack.c.l.b16 %v5999
    %v6071 = vunpack.c.l.b16 %v6000
    %v6072 = vunpack.c.l.b16 %v6001
    %v6073 = vunpack.c.l.b16 %v6002
    %v6074 = vunpack.c.l.b16 %v6003
    %v6075 = vunpack.c.l.b16 %v6004
    %v6076 = vunpack.c.l.b16 %v6005
    %v6077 = vunpack.c.l.b16 %v6006
    %v6078 = vunpack.c.l.b16 %v6007
    %v6079 = vunpack.c.l.b16 %v6008
    %v6080 = vunpack.c.l.b16 %v6009
    %v6081 = vunpack.c.l.b16 %v6010
    %v6082 = vunpack.c.l.b16 %v6011
    %v6083 = vunpack.c.l.b16 %v6012
    %v6084 = vunpack.c.l.b16 %v6013
    %v6085 = vunpack.c.l.b16 %v6014
    %v6086 = vunpack.c.l.b16 %v6015
    %v6087 = vunpack.c.l.b16 %v6016
    %v6088 = vunpack.c.l.b16 %v6017
    %v6089 = vunpack.c.l.b16 %v6018
    %v6090 = vunpack.c.l.b16 %v6019
    %v6091 = vunpack.c.l.b16 %v6020
    %v6092 = vunpack.c.l.b16 %v6021
    %v6093 = vunpack.c.l.b16 %v6022
    %v6094 = vunpack.c.l.b16 %v6023
    %v6095 = vunpack.c.l.b16 %v6024
    %v6096 = vunpack.c.l.b16 %v6025
    %v6097 = vunpack.c.l.b16 %v6026
    %v6098 = vpack.c.b16 %v6067, %v6066
    %v6099 = vpack.c.b16 %v6069, %v6068
    %v6100 = vpack.c.b16 %v6071, %v6070
    %v6101 = vpack.c.b16 %v6073, %v6072
    %v6102 = vpack.c.b16 %v6075, %v6074
    %v6103 = vpack.c.b16 %v6077, %v6076
    %v6104 = vpack.c.b16 %v6079, %v6078
    %v6105 = vpack.c.b16 %v6081, %v6080
    %v6106 = vpack.c.b16 %v6083, %v6082
    %v6107 = vpack.c.b16 %v6085, %v6084
    %v6108 = vpack.c.b16 %v6087, %v6086
    %v6109 = vpack.c.b16 %v6089, %v6088
    %v6110 = vpack.c.b16 %v6091, %v6090
    %v6111 = vpack.c.b16 %v6093, %v6092
    %v6112 = vpack.c.b16 %v6095, %v6094
    %v6113 = vpack.c.b16 %v6097, %v6096
    %6130 = vmatprep.subr.bf16.mxu0 0
    %6131 = vmatpush1.bf16.msra.mxu0 %v6098
    %6132 = vmatprep.subr.bf16.mxu0 0
    %6133 = vmatpush1.bf16.msra.mxu0 %v6099
    %6134 = vmatprep.subr.bf16.mxu0 0
    %6135 = vmatpush1.bf16.msra.mxu0 %v6100
    %6136 = vmatprep.subr.bf16.mxu0 0
    %6137 = vmatpush1.bf16.msra.mxu0 %v6101
    %6138 = vmatprep.subr.bf16.mxu0 0
    %6139 = vmatpush1.bf16.msra.mxu0 %v6102
    %6140 = vmatprep.subr.bf16.mxu0 0
    %6141 = vmatpush1.bf16.msra.mxu0 %v6103
    %6142 = vmatprep.subr.bf16.mxu0 0
    %6143 = vmatpush1.bf16.msra.mxu0 %v6104
    %6144 = vmatprep.subr.bf16.mxu0 0
    %6145 = vmatpush1.bf16.msra.mxu0 %v6105
    %6146 = vmatprep.subr.bf16.mxu0 0
    %6147 = vmatpush1.bf16.msra.mxu0 %v6106
    %6148 = vmatprep.subr.bf16.mxu0 0
    %6149 = vmatpush1.bf16.msra.mxu0 %v6107
    %6150 = vmatprep.subr.bf16.mxu0 0
    %6151 = vmatpush1.bf16.msra.mxu0 %v6108
    %6152 = vmatprep.subr.bf16.mxu0 0
    %6153 = vmatpush1.bf16.msra.mxu0 %v6109
    %6154 = vmatprep.subr.bf16.mxu0 0
    %6155 = vmatpush1.bf16.msra.mxu0 %v6110
    %6156 = vmatprep.subr.bf16.mxu0 0
    %6157 = vmatpush1.bf16.msra.mxu0 %v6111
    %6158 = vmatprep.subr.bf16.mxu0 0
    %6159 = vmatpush1.bf16.msra.mxu0 %v6112
    %6160 = vmatprep.subr.bf16.mxu0 0
    %6161 = vmatpush1.bf16.msra.mxu0 %v6113
    %6162 = vmatprep.mubr.bf16.mxu0 %v5994
    %6163 = vmatmul.mubr.bf16.gmra.mrb[0].mxu0 %v5993
    %v6164 = vpop.f32.mrb[0].mxu0
    %v6165 = vadd.f32 %v6032, %v6164
    %v6166 = vpop.f32.mrb[0].mxu0
    %v6167 = vpop.f32.mrb[0].mxu0
    %v6168 = vpop.f32.mrb[0].mxu0
    %6169 = vdwg.mxu0
    %6170 = vst [vmem:[#allocation20] sm:$0xff] %v6165
    // Predicated region
    $region90: #{tpu_custom_call.1} parent=1 // pred_check
      _
    $region91: #{tpu_custom_call.1} parent=1 // pred_check_branch
      %6172 = sbr.rel (0) target = $region93
    $region92: #{tpu_custom_call.1} parent=1 // pred_region
      %s6174 = ssub.s32 128, 128
      %6175 = vsyncadd [#allocation4], %s6174
      %s6177 = sshll.u32 [#allocation20], 4
      %s6178 = int_to_ptr.vmem [resolvable:$true] %s6177
      %6180 = dma.vmem_to_hbm [thread:$0]  %s6178, 128, %s11, [#allocation4]
    $region93: #{tpu_custom_call.1} parent=1 // pred_fallthru
      _
    // Predicated region
    $region94: #{tpu_custom_call.1} parent=1 // pred_check
      _
    $region95: #{tpu_custom_call.1} parent=1 // pred_check_branch
      %6182 = sbr.rel (0) target = $region97
    $region96: #{tpu_custom_call.1} parent=1 // pred_region
      %6183 = dma.done [#allocation4], 128
    $region97: #{tpu_custom_call.1} parent=1 // pred_fallthru
      _
    %6184 = vsyncpa [#allocation3], 1
    %6185 = vsyncpa [#allocation6], 1
    %6186 = vsyncpa [#allocation9], 1
    %6187 = vsyncpa [#allocation12], 1
    %6188 = vsyncpa [#allocation15], 1
    %6189 = vsyncpa [#allocation18], 1
    %6190 = vsyncpa [#allocation4], 1

</llo_original>
